<compile_context>
chip_gen: v5e
topology: v5e:2x2
jax: 0.10.0
libtpu: 0.0.40
codegen_flags: <defaults>
</compile_context>

<pallas_src>
import functools

import numpy as np

import jax
import jax.numpy as jnp
from jax import lax
from jax.experimental import pallas as pl
from jax.experimental.pallas import tpu as pltpu


# ---------------------------------------------------------------------------
# Small helpers
# ---------------------------------------------------------------------------
def _round_up(x, m):
    return ((x + m - 1) // m) * m


def _pick_rows_tile(r, max_tile):
    """16-aligned row tile; prefer >=2 grid blocks so v7x megacore can split."""
    rp = _round_up(r, 16)
    tr = min(_round_up(max_tile, 16), rp)
    if rp // tr < 2 and rp >= 32:
        tr = _round_up(pl.cdiv(rp, 2), 16)
    rp = _round_up(rp, tr)
    return tr, rp


def _pick_bh_tile(bh, wl, target_rows):
    tb = max(1, min(bh, max(1, target_rows // max(wl, 1))))
    if bh // tb < 2 and bh >= 2:
        tb = pl.cdiv(bh, 2)
    bhp = _round_up(bh, tb)
    return tb, bhp


def _pad_rows_to(x, rp):
    r = x.shape[0]
    if r == rp:
        return x
    pad = [(0, rp - r)] + [(0, 0)] * (x.ndim - 1)
    return jnp.pad(x, pad)


def _compiler_params():
    # explicit budget: fits comfortably on v7x (64 MiB physical / 32 MiB scoped default)
    return pltpu.CompilerParams(
        dimension_semantics=("parallel",),
        vmem_limit_bytes=48 * 1024 * 1024,
    )


def _conv_w_to_mat(w):
    """torch OIHW conv weight -> (Cin*kh*kw, Cout) matrix matching c-major patches."""
    return w.reshape(w.shape[0], -1).T


# ---------------------------------------------------------------------------
# Kernel A: fused UpScale branches (mask conv3x3->ReLU->1x1  ||  fea conv3x3->ReLU->1x1)
# Both branches read the same im2col rows once; W1 is concatenated, W2 is block-diagonal,
# output is one lane-dense 256-wide slab: [mask logits (144) | fea (32) | pad].
# Runs at 1/16 resolution -> keep HIGHEST precision here (near-exact trans_fea anchor);
# the full-resolution tail kernel uses DEFAULT MXU precision.
# ---------------------------------------------------------------------------
def _branches_kernel(x_ref, w1_ref, b1_ref, w2_ref, b2_ref, out_ref):
    h = jnp.maximum(
        jnp.dot(x_ref[...], w1_ref[...], preferred_element_type=jnp.float32,
                precision=lax.Precision.HIGHEST) + b1_ref[...], 0.0)
    y = jnp.dot(h, w2_ref[...], preferred_element_type=jnp.float32,
                precision=lax.Precision.HIGHEST) + b2_ref[...]
    out_ref[...] = y.astype(out_ref.dtype)


def upscale_branches(rows, w1, b1, w2, b2, *, tile_rows=512):
    r, cin = rows.shape
    nh, nout = w1.shape[1], w2.shape[1]
    tr, rp = _pick_rows_tile(r, tile_rows)
    xp = _pad_rows_to(rows, rp)
    out = pl.pallas_call(
        _branches_kernel,
        out_shape=jax.ShapeDtypeStruct((rp, nout), jnp.float32),
        grid=(rp // tr,),
        in_specs=[
            pl.BlockSpec((tr, cin), lambda i: (i, 0)),
            pl.BlockSpec((cin, nh), lambda i: (0, 0)),
            pl.BlockSpec((1, nh), lambda i: (0, 0)),
            pl.BlockSpec((nh, nout), lambda i: (0, 0)),
            pl.BlockSpec((1, nout), lambda i: (0, 0)),
        ],
        out_specs=pl.BlockSpec((tr, nout), lambda i: (i, 0)),
        compiler_params=_compiler_params(),
    )(xp, w1, b1.reshape(1, -1), w2, b2.reshape(1, -1))
    return out[:r]


# ---------------------------------------------------------------------------
# Kernel B: CARAFE reassembly.  One tile = a group of whole low-res rows.
# Softmax over the 9 taps is done on 16-lane slabs (VPU max/add chains, approx recip).
# For every fy the (k,fx) weights are expanded to a lane-dense (rows, 9*fx*C) slab with
# ONE small 0/1 matmul, multiplied against the tap-tiled fea patches and slab-reduced.
# Output blocks are written directly in NHWC order: (bh, fy, wl, fx*C) reshapes to
# (B, H, W, C) for free -> no wrapper transpose, lane-dense 128-wide stores.
# ---------------------------------------------------------------------------
def _carafe_kernel(br_ref, fp_ref, ex_ref, out_ref, *, kk, fy_n, fx_n, cout):
    ups = fy_n * fx_n
    x = br_ref[...]                                   # (tb, wl, 256)
    p = fp_ref[...]                                   # (tb, wl, kk*cout)
    tb, wl = x.shape[0], x.shape[1]
    rows = tb * wl
    x2 = x.reshape(rows, x.shape[2])
    p2 = p.reshape(rows, kk * cout)

    # per-tap 16-lane logit slabs; softmax over taps shared by all 16 sub-pixels
    slabs = [x2[:, k * ups:(k + 1) * ups] for k in range(kk)]
    m = slabs[0]
    for k in range(1, kk):
        m = jnp.maximum(m, slabs[k])
    es = [jnp.exp(slabs[k] - m) for k in range(kk)]
    den = es[0]
    for k in range(1, kk):
        den = den + es[k]
    inv = pl.reciprocal(den, approx=True)
    soft = [es[k] * inv for k in range(kk)]           # (rows, ups) each

    # fea patch taps tiled across fx (lane pattern fx*cout + c), built once per tile
    p_tiled = [jnp.concatenate([p2[:, k * cout:(k + 1) * cout]] * fx_n, axis=-1)
               for k in range(kk)]
    pbig = jnp.concatenate(p_tiled, axis=-1)          # (rows, kk*fx_n*cout), vreg-aligned

    for fy in range(fy_n):
        w36 = jnp.concatenate(
            [soft[k][:, fy * fx_n:(fy + 1) * fx_n] for k in range(kk)], axis=-1)
        wbig = jnp.dot(w36, ex_ref[...], preferred_element_type=jnp.float32)
        prod = wbig * pbig
        acc = prod[:, 0:fx_n * cout]
        for k in range(1, kk):
            acc = acc + prod[:, k * fx_n * cout:(k + 1) * fx_n * cout]
        out_ref[:, fy, :, :] = acc.reshape(tb, wl, fx_n * cout).astype(out_ref.dtype)


def _carafe_expand_matrix(kk, fx_n, cout):
    ex = np.zeros((kk * fx_n, kk * fx_n * cout), np.float32)
    for kpos in range(kk):
        for fxi in range(fx_n):
            r = kpos * fx_n + fxi
            c0 = kpos * fx_n * cout + fxi * cout
            ex[r, c0:c0 + cout] = 1.0
    return jnp.asarray(ex)


def carafe_upsample(branch_slab, fea_patches, ex, *, kk, fy_n, fx_n, cout,
                    target_rows=256):
    bh, wl, width = branch_slab.shape
    tb, bhp = _pick_bh_tile(bh, wl, target_rows)
    bs = _pad_rows_to(branch_slab, bhp)
    fp = _pad_rows_to(fea_patches, bhp)
    out = pl.pallas_call(
        functools.partial(_carafe_kernel, kk=kk, fy_n=fy_n, fx_n=fx_n, cout=cout),
        out_shape=jax.ShapeDtypeStruct((bhp, fy_n, wl, fx_n * cout), jnp.float32),
        grid=(bhp // tb,),
        in_specs=[
            pl.BlockSpec((tb, wl, width), lambda i: (i, 0, 0)),
            pl.BlockSpec((tb, wl, kk * cout), lambda i: (i, 0, 0)),
            pl.BlockSpec(ex.shape, lambda i: (0, 0)),
        ],
        out_specs=pl.BlockSpec((tb, fy_n, wl, fx_n * cout), lambda i: (i, 0, 0, 0)),
        compiler_params=_compiler_params(),
    )(bs, fp, ex)
    return out[:bh]


# ---------------------------------------------------------------------------
# Kernel C: fused tail — detail/bias/middle heads (one matmul pair with concatenated
# W1 and block-diagonal W2), 32-lane-aligned group softmax, dynamic-filter assembly
# via one group-sum matmul, and the moire head, all in a single row-tiled pass.
# Outputs: [detail_fea(12) | moire(1) | pad] (16 lanes) and the softmaxed detail_conv
# weights as a lane-dense 128-wide slab.
# ---------------------------------------------------------------------------
def _tail_kernel(t_ref, p_ref, w1_ref, b1_ref, w2_ref, b2_ref,
                 g4_ref, g4t_ref, gsum_ref, mw1_ref, mb1_ref, mw2_ref, mb2_ref,
                 main_ref, soft_ref, *, c_det, kk_pad):
    nl = c_det * kk_pad
    x = jnp.maximum(t_ref[...], 0.0)                  # shared pre-ReLU of the 3 heads
    h = jnp.maximum(
        jnp.dot(x, w1_ref[...], preferred_element_type=jnp.float32) + b1_ref[...], 0.0)
    y = jnp.dot(h, w2_ref[...], preferred_element_type=jnp.float32) + b2_ref[...]

    logits = y[:, :nl]                                # cd-groups at 32-lane boundaries
    bias12 = y[:, nl:nl + 3 * c_det]
    mid12 = y[:, nl + kk_pad:nl + kk_pad + 3 * c_det]

    # grouped softmax over the 25 taps (padded to 32 aligned lanes; pad bias = -1e30)
    e_parts = []
    for cd in range(c_det):
        lg = logits[:, cd * kk_pad:(cd + 1) * kk_pad]
        mg = jnp.max(lg, axis=-1, keepdims=True)
        e_parts.append(jnp.exp(lg - mg))
    e = jnp.concatenate(e_parts, axis=-1)             # (TR, nl)
    den = jnp.dot(e, g4_ref[...], preferred_element_type=jnp.float32)       # (TR, c_det)
    inv = pl.reciprocal(den, approx=True)
    soft = e * jnp.dot(inv, g4t_ref[...], preferred_element_type=jnp.float32)
    soft_ref[...] = soft.astype(soft_ref.dtype)

    # dynamic-filter weighted sum: tile each image-channel patch group across the
    # c_det groups and reduce every (ci, cd) pair with ONE group-sum matmul.
    pimg = p_ref[...].astype(jnp.float32)             # bf16 in HBM, f32 compute
    c_img = pimg.shape[-1] // kk_pad
    prods = []
    for ci in range(c_img):
        g = pimg[:, ci * kk_pad:(ci + 1) * kk_pad]
        prods.append(jnp.concatenate([g] * c_det, axis=-1) * soft)
    prod = jnp.concatenate(prods, axis=-1)            # (TR, c_img*nl), vreg-aligned
    detail = jnp.dot(prod, gsum_ref[...], preferred_element_type=jnp.float32) + bias12

    # moire head on cat([detail_fea, middle_fea])
    fea = jnp.maximum(jnp.concatenate([detail, mid12], axis=-1), 0.0)
    hm = jnp.maximum(
        jnp.dot(fea, mw1_ref[...], preferred_element_type=jnp.float32) + mb1_ref[...], 0.0)
    moire = jnp.dot(hm, mw2_ref[...], preferred_element_type=jnp.float32) + mb2_ref[...]

    pieces = [detail, moire]
    padw = main_ref.shape[-1] - (3 * c_det + 1)
    if padw:
        pieces.append(jnp.zeros((detail.shape[0], padw), jnp.float32))
    main_ref[...] = jnp.concatenate(pieces, axis=-1).astype(main_ref.dtype)


def fused_tail(trans_rows, img_patches, pk, *, c_det, kk_pad, tile_rows=1024):
    r, up_c = trans_rows.shape
    pcols = img_patches.shape[1]
    nl = c_det * kk_pad
    main_w = _round_up(3 * c_det + 1, 8)
    tr, rp = _pick_rows_tile(r, tile_rows)
    t = _pad_rows_to(trans_rows, rp)
    p = _pad_rows_to(img_patches, rp)
    main, soft = pl.pallas_call(
        functools.partial(_tail_kernel, c_det=c_det, kk_pad=kk_pad),
        out_shape=(jax.ShapeDtypeStruct((rp, main_w), jnp.float32),
                   jax.ShapeDtypeStruct((rp, nl), jnp.float32)),
        grid=(rp // tr,),
        in_specs=[
            pl.BlockSpec((tr, up_c), lambda i: (i, 0)),
            pl.BlockSpec((tr, pcols), lambda i: (i, 0)),
            pl.BlockSpec(pk["w1"].shape, lambda i: (0, 0)),
            pl.BlockSpec((1, pk["b1"].shape[0]), lambda i: (0, 0)),
            pl.BlockSpec(pk["w2"].shape, lambda i: (0, 0)),
            pl.BlockSpec((1, pk["b2"].shape[0]), lambda i: (0, 0)),
            pl.BlockSpec(pk["g4"].shape, lambda i: (0, 0)),
            pl.BlockSpec(pk["g4t"].shape, lambda i: (0, 0)),
            pl.BlockSpec(pk["gsum"].shape, lambda i: (0, 0)),
            pl.BlockSpec(pk["mw1"].shape, lambda i: (0, 0)),
            pl.BlockSpec((1, pk["mb1"].shape[0]), lambda i: (0, 0)),
            pl.BlockSpec(pk["mw2"].shape, lambda i: (0, 0)),
            pl.BlockSpec((1, pk["mb2"].shape[0]), lambda i: (0, 0)),
        ],
        out_specs=(pl.BlockSpec((tr, main_w), lambda i: (i, 0)),
                   pl.BlockSpec((tr, nl), lambda i: (i, 0))),
        compiler_params=_compiler_params(),
    )(t, p, pk["w1"], pk["b1"].reshape(1, -1), pk["w2"], pk["b2"].reshape(1, -1),
      pk["g4"], pk["g4t"], pk["gsum"], pk["mw1"], pk["mb1"].reshape(1, -1),
      pk["mw2"], pk["mb2"].reshape(1, -1))
    return main[:r], soft[:r]


# ---------------------------------------------------------------------------
# Wrapper-side layout glue (im2col / unfold, weight packing).
# TODO(synk): the 5x5/3x3 im2col could be fused into the kernels with halo DMA.
# ---------------------------------------------------------------------------
def _unfold_nchw(x, k, pad):
    """torch F.unfold: (B,C,H,W) -> (B, C*k*k, H*W), channel = c*k*k + (dy*k+dx)."""
    b, c, h, w = x.shape
    xp = jnp.pad(x, ((0, 0), (0, 0), (pad, pad), (pad, pad)))
    cols = jnp.stack([xp[:, :, dy:dy + h, dx:dx + w]
                      for dy in range(k) for dx in range(k)], axis=2)
    return cols.reshape(b, c * k * k, h * w)


def _patches_rows_cmajor(x_nchw, k, pad):
    """(B,C,H,W) -> (B*H*W, C*k*k), lane = c*k*k + kpos (matches torch unfold)."""
    b, c, h, w = x_nchw.shape
    u = _unfold_nchw(x_nchw, k, pad)
    return u.transpose(0, 2, 1).reshape(b * h * w, c * k * k)


def _patches_rows_kmajor_nhwc(x_nhwc, k, pad):
    """(B,H,W,C) -> (B*H*W, k*k*C), lane = kpos*C + c."""
    b, h, w, c = x_nhwc.shape
    xp = jnp.pad(x_nhwc, ((0, 0), (pad, pad), (pad, pad), (0, 0)))
    pat = jnp.stack([xp[:, dy:dy + h, dx:dx + w, :]
                     for dy in range(k) for dx in range(k)], axis=3)
    return pat.reshape(b * h * w, k * k * c)


def _pack_upscale_weights(p, *, fy, fx, up_c):
    m_w1 = _conv_w_to_mat(p["up_mask_w1"])
    f_w1 = _conv_w_to_mat(p["up_fea_w1"])
    feat = m_w1.shape[1]
    w1 = jnp.concatenate([m_w1, f_w1], axis=1)
    b1 = jnp.concatenate([p["up_mask_b1"], p["up_fea_b1"]])
    mask_lanes = fy * fx * 9
    width = _round_up(mask_lanes + up_c, 128)
    w2 = jnp.zeros((2 * feat, width), jnp.float32)
    w2 = w2.at[0:feat, 0:mask_lanes].set(_conv_w_to_mat(p["up_mask_w2"]))
    w2 = w2.at[feat:2 * feat, mask_lanes:mask_lanes + up_c].set(_conv_w_to_mat(p["up_fea_w2"]))
    b2 = jnp.zeros((width,), jnp.float32)
    b2 = b2.at[0:mask_lanes].set(p["up_mask_b2"])
    b2 = b2.at[mask_lanes:mask_lanes + up_c].set(p["up_fea_b2"])
    return w1, b1, w2, b2, mask_lanes, width


def _pack_tail_weights(p, *, c_det, kk, kk_pad, hid=64):
    w1 = jnp.concatenate([_conv_w_to_mat(p["dc_w1"]), _conv_w_to_mat(p["db_w1"]),
                          _conv_w_to_mat(p["mf_w1"])], axis=1)
    b1 = jnp.concatenate([p["dc_b1"], p["db_b1"], p["mf_b1"]])
    nl = c_det * kk_pad
    nout = 2 * nl
    w2 = jnp.zeros((3 * hid, nout), jnp.float32)
    b2 = jnp.zeros((nout,), jnp.float32)
    dc2 = _conv_w_to_mat(p["dc_w2"])
    for cd in range(c_det):
        w2 = w2.at[0:hid, cd * kk_pad:cd * kk_pad + kk].set(dc2[:, cd * kk:(cd + 1) * kk])
        b2 = b2.at[cd * kk_pad:cd * kk_pad + kk].set(p["dc_b2"][cd * kk:(cd + 1) * kk])
        b2 = b2.at[cd * kk_pad + kk:(cd + 1) * kk_pad].set(-1e30)   # pad taps -> exp = 0
    w2 = w2.at[hid:2 * hid, nl:nl + 3 * c_det].set(_conv_w_to_mat(p["db_w2"]))
    b2 = b2.at[nl:nl + 3 * c_det].set(p["db_b2"])
    w2 = w2.at[2 * hid:3 * hid, nl + kk_pad:nl + kk_pad + 3 * c_det].set(_conv_w_to_mat(p["mf_w2"]))
    b2 = b2.at[nl + kk_pad:nl + kk_pad + 3 * c_det].set(p["mf_b2"])

    g4 = np.zeros((nl, c_det), np.float32)
    for cd in range(c_det):
        g4[cd * kk_pad:(cd + 1) * kk_pad, cd] = 1.0
    gsum = np.zeros((3 * nl, 3 * c_det), np.float32)
    for ci in range(3):
        for cd in range(c_det):
            r0 = ci * nl + cd * kk_pad
            gsum[r0:r0 + kk_pad, ci * c_det + cd] = 1.0

    return {
        "w1": w1, "b1": b1, "w2": w2, "b2": b2,
        "g4": jnp.asarray(g4), "g4t": jnp.asarray(g4.T), "gsum": jnp.asarray(gsum),
        "mw1": _conv_w_to_mat(p["mh_w1"]), "mb1": p["mh_b1"],
        "mw2": _conv_w_to_mat(p["mh_w2"]), "mb2": p["mh_b2"],
    }


# ---------------------------------------------------------------------------
# Forward (Pallas path), feature-last / NHWC throughout.
# ---------------------------------------------------------------------------
def triple_branch_tail_forward(x_nchw, trans_in_nchw, params, *, k=5, c_det=4,
                               fy=4, fx=4):
    b, _, img_h, img_w = x_nchw.shape
    _, _, hl, wl = trans_in_nchw.shape
    kk = k * k
    kk_pad = 32
    up_c = params["up_fea_w2"].shape[0]

    # ---- UpScale branches (fused mask + fea) ----
    up_rows = _patches_rows_cmajor(trans_in_nchw, 3, 1)              # (R_lo, Cin*9)
    w1c, b1c, w2c, b2c, mask_lanes, width = _pack_upscale_weights(
        params, fy=fy, fx=fx, up_c=up_c)
    branch = upscale_branches(up_rows, w1c, b1c, w2c, b2c)           # (R_lo, 256)

    # ---- CARAFE reassembly (writes NHWC-ordered lane-dense blocks) ----
    branch3 = branch.reshape(b * hl, wl, width)
    fea_nhwc = branch.reshape(b, hl, wl, width)[..., mask_lanes:mask_lanes + up_c]
    fea_patches = _patches_rows_kmajor_nhwc(fea_nhwc, 3, 1).reshape(b * hl, wl, 9 * up_c)
    ex = _carafe_expand_matrix(9, fx, up_c)
    up_out = carafe_upsample(branch3, fea_patches, ex, kk=9, fy_n=fy, fx_n=fx, cout=up_c)
    trans_fea = up_out.reshape(b, hl * fy, wl * fx, up_c)            # NHWC, free reshape
    # TODO(synk): bicubic F.interpolate fallback (hl*fy != img_H) not implemented.
    assert trans_fea.shape[1] == img_h and trans_fea.shape[2] == img_w
    trans_rows = trans_fea.reshape(b * img_h * img_w, up_c)

    # ---- fused detail/bias/middle heads + KPN + moire head ----
    pat = _patches_rows_cmajor(x_nchw, k, (k - 1) // 2).reshape(-1, 3, kk)
    pat = jnp.pad(pat, ((0, 0), (0, 0), (0, kk_pad - kk)))           # 32-lane aligned taps
    img_patches = pat.reshape(-1, 3 * kk_pad).astype(jnp.bfloat16)   # bf16 HBM storage
    pk = _pack_tail_weights(params, c_det=c_det, kk=kk, kk_pad=kk_pad)
    main, soft = fused_tail(trans_rows, img_patches, pk, c_det=c_det, kk_pad=kk_pad)

    detail_fea = main[:, :3 * c_det].reshape(b, img_h, img_w, 3 * c_det)
    moire_density = main[:, 3 * c_det:3 * c_det + 1].reshape(b, img_h, img_w, 1)
    detail_conv = soft.reshape(b, img_h, img_w, c_det, kk_pad)[..., :kk]
    fea_loss = jnp.mean(moire_density) * 0.0

    return {
        "moire_density": moire_density,
        "detail_conv": detail_conv,
        "detail_fea": detail_fea,
        "trans_fea": trans_fea,
        "fea_loss": fea_loss,
    }


# ---------------------------------------------------------------------------
# Pure-JAX reference (direct transliteration of the torch ops, NCHW).
# ---------------------------------------------------------------------------
def _conv_ref(x, w, b, pad):
    y = lax.conv_general_dilated(x, w, (1, 1), [(pad, pad), (pad, pad)],
                                 dimension_numbers=("NCHW", "OIHW", "NCHW"),
                                 precision=lax.Precision.HIGHEST)
    return y + b.reshape(1, -1, 1, 1)


def _head_ref(x, w1, b1, w2, b2):
    y = jax.nn.relu(x)
    y = _conv_ref(y, w1, b1, 0)
    y = jax.nn.relu(y)
    return _conv_ref(y, w2, b2, 0)


def reference_forward(x, trans_in, params, *, k=5, c_det=4, fy=4, fx=4):
    n, _, hl, wl = trans_in.shape
    mask = _conv_ref(trans_in, params["up_mask_w1"], params["up_mask_b1"], 1)
    mask = _conv_ref(jax.nn.relu(mask), params["up_mask_w2"], params["up_mask_b2"], 0)
    fea = _conv_ref(trans_in, params["up_fea_w1"], params["up_fea_b1"], 1)
    fea = _conv_ref(jax.nn.relu(fea), params["up_fea_w2"], params["up_fea_b2"], 0)
    out_c = fea.shape[1]
    mask = jax.nn.softmax(mask.reshape(n, 1, 9, fy, fx, hl, wl), axis=2)
    feap = _unfold_nchw(fea, 3, 1).reshape(n, out_c, 9, 1, 1, hl, wl)
    up = jnp.sum(mask * feap, axis=2)
    trans_fea = up.transpose(0, 1, 4, 2, 5, 3).reshape(n, out_c, fy * hl, fx * wl)

    b, _, h, w = trans_fea.shape
    dconv = _head_ref(trans_fea, params["dc_w1"], params["dc_b1"],
                      params["dc_w2"], params["dc_b2"])
    dconv = jax.nn.softmax(dconv.reshape(b, 1, c_det, k * k, h, w), axis=3)
    unfold_img = _unfold_nchw(x, k, (k - 1) // 2).reshape(b, 3, 1, k * k, h, w)
    detail_fea = jnp.sum(unfold_img * dconv, axis=3).reshape(b, 3 * c_det, h, w)
    detail_fea = detail_fea + _head_ref(trans_fea, params["db_w1"], params["db_b1"],
                                        params["db_w2"], params["db_b2"])
    mid = _head_ref(trans_fea, params["mf_w1"], params["mf_b1"],
                    params["mf_w2"], params["mf_b2"])
    md = _head_ref(jnp.concatenate([detail_fea, mid], axis=1),
                   params["mh_w1"], params["mh_b1"], params["mh_w2"], params["mh_b2"])
    return {"moire_density": md, "detail_conv": dconv[:, 0],
            "detail_fea": detail_fea, "trans_fea": trans_fea}


def _make_params(key, *, cin_up=16, feat_c=32, up_out_c=32, c_det=4, k=5, fy=4, fx=4):
    keys = iter(jax.random.split(key, 24))

    def conv_w(cout, cin, kh, kw):
        return jax.random.normal(next(keys), (cout, cin, kh, kw), jnp.float32) \
            / jnp.sqrt(cin * kh * kw)

    def bias(c):
        return 0.05 * jax.random.normal(next(keys), (c,), jnp.float32)

    p = {}
    p["up_mask_w1"], p["up_mask_b1"] = conv_w(feat_c, cin_up, 3, 3), bias(feat_c)
    p["up_mask_w2"], p["up_mask_b2"] = conv_w(fy * fx * 9, feat_c, 1, 1), bias(fy * fx * 9)
    p["up_fea_w1"], p["up_fea_b1"] = conv_w(feat_c, cin_up, 3, 3), bias(feat_c)
    p["up_fea_w2"], p["up_fea_b2"] = conv_w(up_out_c, feat_c, 1, 1), bias(up_out_c)
    p["dc_w1"], p["dc_b1"] = conv_w(64, up_out_c, 1, 1), bias(64)
    p["dc_w2"], p["dc_b2"] = conv_w(k * k * c_det, 64, 1, 1), bias(k * k * c_det)
    p["db_w1"], p["db_b1"] = conv_w(64, up_out_c, 1, 1), bias(64)
    p["db_w2"], p["db_b2"] = conv_w(3 * c_det, 64, 1, 1), bias(3 * c_det)
    p["mf_w1"], p["mf_b1"] = conv_w(64, up_out_c, 1, 1), bias(64)
    p["mf_w2"], p["mf_b2"] = conv_w(3 * c_det, 64, 1, 1), bias(3 * c_det)
    p["mh_w1"], p["mh_b1"] = conv_w(32, 6 * c_det, 1, 1), bias(32)
    p["mh_w2"], p["mh_b2"] = conv_w(1, 32, 1, 1), bias(1)
    return p


if __name__ == "__main__":
    key = jax.random.PRNGKey(0)
    k_p, k_x, k_t = jax.random.split(key, 3)

    B, IMG = 2, 16
    HL = WL = 4            # UpScale input spatial; 4x upscale -> 16x16 == image size
    CIN_UP = 16            # stand-in for cat([moire_fea, min_trans_fea]) channels
    C_DET, K = 4, 5

    params = _make_params(k_p, cin_up=CIN_UP, c_det=C_DET, k=K)
    x = jax.random.normal(k_x, (B, 3, IMG, IMG), jnp.float32)
    trans_in = jax.random.normal(k_t, (B, CIN_UP, HL, WL), jnp.float32)

    fwd = jax.jit(functools.partial(triple_branch_tail_forward,
                                    k=K, c_det=C_DET, fy=4, fx=4))
    out = fwd(x, trans_in, params)
    out = jax.block_until_ready(out)

    ref = reference_forward(x, trans_in, params, k=K, c_det=C_DET, fy=4, fx=4)

    def nchw(t):  # NHWC -> NCHW only for the comparison
        return jnp.transpose(t, (0, 3, 1, 2))

    checks = [
        (nchw(out["trans_fea"]), ref["trans_fea"]),
        (nchw(out["detail_fea"]), ref["detail_fea"]),
        (nchw(out["moire_density"]), ref["moire_density"]),
        (jnp.transpose(out["detail_conv"], (0, 3, 4, 1, 2)), ref["detail_conv"]),
    ]
    for got, want in checks:
        assert got.shape == want.shape, (got.shape, want.shape)
        # tolerance covers DEFAULT-precision MXU rounding, bf16 patch storage and
        # the approximate softmax reciprocal
        assert jnp.allclose(got, want, atol=2e-2, rtol=2e-2), \
            float(jnp.max(jnp.abs(got - want)))
    assert float(out["fea_loss"]) == 0.0

    print("KERNEL_OK")
</pallas_src>

<mosaic_0001>
module attributes {stable_mosaic.version = 11 : i64} {
  func.func @_branches_kernel(%arg0: i32, %arg1: memref<16x144xf32, #tpu.memory_space<vmem>>, %arg2: memref<144x64xf32, #tpu.memory_space<vmem>>, %arg3: memref<1x64xf32, #tpu.memory_space<vmem>>, %arg4: memref<64x256xf32, #tpu.memory_space<vmem>>, %arg5: memref<1x256xf32, #tpu.memory_space<vmem>>, %arg6: memref<16x256xf32, #tpu.memory_space<vmem>>) attributes {dimension_semantics = [#tpu.dimension_semantics<parallel>], iteration_bounds = array<i64: 2>, scalar_prefetch = 0 : i64, scratch_operands = 0 : i64, tpu.core_type = #tpu.core_type<tc>, window_params = [{transform_indices = @transform_0, window_bounds = array<i64: 16, 144>}, {pipeline_mode = #tpu.pipeline_mode<synchronous>, transform_indices = @transform_1, window_bounds = array<i64: 144, 64>}, {pipeline_mode = #tpu.pipeline_mode<synchronous>, transform_indices = @transform_2, window_bounds = array<i64: 1, 64>}, {pipeline_mode = #tpu.pipeline_mode<synchronous>, transform_indices = @transform_3, window_bounds = array<i64: 64, 256>}, {pipeline_mode = #tpu.pipeline_mode<synchronous>, transform_indices = @transform_4, window_bounds = array<i64: 1, 256>}, {transform_indices = @transform_5, window_bounds = array<i64: 16, 256>}]} {
    %c0 = arith.constant 0 : index
    %c0_0 = arith.constant 0 : index
    %0 = vector.load %arg1[%c0, %c0_0] : memref<16x144xf32, #tpu.memory_space<vmem>>, vector<16x144xf32>
    %c0_1 = arith.constant 0 : index
    %c0_2 = arith.constant 0 : index
    %1 = vector.load %arg2[%c0_1, %c0_2] : memref<144x64xf32, #tpu.memory_space<vmem>>, vector<144x64xf32>
    %cst = arith.constant dense<0.000000e+00> : vector<16x64xf32>
    %2 = tpu.matmul %0, %1, %cst {dimension_numbers = #tpu.dot_dimension_numbers<[1], [0], [0], [1], [0, 0, 1, 1], [], []>, precision = #tpu.contract_precision<fp32>} : vector<16x144xf32>, vector<144x64xf32>, vector<16x64xf32> -> vector<16x64xf32>
    %c0_3 = arith.constant 0 : index
    %c0_4 = arith.constant 0 : index
    %3 = vector.load %arg3[%c0_3, %c0_4] : memref<1x64xf32, #tpu.memory_space<vmem>>, vector<1x64xf32>
    %4 = vector.broadcast %3 : vector<1x64xf32> to vector<16x64xf32>
    %5 = arith.addf %2, %4 : vector<16x64xf32>
    %cst_5 = arith.constant 0.000000e+00 : f32
    %6 = vector.broadcast %cst_5 : f32 to vector<16x64xf32>
    %7 = arith.maximumf %5, %6 : vector<16x64xf32>
    %c0_6 = arith.constant 0 : index
    %c0_7 = arith.constant 0 : index
    %8 = vector.load %arg4[%c0_6, %c0_7] : memref<64x256xf32, #tpu.memory_space<vmem>>, vector<64x256xf32>
    %cst_8 = arith.constant dense<0.000000e+00> : vector<16x256xf32>
    %9 = tpu.matmul %7, %8, %cst_8 {dimension_numbers = #tpu.dot_dimension_numbers<[1], [0], [0], [1], [0, 0, 1, 1], [], []>, precision = #tpu.contract_precision<fp32>} : vector<16x64xf32>, vector<64x256xf32>, vector<16x256xf32> -> vector<16x256xf32>
    %c0_9 = arith.constant 0 : index
    %c0_10 = arith.constant 0 : index
    %10 = vector.load %arg5[%c0_9, %c0_10] : memref<1x256xf32, #tpu.memory_space<vmem>>, vector<1x256xf32>
    %11 = vector.broadcast %10 : vector<1x256xf32> to vector<16x256xf32>
    %12 = arith.addf %9, %11 : vector<16x256xf32>
    %c0_11 = arith.constant 0 : index
    %c0_12 = arith.constant 0 : index
    %13 = vector.load %arg6[%c0_11, %c0_12] : memref<16x256xf32, #tpu.memory_space<vmem>>, vector<16x256xf32>
    tpu.vector_store %arg6[%c0_11, %c0_12], %12 {strides = array<i32>} : memref<16x256xf32, #tpu.memory_space<vmem>>, vector<16x256xf32>,
    return
  }
  func.func @transform_0(%arg0: i32) -> (i32, i32) {
    %c0_i32 = arith.constant 0 : i32
    %c0_i32_0 = arith.constant 0 : i32
    return %arg0, %c0_i32 : i32, i32
  }
  func.func @transform_1(%arg0: i32) -> (i32, i32) {
    %c0_i32 = arith.constant 0 : i32
    %c0_i32_0 = arith.constant 0 : i32
    %c0_i32_1 = arith.constant 0 : i32
    return %c0_i32, %c0_i32_0 : i32, i32
  }
  func.func @transform_2(%arg0: i32) -> (i32, i32) {
    %c0_i32 = arith.constant 0 : i32
    %c0_i32_0 = arith.constant 0 : i32
    %c0_i32_1 = arith.constant 0 : i32
    return %c0_i32, %c0_i32_0 : i32, i32
  }
  func.func @transform_3(%arg0: i32) -> (i32, i32) {
    %c0_i32 = arith.constant 0 : i32
    %c0_i32_0 = arith.constant 0 : i32
    %c0_i32_1 = arith.constant 0 : i32
    return %c0_i32, %c0_i32_0 : i32, i32
  }
  func.func @transform_4(%arg0: i32) -> (i32, i32) {
    %c0_i32 = arith.constant 0 : i32
    %c0_i32_0 = arith.constant 0 : i32
    %c0_i32_1 = arith.constant 0 : i32
    return %c0_i32, %c0_i32_0 : i32, i32
  }
  func.func @transform_5(%arg0: i32) -> (i32, i32) {
    %c0_i32 = arith.constant 0 : i32
    %c0_i32_0 = arith.constant 0 : i32
    return %arg0, %c0_i32 : i32, i32
  }
}

module attributes {stable_mosaic.version = 11 : i64} {
  func.func @_carafe_kernel(%arg0: i32, %arg1: memref<4x4x256xf32, #tpu.memory_space<vmem>>, %arg2: memref<4x4x288xf32, #tpu.memory_space<vmem>>, %arg3: memref<36x1152xf32, #tpu.memory_space<vmem>>, %arg4: memref<4x4x4x128xf32, #tpu.memory_space<vmem>>) attributes {dimension_semantics = [#tpu.dimension_semantics<parallel>], iteration_bounds = array<i64: 2>, scalar_prefetch = 0 : i64, scratch_operands = 0 : i64, tpu.core_type = #tpu.core_type<tc>, window_params = [{transform_indices = @transform_0, window_bounds = array<i64: 4, 4, 256>}, {transform_indices = @transform_1, window_bounds = array<i64: 4, 4, 288>}, {pipeline_mode = #tpu.pipeline_mode<synchronous>, transform_indices = @transform_2, window_bounds = array<i64: 36, 1152>}, {transform_indices = @transform_3, window_bounds = array<i64: 4, 4, 4, 128>}]} {
    %c0 = arith.constant 0 : index
    %c0_0 = arith.constant 0 : index
    %c0_1 = arith.constant 0 : index
    %0 = vector.load %arg1[%c0, %c0_0, %c0_1] : memref<4x4x256xf32, #tpu.memory_space<vmem>>, vector<4x4x256xf32>
    %c0_2 = arith.constant 0 : index
    %c0_3 = arith.constant 0 : index
    %c0_4 = arith.constant 0 : index
    %1 = vector.load %arg2[%c0_2, %c0_3, %c0_4] : memref<4x4x288xf32, #tpu.memory_space<vmem>>, vector<4x4x288xf32>
    %2 = vector.shape_cast %0 : vector<4x4x256xf32> to vector<16x256xf32>
    %3 = vector.shape_cast %1 : vector<4x4x288xf32> to vector<16x288xf32>
    %4 = vector.extract_strided_slice %2 {offsets = [0, 0], sizes = [16, 16], strides = [1, 1]} : vector<16x256xf32> to vector<16x16xf32>
    %5 = vector.extract_strided_slice %2 {offsets = [0, 16], sizes = [16, 16], strides = [1, 1]} : vector<16x256xf32> to vector<16x16xf32>
    %6 = vector.extract_strided_slice %2 {offsets = [0, 32], sizes = [16, 16], strides = [1, 1]} : vector<16x256xf32> to vector<16x16xf32>
    %7 = vector.extract_strided_slice %2 {offsets = [0, 48], sizes = [16, 16], strides = [1, 1]} : vector<16x256xf32> to vector<16x16xf32>
    %8 = vector.extract_strided_slice %2 {offsets = [0, 64], sizes = [16, 16], strides = [1, 1]} : vector<16x256xf32> to vector<16x16xf32>
    %9 = vector.extract_strided_slice %2 {offsets = [0, 80], sizes = [16, 16], strides = [1, 1]} : vector<16x256xf32> to vector<16x16xf32>
    %10 = vector.extract_strided_slice %2 {offsets = [0, 96], sizes = [16, 16], strides = [1, 1]} : vector<16x256xf32> to vector<16x16xf32>
    %11 = vector.extract_strided_slice %2 {offsets = [0, 112], sizes = [16, 16], strides = [1, 1]} : vector<16x256xf32> to vector<16x16xf32>
    %12 = vector.extract_strided_slice %2 {offsets = [0, 128], sizes = [16, 16], strides = [1, 1]} : vector<16x256xf32> to vector<16x16xf32>
    %13 = arith.maximumf %4, %5 : vector<16x16xf32>
    %14 = arith.maximumf %13, %6 : vector<16x16xf32>
    %15 = arith.maximumf %14, %7 : vector<16x16xf32>
    %16 = arith.maximumf %15, %8 : vector<16x16xf32>
    %17 = arith.maximumf %16, %9 : vector<16x16xf32>
    %18 = arith.maximumf %17, %10 : vector<16x16xf32>
    %19 = arith.maximumf %18, %11 : vector<16x16xf32>
    %20 = arith.maximumf %19, %12 : vector<16x16xf32>
    %21 = arith.subf %4, %20 : vector<16x16xf32>
    %22 = math.exp %21 : vector<16x16xf32>
    %23 = arith.subf %5, %20 : vector<16x16xf32>
    %24 = math.exp %23 : vector<16x16xf32>
    %25 = arith.subf %6, %20 : vector<16x16xf32>
    %26 = math.exp %25 : vector<16x16xf32>
    %27 = arith.subf %7, %20 : vector<16x16xf32>
    %28 = math.exp %27 : vector<16x16xf32>
    %29 = arith.subf %8, %20 : vector<16x16xf32>
    %30 = math.exp %29 : vector<16x16xf32>
    %31 = arith.subf %9, %20 : vector<16x16xf32>
    %32 = math.exp %31 : vector<16x16xf32>
    %33 = arith.subf %10, %20 : vector<16x16xf32>
    %34 = math.exp %33 : vector<16x16xf32>
    %35 = arith.subf %11, %20 : vector<16x16xf32>
    %36 = math.exp %35 : vector<16x16xf32>
    %37 = arith.subf %12, %20 : vector<16x16xf32>
    %38 = math.exp %37 : vector<16x16xf32>
    %39 = arith.addf %22, %24 : vector<16x16xf32>
    %40 = arith.addf %39, %26 : vector<16x16xf32>
    %41 = arith.addf %40, %28 : vector<16x16xf32>
    %42 = arith.addf %41, %30 : vector<16x16xf32>
    %43 = arith.addf %42, %32 : vector<16x16xf32>
    %44 = arith.addf %43, %34 : vector<16x16xf32>
    %45 = arith.addf %44, %36 : vector<16x16xf32>
    %46 = arith.addf %45, %38 : vector<16x16xf32>
    %47 = tpu.reciprocal %46 {approx = true} : vector<16x16xf32> -> vector<16x16xf32>
    %48 = arith.mulf %22, %47 : vector<16x16xf32>
    %49 = arith.mulf %24, %47 : vector<16x16xf32>
    %50 = arith.mulf %26, %47 : vector<16x16xf32>
    %51 = arith.mulf %28, %47 : vector<16x16xf32>
    %52 = arith.mulf %30, %47 : vector<16x16xf32>
    %53 = arith.mulf %32, %47 : vector<16x16xf32>
    %54 = arith.mulf %34, %47 : vector<16x16xf32>
    %55 = arith.mulf %36, %47 : vector<16x16xf32>
    %56 = arith.mulf %38, %47 : vector<16x16xf32>
    %57 = vector.extract_strided_slice %3 {offsets = [0, 0], sizes = [16, 32], strides = [1, 1]} : vector<16x288xf32> to vector<16x32xf32>
    %58 = tpu.concatenate %57, %57, %57, %57 in 1 : vector<16x32xf32>, vector<16x32xf32>, vector<16x32xf32>, vector<16x32xf32> -> vector<16x128xf32>
    %59 = vector.extract_strided_slice %3 {offsets = [0, 32], sizes = [16, 32], strides = [1, 1]} : vector<16x288xf32> to vector<16x32xf32>
    %60 = tpu.concatenate %59, %59, %59, %59 in 1 : vector<16x32xf32>, vector<16x32xf32>, vector<16x32xf32>, vector<16x32xf32> -> vector<16x128xf32>
    %61 = vector.extract_strided_slice %3 {offsets = [0, 64], sizes = [16, 32], strides = [1, 1]} : vector<16x288xf32> to vector<16x32xf32>
    %62 = tpu.concatenate %61, %61, %61, %61 in 1 : vector<16x32xf32>, vector<16x32xf32>, vector<16x32xf32>, vector<16x32xf32> -> vector<16x128xf32>
    %63 = vector.extract_strided_slice %3 {offsets = [0, 96], sizes = [16, 32], strides = [1, 1]} : vector<16x288xf32> to vector<16x32xf32>
    %64 = tpu.concatenate %63, %63, %63, %63 in 1 : vector<16x32xf32>, vector<16x32xf32>, vector<16x32xf32>, vector<16x32xf32> -> vector<16x128xf32>
    %65 = vector.extract_strided_slice %3 {offsets = [0, 128], sizes = [16, 32], strides = [1, 1]} : vector<16x288xf32> to vector<16x32xf32>
    %66 = tpu.concatenate %65, %65, %65, %65 in 1 : vector<16x32xf32>, vector<16x32xf32>, vector<16x32xf32>, vector<16x32xf32> -> vector<16x128xf32>
    %67 = vector.extract_strided_slice %3 {offsets = [0, 160], sizes = [16, 32], strides = [1, 1]} : vector<16x288xf32> to vector<16x32xf32>
    %68 = tpu.concatenate %67, %67, %67, %67 in 1 : vector<16x32xf32>, vector<16x32xf32>, vector<16x32xf32>, vector<16x32xf32> -> vector<16x128xf32>
    %69 = vector.extract_strided_slice %3 {offsets = [0, 192], sizes = [16, 32], strides = [1, 1]} : vector<16x288xf32> to vector<16x32xf32>
    %70 = tpu.concatenate %69, %69, %69, %69 in 1 : vector<16x32xf32>, vector<16x32xf32>, vector<16x32xf32>, vector<16x32xf32> -> vector<16x128xf32>
    %71 = vector.extract_strided_slice %3 {offsets = [0, 224], sizes = [16, 32], strides = [1, 1]} : vector<16x288xf32> to vector<16x32xf32>
    %72 = tpu.concatenate %71, %71, %71, %71 in 1 : vector<16x32xf32>, vector<16x32xf32>, vector<16x32xf32>, vector<16x32xf32> -> vector<16x128xf32>
    %73 = vector.extract_strided_slice %3 {offsets = [0, 256], sizes = [16, 32], strides = [1, 1]} : vector<16x288xf32> to vector<16x32xf32>
    %74 = tpu.concatenate %73, %73, %73, %73 in 1 : vector<16x32xf32>, vector<16x32xf32>, vector<16x32xf32>, vector<16x32xf32> -> vector<16x128xf32>
    %75 = tpu.concatenate %58, %60, %62, %64, %66, %68, %70, %72, %74 in 1 : vector<16x128xf32>, vector<16x128xf32>, vector<16x128xf32>, vector<16x128xf32>, vector<16x128xf32>, vector<16x128xf32>, vector<16x128xf32>, vector<16x128xf32>, vector<16x128xf32> -> vector<16x1152xf32>
    %76 = vector.extract_strided_slice %48 {offsets = [0, 0], sizes = [16, 4], strides = [1, 1]} : vector<16x16xf32> to vector<16x4xf32>
    %77 = vector.extract_strided_slice %49 {offsets = [0, 0], sizes = [16, 4], strides = [1, 1]} : vector<16x16xf32> to vector<16x4xf32>
    %78 = vector.extract_strided_slice %50 {offsets = [0, 0], sizes = [16, 4], strides = [1, 1]} : vector<16x16xf32> to vector<16x4xf32>
    %79 = vector.extract_strided_slice %51 {offsets = [0, 0], sizes = [16, 4], strides = [1, 1]} : vector<16x16xf32> to vector<16x4xf32>
    %80 = vector.extract_strided_slice %52 {offsets = [0, 0], sizes = [16, 4], strides = [1, 1]} : vector<16x16xf32> to vector<16x4xf32>
    %81 = vector.extract_strided_slice %53 {offsets = [0, 0], sizes = [16, 4], strides = [1, 1]} : vector<16x16xf32> to vector<16x4xf32>
    %82 = vector.extract_strided_slice %54 {offsets = [0, 0], sizes = [16, 4], strides = [1, 1]} : vector<16x16xf32> to vector<16x4xf32>
    %83 = vector.extract_strided_slice %55 {offsets = [0, 0], sizes = [16, 4], strides = [1, 1]} : vector<16x16xf32> to vector<16x4xf32>
    %84 = vector.extract_strided_slice %56 {offsets = [0, 0], sizes = [16, 4], strides = [1, 1]} : vector<16x16xf32> to vector<16x4xf32>
    %85 = tpu.concatenate %76, %77, %78, %79, %80, %81, %82, %83, %84 in 1 : vector<16x4xf32>, vector<16x4xf32>, vector<16x4xf32>, vector<16x4xf32>, vector<16x4xf32>, vector<16x4xf32>, vector<16x4xf32>, vector<16x4xf32>, vector<16x4xf32> -> vector<16x36xf32>
    %c0_5 = arith.constant 0 : index
    %c0_6 = arith.constant 0 : index
    %86 = vector.load %arg3[%c0_5, %c0_6] : memref<36x1152xf32, #tpu.memory_space<vmem>>, vector<36x1152xf32>
    %cst = arith.constant dense<0.000000e+00> : vector<16x1152xf32>
    %87 = tpu.matmul %85, %86, %cst {dimension_numbers = #tpu.dot_dimension_numbers<[1], [0], [0], [1], [0, 0, 1, 1], [], []>} : vector<16x36xf32>, vector<36x1152xf32>, vector<16x1152xf32> -> vector<16x1152xf32>
    %88 = arith.mulf %87, %75 : vector<16x1152xf32>
    %89 = vector.extract_strided_slice %88 {offsets = [0, 0], sizes = [16, 128], strides = [1, 1]} : vector<16x1152xf32> to vector<16x128xf32>
    %90 = vector.extract_strided_slice %88 {offsets = [0, 128], sizes = [16, 128], strides = [1, 1]} : vector<16x1152xf32> to vector<16x128xf32>
    %91 = arith.addf %89, %90 : vector<16x128xf32>
    %92 = vector.extract_strided_slice %88 {offsets = [0, 256], sizes = [16, 128], strides = [1, 1]} : vector<16x1152xf32> to vector<16x128xf32>
    %93 = arith.addf %91, %92 : vector<16x128xf32>
    %94 = vector.extract_strided_slice %88 {offsets = [0, 384], sizes = [16, 128], strides = [1, 1]} : vector<16x1152xf32> to vector<16x128xf32>
    %95 = arith.addf %93, %94 : vector<16x128xf32>
    %96 = vector.extract_strided_slice %88 {offsets = [0, 512], sizes = [16, 128], strides = [1, 1]} : vector<16x1152xf32> to vector<16x128xf32>
    %97 = arith.addf %95, %96 : vector<16x128xf32>
    %98 = vector.extract_strided_slice %88 {offsets = [0, 640], sizes = [16, 128], strides = [1, 1]} : vector<16x1152xf32> to vector<16x128xf32>
    %99 = arith.addf %97, %98 : vector<16x128xf32>
    %100 = vector.extract_strided_slice %88 {offsets = [0, 768], sizes = [16, 128], strides = [1, 1]} : vector<16x1152xf32> to vector<16x128xf32>
    %101 = arith.addf %99, %100 : vector<16x128xf32>
    %102 = vector.extract_strided_slice %88 {offsets = [0, 896], sizes = [16, 128], strides = [1, 1]} : vector<16x1152xf32> to vector<16x128xf32>
    %103 = arith.addf %101, %102 : vector<16x128xf32>
    %104 = vector.extract_strided_slice %88 {offsets = [0, 1024], sizes = [16, 128], strides = [1, 1]} : vector<16x1152xf32> to vector<16x128xf32>
    %105 = arith.addf %103, %104 : vector<16x128xf32>
    %106 = vector.shape_cast %105 : vector<16x128xf32> to vector<4x4x128xf32>
    %c0_7 = arith.constant 0 : index
    %c0_8 = arith.constant 0 : index
    %c0_9 = arith.constant 0 : index
    %c0_10 = arith.constant 0 : index
    %107 = vector.load %arg4[%c0_7, %c0_8, %c0_9, %c0_10] : memref<4x4x4x128xf32, #tpu.memory_space<vmem>>, vector<4x1x4x128xf32>
    %108 = vector.shape_cast %107 : vector<4x1x4x128xf32> to vector<4x4x128xf32>
    %109 = vector.shape_cast %106 : vector<4x4x128xf32> to vector<4x1x4x128xf32>
    tpu.vector_store %arg4[%c0_7, %c0_8, %c0_9, %c0_10], %109 {strides = array<i32>} : memref<4x4x4x128xf32, #tpu.memory_space<vmem>>, vector<4x1x4x128xf32>,
    %110 = vector.extract_strided_slice %48 {offsets = [0, 4], sizes = [16, 4], strides = [1, 1]} : vector<16x16xf32> to vector<16x4xf32>
    %111 = vector.extract_strided_slice %49 {offsets = [0, 4], sizes = [16, 4], strides = [1, 1]} : vector<16x16xf32> to vector<16x4xf32>
    %112 = vector.extract_strided_slice %50 {offsets = [0, 4], sizes = [16, 4], strides = [1, 1]} : vector<16x16xf32> to vector<16x4xf32>
    %113 = vector.extract_strided_slice %51 {offsets = [0, 4], sizes = [16, 4], strides = [1, 1]} : vector<16x16xf32> to vector<16x4xf32>
    %114 = vector.extract_strided_slice %52 {offsets = [0, 4], sizes = [16, 4], strides = [1, 1]} : vector<16x16xf32> to vector<16x4xf32>
    %115 = vector.extract_strided_slice %53 {offsets = [0, 4], sizes = [16, 4], strides = [1, 1]} : vector<16x16xf32> to vector<16x4xf32>
    %116 = vector.extract_strided_slice %54 {offsets = [0, 4], sizes = [16, 4], strides = [1, 1]} : vector<16x16xf32> to vector<16x4xf32>
    %117 = vector.extract_strided_slice %55 {offsets = [0, 4], sizes = [16, 4], strides = [1, 1]} : vector<16x16xf32> to vector<16x4xf32>
    %118 = vector.extract_strided_slice %56 {offsets = [0, 4], sizes = [16, 4], strides = [1, 1]} : vector<16x16xf32> to vector<16x4xf32>
    %119 = tpu.concatenate %110, %111, %112, %113, %114, %115, %116, %117, %118 in 1 : vector<16x4xf32>, vector<16x4xf32>, vector<16x4xf32>, vector<16x4xf32>, vector<16x4xf32>, vector<16x4xf32>, vector<16x4xf32>, vector<16x4xf32>, vector<16x4xf32> -> vector<16x36xf32>
    %c0_11 = arith.constant 0 : index
    %c0_12 = arith.constant 0 : index
    %120 = vector.load %arg3[%c0_11, %c0_12] : memref<36x1152xf32, #tpu.memory_space<vmem>>, vector<36x1152xf32>
    %cst_13 = arith.constant dense<0.000000e+00> : vector<16x1152xf32>
    %121 = tpu.matmul %119, %120, %cst_13 {dimension_numbers = #tpu.dot_dimension_numbers<[1], [0], [0], [1], [0, 0, 1, 1], [], []>} : vector<16x36xf32>, vector<36x1152xf32>, vector<16x1152xf32> -> vector<16x1152xf32>
    %122 = arith.mulf %121, %75 : vector<16x1152xf32>
    %123 = vector.extract_strided_slice %122 {offsets = [0, 0], sizes = [16, 128], strides = [1, 1]} : vector<16x1152xf32> to vector<16x128xf32>
    %124 = vector.extract_strided_slice %122 {offsets = [0, 128], sizes = [16, 128], strides = [1, 1]} : vector<16x1152xf32> to vector<16x128xf32>
    %125 = arith.addf %123, %124 : vector<16x128xf32>
    %126 = vector.extract_strided_slice %122 {offsets = [0, 256], sizes = [16, 128], strides = [1, 1]} : vector<16x1152xf32> to vector<16x128xf32>
    %127 = arith.addf %125, %126 : vector<16x128xf32>
    %128 = vector.extract_strided_slice %122 {offsets = [0, 384], sizes = [16, 128], strides = [1, 1]} : vector<16x1152xf32> to vector<16x128xf32>
    %129 = arith.addf %127, %128 : vector<16x128xf32>
    %130 = vector.extract_strided_slice %122 {offsets = [0, 512], sizes = [16, 128], strides = [1, 1]} : vector<16x1152xf32> to vector<16x128xf32>
    %131 = arith.addf %129, %130 : vector<16x128xf32>
    %132 = vector.extract_strided_slice %122 {offsets = [0, 640], sizes = [16, 128], strides = [1, 1]} : vector<16x1152xf32> to vector<16x128xf32>
    %133 = arith.addf %131, %132 : vector<16x128xf32>
    %134 = vector.extract_strided_slice %122 {offsets = [0, 768], sizes = [16, 128], strides = [1, 1]} : vector<16x1152xf32> to vector<16x128xf32>
    %135 = arith.addf %133, %134 : vector<16x128xf32>
    %136 = vector.extract_strided_slice %122 {offsets = [0, 896], sizes = [16, 128], strides = [1, 1]} : vector<16x1152xf32> to vector<16x128xf32>
    %137 = arith.addf %135, %136 : vector<16x128xf32>
    %138 = vector.extract_strided_slice %122 {offsets = [0, 1024], sizes = [16, 128], strides = [1, 1]} : vector<16x1152xf32> to vector<16x128xf32>
    %139 = arith.addf %137, %138 : vector<16x128xf32>
    %140 = vector.shape_cast %139 : vector<16x128xf32> to vector<4x4x128xf32>
    %c0_14 = arith.constant 0 : index
    %c1 = arith.constant 1 : index
    %c0_15 = arith.constant 0 : index
    %c0_16 = arith.constant 0 : index
    %141 = vector.load %arg4[%c0_14, %c1, %c0_15, %c0_16] : memref<4x4x4x128xf32, #tpu.memory_space<vmem>>, vector<4x1x4x128xf32>
    %142 = vector.shape_cast %141 : vector<4x1x4x128xf32> to vector<4x4x128xf32>
    %143 = vector.shape_cast %140 : vector<4x4x128xf32> to vector<4x1x4x128xf32>
    tpu.vector_store %arg4[%c0_14, %c1, %c0_15, %c0_16], %143 {strides = array<i32>} : memref<4x4x4x128xf32, #tpu.memory_space<vmem>>, vector<4x1x4x128xf32>,
    %144 = vector.extract_strided_slice %48 {offsets = [0, 8], sizes = [16, 4], strides = [1, 1]} : vector<16x16xf32> to vector<16x4xf32>
    %145 = vector.extract_strided_slice %49 {offsets = [0, 8], sizes = [16, 4], strides = [1, 1]} : vector<16x16xf32> to vector<16x4xf32>
    %146 = vector.extract_strided_slice %50 {offsets = [0, 8], sizes = [16, 4], strides = [1, 1]} : vector<16x16xf32> to vector<16x4xf32>
    %147 = vector.extract_strided_slice %51 {offsets = [0, 8], sizes = [16, 4], strides = [1, 1]} : vector<16x16xf32> to vector<16x4xf32>
    %148 = vector.extract_strided_slice %52 {offsets = [0, 8], sizes = [16, 4], strides = [1, 1]} : vector<16x16xf32> to vector<16x4xf32>
    %149 = vector.extract_strided_slice %53 {offsets = [0, 8], sizes = [16, 4], strides = [1, 1]} : vector<16x16xf32> to vector<16x4xf32>
    %150 = vector.extract_strided_slice %54 {offsets = [0, 8], sizes = [16, 4], strides = [1, 1]} : vector<16x16xf32> to vector<16x4xf32>
    %151 = vector.extract_strided_slice %55 {offsets = [0, 8], sizes = [16, 4], strides = [1, 1]} : vector<16x16xf32> to vector<16x4xf32>
    %152 = vector.extract_strided_slice %56 {offsets = [0, 8], sizes = [16, 4], strides = [1, 1]} : vector<16x16xf32> to vector<16x4xf32>
    %153 = tpu.concatenate %144, %145, %146, %147, %148, %149, %150, %151, %152 in 1 : vector<16x4xf32>, vector<16x4xf32>, vector<16x4xf32>, vector<16x4xf32>, vector<16x4xf32>, vector<16x4xf32>, vector<16x4xf32>, vector<16x4xf32>, vector<16x4xf32> -> vector<16x36xf32>
    %c0_17 = arith.constant 0 : index
    %c0_18 = arith.constant 0 : index
    %154 = vector.load %arg3[%c0_17, %c0_18] : memref<36x1152xf32, #tpu.memory_space<vmem>>, vector<36x1152xf32>
    %cst_19 = arith.constant dense<0.000000e+00> : vector<16x1152xf32>
    %155 = tpu.matmul %153, %154, %cst_19 {dimension_numbers = #tpu.dot_dimension_numbers<[1], [0], [0], [1], [0, 0, 1, 1], [], []>} : vector<16x36xf32>, vector<36x1152xf32>, vector<16x1152xf32> -> vector<16x1152xf32>
    %156 = arith.mulf %155, %75 : vector<16x1152xf32>
    %157 = vector.extract_strided_slice %156 {offsets = [0, 0], sizes = [16, 128], strides = [1, 1]} : vector<16x1152xf32> to vector<16x128xf32>
    %158 = vector.extract_strided_slice %156 {offsets = [0, 128], sizes = [16, 128], strides = [1, 1]} : vector<16x1152xf32> to vector<16x128xf32>
    %159 = arith.addf %157, %158 : vector<16x128xf32>
    %160 = vector.extract_strided_slice %156 {offsets = [0, 256], sizes = [16, 128], strides = [1, 1]} : vector<16x1152xf32> to vector<16x128xf32>
    %161 = arith.addf %159, %160 : vector<16x128xf32>
    %162 = vector.extract_strided_slice %156 {offsets = [0, 384], sizes = [16, 128], strides = [1, 1]} : vector<16x1152xf32> to vector<16x128xf32>
    %163 = arith.addf %161, %162 : vector<16x128xf32>
    %164 = vector.extract_strided_slice %156 {offsets = [0, 512], sizes = [16, 128], strides = [1, 1]} : vector<16x1152xf32> to vector<16x128xf32>
    %165 = arith.addf %163, %164 : vector<16x128xf32>
    %166 = vector.extract_strided_slice %156 {offsets = [0, 640], sizes = [16, 128], strides = [1, 1]} : vector<16x1152xf32> to vector<16x128xf32>
    %167 = arith.addf %165, %166 : vector<16x128xf32>
    %168 = vector.extract_strided_slice %156 {offsets = [0, 768], sizes = [16, 128], strides = [1, 1]} : vector<16x1152xf32> to vector<16x128xf32>
    %169 = arith.addf %167, %168 : vector<16x128xf32>
    %170 = vector.extract_strided_slice %156 {offsets = [0, 896], sizes = [16, 128], strides = [1, 1]} : vector<16x1152xf32> to vector<16x128xf32>
    %171 = arith.addf %169, %170 : vector<16x128xf32>
    %172 = vector.extract_strided_slice %156 {offsets = [0, 1024], sizes = [16, 128], strides = [1, 1]} : vector<16x1152xf32> to vector<16x128xf32>
    %173 = arith.addf %171, %172 : vector<16x128xf32>
    %174 = vector.shape_cast %173 : vector<16x128xf32> to vector<4x4x128xf32>
    %c0_20 = arith.constant 0 : index
    %c2 = arith.constant 2 : index
    %c0_21 = arith.constant 0 : index
    %c0_22 = arith.constant 0 : index
    %175 = vector.load %arg4[%c0_20, %c2, %c0_21, %c0_22] : memref<4x4x4x128xf32, #tpu.memory_space<vmem>>, vector<4x1x4x128xf32>
    %176 = vector.shape_cast %175 : vector<4x1x4x128xf32> to vector<4x4x128xf32>
    %177 = vector.shape_cast %174 : vector<4x4x128xf32> to vector<4x1x4x128xf32>
    tpu.vector_store %arg4[%c0_20, %c2, %c0_21, %c0_22], %177 {strides = array<i32>} : memref<4x4x4x128xf32, #tpu.memory_space<vmem>>, vector<4x1x4x128xf32>,
    %178 = vector.extract_strided_slice %48 {offsets = [0, 12], sizes = [16, 4], strides = [1, 1]} : vector<16x16xf32> to vector<16x4xf32>
    %179 = vector.extract_strided_slice %49 {offsets = [0, 12], sizes = [16, 4], strides = [1, 1]} : vector<16x16xf32> to vector<16x4xf32>
    %180 = vector.extract_strided_slice %50 {offsets = [0, 12], sizes = [16, 4], strides = [1, 1]} : vector<16x16xf32> to vector<16x4xf32>
    %181 = vector.extract_strided_slice %51 {offsets = [0, 12], sizes = [16, 4], strides = [1, 1]} : vector<16x16xf32> to vector<16x4xf32>
    %182 = vector.extract_strided_slice %52 {offsets = [0, 12], sizes = [16, 4], strides = [1, 1]} : vector<16x16xf32> to vector<16x4xf32>
    %183 = vector.extract_strided_slice %53 {offsets = [0, 12], sizes = [16, 4], strides = [1, 1]} : vector<16x16xf32> to vector<16x4xf32>
    %184 = vector.extract_strided_slice %54 {offsets = [0, 12], sizes = [16, 4], strides = [1, 1]} : vector<16x16xf32> to vector<16x4xf32>
    %185 = vector.extract_strided_slice %55 {offsets = [0, 12], sizes = [16, 4], strides = [1, 1]} : vector<16x16xf32> to vector<16x4xf32>
    %186 = vector.extract_strided_slice %56 {offsets = [0, 12], sizes = [16, 4], strides = [1, 1]} : vector<16x16xf32> to vector<16x4xf32>
    %187 = tpu.concatenate %178, %179, %180, %181, %182, %183, %184, %185, %186 in 1 : vector<16x4xf32>, vector<16x4xf32>, vector<16x4xf32>, vector<16x4xf32>, vector<16x4xf32>, vector<16x4xf32>, vector<16x4xf32>, vector<16x4xf32>, vector<16x4xf32> -> vector<16x36xf32>
    %c0_23 = arith.constant 0 : index
    %c0_24 = arith.constant 0 : index
    %188 = vector.load %arg3[%c0_23, %c0_24] : memref<36x1152xf32, #tpu.memory_space<vmem>>, vector<36x1152xf32>
    %cst_25 = arith.constant dense<0.000000e+00> : vector<16x1152xf32>
    %189 = tpu.matmul %187, %188, %cst_25 {dimension_numbers = #tpu.dot_dimension_numbers<[1], [0], [0], [1], [0, 0, 1, 1], [], []>} : vector<16x36xf32>, vector<36x1152xf32>, vector<16x1152xf32> -> vector<16x1152xf32>
    %190 = arith.mulf %189, %75 : vector<16x1152xf32>
    %191 = vector.extract_strided_slice %190 {offsets = [0, 0], sizes = [16, 128], strides = [1, 1]} : vector<16x1152xf32> to vector<16x128xf32>
    %192 = vector.extract_strided_slice %190 {offsets = [0, 128], sizes = [16, 128], strides = [1, 1]} : vector<16x1152xf32> to vector<16x128xf32>
    %193 = arith.addf %191, %192 : vector<16x128xf32>
    %194 = vector.extract_strided_slice %190 {offsets = [0, 256], sizes = [16, 128], strides = [1, 1]} : vector<16x1152xf32> to vector<16x128xf32>
    %195 = arith.addf %193, %194 : vector<16x128xf32>
    %196 = vector.extract_strided_slice %190 {offsets = [0, 384], sizes = [16, 128], strides = [1, 1]} : vector<16x1152xf32> to vector<16x128xf32>
    %197 = arith.addf %195, %196 : vector<16x128xf32>
    %198 = vector.extract_strided_slice %190 {offsets = [0, 512], sizes = [16, 128], strides = [1, 1]} : vector<16x1152xf32> to vector<16x128xf32>
    %199 = arith.addf %197, %198 : vector<16x128xf32>
    %200 = vector.extract_strided_slice %190 {offsets = [0, 640], sizes = [16, 128], strides = [1, 1]} : vector<16x1152xf32> to vector<16x128xf32>
    %201 = arith.addf %199, %200 : vector<16x128xf32>
    %202 = vector.extract_strided_slice %190 {offsets = [0, 768], sizes = [16, 128], strides = [1, 1]} : vector<16x1152xf32> to vector<16x128xf32>
    %203 = arith.addf %201, %202 : vector<16x128xf32>
    %204 = vector.extract_strided_slice %190 {offsets = [0, 896], sizes = [16, 128], strides = [1, 1]} : vector<16x1152xf32> to vector<16x128xf32>
    %205 = arith.addf %203, %204 : vector<16x128xf32>
    %206 = vector.extract_strided_slice %190 {offsets = [0, 1024], sizes = [16, 128], strides = [1, 1]} : vector<16x1152xf32> to vector<16x128xf32>
    %207 = arith.addf %205, %206 : vector<16x128xf32>
    %208 = vector.shape_cast %207 : vector<16x128xf32> to vector<4x4x128xf32>
    %c0_26 = arith.constant 0 : index
    %c3 = arith.constant 3 : index
    %c0_27 = arith.constant 0 : index
    %c0_28 = arith.constant 0 : index
    %209 = vector.load %arg4[%c0_26, %c3, %c0_27, %c0_28] : memref<4x4x4x128xf32, #tpu.memory_space<vmem>>, vector<4x1x4x128xf32>
    %210 = vector.shape_cast %209 : vector<4x1x4x128xf32> to vector<4x4x128xf32>
    %211 = vector.shape_cast %208 : vector<4x4x128xf32> to vector<4x1x4x128xf32>
    tpu.vector_store %arg4[%c0_26, %c3, %c0_27, %c0_28], %211 {strides = array<i32>} : memref<4x4x4x128xf32, #tpu.memory_space<vmem>>, vector<4x1x4x128xf32>,
    return
  }
  func.func @transform_0(%arg0: i32) -> (i32, i32, i32) {
    %c0_i32 = arith.constant 0 : i32
    %c0_i32_0 = arith.constant 0 : i32
    %c0_i32_1 = arith.constant 0 : i32
    return %arg0, %c0_i32, %c0_i32_0 : i32, i32, i32
  }
  func.func @transform_1(%arg0: i32) -> (i32, i32, i32) {
    %c0_i32 = arith.constant 0 : i32
    %c0_i32_0 = arith.constant 0 : i32
    %c0_i32_1 = arith.constant 0 : i32
    return %arg0, %c0_i32, %c0_i32_0 : i32, i32, i32
  }
  func.func @transform_2(%arg0: i32) -> (i32, i32) {
    %c0_i32 = arith.constant 0 : i32
    %c0_i32_0 = arith.constant 0 : i32
    %c0_i32_1 = arith.constant 0 : i32
    return %c0_i32, %c0_i32_0 : i32, i32
  }
  func.func @transform_3(%arg0: i32) -> (i32, i32, i32, i32) {
    %c0_i32 = arith.constant 0 : i32
    %c0_i32_0 = arith.constant 0 : i32
    %c0_i32_1 = arith.constant 0 : i32
    %c0_i32_2 = arith.constant 0 : i32
    return %arg0, %c0_i32, %c0_i32_0, %c0_i32_1 : i32, i32, i32, i32
  }
}

module attributes {stable_mosaic.version = 11 : i64} {
  func.func @_tail_kernel(%arg0: i32, %arg1: memref<256x32xf32, #tpu.memory_space<vmem>>, %arg2: memref<256x96xbf16, #tpu.memory_space<vmem>>, %arg3: memref<32x192xf32, #tpu.memory_space<vmem>>, %arg4: memref<1x192xf32, #tpu.memory_space<vmem>>, %arg5: memref<192x256xf32, #tpu.memory_space<vmem>>, %arg6: memref<1x256xf32, #tpu.memory_space<vmem>>, %arg7: memref<128x4xf32, #tpu.memory_space<vmem>>, %arg8: memref<4x128xf32, #tpu.memory_space<vmem>>, %arg9: memref<384x12xf32, #tpu.memory_space<vmem>>, %arg10: memref<24x32xf32, #tpu.memory_space<vmem>>, %arg11: memref<1x32xf32, #tpu.memory_space<vmem>>, %arg12: memref<32x1xf32, #tpu.memory_space<vmem>>, %arg13: memref<1x1xf32, #tpu.memory_space<vmem>>, %arg14: memref<256x16xf32, #tpu.memory_space<vmem>>, %arg15: memref<256x128xf32, #tpu.memory_space<vmem>>) attributes {dimension_semantics = [#tpu.dimension_semantics<parallel>], iteration_bounds = array<i64: 2>, scalar_prefetch = 0 : i64, scratch_operands = 0 : i64, tpu.core_type = #tpu.core_type<tc>, window_params = [{transform_indices = @transform_0, window_bounds = array<i64: 256, 32>}, {transform_indices = @transform_1, window_bounds = array<i64: 256, 96>}, {pipeline_mode = #tpu.pipeline_mode<synchronous>, transform_indices = @transform_2, window_bounds = array<i64: 32, 192>}, {pipeline_mode = #tpu.pipeline_mode<synchronous>, transform_indices = @transform_3, window_bounds = array<i64: 1, 192>}, {pipeline_mode = #tpu.pipeline_mode<synchronous>, transform_indices = @transform_4, window_bounds = array<i64: 192, 256>}, {pipeline_mode = #tpu.pipeline_mode<synchronous>, transform_indices = @transform_5, window_bounds = array<i64: 1, 256>}, {pipeline_mode = #tpu.pipeline_mode<synchronous>, transform_indices = @transform_6, window_bounds = array<i64: 128, 4>}, {pipeline_mode = #tpu.pipeline_mode<synchronous>, transform_indices = @transform_7, window_bounds = array<i64: 4, 128>}, {pipeline_mode = #tpu.pipeline_mode<synchronous>, transform_indices = @transform_8, window_bounds = array<i64: 384, 12>}, {pipeline_mode = #tpu.pipeline_mode<synchronous>, transform_indices = @transform_9, window_bounds = array<i64: 24, 32>}, {pipeline_mode = #tpu.pipeline_mode<synchronous>, transform_indices = @transform_10, window_bounds = array<i64: 1, 32>}, {pipeline_mode = #tpu.pipeline_mode<synchronous>, transform_indices = @transform_11, window_bounds = array<i64: 32, 1>}, {pipeline_mode = #tpu.pipeline_mode<synchronous>, transform_indices = @transform_12, window_bounds = array<i64: 1, 1>}, {transform_indices = @transform_13, window_bounds = array<i64: 256, 16>}, {transform_indices = @transform_14, window_bounds = array<i64: 256, 128>}]} {
    %c0 = arith.constant 0 : index
    %c0_0 = arith.constant 0 : index
    %0 = vector.load %arg1[%c0, %c0_0] : memref<256x32xf32, #tpu.memory_space<vmem>>, vector<256x32xf32>
    %cst = arith.constant 0.000000e+00 : f32
    %1 = vector.broadcast %cst : f32 to vector<256x32xf32>
    %2 = arith.maximumf %0, %1 : vector<256x32xf32>
    %c0_1 = arith.constant 0 : index
    %c0_2 = arith.constant 0 : index
    %3 = vector.load %arg3[%c0_1, %c0_2] : memref<32x192xf32, #tpu.memory_space<vmem>>, vector<32x192xf32>
    %cst_3 = arith.constant dense<0.000000e+00> : vector<256x192xf32>
    %4 = tpu.matmul %2, %3, %cst_3 {dimension_numbers = #tpu.dot_dimension_numbers<[1], [0], [0], [1], [0, 0, 1, 1], [], []>} : vector<256x32xf32>, vector<32x192xf32>, vector<256x192xf32> -> vector<256x192xf32>
    %c0_4 = arith.constant 0 : index
    %c0_5 = arith.constant 0 : index
    %5 = vector.load %arg4[%c0_4, %c0_5] : memref<1x192xf32, #tpu.memory_space<vmem>>, vector<1x192xf32>
    %6 = vector.broadcast %5 : vector<1x192xf32> to vector<256x192xf32>
    %7 = arith.addf %4, %6 : vector<256x192xf32>
    %cst_6 = arith.constant 0.000000e+00 : f32
    %8 = vector.broadcast %cst_6 : f32 to vector<256x192xf32>
    %9 = arith.maximumf %7, %8 : vector<256x192xf32>
    %c0_7 = arith.constant 0 : index
    %c0_8 = arith.constant 0 : index
    %10 = vector.load %arg5[%c0_7, %c0_8] : memref<192x256xf32, #tpu.memory_space<vmem>>, vector<192x256xf32>
    %cst_9 = arith.constant dense<0.000000e+00> : vector<256x256xf32>
    %11 = tpu.matmul %9, %10, %cst_9 {dimension_numbers = #tpu.dot_dimension_numbers<[1], [0], [0], [1], [0, 0, 1, 1], [], []>} : vector<256x192xf32>, vector<192x256xf32>, vector<256x256xf32> -> vector<256x256xf32>
    %c0_10 = arith.constant 0 : index
    %c0_11 = arith.constant 0 : index
    %12 = vector.load %arg6[%c0_10, %c0_11] : memref<1x256xf32, #tpu.memory_space<vmem>>, vector<1x256xf32>
    %13 = vector.broadcast %12 : vector<1x256xf32> to vector<256x256xf32>
    %14 = arith.addf %11, %13 : vector<256x256xf32>
    %15 = vector.extract_strided_slice %14 {offsets = [0, 0], sizes = [256, 128], strides = [1, 1]} : vector<256x256xf32> to vector<256x128xf32>
    %16 = vector.extract_strided_slice %14 {offsets = [0, 128], sizes = [256, 12], strides = [1, 1]} : vector<256x256xf32> to vector<256x12xf32>
    %17 = vector.extract_strided_slice %14 {offsets = [0, 160], sizes = [256, 12], strides = [1, 1]} : vector<256x256xf32> to vector<256x12xf32>
    %18 = vector.extract_strided_slice %15 {offsets = [0, 0], sizes = [256, 32], strides = [1, 1]} : vector<256x128xf32> to vector<256x32xf32>
    %cst_12 = arith.constant dense<0xFF800000> : vector<256xf32>
    %19 = vector.multi_reduction <maximumf>, %18, %cst_12 [1] : vector<256x32xf32> to vector<256xf32>
    %20 = vector.shape_cast %19 : vector<256xf32> to vector<256x1xf32>
    %21 = vector.broadcast %20 : vector<256x1xf32> to vector<256x32xf32>
    %22 = arith.subf %18, %21 : vector<256x32xf32>
    %23 = math.exp %22 : vector<256x32xf32>
    %24 = vector.extract_strided_slice %15 {offsets = [0, 32], sizes = [256, 32], strides = [1, 1]} : vector<256x128xf32> to vector<256x32xf32>
    %cst_13 = arith.constant dense<0xFF800000> : vector<256xf32>
    %25 = vector.multi_reduction <maximumf>, %24, %cst_13 [1] : vector<256x32xf32> to vector<256xf32>
    %26 = vector.shape_cast %25 : vector<256xf32> to vector<256x1xf32>
    %27 = vector.broadcast %26 : vector<256x1xf32> to vector<256x32xf32>
    %28 = arith.subf %24, %27 : vector<256x32xf32>
    %29 = math.exp %28 : vector<256x32xf32>
    %30 = vector.extract_strided_slice %15 {offsets = [0, 64], sizes = [256, 32], strides = [1, 1]} : vector<256x128xf32> to vector<256x32xf32>
    %cst_14 = arith.constant dense<0xFF800000> : vector<256xf32>
    %31 = vector.multi_reduction <maximumf>, %30, %cst_14 [1] : vector<256x32xf32> to vector<256xf32>
    %32 = vector.shape_cast %31 : vector<256xf32> to vector<256x1xf32>
    %33 = vector.broadcast %32 : vector<256x1xf32> to vector<256x32xf32>
    %34 = arith.subf %30, %33 : vector<256x32xf32>
    %35 = math.exp %34 : vector<256x32xf32>
    %36 = vector.extract_strided_slice %15 {offsets = [0, 96], sizes = [256, 32], strides = [1, 1]} : vector<256x128xf32> to vector<256x32xf32>
    %cst_15 = arith.constant dense<0xFF800000> : vector<256xf32>
    %37 = vector.multi_reduction <maximumf>, %36, %cst_15 [1] : vector<256x32xf32> to vector<256xf32>
    %38 = vector.shape_cast %37 : vector<256xf32> to vector<256x1xf32>
    %39 = vector.broadcast %38 : vector<256x1xf32> to vector<256x32xf32>
    %40 = arith.subf %36, %39 : vector<256x32xf32>
    %41 = math.exp %40 : vector<256x32xf32>
    %42 = tpu.concatenate %23, %29, %35, %41 in 1 : vector<256x32xf32>, vector<256x32xf32>, vector<256x32xf32>, vector<256x32xf32> -> vector<256x128xf32>
    %c0_16 = arith.constant 0 : index
    %c0_17 = arith.constant 0 : index
    %43 = vector.load %arg7[%c0_16, %c0_17] : memref<128x4xf32, #tpu.memory_space<vmem>>, vector<128x4xf32>
    %cst_18 = arith.constant dense<0.000000e+00> : vector<256x4xf32>
    %44 = tpu.matmul %42, %43, %cst_18 {dimension_numbers = #tpu.dot_dimension_numbers<[1], [0], [0], [1], [0, 0, 1, 1], [], []>} : vector<256x128xf32>, vector<128x4xf32>, vector<256x4xf32> -> vector<256x4xf32>
    %45 = tpu.reciprocal %44 {approx = true} : vector<256x4xf32> -> vector<256x4xf32>
    %c0_19 = arith.constant 0 : index
    %c0_20 = arith.constant 0 : index
    %46 = vector.load %arg8[%c0_19, %c0_20] : memref<4x128xf32, #tpu.memory_space<vmem>>, vector<4x128xf32>
    %cst_21 = arith.constant dense<0.000000e+00> : vector<256x128xf32>
    %47 = tpu.matmul %45, %46, %cst_21 {dimension_numbers = #tpu.dot_dimension_numbers<[1], [0], [0], [1], [0, 0, 1, 1], [], []>} : vector<256x4xf32>, vector<4x128xf32>, vector<256x128xf32> -> vector<256x128xf32>
    %48 = arith.mulf %42, %47 : vector<256x128xf32>
    %c0_22 = arith.constant 0 : index
    %c0_23 = arith.constant 0 : index
    %49 = vector.load %arg15[%c0_22, %c0_23] : memref<256x128xf32, #tpu.memory_space<vmem>>, vector<256x128xf32>
    tpu.vector_store %arg15[%c0_22, %c0_23], %48 {strides = array<i32>} : memref<256x128xf32, #tpu.memory_space<vmem>>, vector<256x128xf32>,
    %c0_24 = arith.constant 0 : index
    %c0_25 = arith.constant 0 : index
    %50 = vector.load %arg2[%c0_24, %c0_25] : memref<256x96xbf16, #tpu.memory_space<vmem>>, vector<256x96xbf16>
    %51 = arith.extf %50 : vector<256x96xbf16> to vector<256x96xf32>
    %52 = vector.extract_strided_slice %51 {offsets = [0, 0], sizes = [256, 32], strides = [1, 1]} : vector<256x96xf32> to vector<256x32xf32>
    %53 = tpu.concatenate %52, %52, %52, %52 in 1 : vector<256x32xf32>, vector<256x32xf32>, vector<256x32xf32>, vector<256x32xf32> -> vector<256x128xf32>
    %54 = arith.mulf %53, %48 : vector<256x128xf32>
    %55 = vector.extract_strided_slice %51 {offsets = [0, 32], sizes = [256, 32], strides = [1, 1]} : vector<256x96xf32> to vector<256x32xf32>
    %56 = tpu.concatenate %55, %55, %55, %55 in 1 : vector<256x32xf32>, vector<256x32xf32>, vector<256x32xf32>, vector<256x32xf32> -> vector<256x128xf32>
    %57 = arith.mulf %56, %48 : vector<256x128xf32>
    %58 = vector.extract_strided_slice %51 {offsets = [0, 64], sizes = [256, 32], strides = [1, 1]} : vector<256x96xf32> to vector<256x32xf32>
    %59 = tpu.concatenate %58, %58, %58, %58 in 1 : vector<256x32xf32>, vector<256x32xf32>, vector<256x32xf32>, vector<256x32xf32> -> vector<256x128xf32>
    %60 = arith.mulf %59, %48 : vector<256x128xf32>
    %61 = tpu.concatenate %54, %57, %60 in 1 : vector<256x128xf32>, vector<256x128xf32>, vector<256x128xf32> -> vector<256x384xf32>
    %c0_26 = arith.constant 0 : index
    %c0_27 = arith.constant 0 : index
    %62 = vector.load %arg9[%c0_26, %c0_27] : memref<384x12xf32, #tpu.memory_space<vmem>>, vector<384x12xf32>
    %cst_28 = arith.constant dense<0.000000e+00> : vector<256x12xf32>
    %63 = tpu.matmul %61, %62, %cst_28 {dimension_numbers = #tpu.dot_dimension_numbers<[1], [0], [0], [1], [0, 0, 1, 1], [], []>} : vector<256x384xf32>, vector<384x12xf32>, vector<256x12xf32> -> vector<256x12xf32>
    %64 = arith.addf %63, %16 : vector<256x12xf32>
    %65 = tpu.concatenate %64, %17 in 1 : vector<256x12xf32>, vector<256x12xf32> -> vector<256x24xf32>
    %cst_29 = arith.constant 0.000000e+00 : f32
    %66 = vector.broadcast %cst_29 : f32 to vector<256x24xf32>
    %67 = arith.maximumf %65, %66 : vector<256x24xf32>
    %c0_30 = arith.constant 0 : index
    %c0_31 = arith.constant 0 : index
    %68 = vector.load %arg10[%c0_30, %c0_31] : memref<24x32xf32, #tpu.memory_space<vmem>>, vector<24x32xf32>
    %cst_32 = arith.constant dense<0.000000e+00> : vector<256x32xf32>
    %69 = tpu.matmul %67, %68, %cst_32 {dimension_numbers = #tpu.dot_dimension_numbers<[1], [0], [0], [1], [0, 0, 1, 1], [], []>} : vector<256x24xf32>, vector<24x32xf32>, vector<256x32xf32> -> vector<256x32xf32>
    %c0_33 = arith.constant 0 : index
    %c0_34 = arith.constant 0 : index
    %70 = vector.load %arg11[%c0_33, %c0_34] : memref<1x32xf32, #tpu.memory_space<vmem>>, vector<1x32xf32>
    %71 = vector.broadcast %70 : vector<1x32xf32> to vector<256x32xf32>
    %72 = arith.addf %69, %71 : vector<256x32xf32>
    %cst_35 = arith.constant 0.000000e+00 : f32
    %73 = vector.broadcast %cst_35 : f32 to vector<256x32xf32>
    %74 = arith.maximumf %72, %73 : vector<256x32xf32>
    %c0_36 = arith.constant 0 : index
    %c0_37 = arith.constant 0 : index
    %75 = vector.load %arg12[%c0_36, %c0_37] : memref<32x1xf32, #tpu.memory_space<vmem>>, vector<32x1xf32>
    %cst_38 = arith.constant dense<0.000000e+00> : vector<256x1xf32>
    %76 = tpu.matmul %74, %75, %cst_38 {dimension_numbers = #tpu.dot_dimension_numbers<[1], [0], [0], [1], [0, 0, 1, 1], [], []>} : vector<256x32xf32>, vector<32x1xf32>, vector<256x1xf32> -> vector<256x1xf32>
    %c0_39 = arith.constant 0 : index
    %c0_40 = arith.constant 0 : index
    %77 = vector.load %arg13[%c0_39, %c0_40] : memref<1x1xf32, #tpu.memory_space<vmem>>, vector<1x1xf32>
    %78 = vector.broadcast %77 : vector<1x1xf32> to vector<256x1xf32>
    %79 = arith.addf %76, %78 : vector<256x1xf32>
    %cst_41 = arith.constant 0.000000e+00 : f32
    %80 = vector.broadcast %cst_41 : f32 to vector<256x3xf32>
    %81 = tpu.concatenate %64, %79, %80 in 1 : vector<256x12xf32>, vector<256x1xf32>, vector<256x3xf32> -> vector<256x16xf32>
    %c0_42 = arith.constant 0 : index
    %c0_43 = arith.constant 0 : index
    %82 = vector.load %arg14[%c0_42, %c0_43] : memref<256x16xf32, #tpu.memory_space<vmem>>, vector<256x16xf32>
    tpu.vector_store %arg14[%c0_42, %c0_43], %81 {strides = array<i32>} : memref<256x16xf32, #tpu.memory_space<vmem>>, vector<256x16xf32>,
    return
  }
  func.func @transform_0(%arg0: i32) -> (i32, i32) {
    %c0_i32 = arith.constant 0 : i32
    %c0_i32_0 = arith.constant 0 : i32
    return %arg0, %c0_i32 : i32, i32
  }
  func.func @transform_1(%arg0: i32) -> (i32, i32) {
    %c0_i32 = arith.constant 0 : i32
    %c0_i32_0 = arith.constant 0 : i32
    return %arg0, %c0_i32 : i32, i32
  }
  func.func @transform_2(%arg0: i32) -> (i32, i32) {
    %c0_i32 = arith.constant 0 : i32
    %c0_i32_0 = arith.constant 0 : i32
    %c0_i32_1 = arith.constant 0 : i32
    return %c0_i32, %c0_i32_0 : i32, i32
  }
  func.func @transform_3(%arg0: i32) -> (i32, i32) {
    %c0_i32 = arith.constant 0 : i32
    %c0_i32_0 = arith.constant 0 : i32
    %c0_i32_1 = arith.constant 0 : i32
    return %c0_i32, %c0_i32_0 : i32, i32
  }
  func.func @transform_4(%arg0: i32) -> (i32, i32) {
    %c0_i32 = arith.constant 0 : i32
    %c0_i32_0 = arith.constant 0 : i32
    %c0_i32_1 = arith.constant 0 : i32
    return %c0_i32, %c0_i32_0 : i32, i32
  }
  func.func @transform_5(%arg0: i32) -> (i32, i32) {
    %c0_i32 = arith.constant 0 : i32
    %c0_i32_0 = arith.constant 0 : i32
    %c0_i32_1 = arith.constant 0 : i32
    return %c0_i32, %c0_i32_0 : i32, i32
  }
  func.func @transform_6(%arg0: i32) -> (i32, i32) {
    %c0_i32 = arith.constant 0 : i32
    %c0_i32_0 = arith.constant 0 : i32
    %c0_i32_1 = arith.constant 0 : i32
    return %c0_i32, %c0_i32_0 : i32, i32
  }
  func.func @transform_7(%arg0: i32) -> (i32, i32) {
    %c0_i32 = arith.constant 0 : i32
    %c0_i32_0 = arith.constant 0 : i32
    %c0_i32_1 = arith.constant 0 : i32
    return %c0_i32, %c0_i32_0 : i32, i32
  }
  func.func @transform_8(%arg0: i32) -> (i32, i32) {
    %c0_i32 = arith.constant 0 : i32
    %c0_i32_0 = arith.constant 0 : i32
    %c0_i32_1 = arith.constant 0 : i32
    return %c0_i32, %c0_i32_0 : i32, i32
  }
  func.func @transform_9(%arg0: i32) -> (i32, i32) {
    %c0_i32 = arith.constant 0 : i32
    %c0_i32_0 = arith.constant 0 : i32
    %c0_i32_1 = arith.constant 0 : i32
    return %c0_i32, %c0_i32_0 : i32, i32
  }
  func.func @transform_10(%arg0: i32) -> (i32, i32) {
    %c0_i32 = arith.constant 0 : i32
    %c0_i32_0 = arith.constant 0 : i32
    %c0_i32_1 = arith.constant 0 : i32
    return %c0_i32, %c0_i32_0 : i32, i32
  }
  func.func @transform_11(%arg0: i32) -> (i32, i32) {
    %c0_i32 = arith.constant 0 : i32
    %c0_i32_0 = arith.constant 0 : i32
    %c0_i32_1 = arith.constant 0 : i32
    return %c0_i32, %c0_i32_0 : i32, i32
  }
  func.func @transform_12(%arg0: i32) -> (i32, i32) {
    %c0_i32 = arith.constant 0 : i32
    %c0_i32_0 = arith.constant 0 : i32
    %c0_i32_1 = arith.constant 0 : i32
    return %c0_i32, %c0_i32_0 : i32, i32
  }
  func.func @transform_13(%arg0: i32) -> (i32, i32) {
    %c0_i32 = arith.constant 0 : i32
    %c0_i32_0 = arith.constant 0 : i32
    return %arg0, %c0_i32 : i32, i32
  }
  func.func @transform_14(%arg0: i32) -> (i32, i32) {
    %c0_i32 = arith.constant 0 : i32
    %c0_i32_0 = arith.constant 0 : i32
    return %arg0, %c0_i32 : i32, i32
  }
}

</mosaic_0001>

<llo_original>
// kernel: triple_branch_tail_forward.3
$region0: #{triple_branch_tail_forward.3}
  #allocation0 [shape = 'u32[]', space=smem, size = 0x4, offset = 0x4, fixed_abs, tag = 'smem constant byte address 0x4 - core index']
  #allocation1 [shape = 'u32[72,128]{1,0:T(1,128)}', space=vmem, size = 0x9000, scoped, tag = 'internal scratch']
  %s0 = inlined_call_operand.vmem [shape: f32[32,144], index: 0, kind: input, shape index: {}]
  %s1 = inlined_call_operand.vmem [shape: f32[144,64], index: 1, kind: input, shape index: {}]
  %s2 = inlined_call_operand.vmem [shape: f32[1,64], index: 2, kind: input, shape index: {}]
  %s3 = inlined_call_operand.vmem [shape: f32[64,256], index: 3, kind: input, shape index: {}]
  %s4 = inlined_call_operand.vmem [shape: f32[1,256], index: 4, kind: input, shape index: {}]
  %s5 = inlined_call_operand.vmem [shape: f32[32,256], index: 5, kind: output, shape index: {}]
  %s6 = sld [smem:[#allocation0]]
  $region53: #{triple_branch_tail_forward.3} parent=0
    _
  %s8 = ssub.s32 1, %s6
  %s9 = scalar_select 0, %s8, %s6
  loop: start=0, step=1, limit=4
  $region2: #{triple_branch_tail_forward.3} parent=0 // loop_pre_header
    _
  $region3: #{triple_branch_tail_forward.3} parent=0 // loop_header
    %s11 = sphi 0, %s15
    %p12 = scmp.ge.s32.totalorder %s11, 4
    %s21 = sphi 0, %s23
    %s24 = sphi 0, %s21
    %s25 = sphi 0, %s24
    %s41 = sphi 0, %s25
    %s45 = sphi 0, %s45
    %s47 = sphi 0, %s45
    %s48 = sphi 0, %s47
    %s62 = sphi 0, %s48
    %s66 = sphi 0, %s66
    %s68 = sphi 0, %s66
    %s69 = sphi 0, %s68
    %s83 = sphi 0, %s69
    %s87 = sphi 0, %s87
    %s89 = sphi 0, %s87
    %s90 = sphi 0, %s89
    %s104 = sphi 0, %s90
    %s108 = sphi 0, %s108
    %s110 = sphi 0, %s108
    %s111 = sphi 0, %s110
    %s125 = sphi 0, %s111
    %s131 = sphi 0, %s133
    %s134 = sphi 0, %s131
    %s135 = sphi 0, %s134
    %s151 = sphi 0, %s135
  $region4: #{triple_branch_tail_forward.3} parent=0 // loop_header_branch
    %14 = sbr.rel (%p12) target = $region8
  $region5: #{triple_branch_tail_forward.3} parent=0 // loop_body
    %s16 = ssub.s32 %s11, 1
    %s17 = ssub.s32 %s11, 2
    %s18 = sadd.s32 %s11, 1
    %s19 = ssub.s32 %s11, %s18
    %p20 = scmp.eq.s32.totalorder %s19, 0
    %s22 = sadd.s32 %s21, 1
    %s23 = scalar_select %p20, %s21, %s22
    %p26 = pneg %p20
    %p27 = scmp.eq.s32.totalorder %s11, 1
    %p28 = por %p26, %p27
    %p29 = scmp.ne.s32.totalorder %s21, %s24
    %p30 = scmp.eq.s32.totalorder %s11, 0
    %p31 = por %p29, %p30
    %p32 = scmp.ne.s32.totalorder %s21, %s24
    %p33 = scmp.eq.s32.totalorder %s16, 1
    %p34 = por %p32, %p33
    %p35 = scmp.ne.s32.totalorder %s24, %s25
    %p36 = scmp.eq.s32.totalorder %s16, 0
    %p37 = por %p35, %p36
    %p38 = scmp.ne.s32.totalorder %s24, %s25
    %p39 = scmp.eq.s32.totalorder %s17, 1
    %p40 = por %p38, %p39
    %p42 = scmp.ne.s32.totalorder %s25, %s41
    %p43 = scmp.eq.s32.totalorder %s17, 0
    %p44 = por %p42, %p43
    %s46 = sadd.s32 %s45, 1
    %p49 = scmp.eq.s32.totalorder %s11, 1
    %p50 = scmp.ne.s32.totalorder %s45, %s47
    %p51 = scmp.eq.s32.totalorder %s11, 0
    %p52 = por %p50, %p51
    %p53 = scmp.ne.s32.totalorder %s45, %s47
    %p54 = scmp.eq.s32.totalorder %s16, 1
    %p55 = por %p53, %p54
    %p56 = scmp.ne.s32.totalorder %s47, %s48
    %p57 = scmp.eq.s32.totalorder %s16, 0
    %p58 = por %p56, %p57
    %p59 = scmp.ne.s32.totalorder %s47, %s48
    %p60 = scmp.eq.s32.totalorder %s17, 1
    %p61 = por %p59, %p60
    %p63 = scmp.ne.s32.totalorder %s48, %s62
    %p64 = scmp.eq.s32.totalorder %s17, 0
    %p65 = por %p63, %p64
    %s67 = sadd.s32 %s66, 1
    %p70 = scmp.eq.s32.totalorder %s11, 1
    %p71 = scmp.ne.s32.totalorder %s66, %s68
    %p72 = scmp.eq.s32.totalorder %s11, 0
    %p73 = por %p71, %p72
    %p74 = scmp.ne.s32.totalorder %s66, %s68
    %p75 = scmp.eq.s32.totalorder %s16, 1
    %p76 = por %p74, %p75
    %p77 = scmp.ne.s32.totalorder %s68, %s69
    %p78 = scmp.eq.s32.totalorder %s16, 0
    %p79 = por %p77, %p78
    %p80 = scmp.ne.s32.totalorder %s68, %s69
    %p81 = scmp.eq.s32.totalorder %s17, 1
    %p82 = por %p80, %p81
    %p84 = scmp.ne.s32.totalorder %s69, %s83
    %p85 = scmp.eq.s32.totalorder %s17, 0
    %p86 = por %p84, %p85
    %s88 = sadd.s32 %s87, 1
    %p91 = scmp.eq.s32.totalorder %s11, 1
    %p92 = scmp.ne.s32.totalorder %s87, %s89
    %p93 = scmp.eq.s32.totalorder %s11, 0
    %p94 = por %p92, %p93
    %p95 = scmp.ne.s32.totalorder %s87, %s89
    %p96 = scmp.eq.s32.totalorder %s16, 1
    %p97 = por %p95, %p96
    %p98 = scmp.ne.s32.totalorder %s89, %s90
    %p99 = scmp.eq.s32.totalorder %s16, 0
    %p100 = por %p98, %p99
    %p101 = scmp.ne.s32.totalorder %s89, %s90
    %p102 = scmp.eq.s32.totalorder %s17, 1
    %p103 = por %p101, %p102
    %p105 = scmp.ne.s32.totalorder %s90, %s104
    %p106 = scmp.eq.s32.totalorder %s17, 0
    %p107 = por %p105, %p106
    %s109 = sadd.s32 %s108, 1
    %p112 = scmp.eq.s32.totalorder %s11, 1
    %p113 = scmp.ne.s32.totalorder %s108, %s110
    %p114 = scmp.eq.s32.totalorder %s11, 0
    %p115 = por %p113, %p114
    %p116 = scmp.ne.s32.totalorder %s108, %s110
    %p117 = scmp.eq.s32.totalorder %s16, 1
    %p118 = por %p116, %p117
    %p119 = scmp.ne.s32.totalorder %s110, %s111
    %p120 = scmp.eq.s32.totalorder %s16, 0
    %p121 = por %p119, %p120
    %p122 = scmp.ne.s32.totalorder %s110, %s111
    %p123 = scmp.eq.s32.totalorder %s17, 1
    %p124 = por %p122, %p123
    %p126 = scmp.ne.s32.totalorder %s111, %s125
    %p127 = scmp.eq.s32.totalorder %s17, 0
    %p128 = por %p126, %p127
    %s129 = ssub.s32 %s11, %s18
    %p130 = scmp.eq.s32.totalorder %s129, 0
    %s132 = sadd.s32 %s131, 1
    %s133 = scalar_select %p130, %s131, %s132
    %p136 = pneg %p130
    %p137 = scmp.eq.s32.totalorder %s11, 1
    %p138 = por %p136, %p137
    %p139 = scmp.ne.s32.totalorder %s131, %s134
    %p140 = scmp.eq.s32.totalorder %s11, 0
    %p141 = por %p139, %p140
    %p142 = scmp.ne.s32.totalorder %s131, %s134
    %p143 = scmp.eq.s32.totalorder %s16, 1
    %p144 = por %p142, %p143
    %p145 = scmp.ne.s32.totalorder %s134, %s135
    %p146 = scmp.eq.s32.totalorder %s16, 0
    %p147 = por %p145, %p146
    %p148 = scmp.ne.s32.totalorder %s134, %s135
    %p149 = scmp.eq.s32.totalorder %s17, 1
    %p150 = por %p148, %p149
    %p152 = scmp.ne.s32.totalorder %s135, %s151
    %p153 = scmp.eq.s32.totalorder %s17, 0
    %p154 = por %p152, %p153
    %p155 = scmp.le.s32.totalorder 1, %s11
    %p156 = scmp.lt.s32.totalorder %s11, 3
    %p157 = pnand %p155, %p156
    %p158 = pneg %p157
    // Predicated region
    $region9: #{triple_branch_tail_forward.3} parent=5 // pred_check
      _
    $region10: #{triple_branch_tail_forward.3} parent=5 // pred_check_branch
      %160 = sbr.rel (%p157) target = $region12
    $region11: #{triple_branch_tail_forward.3} parent=5 // pred_region
      %s161 = ssub.s32 %s11, 1
      // Predicated region
      $region13: #{triple_branch_tail_forward.3} parent=11 // pred_check
        %p162 = pneg %p58
      $region14: #{triple_branch_tail_forward.3} parent=11 // pred_check_branch
        %164 = sbr.rel (%p162) target = $region16
      $region15: #{triple_branch_tail_forward.3} parent=11 // pred_region
        _
      $region16: #{triple_branch_tail_forward.3} parent=11 // pred_fallthru
        _
      // Predicated region
      $region17: #{triple_branch_tail_forward.3} parent=11 // pred_check
        %p165 = pneg %p79
      $region18: #{triple_branch_tail_forward.3} parent=11 // pred_check_branch
        %167 = sbr.rel (%p165) target = $region20
      $region19: #{triple_branch_tail_forward.3} parent=11 // pred_region
        _
      $region20: #{triple_branch_tail_forward.3} parent=11 // pred_fallthru
        _
      // Predicated region
      $region21: #{triple_branch_tail_forward.3} parent=11 // pred_check
        %p168 = pneg %p100
      $region22: #{triple_branch_tail_forward.3} parent=11 // pred_check_branch
        %170 = sbr.rel (%p168) target = $region24
      $region23: #{triple_branch_tail_forward.3} parent=11 // pred_region
        _
      $region24: #{triple_branch_tail_forward.3} parent=11 // pred_fallthru
        _
      // Predicated region
      $region25: #{triple_branch_tail_forward.3} parent=11 // pred_check
        %p171 = pneg %p121
      $region26: #{triple_branch_tail_forward.3} parent=11 // pred_check_branch
        %173 = sbr.rel (%p171) target = $region28
      $region27: #{triple_branch_tail_forward.3} parent=11 // pred_region
        _
      $region28: #{triple_branch_tail_forward.3} parent=11 // pred_fallthru
        _
    $region12: #{triple_branch_tail_forward.3} parent=5 // pred_fallthru
      _
    %p174 = scmp.lt.s32.totalorder %s11, 2
    // Predicated region
    $region29: #{triple_branch_tail_forward.3} parent=5 // pred_check
      %p175 = pneg %p174
    $region30: #{triple_branch_tail_forward.3} parent=5 // pred_check_branch
      %177 = sbr.rel (%p175) target = $region32
    $region31: #{triple_branch_tail_forward.3} parent=5 // pred_region
      // Predicated region
      $region33: #{triple_branch_tail_forward.3} parent=31 // pred_check
        %p178 = pneg %p31
      $region34: #{triple_branch_tail_forward.3} parent=31 // pred_check_branch
        %180 = sbr.rel (%p178) target = $region36
      $region35: #{triple_branch_tail_forward.3} parent=31 // pred_region
        %s181 = smul.u32 2, %s11
        %p182 = scmp.lt.s32.totalorder %s181, 3
        %s183 = scalar_select %p182, %s181, 3
        %s184 = smul.addr %s183, 2
        %s185 = smul.addr %s184, 8
        %s186 = scalar_lea.vmem %s0, %s185
        %s187 = smul.u32 2, %s11
      $region36: #{triple_branch_tail_forward.3} parent=31 // pred_fallthru
        _
    $region32: #{triple_branch_tail_forward.3} parent=5 // pred_fallthru
      _
    %p188 = scmp.le.s32.totalorder 1, %s11
    %p189 = scmp.lt.s32.totalorder %s11, 3
    %p190 = pnand %p188, %p189
    %p191 = pneg %p190
    // Predicated region
    $region37: #{triple_branch_tail_forward.3} parent=5 // pred_check
      _
    $region38: #{triple_branch_tail_forward.3} parent=5 // pred_check_branch
      %193 = sbr.rel (%p190) target = $region40
    $region39: #{triple_branch_tail_forward.3} parent=5 // pred_region
      %s194 = ssub.s32 %s11, 1
      %s195 = smul.u32 2, %s16
      %p196 = scmp.lt.s32.totalorder %s195, 3
      %s197 = scalar_select %p196, %s195, 3
      %s198 = smul.addr %s197, 2
      %s199 = smul.addr %s198, 8
      %s200 = scalar_lea.vmem %s0, %s199
      %p201 = pneg %p37
      %p202 = pneg %p34
      %p203 = pneg %p58
      %p204 = pneg %p55
      %p205 = pneg %p79
      %p206 = pneg %p76
      %p207 = pneg %p100
      %p208 = pneg %p97
      %p209 = pneg %p121
      %p210 = pneg %p118
      %p211 = pneg %p147
      %p212 = pneg %p144
      %s213 = smul.u32 2, %s16
      %p214 = scmp.lt.s32.totalorder %s213, 3
      %s215 = scalar_select %p214, %s213, 3
      %s216 = smul.addr %s215, 2
      %s217 = smul.addr %s216, 8
      %s218 = scalar_lea.vmem %s5, %s217
      %s219 = smul.u32 2, %s16
      %p220 = scmp.lt.s32.totalorder %s219, 3
      %s221 = scalar_select %p220, %s219, 3
      %s222 = smul.addr %s221, 2
      %s223 = smul.addr %s222, 8
      %s224 = scalar_lea.vmem %s0, %s223
      %s225 = smul.u32 2, %s16
      %s226 = smul.u32 2, %s16
      %p227 = scmp.lt.s32.totalorder %s226, 3
      %s228 = scalar_select %p227, %s226, 3
      %s229 = smul.addr %s228, 2
      %s230 = smul.addr %s229, 8
      %s231 = scalar_lea.vmem %s5, %s230
      %s232 = smul.u32 2, %s16
      %v233 = vld [vmem:[%s224] sm:$0xff]
      %v234 = vld [vmem:[%s224 + $0x8] sm:$0xff]
      %v235 = vld [vmem:[%s224 + $0x10] sm:$0xff]
      %v236 = vld [vmem:[%s224 + $0x18] sm:$0xff]
      %v237 = vld [vmem:[%s1] sm:$0xff]
      %v238 = vld [vmem:[%s1 + $0x8] sm:$0xff]
      %v239 = vld [vmem:[%s1 + $0x10] sm:$0xff]
      %v240 = vld [vmem:[%s1 + $0x18] sm:$0xff]
      %v241 = vld [vmem:[%s1 + $0x20] sm:$0xff]
      %v242 = vld [vmem:[%s1 + $0x28] sm:$0xff]
      %v243 = vld [vmem:[%s1 + $0x30] sm:$0xff]
      %v244 = vld [vmem:[%s1 + $0x38] sm:$0xff]
      %v245 = vld [vmem:[%s1 + $0x40] sm:$0xff]
      %v246 = vld [vmem:[%s1 + $0x48] sm:$0xff]
      %v247 = vld [vmem:[%s1 + $0x50] sm:$0xff]
      %v248 = vld [vmem:[%s1 + $0x58] sm:$0xff]
      %v249 = vld [vmem:[%s1 + $0x60] sm:$0xff]
      %v250 = vld [vmem:[%s1 + $0x68] sm:$0xff]
      %v251 = vld [vmem:[%s1 + $0x70] sm:$0xff]
      %v252 = vld [vmem:[%s1 + $0x78] sm:$0xff]
      %v253 = vld [vmem:[%s1 + $0x80] sm:$0xff]
      %v254 = vld [vmem:[%s1 + $0x88] sm:$0xff]
      %v255 = vld [vmem:[%s2] sm:$0x1]
      %v257 = vperm.slane %v255, 0
      %vm259 = vcmask 130048
      %v261 = vsel %vm259, %v234, 0
      %v264 = vsel %vm259, %v236, 0
      %v266 = vand.u32 %v252, 4294901760
      %267 = vmatpush.msra.mxu0 %v266
      %v268 = vand.u32 %v251, 4294901760
      %269 = vmatpush.msra.mxu0 %v268
      %v270 = vand.u32 %v250, 4294901760
      %271 = vmatpush.msra.mxu0 %v270
      %v272 = vand.u32 %v249, 4294901760
      %273 = vmatpush.msra.mxu0 %v272
      %v274 = vand.u32 %v248, 4294901760
      %275 = vmatpush.msra.mxu0 %v274
      %v276 = vand.u32 %v247, 4294901760
      %277 = vmatpush.msra.mxu0 %v276
      %v278 = vand.u32 %v246, 4294901760
      %279 = vmatpush.msra.mxu0 %v278
      %v280 = vand.u32 %v245, 4294901760
      %281 = vmatpush.msra.mxu0 %v280
      %v282 = vand.u32 %v244, 4294901760
      %283 = vmatpush.msra.mxu0 %v282
      %v284 = vand.u32 %v243, 4294901760
      %285 = vmatpush.msra.mxu0 %v284
      %v286 = vand.u32 %v242, 4294901760
      %287 = vmatpush.msra.mxu0 %v286
      %v288 = vand.u32 %v241, 4294901760
      %289 = vmatpush.msra.mxu0 %v288
      %v290 = vand.u32 %v240, 4294901760
      %291 = vmatpush.msra.mxu0 %v290
      %v292 = vand.u32 %v239, 4294901760
      %293 = vmatpush.msra.mxu0 %v292
      %v294 = vand.u32 %v238, 4294901760
      %295 = vmatpush.msra.mxu0 %v294
      %v296 = vand.u32 %v237, 4294901760
      %297 = vmatpush.msra.mxu0 %v296
      %v298 = vand.u32 %v233, 4294901760
      %v299 = vsub.f32 %v233, %v298
      %v300 = vand.u32 %v299, 4294901760
      %v301 = vsub.f32 %v299, %v300
      %v302 = vand.u32 %v301, 4294901760
      %303 = vmatmul.f32.gmra.mxu0 %v302
      %v304 = vpop.f32.mrf.mxu0
      %v305 = vadd.f32 %v257, %v304
      %v306 = vand.u32 %v235, 4294901760
      %v307 = vsub.f32 %v235, %v306
      %v308 = vand.u32 %v307, 4294901760
      %v309 = vsub.f32 %v307, %v308
      %v310 = vand.u32 %v309, 4294901760
      %311 = vmatmul.f32.gmra.mxu0 %v310
      %v312 = vpop.f32.mrf.mxu0
      %v313 = vadd.f32 %v257, %v312
      %314 = vdwg.mxu0
      %v315 = vand.u32 %v252, 4294901760
      %v316 = vsub.f32 %v252, %v315
      %v317 = vand.u32 %v316, 4294901760
      %v318 = vsub.f32 %v316, %v317
      %v319 = vand.u32 %v318, 4294901760
      %320 = vmatpush.msra.mxu0 %v319
      %v321 = vand.u32 %v251, 4294901760
      %v322 = vsub.f32 %v251, %v321
      %v323 = vand.u32 %v322, 4294901760
      %v324 = vsub.f32 %v322, %v323
      %v325 = vand.u32 %v324, 4294901760
      %326 = vmatpush.msra.mxu0 %v325
      %v327 = vand.u32 %v250, 4294901760
      %v328 = vsub.f32 %v250, %v327
      %v329 = vand.u32 %v328, 4294901760
      %v330 = vsub.f32 %v328, %v329
      %v331 = vand.u32 %v330, 4294901760
      %332 = vmatpush.msra.mxu0 %v331
      %v333 = vand.u32 %v249, 4294901760
      %v334 = vsub.f32 %v249, %v333
      %v335 = vand.u32 %v334, 4294901760
      %v336 = vsub.f32 %v334, %v335
      %v337 = vand.u32 %v336, 4294901760
      %338 = vmatpush.msra.mxu0 %v337
      %v339 = vand.u32 %v248, 4294901760
      %v340 = vsub.f32 %v248, %v339
      %v341 = vand.u32 %v340, 4294901760
      %v342 = vsub.f32 %v340, %v341
      %v343 = vand.u32 %v342, 4294901760
      %344 = vmatpush.msra.mxu0 %v343
      %v345 = vand.u32 %v247, 4294901760
      %v346 = vsub.f32 %v247, %v345
      %v347 = vand.u32 %v346, 4294901760
      %v348 = vsub.f32 %v346, %v347
      %v349 = vand.u32 %v348, 4294901760
      %350 = vmatpush.msra.mxu0 %v349
      %v351 = vand.u32 %v246, 4294901760
      %v352 = vsub.f32 %v246, %v351
      %v353 = vand.u32 %v352, 4294901760
      %v354 = vsub.f32 %v352, %v353
      %v355 = vand.u32 %v354, 4294901760
      %356 = vmatpush.msra.mxu0 %v355
      %v357 = vand.u32 %v245, 4294901760
      %v358 = vsub.f32 %v245, %v357
      %v359 = vand.u32 %v358, 4294901760
      %v360 = vsub.f32 %v358, %v359
      %v361 = vand.u32 %v360, 4294901760
      %362 = vmatpush.msra.mxu0 %v361
      %v363 = vand.u32 %v244, 4294901760
      %v364 = vsub.f32 %v244, %v363
      %v365 = vand.u32 %v364, 4294901760
      %v366 = vsub.f32 %v364, %v365
      %v367 = vand.u32 %v366, 4294901760
      %368 = vmatpush.msra.mxu0 %v367
      %v369 = vand.u32 %v243, 4294901760
      %v370 = vsub.f32 %v243, %v369
      %v371 = vand.u32 %v370, 4294901760
      %v372 = vsub.f32 %v370, %v371
      %v373 = vand.u32 %v372, 4294901760
      %374 = vmatpush.msra.mxu0 %v373
      %v375 = vand.u32 %v242, 4294901760
      %v376 = vsub.f32 %v242, %v375
      %v377 = vand.u32 %v376, 4294901760
      %v378 = vsub.f32 %v376, %v377
      %v379 = vand.u32 %v378, 4294901760
      %380 = vmatpush.msra.mxu0 %v379
      %v381 = vand.u32 %v241, 4294901760
      %v382 = vsub.f32 %v241, %v381
      %v383 = vand.u32 %v382, 4294901760
      %v384 = vsub.f32 %v382, %v383
      %v385 = vand.u32 %v384, 4294901760
      %386 = vmatpush.msra.mxu0 %v385
      %v387 = vand.u32 %v240, 4294901760
      %v388 = vsub.f32 %v240, %v387
      %v389 = vand.u32 %v388, 4294901760
      %v390 = vsub.f32 %v388, %v389
      %v391 = vand.u32 %v390, 4294901760
      %392 = vmatpush.msra.mxu0 %v391
      %v393 = vand.u32 %v239, 4294901760
      %v394 = vsub.f32 %v239, %v393
      %v395 = vand.u32 %v394, 4294901760
      %v396 = vsub.f32 %v394, %v395
      %v397 = vand.u32 %v396, 4294901760
      %398 = vmatpush.msra.mxu0 %v397
      %v399 = vand.u32 %v238, 4294901760
      %v400 = vsub.f32 %v238, %v399
      %v401 = vand.u32 %v400, 4294901760
      %v402 = vsub.f32 %v400, %v401
      %v403 = vand.u32 %v402, 4294901760
      %404 = vmatpush.msra.mxu0 %v403
      %v405 = vand.u32 %v237, 4294901760
      %v406 = vsub.f32 %v237, %v405
      %v407 = vand.u32 %v406, 4294901760
      %v408 = vsub.f32 %v406, %v407
      %v409 = vand.u32 %v408, 4294901760
      %410 = vmatpush.msra.mxu0 %v409
      %v411 = vand.u32 %v233, 4294901760
      %412 = vmatmul.f32.gmra.mxu0 %v411
      %v413 = vpop.f32.mrf.mxu0
      %v414 = vadd.f32 %v305, %v413
      %v415 = vand.u32 %v235, 4294901760
      %416 = vmatmul.f32.gmra.mxu0 %v415
      %v417 = vpop.f32.mrf.mxu0
      %v418 = vadd.f32 %v313, %v417
      %419 = vdwg.mxu0
      %v420 = vand.u32 %v252, 4294901760
      %v421 = vsub.f32 %v252, %v420
      %422 = vmatpush.msra.mxu0 %v421
      %v423 = vand.u32 %v251, 4294901760
      %v424 = vsub.f32 %v251, %v423
      %425 = vmatpush.msra.mxu0 %v424
      %v426 = vand.u32 %v250, 4294901760
      %v427 = vsub.f32 %v250, %v426
      %428 = vmatpush.msra.mxu0 %v427
      %v429 = vand.u32 %v249, 4294901760
      %v430 = vsub.f32 %v249, %v429
      %431 = vmatpush.msra.mxu0 %v430
      %v432 = vand.u32 %v248, 4294901760
      %v433 = vsub.f32 %v248, %v432
      %434 = vmatpush.msra.mxu0 %v433
      %v435 = vand.u32 %v247, 4294901760
      %v436 = vsub.f32 %v247, %v435
      %437 = vmatpush.msra.mxu0 %v436
      %v438 = vand.u32 %v246, 4294901760
      %v439 = vsub.f32 %v246, %v438
      %440 = vmatpush.msra.mxu0 %v439
      %v441 = vand.u32 %v245, 4294901760
      %v442 = vsub.f32 %v245, %v441
      %443 = vmatpush.msra.mxu0 %v442
      %v444 = vand.u32 %v244, 4294901760
      %v445 = vsub.f32 %v244, %v444
      %446 = vmatpush.msra.mxu0 %v445
      %v447 = vand.u32 %v243, 4294901760
      %v448 = vsub.f32 %v243, %v447
      %449 = vmatpush.msra.mxu0 %v448
      %v450 = vand.u32 %v242, 4294901760
      %v451 = vsub.f32 %v242, %v450
      %452 = vmatpush.msra.mxu0 %v451
      %v453 = vand.u32 %v241, 4294901760
      %v454 = vsub.f32 %v241, %v453
      %455 = vmatpush.msra.mxu0 %v454
      %v456 = vand.u32 %v240, 4294901760
      %v457 = vsub.f32 %v240, %v456
      %458 = vmatpush.msra.mxu0 %v457
      %v459 = vand.u32 %v239, 4294901760
      %v460 = vsub.f32 %v239, %v459
      %461 = vmatpush.msra.mxu0 %v460
      %v462 = vand.u32 %v238, 4294901760
      %v463 = vsub.f32 %v238, %v462
      %464 = vmatpush.msra.mxu0 %v463
      %v465 = vand.u32 %v237, 4294901760
      %v466 = vsub.f32 %v237, %v465
      %467 = vmatpush.msra.mxu0 %v466
      %v468 = vand.u32 %v233, 4294901760
      %v469 = vsub.f32 %v233, %v468
      %470 = vmatmul.f32.gmra.mxu0 %v469
      %v471 = vpop.f32.mrf.mxu0
      %v472 = vadd.f32 %v414, %v471
      %v473 = vand.u32 %v235, 4294901760
      %v474 = vsub.f32 %v235, %v473
      %475 = vmatmul.f32.gmra.mxu0 %v474
      %v476 = vpop.f32.mrf.mxu0
      %v477 = vadd.f32 %v418, %v476
      %478 = vdwg.mxu0
      %v479 = vand.u32 %v252, 4294901760
      %480 = vmatpush.msra.mxu0 %v479
      %v481 = vand.u32 %v251, 4294901760
      %482 = vmatpush.msra.mxu0 %v481
      %v483 = vand.u32 %v250, 4294901760
      %484 = vmatpush.msra.mxu0 %v483
      %v485 = vand.u32 %v249, 4294901760
      %486 = vmatpush.msra.mxu0 %v485
      %v487 = vand.u32 %v248, 4294901760
      %488 = vmatpush.msra.mxu0 %v487
      %v489 = vand.u32 %v247, 4294901760
      %490 = vmatpush.msra.mxu0 %v489
      %v491 = vand.u32 %v246, 4294901760
      %492 = vmatpush.msra.mxu0 %v491
      %v493 = vand.u32 %v245, 4294901760
      %494 = vmatpush.msra.mxu0 %v493
      %v495 = vand.u32 %v244, 4294901760
      %496 = vmatpush.msra.mxu0 %v495
      %v497 = vand.u32 %v243, 4294901760
      %498 = vmatpush.msra.mxu0 %v497
      %v499 = vand.u32 %v242, 4294901760
      %500 = vmatpush.msra.mxu0 %v499
      %v501 = vand.u32 %v241, 4294901760
      %502 = vmatpush.msra.mxu0 %v501
      %v503 = vand.u32 %v240, 4294901760
      %504 = vmatpush.msra.mxu0 %v503
      %v505 = vand.u32 %v239, 4294901760
      %506 = vmatpush.msra.mxu0 %v505
      %v507 = vand.u32 %v238, 4294901760
      %508 = vmatpush.msra.mxu0 %v507
      %v509 = vand.u32 %v237, 4294901760
      %510 = vmatpush.msra.mxu0 %v509
      %v511 = vand.u32 %v233, 4294901760
      %v512 = vsub.f32 %v233, %v511
      %v513 = vand.u32 %v512, 4294901760
      %514 = vmatmul.f32.gmra.mxu0 %v513
      %v515 = vpop.f32.mrf.mxu0
      %v516 = vadd.f32 %v472, %v515
      %v517 = vand.u32 %v235, 4294901760
      %v518 = vsub.f32 %v235, %v517
      %v519 = vand.u32 %v518, 4294901760
      %520 = vmatmul.f32.gmra.mxu0 %v519
      %v521 = vpop.f32.mrf.mxu0
      %v522 = vadd.f32 %v477, %v521
      %523 = vdwg.mxu0
      %v524 = vand.u32 %v252, 4294901760
      %v525 = vsub.f32 %v252, %v524
      %v526 = vand.u32 %v525, 4294901760
      %527 = vmatpush.msra.mxu0 %v526
      %v528 = vand.u32 %v251, 4294901760
      %v529 = vsub.f32 %v251, %v528
      %v530 = vand.u32 %v529, 4294901760
      %531 = vmatpush.msra.mxu0 %v530
      %v532 = vand.u32 %v250, 4294901760
      %v533 = vsub.f32 %v250, %v532
      %v534 = vand.u32 %v533, 4294901760
      %535 = vmatpush.msra.mxu0 %v534
      %v536 = vand.u32 %v249, 4294901760
      %v537 = vsub.f32 %v249, %v536
      %v538 = vand.u32 %v537, 4294901760
      %539 = vmatpush.msra.mxu0 %v538
      %v540 = vand.u32 %v248, 4294901760
      %v541 = vsub.f32 %v248, %v540
      %v542 = vand.u32 %v541, 4294901760
      %543 = vmatpush.msra.mxu0 %v542
      %v544 = vand.u32 %v247, 4294901760
      %v545 = vsub.f32 %v247, %v544
      %v546 = vand.u32 %v545, 4294901760
      %547 = vmatpush.msra.mxu0 %v546
      %v548 = vand.u32 %v246, 4294901760
      %v549 = vsub.f32 %v246, %v548
      %v550 = vand.u32 %v549, 4294901760
      %551 = vmatpush.msra.mxu0 %v550
      %v552 = vand.u32 %v245, 4294901760
      %v553 = vsub.f32 %v245, %v552
      %v554 = vand.u32 %v553, 4294901760
      %555 = vmatpush.msra.mxu0 %v554
      %v556 = vand.u32 %v244, 4294901760
      %v557 = vsub.f32 %v244, %v556
      %v558 = vand.u32 %v557, 4294901760
      %559 = vmatpush.msra.mxu0 %v558
      %v560 = vand.u32 %v243, 4294901760
      %v561 = vsub.f32 %v243, %v560
      %v562 = vand.u32 %v561, 4294901760
      %563 = vmatpush.msra.mxu0 %v562
      %v564 = vand.u32 %v242, 4294901760
      %v565 = vsub.f32 %v242, %v564
      %v566 = vand.u32 %v565, 4294901760
      %567 = vmatpush.msra.mxu0 %v566
      %v568 = vand.u32 %v241, 4294901760
      %v569 = vsub.f32 %v241, %v568
      %v570 = vand.u32 %v569, 4294901760
      %571 = vmatpush.msra.mxu0 %v570
      %v572 = vand.u32 %v240, 4294901760
      %v573 = vsub.f32 %v240, %v572
      %v574 = vand.u32 %v573, 4294901760
      %575 = vmatpush.msra.mxu0 %v574
      %v576 = vand.u32 %v239, 4294901760
      %v577 = vsub.f32 %v239, %v576
      %v578 = vand.u32 %v577, 4294901760
      %579 = vmatpush.msra.mxu0 %v578
      %v580 = vand.u32 %v238, 4294901760
      %v581 = vsub.f32 %v238, %v580
      %v582 = vand.u32 %v581, 4294901760
      %583 = vmatpush.msra.mxu0 %v582
      %v584 = vand.u32 %v237, 4294901760
      %v585 = vsub.f32 %v237, %v584
      %v586 = vand.u32 %v585, 4294901760
      %587 = vmatpush.msra.mxu0 %v586
      %v588 = vand.u32 %v233, 4294901760
      %589 = vmatmul.f32.gmra.mxu0 %v588
      %v590 = vpop.f32.mrf.mxu0
      %v591 = vadd.f32 %v516, %v590
      %v592 = vand.u32 %v235, 4294901760
      %593 = vmatmul.f32.gmra.mxu0 %v592
      %v594 = vpop.f32.mrf.mxu0
      %v595 = vadd.f32 %v522, %v594
      %596 = vdwg.mxu0
      %v597 = vand.u32 %v252, 4294901760
      %598 = vmatpush.msra.mxu0 %v597
      %v599 = vand.u32 %v251, 4294901760
      %600 = vmatpush.msra.mxu0 %v599
      %v601 = vand.u32 %v250, 4294901760
      %602 = vmatpush.msra.mxu0 %v601
      %v603 = vand.u32 %v249, 4294901760
      %604 = vmatpush.msra.mxu0 %v603
      %v605 = vand.u32 %v248, 4294901760
      %606 = vmatpush.msra.mxu0 %v605
      %v607 = vand.u32 %v247, 4294901760
      %608 = vmatpush.msra.mxu0 %v607
      %v609 = vand.u32 %v246, 4294901760
      %610 = vmatpush.msra.mxu0 %v609
      %v611 = vand.u32 %v245, 4294901760
      %612 = vmatpush.msra.mxu0 %v611
      %v613 = vand.u32 %v244, 4294901760
      %614 = vmatpush.msra.mxu0 %v613
      %v615 = vand.u32 %v243, 4294901760
      %616 = vmatpush.msra.mxu0 %v615
      %v617 = vand.u32 %v242, 4294901760
      %618 = vmatpush.msra.mxu0 %v617
      %v619 = vand.u32 %v241, 4294901760
      %620 = vmatpush.msra.mxu0 %v619
      %v621 = vand.u32 %v240, 4294901760
      %622 = vmatpush.msra.mxu0 %v621
      %v623 = vand.u32 %v239, 4294901760
      %624 = vmatpush.msra.mxu0 %v623
      %v625 = vand.u32 %v238, 4294901760
      %626 = vmatpush.msra.mxu0 %v625
      %v627 = vand.u32 %v237, 4294901760
      %628 = vmatpush.msra.mxu0 %v627
      %v629 = vand.u32 %v233, 4294901760
      %630 = vmatmul.f32.gmra.mxu0 %v629
      %v631 = vpop.f32.mrf.mxu0
      %v632 = vadd.f32 %v591, %v631
      %v633 = vand.u32 %v235, 4294901760
      %634 = vmatmul.f32.gmra.mxu0 %v633
      %v635 = vpop.f32.mrf.mxu0
      %v636 = vadd.f32 %v595, %v635
      %637 = vdwg.mxu0
      %638 = vmatpush.msra.mxu0 0.0
      %639 = vmatpush.msra.mxu0 0.0
      %640 = vmatpush.msra.mxu0 0.0
      %641 = vmatpush.msra.mxu0 0.0
      %642 = vmatpush.msra.mxu0 0.0
      %643 = vmatpush.msra.mxu0 0.0
      %644 = vmatpush.msra.mxu0 0.0
      %645 = vmatpush.msra.mxu0 0.0
      %646 = vmatpush.msra.mxu0 0.0
      %647 = vmatpush.msra.mxu0 0.0
      %648 = vmatpush.msra.mxu0 0.0
      %649 = vmatpush.msra.mxu0 0.0
      %650 = vmatpush.msra.mxu0 0.0
      %651 = vmatpush.msra.mxu0 0.0
      %v652 = vand.u32 %v254, 4294901760
      %653 = vmatpush.msra.mxu0 %v652
      %v654 = vand.u32 %v253, 4294901760
      %655 = vmatpush.msra.mxu0 %v654
      %v656 = vand.u32 %v261, 4294901760
      %v657 = vsub.f32 %v261, %v656
      %v658 = vand.u32 %v657, 4294901760
      %v659 = vsub.f32 %v657, %v658
      %v660 = vand.u32 %v659, 4294901760
      %661 = vmatmul.f32.gmra.mxu0 %v660
      %v662 = vpop.f32.mrf.mxu0
      %v663 = vadd.f32 %v632, %v662
      %v664 = vand.u32 %v264, 4294901760
      %v665 = vsub.f32 %v264, %v664
      %v666 = vand.u32 %v665, 4294901760
      %v667 = vsub.f32 %v665, %v666
      %v668 = vand.u32 %v667, 4294901760
      %669 = vmatmul.f32.gmra.mxu0 %v668
      %v670 = vpop.f32.mrf.mxu0
      %v671 = vadd.f32 %v636, %v670
      %672 = vdwg.mxu0
      %673 = vmatpush.msra.mxu0 0.0
      %674 = vmatpush.msra.mxu0 0.0
      %675 = vmatpush.msra.mxu0 0.0
      %676 = vmatpush.msra.mxu0 0.0
      %677 = vmatpush.msra.mxu0 0.0
      %678 = vmatpush.msra.mxu0 0.0
      %679 = vmatpush.msra.mxu0 0.0
      %680 = vmatpush.msra.mxu0 0.0
      %681 = vmatpush.msra.mxu0 0.0
      %682 = vmatpush.msra.mxu0 0.0
      %683 = vmatpush.msra.mxu0 0.0
      %684 = vmatpush.msra.mxu0 0.0
      %685 = vmatpush.msra.mxu0 0.0
      %686 = vmatpush.msra.mxu0 0.0
      %v687 = vand.u32 %v254, 4294901760
      %v688 = vsub.f32 %v254, %v687
      %v689 = vand.u32 %v688, 4294901760
      %v690 = vsub.f32 %v688, %v689
      %v691 = vand.u32 %v690, 4294901760
      %692 = vmatpush.msra.mxu0 %v691
      %v693 = vand.u32 %v253, 4294901760
      %v694 = vsub.f32 %v253, %v693
      %v695 = vand.u32 %v694, 4294901760
      %v696 = vsub.f32 %v694, %v695
      %v697 = vand.u32 %v696, 4294901760
      %698 = vmatpush.msra.mxu0 %v697
      %v699 = vand.u32 %v261, 4294901760
      %700 = vmatmul.f32.gmra.mxu0 %v699
      %v701 = vpop.f32.mrf.mxu0
      %v702 = vadd.f32 %v663, %v701
      %v703 = vand.u32 %v264, 4294901760
      %704 = vmatmul.f32.gmra.mxu0 %v703
      %v705 = vpop.f32.mrf.mxu0
      %v706 = vadd.f32 %v671, %v705
      %707 = vdwg.mxu0
      %708 = vmatpush.msra.mxu0 0.0
      %709 = vmatpush.msra.mxu0 0.0
      %710 = vmatpush.msra.mxu0 0.0
      %711 = vmatpush.msra.mxu0 0.0
      %712 = vmatpush.msra.mxu0 0.0
      %713 = vmatpush.msra.mxu0 0.0
      %714 = vmatpush.msra.mxu0 0.0
      %715 = vmatpush.msra.mxu0 0.0
      %716 = vmatpush.msra.mxu0 0.0
      %717 = vmatpush.msra.mxu0 0.0
      %718 = vmatpush.msra.mxu0 0.0
      %719 = vmatpush.msra.mxu0 0.0
      %720 = vmatpush.msra.mxu0 0.0
      %721 = vmatpush.msra.mxu0 0.0
      %v722 = vand.u32 %v254, 4294901760
      %v723 = vsub.f32 %v254, %v722
      %724 = vmatpush.msra.mxu0 %v723
      %v725 = vand.u32 %v253, 4294901760
      %v726 = vsub.f32 %v253, %v725
      %727 = vmatpush.msra.mxu0 %v726
      %v728 = vand.u32 %v261, 4294901760
      %v729 = vsub.f32 %v261, %v728
      %730 = vmatmul.f32.gmra.mxu0 %v729
      %v731 = vpop.f32.mrf.mxu0
      %v732 = vadd.f32 %v702, %v731
      %v733 = vand.u32 %v264, 4294901760
      %v734 = vsub.f32 %v264, %v733
      %735 = vmatmul.f32.gmra.mxu0 %v734
      %v736 = vpop.f32.mrf.mxu0
      %v737 = vadd.f32 %v706, %v736
      %738 = vdwg.mxu0
      %739 = vmatpush.msra.mxu0 0.0
      %740 = vmatpush.msra.mxu0 0.0
      %741 = vmatpush.msra.mxu0 0.0
      %742 = vmatpush.msra.mxu0 0.0
      %743 = vmatpush.msra.mxu0 0.0
      %744 = vmatpush.msra.mxu0 0.0
      %745 = vmatpush.msra.mxu0 0.0
      %746 = vmatpush.msra.mxu0 0.0
      %747 = vmatpush.msra.mxu0 0.0
      %748 = vmatpush.msra.mxu0 0.0
      %749 = vmatpush.msra.mxu0 0.0
      %750 = vmatpush.msra.mxu0 0.0
      %751 = vmatpush.msra.mxu0 0.0
      %752 = vmatpush.msra.mxu0 0.0
      %v753 = vand.u32 %v254, 4294901760
      %754 = vmatpush.msra.mxu0 %v753
      %v755 = vand.u32 %v253, 4294901760
      %756 = vmatpush.msra.mxu0 %v755
      %v757 = vand.u32 %v261, 4294901760
      %v758 = vsub.f32 %v261, %v757
      %v759 = vand.u32 %v758, 4294901760
      %760 = vmatmul.f32.gmra.mxu0 %v759
      %v761 = vpop.f32.mrf.mxu0
      %v762 = vadd.f32 %v732, %v761
      %v763 = vand.u32 %v264, 4294901760
      %v764 = vsub.f32 %v264, %v763
      %v765 = vand.u32 %v764, 4294901760
      %766 = vmatmul.f32.gmra.mxu0 %v765
      %v767 = vpop.f32.mrf.mxu0
      %v768 = vadd.f32 %v737, %v767
      %769 = vdwg.mxu0
      %770 = vmatpush.msra.mxu0 0.0
      %771 = vmatpush.msra.mxu0 0.0
      %772 = vmatpush.msra.mxu0 0.0
      %773 = vmatpush.msra.mxu0 0.0
      %774 = vmatpush.msra.mxu0 0.0
      %775 = vmatpush.msra.mxu0 0.0
      %776 = vmatpush.msra.mxu0 0.0
      %777 = vmatpush.msra.mxu0 0.0
      %778 = vmatpush.msra.mxu0 0.0
      %779 = vmatpush.msra.mxu0 0.0
      %780 = vmatpush.msra.mxu0 0.0
      %781 = vmatpush.msra.mxu0 0.0
      %782 = vmatpush.msra.mxu0 0.0
      %783 = vmatpush.msra.mxu0 0.0
      %v784 = vand.u32 %v254, 4294901760
      %v785 = vsub.f32 %v254, %v784
      %v786 = vand.u32 %v785, 4294901760
      %787 = vmatpush.msra.mxu0 %v786
      %v788 = vand.u32 %v253, 4294901760
      %v789 = vsub.f32 %v253, %v788
      %v790 = vand.u32 %v789, 4294901760
      %791 = vmatpush.msra.mxu0 %v790
      %v792 = vand.u32 %v261, 4294901760
      %793 = vmatmul.f32.gmra.mxu0 %v792
      %v794 = vpop.f32.mrf.mxu0
      %v795 = vadd.f32 %v762, %v794
      %v796 = vand.u32 %v264, 4294901760
      %797 = vmatmul.f32.gmra.mxu0 %v796
      %v798 = vpop.f32.mrf.mxu0
      %v799 = vadd.f32 %v768, %v798
      %800 = vdwg.mxu0
      %801 = vmatpush.msra.mxu0 0.0
      %802 = vmatpush.msra.mxu0 0.0
      %803 = vmatpush.msra.mxu0 0.0
      %804 = vmatpush.msra.mxu0 0.0
      %805 = vmatpush.msra.mxu0 0.0
      %806 = vmatpush.msra.mxu0 0.0
      %807 = vmatpush.msra.mxu0 0.0
      %808 = vmatpush.msra.mxu0 0.0
      %809 = vmatpush.msra.mxu0 0.0
      %810 = vmatpush.msra.mxu0 0.0
      %811 = vmatpush.msra.mxu0 0.0
      %812 = vmatpush.msra.mxu0 0.0
      %813 = vmatpush.msra.mxu0 0.0
      %814 = vmatpush.msra.mxu0 0.0
      %v815 = vand.u32 %v254, 4294901760
      %816 = vmatpush.msra.mxu0 %v815
      %v817 = vand.u32 %v253, 4294901760
      %818 = vmatpush.msra.mxu0 %v817
      %v819 = vand.u32 %v261, 4294901760
      %820 = vmatmul.f32.gmra.mxu0 %v819
      %v821 = vpop.f32.mrf.mxu0
      %v822 = vadd.f32 %v795, %v821
      %v823 = vand.u32 %v264, 4294901760
      %824 = vmatmul.f32.gmra.mxu0 %v823
      %v825 = vpop.f32.mrf.mxu0
      %v826 = vadd.f32 %v799, %v825
      %827 = vdwg.mxu0
      %v828 = vmax.f32 %v822, 0.0
      %v829 = vmax.f32 %v826, 0.0
      %v830 = vld [vmem:[%s3] sm:$0xff]
      %v831 = vld [vmem:[%s3 + $0x8] sm:$0xff]
      %v832 = vld [vmem:[%s3 + $0x10] sm:$0xff]
      %v833 = vld [vmem:[%s3 + $0x18] sm:$0xff]
      %v834 = vld [vmem:[%s3 + $0x20] sm:$0xff]
      %v835 = vld [vmem:[%s3 + $0x28] sm:$0xff]
      %v836 = vld [vmem:[%s3 + $0x30] sm:$0xff]
      %v837 = vld [vmem:[%s3 + $0x38] sm:$0xff]
      %v838 = vld [vmem:[%s3 + $0x40] sm:$0xff]
      %v839 = vld [vmem:[%s3 + $0x48] sm:$0xff]
      %v840 = vld [vmem:[%s3 + $0x50] sm:$0xff]
      %v841 = vld [vmem:[%s3 + $0x58] sm:$0xff]
      %v842 = vld [vmem:[%s3 + $0x60] sm:$0xff]
      %v843 = vld [vmem:[%s3 + $0x68] sm:$0xff]
      %v844 = vld [vmem:[%s3 + $0x70] sm:$0xff]
      %v845 = vld [vmem:[%s3 + $0x78] sm:$0xff]
      %v846 = vld [vmem:[%s4] sm:$0x3]
      %v848 = vperm.slane %v846, 0
      %v849 = vperm.slane %v846, 1
      %vm852 = vcmask 523264
      %v854 = vsel %vm852, %v828, 0
      %v857 = vsel %vm852, %v829, 0
      %859 = vmatpush.msra.mxu0 0.0
      %860 = vmatpush.msra.mxu0 0.0
      %861 = vmatpush.msra.mxu0 0.0
      %862 = vmatpush.msra.mxu0 0.0
      %863 = vmatpush.msra.mxu0 0.0
      %864 = vmatpush.msra.mxu0 0.0
      %865 = vmatpush.msra.mxu0 0.0
      %866 = vmatpush.msra.mxu0 0.0
      %v867 = vand.u32 %v844, 4294901760
      %868 = vmatpush.msra.mxu0 %v867
      %v869 = vand.u32 %v842, 4294901760
      %870 = vmatpush.msra.mxu0 %v869
      %v871 = vand.u32 %v840, 4294901760
      %872 = vmatpush.msra.mxu0 %v871
      %v873 = vand.u32 %v838, 4294901760
      %874 = vmatpush.msra.mxu0 %v873
      %v875 = vand.u32 %v836, 4294901760
      %876 = vmatpush.msra.mxu0 %v875
      %v877 = vand.u32 %v834, 4294901760
      %878 = vmatpush.msra.mxu0 %v877
      %v879 = vand.u32 %v832, 4294901760
      %880 = vmatpush.msra.mxu0 %v879
      %v881 = vand.u32 %v830, 4294901760
      %882 = vmatpush.msra.mxu0 %v881
      %v883 = vand.u32 %v854, 4294901760
      %v884 = vsub.f32 %v854, %v883
      %v885 = vand.u32 %v884, 4294901760
      %v886 = vsub.f32 %v884, %v885
      %v887 = vand.u32 %v886, 4294901760
      %888 = vmatmul.f32.gmra.mxu0 %v887
      %v889 = vpop.f32.mrf.mxu0
      %v890 = vadd.f32 %v848, %v889
      %v891 = vand.u32 %v857, 4294901760
      %v892 = vsub.f32 %v857, %v891
      %v893 = vand.u32 %v892, 4294901760
      %v894 = vsub.f32 %v892, %v893
      %v895 = vand.u32 %v894, 4294901760
      %896 = vmatmul.f32.gmra.mxu0 %v895
      %v897 = vpop.f32.mrf.mxu0
      %v898 = vadd.f32 %v848, %v897
      %899 = vdwg.mxu0
      %900 = vmatpush.msra.mxu0 0.0
      %901 = vmatpush.msra.mxu0 0.0
      %902 = vmatpush.msra.mxu0 0.0
      %903 = vmatpush.msra.mxu0 0.0
      %904 = vmatpush.msra.mxu0 0.0
      %905 = vmatpush.msra.mxu0 0.0
      %906 = vmatpush.msra.mxu0 0.0
      %907 = vmatpush.msra.mxu0 0.0
      %v908 = vand.u32 %v844, 4294901760
      %v909 = vsub.f32 %v844, %v908
      %v910 = vand.u32 %v909, 4294901760
      %v911 = vsub.f32 %v909, %v910
      %v912 = vand.u32 %v911, 4294901760
      %913 = vmatpush.msra.mxu0 %v912
      %v914 = vand.u32 %v842, 4294901760
      %v915 = vsub.f32 %v842, %v914
      %v916 = vand.u32 %v915, 4294901760
      %v917 = vsub.f32 %v915, %v916
      %v918 = vand.u32 %v917, 4294901760
      %919 = vmatpush.msra.mxu0 %v918
      %v920 = vand.u32 %v840, 4294901760
      %v921 = vsub.f32 %v840, %v920
      %v922 = vand.u32 %v921, 4294901760
      %v923 = vsub.f32 %v921, %v922
      %v924 = vand.u32 %v923, 4294901760
      %925 = vmatpush.msra.mxu0 %v924
      %v926 = vand.u32 %v838, 4294901760
      %v927 = vsub.f32 %v838, %v926
      %v928 = vand.u32 %v927, 4294901760
      %v929 = vsub.f32 %v927, %v928
      %v930 = vand.u32 %v929, 4294901760
      %931 = vmatpush.msra.mxu0 %v930
      %v932 = vand.u32 %v836, 4294901760
      %v933 = vsub.f32 %v836, %v932
      %v934 = vand.u32 %v933, 4294901760
      %v935 = vsub.f32 %v933, %v934
      %v936 = vand.u32 %v935, 4294901760
      %937 = vmatpush.msra.mxu0 %v936
      %v938 = vand.u32 %v834, 4294901760
      %v939 = vsub.f32 %v834, %v938
      %v940 = vand.u32 %v939, 4294901760
      %v941 = vsub.f32 %v939, %v940
      %v942 = vand.u32 %v941, 4294901760
      %943 = vmatpush.msra.mxu0 %v942
      %v944 = vand.u32 %v832, 4294901760
      %v945 = vsub.f32 %v832, %v944
      %v946 = vand.u32 %v945, 4294901760
      %v947 = vsub.f32 %v945, %v946
      %v948 = vand.u32 %v947, 4294901760
      %949 = vmatpush.msra.mxu0 %v948
      %v950 = vand.u32 %v830, 4294901760
      %v951 = vsub.f32 %v830, %v950
      %v952 = vand.u32 %v951, 4294901760
      %v953 = vsub.f32 %v951, %v952
      %v954 = vand.u32 %v953, 4294901760
      %955 = vmatpush.msra.mxu0 %v954
      %v956 = vand.u32 %v854, 4294901760
      %957 = vmatmul.f32.gmra.mxu0 %v956
      %v958 = vpop.f32.mrf.mxu0
      %v959 = vadd.f32 %v890, %v958
      %v960 = vand.u32 %v857, 4294901760
      %961 = vmatmul.f32.gmra.mxu0 %v960
      %v962 = vpop.f32.mrf.mxu0
      %v963 = vadd.f32 %v898, %v962
      %964 = vdwg.mxu0
      %965 = vmatpush.msra.mxu0 0.0
      %966 = vmatpush.msra.mxu0 0.0
      %967 = vmatpush.msra.mxu0 0.0
      %968 = vmatpush.msra.mxu0 0.0
      %969 = vmatpush.msra.mxu0 0.0
      %970 = vmatpush.msra.mxu0 0.0
      %971 = vmatpush.msra.mxu0 0.0
      %972 = vmatpush.msra.mxu0 0.0
      %v973 = vand.u32 %v844, 4294901760
      %v974 = vsub.f32 %v844, %v973
      %975 = vmatpush.msra.mxu0 %v974
      %v976 = vand.u32 %v842, 4294901760
      %v977 = vsub.f32 %v842, %v976
      %978 = vmatpush.msra.mxu0 %v977
      %v979 = vand.u32 %v840, 4294901760
      %v980 = vsub.f32 %v840, %v979
      %981 = vmatpush.msra.mxu0 %v980
      %v982 = vand.u32 %v838, 4294901760
      %v983 = vsub.f32 %v838, %v982
      %984 = vmatpush.msra.mxu0 %v983
      %v985 = vand.u32 %v836, 4294901760
      %v986 = vsub.f32 %v836, %v985
      %987 = vmatpush.msra.mxu0 %v986
      %v988 = vand.u32 %v834, 4294901760
      %v989 = vsub.f32 %v834, %v988
      %990 = vmatpush.msra.mxu0 %v989
      %v991 = vand.u32 %v832, 4294901760
      %v992 = vsub.f32 %v832, %v991
      %993 = vmatpush.msra.mxu0 %v992
      %v994 = vand.u32 %v830, 4294901760
      %v995 = vsub.f32 %v830, %v994
      %996 = vmatpush.msra.mxu0 %v995
      %v997 = vand.u32 %v854, 4294901760
      %v998 = vsub.f32 %v854, %v997
      %999 = vmatmul.f32.gmra.mxu0 %v998
      %v1000 = vpop.f32.mrf.mxu0
      %v1001 = vadd.f32 %v959, %v1000
      %v1002 = vand.u32 %v857, 4294901760
      %v1003 = vsub.f32 %v857, %v1002
      %1004 = vmatmul.f32.gmra.mxu0 %v1003
      %v1005 = vpop.f32.mrf.mxu0
      %v1006 = vadd.f32 %v963, %v1005
      %1007 = vdwg.mxu0
      %1008 = vmatpush.msra.mxu0 0.0
      %1009 = vmatpush.msra.mxu0 0.0
      %1010 = vmatpush.msra.mxu0 0.0
      %1011 = vmatpush.msra.mxu0 0.0
      %1012 = vmatpush.msra.mxu0 0.0
      %1013 = vmatpush.msra.mxu0 0.0
      %1014 = vmatpush.msra.mxu0 0.0
      %1015 = vmatpush.msra.mxu0 0.0
      %v1016 = vand.u32 %v844, 4294901760
      %1017 = vmatpush.msra.mxu0 %v1016
      %v1018 = vand.u32 %v842, 4294901760
      %1019 = vmatpush.msra.mxu0 %v1018
      %v1020 = vand.u32 %v840, 4294901760
      %1021 = vmatpush.msra.mxu0 %v1020
      %v1022 = vand.u32 %v838, 4294901760
      %1023 = vmatpush.msra.mxu0 %v1022
      %v1024 = vand.u32 %v836, 4294901760
      %1025 = vmatpush.msra.mxu0 %v1024
      %v1026 = vand.u32 %v834, 4294901760
      %1027 = vmatpush.msra.mxu0 %v1026
      %v1028 = vand.u32 %v832, 4294901760
      %1029 = vmatpush.msra.mxu0 %v1028
      %v1030 = vand.u32 %v830, 4294901760
      %1031 = vmatpush.msra.mxu0 %v1030
      %v1032 = vand.u32 %v854, 4294901760
      %v1033 = vsub.f32 %v854, %v1032
      %v1034 = vand.u32 %v1033, 4294901760
      %1035 = vmatmul.f32.gmra.mxu0 %v1034
      %v1036 = vpop.f32.mrf.mxu0
      %v1037 = vadd.f32 %v1001, %v1036
      %v1038 = vand.u32 %v857, 4294901760
      %v1039 = vsub.f32 %v857, %v1038
      %v1040 = vand.u32 %v1039, 4294901760
      %1041 = vmatmul.f32.gmra.mxu0 %v1040
      %v1042 = vpop.f32.mrf.mxu0
      %v1043 = vadd.f32 %v1006, %v1042
      %1044 = vdwg.mxu0
      %1045 = vmatpush.msra.mxu0 0.0
      %1046 = vmatpush.msra.mxu0 0.0
      %1047 = vmatpush.msra.mxu0 0.0
      %1048 = vmatpush.msra.mxu0 0.0
      %1049 = vmatpush.msra.mxu0 0.0
      %1050 = vmatpush.msra.mxu0 0.0
      %1051 = vmatpush.msra.mxu0 0.0
      %1052 = vmatpush.msra.mxu0 0.0
      %v1053 = vand.u32 %v844, 4294901760
      %v1054 = vsub.f32 %v844, %v1053
      %v1055 = vand.u32 %v1054, 4294901760
      %1056 = vmatpush.msra.mxu0 %v1055
      %v1057 = vand.u32 %v842, 4294901760
      %v1058 = vsub.f32 %v842, %v1057
      %v1059 = vand.u32 %v1058, 4294901760
      %1060 = vmatpush.msra.mxu0 %v1059
      %v1061 = vand.u32 %v840, 4294901760
      %v1062 = vsub.f32 %v840, %v1061
      %v1063 = vand.u32 %v1062, 4294901760
      %1064 = vmatpush.msra.mxu0 %v1063
      %v1065 = vand.u32 %v838, 4294901760
      %v1066 = vsub.f32 %v838, %v1065
      %v1067 = vand.u32 %v1066, 4294901760
      %1068 = vmatpush.msra.mxu0 %v1067
      %v1069 = vand.u32 %v836, 4294901760
      %v1070 = vsub.f32 %v836, %v1069
      %v1071 = vand.u32 %v1070, 4294901760
      %1072 = vmatpush.msra.mxu0 %v1071
      %v1073 = vand.u32 %v834, 4294901760
      %v1074 = vsub.f32 %v834, %v1073
      %v1075 = vand.u32 %v1074, 4294901760
      %1076 = vmatpush.msra.mxu0 %v1075
      %v1077 = vand.u32 %v832, 4294901760
      %v1078 = vsub.f32 %v832, %v1077
      %v1079 = vand.u32 %v1078, 4294901760
      %1080 = vmatpush.msra.mxu0 %v1079
      %v1081 = vand.u32 %v830, 4294901760
      %v1082 = vsub.f32 %v830, %v1081
      %v1083 = vand.u32 %v1082, 4294901760
      %1084 = vmatpush.msra.mxu0 %v1083
      %v1085 = vand.u32 %v854, 4294901760
      %1086 = vmatmul.f32.gmra.mxu0 %v1085
      %v1087 = vpop.f32.mrf.mxu0
      %v1088 = vadd.f32 %v1037, %v1087
      %v1089 = vand.u32 %v857, 4294901760
      %1090 = vmatmul.f32.gmra.mxu0 %v1089
      %v1091 = vpop.f32.mrf.mxu0
      %v1092 = vadd.f32 %v1043, %v1091
      %1093 = vdwg.mxu0
      %1094 = vmatpush.msra.mxu0 0.0
      %1095 = vmatpush.msra.mxu0 0.0
      %1096 = vmatpush.msra.mxu0 0.0
      %1097 = vmatpush.msra.mxu0 0.0
      %1098 = vmatpush.msra.mxu0 0.0
      %1099 = vmatpush.msra.mxu0 0.0
      %1100 = vmatpush.msra.mxu0 0.0
      %1101 = vmatpush.msra.mxu0 0.0
      %v1102 = vand.u32 %v844, 4294901760
      %1103 = vmatpush.msra.mxu0 %v1102
      %v1104 = vand.u32 %v842, 4294901760
      %1105 = vmatpush.msra.mxu0 %v1104
      %v1106 = vand.u32 %v840, 4294901760
      %1107 = vmatpush.msra.mxu0 %v1106
      %v1108 = vand.u32 %v838, 4294901760
      %1109 = vmatpush.msra.mxu0 %v1108
      %v1110 = vand.u32 %v836, 4294901760
      %1111 = vmatpush.msra.mxu0 %v1110
      %v1112 = vand.u32 %v834, 4294901760
      %1113 = vmatpush.msra.mxu0 %v1112
      %v1114 = vand.u32 %v832, 4294901760
      %1115 = vmatpush.msra.mxu0 %v1114
      %v1116 = vand.u32 %v830, 4294901760
      %1117 = vmatpush.msra.mxu0 %v1116
      %v1118 = vand.u32 %v854, 4294901760
      %1119 = vmatmul.f32.gmra.mxu0 %v1118
      %v1120 = vpop.f32.mrf.mxu0
      %v1121 = vadd.f32 %v1088, %v1120
      %v1122 = vand.u32 %v857, 4294901760
      %1123 = vmatmul.f32.gmra.mxu0 %v1122
      %v1124 = vpop.f32.mrf.mxu0
      %v1125 = vadd.f32 %v1092, %v1124
      %1126 = vdwg.mxu0
      %1127 = vmatpush.msra.mxu0 0.0
      %1128 = vmatpush.msra.mxu0 0.0
      %1129 = vmatpush.msra.mxu0 0.0
      %1130 = vmatpush.msra.mxu0 0.0
      %1131 = vmatpush.msra.mxu0 0.0
      %1132 = vmatpush.msra.mxu0 0.0
      %1133 = vmatpush.msra.mxu0 0.0
      %1134 = vmatpush.msra.mxu0 0.0
      %v1135 = vand.u32 %v845, 4294901760
      %1136 = vmatpush.msra.mxu0 %v1135
      %v1137 = vand.u32 %v843, 4294901760
      %1138 = vmatpush.msra.mxu0 %v1137
      %v1139 = vand.u32 %v841, 4294901760
      %1140 = vmatpush.msra.mxu0 %v1139
      %v1141 = vand.u32 %v839, 4294901760
      %1142 = vmatpush.msra.mxu0 %v1141
      %v1143 = vand.u32 %v837, 4294901760
      %1144 = vmatpush.msra.mxu0 %v1143
      %v1145 = vand.u32 %v835, 4294901760
      %1146 = vmatpush.msra.mxu0 %v1145
      %v1147 = vand.u32 %v833, 4294901760
      %1148 = vmatpush.msra.mxu0 %v1147
      %v1149 = vand.u32 %v831, 4294901760
      %1150 = vmatpush.msra.mxu0 %v1149
      %v1151 = vand.u32 %v854, 4294901760
      %v1152 = vsub.f32 %v854, %v1151
      %v1153 = vand.u32 %v1152, 4294901760
      %v1154 = vsub.f32 %v1152, %v1153
      %v1155 = vand.u32 %v1154, 4294901760
      %1156 = vmatmul.f32.gmra.mxu0 %v1155
      %v1157 = vpop.f32.mrf.mxu0
      %v1158 = vadd.f32 %v849, %v1157
      %v1159 = vand.u32 %v857, 4294901760
      %v1160 = vsub.f32 %v857, %v1159
      %v1161 = vand.u32 %v1160, 4294901760
      %v1162 = vsub.f32 %v1160, %v1161
      %v1163 = vand.u32 %v1162, 4294901760
      %1164 = vmatmul.f32.gmra.mxu0 %v1163
      %v1165 = vpop.f32.mrf.mxu0
      %v1166 = vadd.f32 %v849, %v1165
      %1167 = vdwg.mxu0
      %1168 = vmatpush.msra.mxu0 0.0
      %1169 = vmatpush.msra.mxu0 0.0
      %1170 = vmatpush.msra.mxu0 0.0
      %1171 = vmatpush.msra.mxu0 0.0
      %1172 = vmatpush.msra.mxu0 0.0
      %1173 = vmatpush.msra.mxu0 0.0
      %1174 = vmatpush.msra.mxu0 0.0
      %1175 = vmatpush.msra.mxu0 0.0
      %v1176 = vand.u32 %v845, 4294901760
      %v1177 = vsub.f32 %v845, %v1176
      %v1178 = vand.u32 %v1177, 4294901760
      %v1179 = vsub.f32 %v1177, %v1178
      %v1180 = vand.u32 %v1179, 4294901760
      %1181 = vmatpush.msra.mxu0 %v1180
      %v1182 = vand.u32 %v843, 4294901760
      %v1183 = vsub.f32 %v843, %v1182
      %v1184 = vand.u32 %v1183, 4294901760
      %v1185 = vsub.f32 %v1183, %v1184
      %v1186 = vand.u32 %v1185, 4294901760
      %1187 = vmatpush.msra.mxu0 %v1186
      %v1188 = vand.u32 %v841, 4294901760
      %v1189 = vsub.f32 %v841, %v1188
      %v1190 = vand.u32 %v1189, 4294901760
      %v1191 = vsub.f32 %v1189, %v1190
      %v1192 = vand.u32 %v1191, 4294901760
      %1193 = vmatpush.msra.mxu0 %v1192
      %v1194 = vand.u32 %v839, 4294901760
      %v1195 = vsub.f32 %v839, %v1194
      %v1196 = vand.u32 %v1195, 4294901760
      %v1197 = vsub.f32 %v1195, %v1196
      %v1198 = vand.u32 %v1197, 4294901760
      %1199 = vmatpush.msra.mxu0 %v1198
      %v1200 = vand.u32 %v837, 4294901760
      %v1201 = vsub.f32 %v837, %v1200
      %v1202 = vand.u32 %v1201, 4294901760
      %v1203 = vsub.f32 %v1201, %v1202
      %v1204 = vand.u32 %v1203, 4294901760
      %1205 = vmatpush.msra.mxu0 %v1204
      %v1206 = vand.u32 %v835, 4294901760
      %v1207 = vsub.f32 %v835, %v1206
      %v1208 = vand.u32 %v1207, 4294901760
      %v1209 = vsub.f32 %v1207, %v1208
      %v1210 = vand.u32 %v1209, 4294901760
      %1211 = vmatpush.msra.mxu0 %v1210
      %v1212 = vand.u32 %v833, 4294901760
      %v1213 = vsub.f32 %v833, %v1212
      %v1214 = vand.u32 %v1213, 4294901760
      %v1215 = vsub.f32 %v1213, %v1214
      %v1216 = vand.u32 %v1215, 4294901760
      %1217 = vmatpush.msra.mxu0 %v1216
      %v1218 = vand.u32 %v831, 4294901760
      %v1219 = vsub.f32 %v831, %v1218
      %v1220 = vand.u32 %v1219, 4294901760
      %v1221 = vsub.f32 %v1219, %v1220
      %v1222 = vand.u32 %v1221, 4294901760
      %1223 = vmatpush.msra.mxu0 %v1222
      %v1224 = vand.u32 %v854, 4294901760
      %1225 = vmatmul.f32.gmra.mxu0 %v1224
      %v1226 = vpop.f32.mrf.mxu0
      %v1227 = vadd.f32 %v1158, %v1226
      %v1228 = vand.u32 %v857, 4294901760
      %1229 = vmatmul.f32.gmra.mxu0 %v1228
      %v1230 = vpop.f32.mrf.mxu0
      %v1231 = vadd.f32 %v1166, %v1230
      %1232 = vdwg.mxu0
      %1233 = vmatpush.msra.mxu0 0.0
      %1234 = vmatpush.msra.mxu0 0.0
      %1235 = vmatpush.msra.mxu0 0.0
      %1236 = vmatpush.msra.mxu0 0.0
      %1237 = vmatpush.msra.mxu0 0.0
      %1238 = vmatpush.msra.mxu0 0.0
      %1239 = vmatpush.msra.mxu0 0.0
      %1240 = vmatpush.msra.mxu0 0.0
      %v1241 = vand.u32 %v845, 4294901760
      %v1242 = vsub.f32 %v845, %v1241
      %1243 = vmatpush.msra.mxu0 %v1242
      %v1244 = vand.u32 %v843, 4294901760
      %v1245 = vsub.f32 %v843, %v1244
      %1246 = vmatpush.msra.mxu0 %v1245
      %v1247 = vand.u32 %v841, 4294901760
      %v1248 = vsub.f32 %v841, %v1247
      %1249 = vmatpush.msra.mxu0 %v1248
      %v1250 = vand.u32 %v839, 4294901760
      %v1251 = vsub.f32 %v839, %v1250
      %1252 = vmatpush.msra.mxu0 %v1251
      %v1253 = vand.u32 %v837, 4294901760
      %v1254 = vsub.f32 %v837, %v1253
      %1255 = vmatpush.msra.mxu0 %v1254
      %v1256 = vand.u32 %v835, 4294901760
      %v1257 = vsub.f32 %v835, %v1256
      %1258 = vmatpush.msra.mxu0 %v1257
      %v1259 = vand.u32 %v833, 4294901760
      %v1260 = vsub.f32 %v833, %v1259
      %1261 = vmatpush.msra.mxu0 %v1260
      %v1262 = vand.u32 %v831, 4294901760
      %v1263 = vsub.f32 %v831, %v1262
      %1264 = vmatpush.msra.mxu0 %v1263
      %v1265 = vand.u32 %v854, 4294901760
      %v1266 = vsub.f32 %v854, %v1265
      %1267 = vmatmul.f32.gmra.mxu0 %v1266
      %v1268 = vpop.f32.mrf.mxu0
      %v1269 = vadd.f32 %v1227, %v1268
      %v1270 = vand.u32 %v857, 4294901760
      %v1271 = vsub.f32 %v857, %v1270
      %1272 = vmatmul.f32.gmra.mxu0 %v1271
      %v1273 = vpop.f32.mrf.mxu0
      %v1274 = vadd.f32 %v1231, %v1273
      %1275 = vdwg.mxu0
      %1276 = vmatpush.msra.mxu0 0.0
      %1277 = vmatpush.msra.mxu0 0.0
      %1278 = vmatpush.msra.mxu0 0.0
      %1279 = vmatpush.msra.mxu0 0.0
      %1280 = vmatpush.msra.mxu0 0.0
      %1281 = vmatpush.msra.mxu0 0.0
      %1282 = vmatpush.msra.mxu0 0.0
      %1283 = vmatpush.msra.mxu0 0.0
      %v1284 = vand.u32 %v845, 4294901760
      %1285 = vmatpush.msra.mxu0 %v1284
      %v1286 = vand.u32 %v843, 4294901760
      %1287 = vmatpush.msra.mxu0 %v1286
      %v1288 = vand.u32 %v841, 4294901760
      %1289 = vmatpush.msra.mxu0 %v1288
      %v1290 = vand.u32 %v839, 4294901760
      %1291 = vmatpush.msra.mxu0 %v1290
      %v1292 = vand.u32 %v837, 4294901760
      %1293 = vmatpush.msra.mxu0 %v1292
      %v1294 = vand.u32 %v835, 4294901760
      %1295 = vmatpush.msra.mxu0 %v1294
      %v1296 = vand.u32 %v833, 4294901760
      %1297 = vmatpush.msra.mxu0 %v1296
      %v1298 = vand.u32 %v831, 4294901760
      %1299 = vmatpush.msra.mxu0 %v1298
      %v1300 = vand.u32 %v854, 4294901760
      %v1301 = vsub.f32 %v854, %v1300
      %v1302 = vand.u32 %v1301, 4294901760
      %1303 = vmatmul.f32.gmra.mxu0 %v1302
      %v1304 = vpop.f32.mrf.mxu0
      %v1305 = vadd.f32 %v1269, %v1304
      %v1306 = vand.u32 %v857, 4294901760
      %v1307 = vsub.f32 %v857, %v1306
      %v1308 = vand.u32 %v1307, 4294901760
      %1309 = vmatmul.f32.gmra.mxu0 %v1308
      %v1310 = vpop.f32.mrf.mxu0
      %v1311 = vadd.f32 %v1274, %v1310
      %1312 = vdwg.mxu0
      %1313 = vmatpush.msra.mxu0 0.0
      %1314 = vmatpush.msra.mxu0 0.0
      %1315 = vmatpush.msra.mxu0 0.0
      %1316 = vmatpush.msra.mxu0 0.0
      %1317 = vmatpush.msra.mxu0 0.0
      %1318 = vmatpush.msra.mxu0 0.0
      %1319 = vmatpush.msra.mxu0 0.0
      %1320 = vmatpush.msra.mxu0 0.0
      %v1321 = vand.u32 %v845, 4294901760
      %v1322 = vsub.f32 %v845, %v1321
      %v1323 = vand.u32 %v1322, 4294901760
      %1324 = vmatpush.msra.mxu0 %v1323
      %v1325 = vand.u32 %v843, 4294901760
      %v1326 = vsub.f32 %v843, %v1325
      %v1327 = vand.u32 %v1326, 4294901760
      %1328 = vmatpush.msra.mxu0 %v1327
      %v1329 = vand.u32 %v841, 4294901760
      %v1330 = vsub.f32 %v841, %v1329
      %v1331 = vand.u32 %v1330, 4294901760
      %1332 = vmatpush.msra.mxu0 %v1331
      %v1333 = vand.u32 %v839, 4294901760
      %v1334 = vsub.f32 %v839, %v1333
      %v1335 = vand.u32 %v1334, 4294901760
      %1336 = vmatpush.msra.mxu0 %v1335
      %v1337 = vand.u32 %v837, 4294901760
      %v1338 = vsub.f32 %v837, %v1337
      %v1339 = vand.u32 %v1338, 4294901760
      %1340 = vmatpush.msra.mxu0 %v1339
      %v1341 = vand.u32 %v835, 4294901760
      %v1342 = vsub.f32 %v835, %v1341
      %v1343 = vand.u32 %v1342, 4294901760
      %1344 = vmatpush.msra.mxu0 %v1343
      %v1345 = vand.u32 %v833, 4294901760
      %v1346 = vsub.f32 %v833, %v1345
      %v1347 = vand.u32 %v1346, 4294901760
      %1348 = vmatpush.msra.mxu0 %v1347
      %v1349 = vand.u32 %v831, 4294901760
      %v1350 = vsub.f32 %v831, %v1349
      %v1351 = vand.u32 %v1350, 4294901760
      %1352 = vmatpush.msra.mxu0 %v1351
      %v1353 = vand.u32 %v854, 4294901760
      %1354 = vmatmul.f32.gmra.mxu0 %v1353
      %v1355 = vpop.f32.mrf.mxu0
      %v1356 = vadd.f32 %v1305, %v1355
      %v1357 = vand.u32 %v857, 4294901760
      %1358 = vmatmul.f32.gmra.mxu0 %v1357
      %v1359 = vpop.f32.mrf.mxu0
      %v1360 = vadd.f32 %v1311, %v1359
      %1361 = vdwg.mxu0
      %1362 = vmatpush.msra.mxu0 0.0
      %1363 = vmatpush.msra.mxu0 0.0
      %1364 = vmatpush.msra.mxu0 0.0
      %1365 = vmatpush.msra.mxu0 0.0
      %1366 = vmatpush.msra.mxu0 0.0
      %1367 = vmatpush.msra.mxu0 0.0
      %1368 = vmatpush.msra.mxu0 0.0
      %1369 = vmatpush.msra.mxu0 0.0
      %v1370 = vand.u32 %v845, 4294901760
      %1371 = vmatpush.msra.mxu0 %v1370
      %v1372 = vand.u32 %v843, 4294901760
      %1373 = vmatpush.msra.mxu0 %v1372
      %v1374 = vand.u32 %v841, 4294901760
      %1375 = vmatpush.msra.mxu0 %v1374
      %v1376 = vand.u32 %v839, 4294901760
      %1377 = vmatpush.msra.mxu0 %v1376
      %v1378 = vand.u32 %v837, 4294901760
      %1379 = vmatpush.msra.mxu0 %v1378
      %v1380 = vand.u32 %v835, 4294901760
      %1381 = vmatpush.msra.mxu0 %v1380
      %v1382 = vand.u32 %v833, 4294901760
      %1383 = vmatpush.msra.mxu0 %v1382
      %v1384 = vand.u32 %v831, 4294901760
      %1385 = vmatpush.msra.mxu0 %v1384
      %v1386 = vand.u32 %v854, 4294901760
      %1387 = vmatmul.f32.gmra.mxu0 %v1386
      %v1388 = vpop.f32.mrf.mxu0
      %v1389 = vadd.f32 %v1356, %v1388
      %v1390 = vand.u32 %v857, 4294901760
      %1391 = vmatmul.f32.gmra.mxu0 %v1390
      %v1392 = vpop.f32.mrf.mxu0
      %v1393 = vadd.f32 %v1360, %v1392
      %1394 = vdwg.mxu0
      %1395 = vst [vmem:[%s231] sm:$0xff] %v1121
      %1396 = vst [vmem:[%s231 + $0x8] sm:$0xff] %v1389
      %1397 = vst [vmem:[%s231 + $0x10] sm:$0xff] %v1125
      %1398 = vst [vmem:[%s231 + $0x18] sm:$0xff] %v1393
      %s1399 = smul.u32 2, %s16
      %p1400 = scmp.lt.s32.totalorder %s1399, 3
      %s1401 = scalar_select %p1400, %s1399, 3
      %s1402 = smul.addr %s1401, 2
      %s1403 = smul.addr %s1402, 8
      %s1404 = scalar_lea.vmem %s5, %s1403
      // Predicated region
      $region41: #{triple_branch_tail_forward.3} parent=39 // pred_check
        %p1405 = pneg %p144
      $region42: #{triple_branch_tail_forward.3} parent=39 // pred_check_branch
        %1407 = sbr.rel (%p1405) target = $region44
      $region43: #{triple_branch_tail_forward.3} parent=39 // pred_region
        %s1408 = smul.u32 2, %s16
      $region44: #{triple_branch_tail_forward.3} parent=39 // pred_fallthru
        _
    $region40: #{triple_branch_tail_forward.3} parent=5 // pred_fallthru
      _
    %p1409 = scmp.le.s32.totalorder 2, %s11
    // Predicated region
    $region45: #{triple_branch_tail_forward.3} parent=5 // pred_check
      %p1410 = pneg %p1409
    $region46: #{triple_branch_tail_forward.3} parent=5 // pred_check_branch
      %1412 = sbr.rel (%p1410) target = $region48
    $region47: #{triple_branch_tail_forward.3} parent=5 // pred_region
      %s1413 = ssub.s32 %s11, 2
      // Predicated region
      $region49: #{triple_branch_tail_forward.3} parent=47 // pred_check
        %p1414 = pneg %p150
      $region50: #{triple_branch_tail_forward.3} parent=47 // pred_check_branch
        %1416 = sbr.rel (%p1414) target = $region52
      $region51: #{triple_branch_tail_forward.3} parent=47 // pred_region
        %s1417 = smul.u32 2, %s17
        %p1418 = scmp.lt.s32.totalorder %s1417, 3
        %s1419 = scalar_select %p1418, %s1417, 3
        %s1420 = smul.addr %s1419, 2
        %s1421 = smul.addr %s1420, 8
        %s1422 = scalar_lea.vmem %s5, %s1421
      $region52: #{triple_branch_tail_forward.3} parent=47 // pred_fallthru
        _
    $region48: #{triple_branch_tail_forward.3} parent=5 // pred_fallthru
      _
  $region6: #{triple_branch_tail_forward.3} parent=0 // loop_footer
    %s15 = sadd.s32 1, %s11
  $region7: #{triple_branch_tail_forward.3} parent=0 // loop_footer_branch
    %10 = sbr.rel target = $region3
  $region8: #{triple_branch_tail_forward.3} parent=0 // loop_exit
    _

// kernel: triple_branch_tail_forward.4
$region0: #{triple_branch_tail_forward.4}
  #allocation0 [shape = 'u32[]', space=smem, size = 0x4, offset = 0x4, fixed_abs, tag = 'smem constant byte address 0x4 - core index']
  #allocation1 [shape = 'u32[72,128]{1,0:T(1,128)}', space=vmem, size = 0x9000, scoped, tag = 'internal scratch']
  %s0 = inlined_call_operand.vmem [shape: f32[8,4,256], index: 0, kind: input, shape index: {}]
  %s1 = inlined_call_operand.vmem [shape: f32[8,4,288], index: 1, kind: input, shape index: {}]
  %s2 = inlined_call_operand.vmem [shape: f32[36,1152], index: 2, kind: input, shape index: {}]
  %s3 = inlined_call_operand.vmem [shape: f32[8,4,4,128], index: 3, kind: output, shape index: {}]
  %s4 = sld [smem:[#allocation0]]
  $region45: #{triple_branch_tail_forward.4} parent=0
    _
  %s6 = ssub.s32 1, %s4
  %s7 = scalar_select 0, %s6, %s4
  loop: start=0, step=1, limit=4
  $region2: #{triple_branch_tail_forward.4} parent=0 // loop_pre_header
    _
  $region3: #{triple_branch_tail_forward.4} parent=0 // loop_header
    %s9 = sphi 0, %s13
    %p10 = scmp.ge.s32.totalorder %s9, 4
    %s19 = sphi 0, %s21
    %s22 = sphi 0, %s19
    %s23 = sphi 0, %s22
    %s39 = sphi 0, %s23
    %s45 = sphi 0, %s47
    %s48 = sphi 0, %s45
    %s49 = sphi 0, %s48
    %s65 = sphi 0, %s49
    %s69 = sphi 0, %s69
    %s71 = sphi 0, %s69
    %s72 = sphi 0, %s71
    %s86 = sphi 0, %s72
    %s92 = sphi 0, %s94
    %s95 = sphi 0, %s92
    %s96 = sphi 0, %s95
    %s112 = sphi 0, %s96
  $region4: #{triple_branch_tail_forward.4} parent=0 // loop_header_branch
    %12 = sbr.rel (%p10) target = $region8
  $region5: #{triple_branch_tail_forward.4} parent=0 // loop_body
    %s14 = ssub.s32 %s9, 1
    %s15 = ssub.s32 %s9, 2
    %s16 = sadd.s32 %s9, 1
    %s17 = ssub.s32 %s9, %s16
    %p18 = scmp.eq.s32.totalorder %s17, 0
    %s20 = sadd.s32 %s19, 1
    %s21 = scalar_select %p18, %s19, %s20
    %p24 = pneg %p18
    %p25 = scmp.eq.s32.totalorder %s9, 1
    %p26 = por %p24, %p25
    %p27 = scmp.ne.s32.totalorder %s19, %s22
    %p28 = scmp.eq.s32.totalorder %s9, 0
    %p29 = por %p27, %p28
    %p30 = scmp.ne.s32.totalorder %s19, %s22
    %p31 = scmp.eq.s32.totalorder %s14, 1
    %p32 = por %p30, %p31
    %p33 = scmp.ne.s32.totalorder %s22, %s23
    %p34 = scmp.eq.s32.totalorder %s14, 0
    %p35 = por %p33, %p34
    %p36 = scmp.ne.s32.totalorder %s22, %s23
    %p37 = scmp.eq.s32.totalorder %s15, 1
    %p38 = por %p36, %p37
    %p40 = scmp.ne.s32.totalorder %s23, %s39
    %p41 = scmp.eq.s32.totalorder %s15, 0
    %p42 = por %p40, %p41
    %s43 = ssub.s32 %s9, %s16
    %p44 = scmp.eq.s32.totalorder %s43, 0
    %s46 = sadd.s32 %s45, 1
    %s47 = scalar_select %p44, %s45, %s46
    %p50 = pneg %p44
    %p51 = scmp.eq.s32.totalorder %s9, 1
    %p52 = por %p50, %p51
    %p53 = scmp.ne.s32.totalorder %s45, %s48
    %p54 = scmp.eq.s32.totalorder %s9, 0
    %p55 = por %p53, %p54
    %p56 = scmp.ne.s32.totalorder %s45, %s48
    %p57 = scmp.eq.s32.totalorder %s14, 1
    %p58 = por %p56, %p57
    %p59 = scmp.ne.s32.totalorder %s48, %s49
    %p60 = scmp.eq.s32.totalorder %s14, 0
    %p61 = por %p59, %p60
    %p62 = scmp.ne.s32.totalorder %s48, %s49
    %p63 = scmp.eq.s32.totalorder %s15, 1
    %p64 = por %p62, %p63
    %p66 = scmp.ne.s32.totalorder %s49, %s65
    %p67 = scmp.eq.s32.totalorder %s15, 0
    %p68 = por %p66, %p67
    %s70 = sadd.s32 %s69, 1
    %p73 = scmp.eq.s32.totalorder %s9, 1
    %p74 = scmp.ne.s32.totalorder %s69, %s71
    %p75 = scmp.eq.s32.totalorder %s9, 0
    %p76 = por %p74, %p75
    %p77 = scmp.ne.s32.totalorder %s69, %s71
    %p78 = scmp.eq.s32.totalorder %s14, 1
    %p79 = por %p77, %p78
    %p80 = scmp.ne.s32.totalorder %s71, %s72
    %p81 = scmp.eq.s32.totalorder %s14, 0
    %p82 = por %p80, %p81
    %p83 = scmp.ne.s32.totalorder %s71, %s72
    %p84 = scmp.eq.s32.totalorder %s15, 1
    %p85 = por %p83, %p84
    %p87 = scmp.ne.s32.totalorder %s72, %s86
    %p88 = scmp.eq.s32.totalorder %s15, 0
    %p89 = por %p87, %p88
    %s90 = ssub.s32 %s9, %s16
    %p91 = scmp.eq.s32.totalorder %s90, 0
    %s93 = sadd.s32 %s92, 1
    %s94 = scalar_select %p91, %s92, %s93
    %p97 = pneg %p91
    %p98 = scmp.eq.s32.totalorder %s9, 1
    %p99 = por %p97, %p98
    %p100 = scmp.ne.s32.totalorder %s92, %s95
    %p101 = scmp.eq.s32.totalorder %s9, 0
    %p102 = por %p100, %p101
    %p103 = scmp.ne.s32.totalorder %s92, %s95
    %p104 = scmp.eq.s32.totalorder %s14, 1
    %p105 = por %p103, %p104
    %p106 = scmp.ne.s32.totalorder %s95, %s96
    %p107 = scmp.eq.s32.totalorder %s14, 0
    %p108 = por %p106, %p107
    %p109 = scmp.ne.s32.totalorder %s95, %s96
    %p110 = scmp.eq.s32.totalorder %s15, 1
    %p111 = por %p109, %p110
    %p113 = scmp.ne.s32.totalorder %s96, %s112
    %p114 = scmp.eq.s32.totalorder %s15, 0
    %p115 = por %p113, %p114
    %p116 = scmp.le.s32.totalorder 1, %s9
    %p117 = scmp.lt.s32.totalorder %s9, 3
    %p118 = pnand %p116, %p117
    %p119 = pneg %p118
    // Predicated region
    $region9: #{triple_branch_tail_forward.4} parent=5 // pred_check
      _
    $region10: #{triple_branch_tail_forward.4} parent=5 // pred_check_branch
      %121 = sbr.rel (%p118) target = $region12
    $region11: #{triple_branch_tail_forward.4} parent=5 // pred_region
      %s122 = ssub.s32 %s9, 1
      // Predicated region
      $region13: #{triple_branch_tail_forward.4} parent=11 // pred_check
        %p123 = pneg %p82
      $region14: #{triple_branch_tail_forward.4} parent=11 // pred_check_branch
        %125 = sbr.rel (%p123) target = $region16
      $region15: #{triple_branch_tail_forward.4} parent=11 // pred_region
        _
      $region16: #{triple_branch_tail_forward.4} parent=11 // pred_fallthru
        _
    $region12: #{triple_branch_tail_forward.4} parent=5 // pred_fallthru
      _
    %p126 = scmp.lt.s32.totalorder %s9, 2
    // Predicated region
    $region17: #{triple_branch_tail_forward.4} parent=5 // pred_check
      %p127 = pneg %p126
    $region18: #{triple_branch_tail_forward.4} parent=5 // pred_check_branch
      %129 = sbr.rel (%p127) target = $region20
    $region19: #{triple_branch_tail_forward.4} parent=5 // pred_region
      // Predicated region
      $region21: #{triple_branch_tail_forward.4} parent=19 // pred_check
        %p130 = pneg %p29
      $region22: #{triple_branch_tail_forward.4} parent=19 // pred_check_branch
        %132 = sbr.rel (%p130) target = $region24
      $region23: #{triple_branch_tail_forward.4} parent=19 // pred_region
        %s133 = smul.u32 4, %s9
        %p134 = scmp.lt.s32.totalorder %s133, 7
        %s135 = scalar_select %p134, %s133, 7
        %s136 = smul.addr %s135, 2
        %s137 = smul.addr %s136, 4
        %s138 = scalar_lea.vmem %s0, %s137
        %s139 = smul.u32 4, %s9
      $region24: #{triple_branch_tail_forward.4} parent=19 // pred_fallthru
        _
      // Predicated region
      $region25: #{triple_branch_tail_forward.4} parent=19 // pred_check
        %p140 = pneg %p55
      $region26: #{triple_branch_tail_forward.4} parent=19 // pred_check_branch
        %142 = sbr.rel (%p140) target = $region28
      $region27: #{triple_branch_tail_forward.4} parent=19 // pred_region
        %s143 = smul.u32 4, %s9
        %p144 = scmp.lt.s32.totalorder %s143, 7
        %s145 = scalar_select %p144, %s143, 7
        %s146 = smul.addr %s145, 3
        %s147 = smul.addr %s146, 4
        %s148 = scalar_lea.vmem %s1, %s147
        %s149 = smul.u32 4, %s9
      $region28: #{triple_branch_tail_forward.4} parent=19 // pred_fallthru
        _
    $region20: #{triple_branch_tail_forward.4} parent=5 // pred_fallthru
      _
    %p150 = scmp.le.s32.totalorder 1, %s9
    %p151 = scmp.lt.s32.totalorder %s9, 3
    %p152 = pnand %p150, %p151
    %p153 = pneg %p152
    // Predicated region
    $region29: #{triple_branch_tail_forward.4} parent=5 // pred_check
      _
    $region30: #{triple_branch_tail_forward.4} parent=5 // pred_check_branch
      %155 = sbr.rel (%p152) target = $region32
    $region31: #{triple_branch_tail_forward.4} parent=5 // pred_region
      %s156 = ssub.s32 %s9, 1
      %s157 = smul.u32 4, %s14
      %p158 = scmp.lt.s32.totalorder %s157, 7
      %s159 = scalar_select %p158, %s157, 7
      %s160 = smul.addr %s159, 2
      %s161 = smul.addr %s160, 4
      %s162 = scalar_lea.vmem %s0, %s161
      %p163 = pneg %p35
      %p164 = pneg %p32
      %s165 = smul.u32 4, %s14
      %p166 = scmp.lt.s32.totalorder %s165, 7
      %s167 = scalar_select %p166, %s165, 7
      %s168 = smul.addr %s167, 3
      %s169 = smul.addr %s168, 4
      %s170 = scalar_lea.vmem %s1, %s169
      %p171 = pneg %p61
      %p172 = pneg %p58
      %p173 = pneg %p82
      %p174 = pneg %p79
      %p175 = pneg %p108
      %p176 = pneg %p105
      %s177 = smul.u32 4, %s14
      %p178 = scmp.lt.s32.totalorder %s177, 7
      %s179 = scalar_select %p178, %s177, 7
      %s180 = smul.addr %s179, 4
      %s181 = smul.addr %s180, 4
      %s182 = scalar_lea.vmem %s3, %s181
      %s183 = smul.u32 4, %s14
      %p184 = scmp.lt.s32.totalorder %s183, 7
      %s185 = scalar_select %p184, %s183, 7
      %s186 = smul.addr %s185, 2
      %s187 = smul.addr %s186, 4
      %s188 = scalar_lea.vmem %s0, %s187
      %s189 = smul.u32 4, %s14
      %s190 = smul.u32 4, %s14
      %p191 = scmp.lt.s32.totalorder %s190, 7
      %s192 = scalar_select %p191, %s190, 7
      %s193 = smul.addr %s192, 3
      %s194 = smul.addr %s193, 4
      %s195 = scalar_lea.vmem %s1, %s194
      %s196 = smul.u32 4, %s14
      %s197 = smul.u32 4, %s14
      %p198 = scmp.lt.s32.totalorder %s197, 7
      %s199 = scalar_select %p198, %s197, 7
      %s200 = smul.addr %s199, 4
      %s201 = smul.addr %s200, 4
      %s202 = scalar_lea.vmem %s3, %s201
      %s203 = smul.u32 4, %s14
      %v204 = vld [vmem:[%s188] sm:$0xff]
      %v205 = vld [vmem:[%s188 + $0x8] sm:$0xff]
      %v206 = vld [vmem:[%s188 + $0x10] sm:$0xff]
      %v207 = vld [vmem:[%s188 + $0x18] sm:$0xff]
      %v208 = vld [vmem:[%s195] sm:$0xff]
      %v209 = vld [vmem:[%s195 + $0x8] sm:$0xf]
      %v210 = vld [vmem:[%s195 + $0xc] sm:$0xff]
      %v211 = vld [vmem:[%s195 + $0x14] sm:$0xf]
      %v212 = vld [vmem:[%s195 + $0x18] sm:$0xff]
      %v213 = vld [vmem:[%s195 + $0x20] sm:$0xf]
      %v214 = vld [vmem:[%s195 + $0x24] sm:$0xff]
      %v215 = vld [vmem:[%s195 + $0x2c] sm:$0xf]
      %220 = vrot.lane.b32.xlu0 %v204, 112
      %v221 = vpop.permute.xlu0 %220
      %222 = vrot.lane.b32.xlu0 %v205, 112
      %v223 = vpop.permute.xlu0 %222
      %224 = vrot.lane.b32.xlu0 %v206, 112
      %v225 = vpop.permute.xlu0 %224
      %226 = vrot.lane.b32.xlu0 %v207, 112
      %v227 = vpop.permute.xlu0 %226
      %v232 = vmax.f32 %v204, %v221
      %v233 = vmax.f32 %v205, %v223
      %v234 = vmax.f32 %v206, %v225
      %v235 = vmax.f32 %v207, %v227
      %236 = vrot.lane.b32.xlu0 %v204, 96
      %v237 = vpop.permute.xlu0 %236
      %238 = vrot.lane.b32.xlu0 %v205, 96
      %v239 = vpop.permute.xlu0 %238
      %240 = vrot.lane.b32.xlu0 %v206, 96
      %v241 = vpop.permute.xlu0 %240
      %242 = vrot.lane.b32.xlu0 %v207, 96
      %v243 = vpop.permute.xlu0 %242
      %v248 = vmax.f32 %v232, %v237
      %v249 = vmax.f32 %v233, %v239
      %v250 = vmax.f32 %v234, %v241
      %v251 = vmax.f32 %v235, %v243
      %252 = vrot.lane.b32.xlu0 %v204, 80
      %v253 = vpop.permute.xlu0 %252
      %254 = vrot.lane.b32.xlu0 %v205, 80
      %v255 = vpop.permute.xlu0 %254
      %256 = vrot.lane.b32.xlu0 %v206, 80
      %v257 = vpop.permute.xlu0 %256
      %258 = vrot.lane.b32.xlu0 %v207, 80
      %v259 = vpop.permute.xlu0 %258
      %v264 = vmax.f32 %v248, %v253
      %v265 = vmax.f32 %v249, %v255
      %v266 = vmax.f32 %v250, %v257
      %v267 = vmax.f32 %v251, %v259
      %268 = vrot.lane.b32.xlu0 %v204, 64
      %v269 = vpop.permute.xlu0 %268
      %270 = vrot.lane.b32.xlu0 %v205, 64
      %v271 = vpop.permute.xlu0 %270
      %272 = vrot.lane.b32.xlu0 %v206, 64
      %v273 = vpop.permute.xlu0 %272
      %274 = vrot.lane.b32.xlu0 %v207, 64
      %v275 = vpop.permute.xlu0 %274
      %v280 = vmax.f32 %v264, %v269
      %v281 = vmax.f32 %v265, %v271
      %v282 = vmax.f32 %v266, %v273
      %v283 = vmax.f32 %v267, %v275
      %284 = vrot.lane.b32.xlu0 %v204, 48
      %v285 = vpop.permute.xlu0 %284
      %286 = vrot.lane.b32.xlu0 %v205, 48
      %v287 = vpop.permute.xlu0 %286
      %288 = vrot.lane.b32.xlu0 %v206, 48
      %v289 = vpop.permute.xlu0 %288
      %290 = vrot.lane.b32.xlu0 %v207, 48
      %v291 = vpop.permute.xlu0 %290
      %v296 = vmax.f32 %v280, %v285
      %v297 = vmax.f32 %v281, %v287
      %v298 = vmax.f32 %v282, %v289
      %v299 = vmax.f32 %v283, %v291
      %300 = vrot.lane.b32.xlu0 %v204, 32
      %v301 = vpop.permute.xlu0 %300
      %302 = vrot.lane.b32.xlu0 %v205, 32
      %v303 = vpop.permute.xlu0 %302
      %304 = vrot.lane.b32.xlu0 %v206, 32
      %v305 = vpop.permute.xlu0 %304
      %306 = vrot.lane.b32.xlu0 %v207, 32
      %v307 = vpop.permute.xlu0 %306
      %v312 = vmax.f32 %v296, %v301
      %v313 = vmax.f32 %v297, %v303
      %v314 = vmax.f32 %v298, %v305
      %v315 = vmax.f32 %v299, %v307
      %316 = vrot.lane.b32.xlu0 %v204, 16
      %v317 = vpop.permute.xlu0 %316
      %318 = vrot.lane.b32.xlu0 %v205, 16
      %v319 = vpop.permute.xlu0 %318
      %320 = vrot.lane.b32.xlu0 %v206, 16
      %v321 = vpop.permute.xlu0 %320
      %322 = vrot.lane.b32.xlu0 %v207, 16
      %v323 = vpop.permute.xlu0 %322
      %v328 = vmax.f32 %v312, %v317
      %v329 = vmax.f32 %v313, %v319
      %v330 = vmax.f32 %v314, %v321
      %v331 = vmax.f32 %v315, %v323
      %v332 = vrot.slane %v204, 4
      %v333 = vrot.slane %v205, 4
      %v334 = vrot.slane %v206, 4
      %v335 = vrot.slane %v207, 4
      %v340 = vmax.f32 %v328, %v332
      %v341 = vmax.f32 %v329, %v333
      %v342 = vmax.f32 %v330, %v334
      %v343 = vmax.f32 %v331, %v335
      %v344 = vsub.f32 %v204, %v340
      %v345 = vsub.f32 %v205, %v341
      %v346 = vsub.f32 %v206, %v342
      %v347 = vsub.f32 %v207, %v343
      %v348 = vmul.f32 %v344, 1.442695
      %v349 = vpow.pop %v348
      %v350 = vmul.f32 %v345, 1.442695
      %v351 = vpow.pop %v350
      %v352 = vmul.f32 %v346, 1.442695
      %v353 = vpow.pop %v352
      %v354 = vmul.f32 %v347, 1.442695
      %v355 = vpow.pop %v354
      %360 = vrot.lane.b32.xlu0 %v340, 16
      %v361 = vpop.permute.xlu0 %360
      %362 = vrot.lane.b32.xlu0 %v341, 16
      %v363 = vpop.permute.xlu0 %362
      %364 = vrot.lane.b32.xlu0 %v342, 16
      %v365 = vpop.permute.xlu0 %364
      %366 = vrot.lane.b32.xlu0 %v343, 16
      %v367 = vpop.permute.xlu0 %366
      %v372 = vsub.f32 %v204, %v361
      %v373 = vsub.f32 %v205, %v363
      %v374 = vsub.f32 %v206, %v365
      %v375 = vsub.f32 %v207, %v367
      %v376 = vmul.f32 %v372, 1.442695
      %v377 = vpow.pop %v376
      %v378 = vmul.f32 %v373, 1.442695
      %v379 = vpow.pop %v378
      %v380 = vmul.f32 %v374, 1.442695
      %v381 = vpow.pop %v380
      %v382 = vmul.f32 %v375, 1.442695
      %v383 = vpow.pop %v382
      %384 = vrot.lane.b32.xlu0 %v340, 32
      %v385 = vpop.permute.xlu0 %384
      %386 = vrot.lane.b32.xlu0 %v341, 32
      %v387 = vpop.permute.xlu0 %386
      %388 = vrot.lane.b32.xlu0 %v342, 32
      %v389 = vpop.permute.xlu0 %388
      %390 = vrot.lane.b32.xlu0 %v343, 32
      %v391 = vpop.permute.xlu0 %390
      %v396 = vsub.f32 %v204, %v385
      %v397 = vsub.f32 %v205, %v387
      %v398 = vsub.f32 %v206, %v389
      %v399 = vsub.f32 %v207, %v391
      %v400 = vmul.f32 %v396, 1.442695
      %v401 = vpow.pop %v400
      %v402 = vmul.f32 %v397, 1.442695
      %v403 = vpow.pop %v402
      %v404 = vmul.f32 %v398, 1.442695
      %v405 = vpow.pop %v404
      %v406 = vmul.f32 %v399, 1.442695
      %v407 = vpow.pop %v406
      %408 = vrot.lane.b32.xlu0 %v340, 48
      %v409 = vpop.permute.xlu0 %408
      %410 = vrot.lane.b32.xlu0 %v341, 48
      %v411 = vpop.permute.xlu0 %410
      %412 = vrot.lane.b32.xlu0 %v342, 48
      %v413 = vpop.permute.xlu0 %412
      %414 = vrot.lane.b32.xlu0 %v343, 48
      %v415 = vpop.permute.xlu0 %414
      %v420 = vsub.f32 %v204, %v409
      %v421 = vsub.f32 %v205, %v411
      %v422 = vsub.f32 %v206, %v413
      %v423 = vsub.f32 %v207, %v415
      %v424 = vmul.f32 %v420, 1.442695
      %v425 = vpow.pop %v424
      %v426 = vmul.f32 %v421, 1.442695
      %v427 = vpow.pop %v426
      %v428 = vmul.f32 %v422, 1.442695
      %v429 = vpow.pop %v428
      %v430 = vmul.f32 %v423, 1.442695
      %v431 = vpow.pop %v430
      %432 = vrot.lane.b32.xlu0 %v340, 64
      %v433 = vpop.permute.xlu0 %432
      %434 = vrot.lane.b32.xlu0 %v341, 64
      %v435 = vpop.permute.xlu0 %434
      %436 = vrot.lane.b32.xlu0 %v342, 64
      %v437 = vpop.permute.xlu0 %436
      %438 = vrot.lane.b32.xlu0 %v343, 64
      %v439 = vpop.permute.xlu0 %438
      %v444 = vsub.f32 %v204, %v433
      %v445 = vsub.f32 %v205, %v435
      %v446 = vsub.f32 %v206, %v437
      %v447 = vsub.f32 %v207, %v439
      %v448 = vmul.f32 %v444, 1.442695
      %v449 = vpow.pop %v448
      %v450 = vmul.f32 %v445, 1.442695
      %v451 = vpow.pop %v450
      %v452 = vmul.f32 %v446, 1.442695
      %v453 = vpow.pop %v452
      %v454 = vmul.f32 %v447, 1.442695
      %v455 = vpow.pop %v454
      %456 = vrot.lane.b32.xlu0 %v340, 80
      %v457 = vpop.permute.xlu0 %456
      %458 = vrot.lane.b32.xlu0 %v341, 80
      %v459 = vpop.permute.xlu0 %458
      %460 = vrot.lane.b32.xlu0 %v342, 80
      %v461 = vpop.permute.xlu0 %460
      %462 = vrot.lane.b32.xlu0 %v343, 80
      %v463 = vpop.permute.xlu0 %462
      %v468 = vsub.f32 %v204, %v457
      %v469 = vsub.f32 %v205, %v459
      %v470 = vsub.f32 %v206, %v461
      %v471 = vsub.f32 %v207, %v463
      %v472 = vmul.f32 %v468, 1.442695
      %v473 = vpow.pop %v472
      %v474 = vmul.f32 %v469, 1.442695
      %v475 = vpow.pop %v474
      %v476 = vmul.f32 %v470, 1.442695
      %v477 = vpow.pop %v476
      %v478 = vmul.f32 %v471, 1.442695
      %v479 = vpow.pop %v478
      %480 = vrot.lane.b32.xlu0 %v340, 96
      %v481 = vpop.permute.xlu0 %480
      %482 = vrot.lane.b32.xlu0 %v341, 96
      %v483 = vpop.permute.xlu0 %482
      %484 = vrot.lane.b32.xlu0 %v342, 96
      %v485 = vpop.permute.xlu0 %484
      %486 = vrot.lane.b32.xlu0 %v343, 96
      %v487 = vpop.permute.xlu0 %486
      %v492 = vsub.f32 %v204, %v481
      %v493 = vsub.f32 %v205, %v483
      %v494 = vsub.f32 %v206, %v485
      %v495 = vsub.f32 %v207, %v487
      %v496 = vmul.f32 %v492, 1.442695
      %v497 = vpow.pop %v496
      %v498 = vmul.f32 %v493, 1.442695
      %v499 = vpow.pop %v498
      %v500 = vmul.f32 %v494, 1.442695
      %v501 = vpow.pop %v500
      %v502 = vmul.f32 %v495, 1.442695
      %v503 = vpow.pop %v502
      %504 = vrot.lane.b32.xlu0 %v340, 112
      %v505 = vpop.permute.xlu0 %504
      %506 = vrot.lane.b32.xlu0 %v341, 112
      %v507 = vpop.permute.xlu0 %506
      %508 = vrot.lane.b32.xlu0 %v342, 112
      %v509 = vpop.permute.xlu0 %508
      %510 = vrot.lane.b32.xlu0 %v343, 112
      %v511 = vpop.permute.xlu0 %510
      %v516 = vsub.f32 %v204, %v505
      %v517 = vsub.f32 %v205, %v507
      %v518 = vsub.f32 %v206, %v509
      %v519 = vsub.f32 %v207, %v511
      %v520 = vmul.f32 %v516, 1.442695
      %v521 = vpow.pop %v520
      %v522 = vmul.f32 %v517, 1.442695
      %v523 = vpow.pop %v522
      %v524 = vmul.f32 %v518, 1.442695
      %v525 = vpow.pop %v524
      %v526 = vmul.f32 %v519, 1.442695
      %v527 = vpow.pop %v526
      %v528 = vsub.f32 %v332, %v340
      %v529 = vsub.f32 %v333, %v341
      %v530 = vsub.f32 %v334, %v342
      %v531 = vsub.f32 %v335, %v343
      %v532 = vmul.f32 %v528, 1.442695
      %v533 = vpow.pop %v532
      %v534 = vmul.f32 %v529, 1.442695
      %v535 = vpow.pop %v534
      %v536 = vmul.f32 %v530, 1.442695
      %v537 = vpow.pop %v536
      %v538 = vmul.f32 %v531, 1.442695
      %v539 = vpow.pop %v538
      %544 = vrot.lane.b32.xlu0 %v377, 112
      %v545 = vpop.permute.xlu0 %544
      %546 = vrot.lane.b32.xlu0 %v379, 112
      %v547 = vpop.permute.xlu0 %546
      %548 = vrot.lane.b32.xlu0 %v381, 112
      %v549 = vpop.permute.xlu0 %548
      %550 = vrot.lane.b32.xlu0 %v383, 112
      %v551 = vpop.permute.xlu0 %550
      %v556 = vadd.f32 %v349, %v545
      %v557 = vadd.f32 %v351, %v547
      %v558 = vadd.f32 %v353, %v549
      %v559 = vadd.f32 %v355, %v551
      %564 = vrot.lane.b32.xlu0 %v401, 96
      %v565 = vpop.permute.xlu0 %564
      %566 = vrot.lane.b32.xlu0 %v403, 96
      %v567 = vpop.permute.xlu0 %566
      %568 = vrot.lane.b32.xlu0 %v405, 96
      %v569 = vpop.permute.xlu0 %568
      %570 = vrot.lane.b32.xlu0 %v407, 96
      %v571 = vpop.permute.xlu0 %570
      %v576 = vadd.f32 %v556, %v565
      %v577 = vadd.f32 %v557, %v567
      %v578 = vadd.f32 %v558, %v569
      %v579 = vadd.f32 %v559, %v571
      %584 = vrot.lane.b32.xlu0 %v425, 80
      %v585 = vpop.permute.xlu0 %584
      %586 = vrot.lane.b32.xlu0 %v427, 80
      %v587 = vpop.permute.xlu0 %586
      %588 = vrot.lane.b32.xlu0 %v429, 80
      %v589 = vpop.permute.xlu0 %588
      %590 = vrot.lane.b32.xlu0 %v431, 80
      %v591 = vpop.permute.xlu0 %590
      %v596 = vadd.f32 %v576, %v585
      %v597 = vadd.f32 %v577, %v587
      %v598 = vadd.f32 %v578, %v589
      %v599 = vadd.f32 %v579, %v591
      %604 = vrot.lane.b32.xlu0 %v449, 64
      %v605 = vpop.permute.xlu0 %604
      %606 = vrot.lane.b32.xlu0 %v451, 64
      %v607 = vpop.permute.xlu0 %606
      %608 = vrot.lane.b32.xlu0 %v453, 64
      %v609 = vpop.permute.xlu0 %608
      %610 = vrot.lane.b32.xlu0 %v455, 64
      %v611 = vpop.permute.xlu0 %610
      %v616 = vadd.f32 %v596, %v605
      %v617 = vadd.f32 %v597, %v607
      %v618 = vadd.f32 %v598, %v609
      %v619 = vadd.f32 %v599, %v611
      %624 = vrot.lane.b32.xlu0 %v473, 48
      %v625 = vpop.permute.xlu0 %624
      %626 = vrot.lane.b32.xlu0 %v475, 48
      %v627 = vpop.permute.xlu0 %626
      %628 = vrot.lane.b32.xlu0 %v477, 48
      %v629 = vpop.permute.xlu0 %628
      %630 = vrot.lane.b32.xlu0 %v479, 48
      %v631 = vpop.permute.xlu0 %630
      %v636 = vadd.f32 %v616, %v625
      %v637 = vadd.f32 %v617, %v627
      %v638 = vadd.f32 %v618, %v629
      %v639 = vadd.f32 %v619, %v631
      %644 = vrot.lane.b32.xlu0 %v497, 32
      %v645 = vpop.permute.xlu0 %644
      %646 = vrot.lane.b32.xlu0 %v499, 32
      %v647 = vpop.permute.xlu0 %646
      %648 = vrot.lane.b32.xlu0 %v501, 32
      %v649 = vpop.permute.xlu0 %648
      %650 = vrot.lane.b32.xlu0 %v503, 32
      %v651 = vpop.permute.xlu0 %650
      %v656 = vadd.f32 %v636, %v645
      %v657 = vadd.f32 %v637, %v647
      %v658 = vadd.f32 %v638, %v649
      %v659 = vadd.f32 %v639, %v651
      %664 = vrot.lane.b32.xlu0 %v521, 16
      %v665 = vpop.permute.xlu0 %664
      %666 = vrot.lane.b32.xlu0 %v523, 16
      %v667 = vpop.permute.xlu0 %666
      %668 = vrot.lane.b32.xlu0 %v525, 16
      %v669 = vpop.permute.xlu0 %668
      %670 = vrot.lane.b32.xlu0 %v527, 16
      %v671 = vpop.permute.xlu0 %670
      %v676 = vadd.f32 %v656, %v665
      %v677 = vadd.f32 %v657, %v667
      %v678 = vadd.f32 %v658, %v669
      %v679 = vadd.f32 %v659, %v671
      %v680 = vadd.f32 %v676, %v533
      %v681 = vadd.f32 %v677, %v535
      %v682 = vadd.f32 %v678, %v537
      %v683 = vadd.f32 %v679, %v539
      %v684 = vrcp.pop %v680
      %v685 = vrcp.pop %v681
      %v686 = vrcp.pop %v682
      %v687 = vrcp.pop %v683
      %v688 = vmul.f32 %v349, %v684
      %v689 = vmul.f32 %v351, %v685
      %v690 = vmul.f32 %v353, %v686
      %v691 = vmul.f32 %v355, %v687
      %696 = vrot.lane.b32.xlu0 %v684, 16
      %v697 = vpop.permute.xlu0 %696
      %698 = vrot.lane.b32.xlu0 %v685, 16
      %v699 = vpop.permute.xlu0 %698
      %700 = vrot.lane.b32.xlu0 %v686, 16
      %v701 = vpop.permute.xlu0 %700
      %702 = vrot.lane.b32.xlu0 %v687, 16
      %v703 = vpop.permute.xlu0 %702
      %v708 = vmul.f32 %v377, %v697
      %v709 = vmul.f32 %v379, %v699
      %v710 = vmul.f32 %v381, %v701
      %v711 = vmul.f32 %v383, %v703
      %712 = vrot.lane.b32.xlu0 %v684, 32
      %v713 = vpop.permute.xlu0 %712
      %714 = vrot.lane.b32.xlu0 %v685, 32
      %v715 = vpop.permute.xlu0 %714
      %716 = vrot.lane.b32.xlu0 %v686, 32
      %v717 = vpop.permute.xlu0 %716
      %718 = vrot.lane.b32.xlu0 %v687, 32
      %v719 = vpop.permute.xlu0 %718
      %v724 = vmul.f32 %v401, %v713
      %v725 = vmul.f32 %v403, %v715
      %v726 = vmul.f32 %v405, %v717
      %v727 = vmul.f32 %v407, %v719
      %728 = vrot.lane.b32.xlu0 %v684, 48
      %v729 = vpop.permute.xlu0 %728
      %730 = vrot.lane.b32.xlu0 %v685, 48
      %v731 = vpop.permute.xlu0 %730
      %732 = vrot.lane.b32.xlu0 %v686, 48
      %v733 = vpop.permute.xlu0 %732
      %734 = vrot.lane.b32.xlu0 %v687, 48
      %v735 = vpop.permute.xlu0 %734
      %v740 = vmul.f32 %v425, %v729
      %v741 = vmul.f32 %v427, %v731
      %v742 = vmul.f32 %v429, %v733
      %v743 = vmul.f32 %v431, %v735
      %744 = vrot.lane.b32.xlu0 %v684, 64
      %v745 = vpop.permute.xlu0 %744
      %746 = vrot.lane.b32.xlu0 %v685, 64
      %v747 = vpop.permute.xlu0 %746
      %748 = vrot.lane.b32.xlu0 %v686, 64
      %v749 = vpop.permute.xlu0 %748
      %750 = vrot.lane.b32.xlu0 %v687, 64
      %v751 = vpop.permute.xlu0 %750
      %v756 = vmul.f32 %v449, %v745
      %v757 = vmul.f32 %v451, %v747
      %v758 = vmul.f32 %v453, %v749
      %v759 = vmul.f32 %v455, %v751
      %760 = vrot.lane.b32.xlu0 %v684, 80
      %v761 = vpop.permute.xlu0 %760
      %762 = vrot.lane.b32.xlu0 %v685, 80
      %v763 = vpop.permute.xlu0 %762
      %764 = vrot.lane.b32.xlu0 %v686, 80
      %v765 = vpop.permute.xlu0 %764
      %766 = vrot.lane.b32.xlu0 %v687, 80
      %v767 = vpop.permute.xlu0 %766
      %v772 = vmul.f32 %v473, %v761
      %v773 = vmul.f32 %v475, %v763
      %v774 = vmul.f32 %v477, %v765
      %v775 = vmul.f32 %v479, %v767
      %776 = vrot.lane.b32.xlu0 %v684, 96
      %v777 = vpop.permute.xlu0 %776
      %778 = vrot.lane.b32.xlu0 %v685, 96
      %v779 = vpop.permute.xlu0 %778
      %780 = vrot.lane.b32.xlu0 %v686, 96
      %v781 = vpop.permute.xlu0 %780
      %782 = vrot.lane.b32.xlu0 %v687, 96
      %v783 = vpop.permute.xlu0 %782
      %v788 = vmul.f32 %v497, %v777
      %v789 = vmul.f32 %v499, %v779
      %v790 = vmul.f32 %v501, %v781
      %v791 = vmul.f32 %v503, %v783
      %792 = vrot.lane.b32.xlu0 %v684, 112
      %v793 = vpop.permute.xlu0 %792
      %794 = vrot.lane.b32.xlu0 %v685, 112
      %v795 = vpop.permute.xlu0 %794
      %796 = vrot.lane.b32.xlu0 %v686, 112
      %v797 = vpop.permute.xlu0 %796
      %798 = vrot.lane.b32.xlu0 %v687, 112
      %v799 = vpop.permute.xlu0 %798
      %v804 = vmul.f32 %v521, %v793
      %v805 = vmul.f32 %v523, %v795
      %v806 = vmul.f32 %v525, %v797
      %v807 = vmul.f32 %v527, %v799
      %v808 = vmul.f32 %v533, %v684
      %v809 = vmul.f32 %v535, %v685
      %v810 = vmul.f32 %v537, %v686
      %v811 = vmul.f32 %v539, %v687
      %816 = vst [vmem:[#allocation1] ss:$2 sm:$0xff] %v208
      %s817 = scalar_lea.vmem [#allocation1], 1
      %818 = vst [vmem:[%s817] ss:$2 sm:$0xff] %v210
      %s819 = scalar_lea.vmem [#allocation1], 16
      %820 = vst [vmem:[%s819] ss:$2 sm:$0xff] %v212
      %s821 = scalar_lea.vmem [#allocation1], 17
      %822 = vst [vmem:[%s821] ss:$2 sm:$0xff] %v214
      %v823 = vld.sshfl [vmem:[#allocation1] sm:$0xff pattern:$0x75316420]
      %v824 = vld.sshfl [vmem:[#allocation1 + $0x10] sm:$0xff pattern:$0x75316420]
      %827 = vst [vmem:[#allocation1] ss:$2 sm:$0xff] %v208
      %s828 = scalar_lea.vmem [#allocation1], 1
      %829 = vst [vmem:[%s828] ss:$2 sm:$0xff] %v210
      %s830 = scalar_lea.vmem [#allocation1], 16
      %831 = vst [vmem:[%s830] ss:$2 sm:$0xff] %v212
      %s832 = scalar_lea.vmem [#allocation1], 17
      %833 = vst [vmem:[%s832] ss:$2 sm:$0xff] %v214
      %v834 = vld.sshfl [vmem:[#allocation1] sm:$0xff pattern:$0x75316420]
      %v835 = vld.sshfl [vmem:[#allocation1 + $0x10] sm:$0xff pattern:$0x75316420]
      %836 = vrot.lane.b32.xlu0 %v834, 32
      %v837 = vpop.permute.xlu0 %836
      %838 = vrot.lane.b32.xlu0 %v835, 32
      %v839 = vpop.permute.xlu0 %838
      %842 = vst [vmem:[#allocation1] ss:$2 sm:$0xff] %v208
      %s843 = scalar_lea.vmem [#allocation1], 1
      %844 = vst [vmem:[%s843] ss:$2 sm:$0xff] %v210
      %s845 = scalar_lea.vmem [#allocation1], 16
      %846 = vst [vmem:[%s845] ss:$2 sm:$0xff] %v212
      %s847 = scalar_lea.vmem [#allocation1], 17
      %848 = vst [vmem:[%s847] ss:$2 sm:$0xff] %v214
      %v849 = vld.sshfl [vmem:[#allocation1] sm:$0xff pattern:$0x75316420]
      %v850 = vld.sshfl [vmem:[#allocation1 + $0x10] sm:$0xff pattern:$0x75316420]
      %851 = vrot.lane.b32.xlu0 %v849, 64
      %v852 = vpop.permute.xlu0 %851
      %853 = vrot.lane.b32.xlu0 %v850, 64
      %v854 = vpop.permute.xlu0 %853
      %857 = vst [vmem:[#allocation1] ss:$2 sm:$0xff] %v208
      %s858 = scalar_lea.vmem [#allocation1], 1
      %859 = vst [vmem:[%s858] ss:$2 sm:$0xff] %v210
      %s860 = scalar_lea.vmem [#allocation1], 16
      %861 = vst [vmem:[%s860] ss:$2 sm:$0xff] %v212
      %s862 = scalar_lea.vmem [#allocation1], 17
      %863 = vst [vmem:[%s862] ss:$2 sm:$0xff] %v214
      %v864 = vld.sshfl [vmem:[#allocation1] sm:$0xff pattern:$0x75316420]
      %v865 = vld.sshfl [vmem:[#allocation1 + $0x10] sm:$0xff pattern:$0x75316420]
      %866 = vrot.lane.b32.xlu0 %v864, 96
      %v867 = vpop.permute.xlu0 %866
      %868 = vrot.lane.b32.xlu0 %v865, 96
      %v869 = vpop.permute.xlu0 %868
      %vm872 = vcmask 261120
      %v873 = vsel %vm872, %v823, %v837
      %v874 = vsel %vm872, %v824, %v839
      %vm875 = vcmask 523264
      %v876 = vsel %vm875, %v873, %v852
      %v877 = vsel %vm875, %v874, %v854
      %vm878 = vcmask 785408
      %v879 = vsel %vm878, %v876, %v867
      %v880 = vsel %vm878, %v877, %v869
      %881 = vst [vmem:[#allocation1] ss:$2 sm:$0xff] %v208
      %s882 = scalar_lea.vmem [#allocation1], 1
      %883 = vst [vmem:[%s882] ss:$2 sm:$0xff] %v210
      %s884 = scalar_lea.vmem [#allocation1], 16
      %885 = vst [vmem:[%s884] ss:$2 sm:$0xff] %v212
      %s886 = scalar_lea.vmem [#allocation1], 17
      %887 = vst [vmem:[%s886] ss:$2 sm:$0xff] %v214
      %v888 = vld.sshfl [vmem:[#allocation1] sm:$0xff pattern:$0x75316420]
      %v889 = vld.sshfl [vmem:[#allocation1 + $0x10] sm:$0xff pattern:$0x75316420]
      %890 = vrot.lane.b32.xlu0 %v888, 96
      %v891 = vpop.permute.xlu0 %890
      %892 = vrot.lane.b32.xlu0 %v889, 96
      %v893 = vpop.permute.xlu0 %892
      %896 = vst [vmem:[#allocation1] ss:$2 sm:$0xff] %v208
      %s897 = scalar_lea.vmem [#allocation1], 1
      %898 = vst [vmem:[%s897] ss:$2 sm:$0xff] %v210
      %s899 = scalar_lea.vmem [#allocation1], 16
      %900 = vst [vmem:[%s899] ss:$2 sm:$0xff] %v212
      %s901 = scalar_lea.vmem [#allocation1], 17
      %902 = vst [vmem:[%s901] ss:$2 sm:$0xff] %v214
      %v903 = vld.sshfl [vmem:[#allocation1] sm:$0xff pattern:$0x75316420]
      %v904 = vld.sshfl [vmem:[#allocation1 + $0x10] sm:$0xff pattern:$0x75316420]
      %907 = vst [vmem:[#allocation1] ss:$2 sm:$0xff] %v208
      %s908 = scalar_lea.vmem [#allocation1], 1
      %909 = vst [vmem:[%s908] ss:$2 sm:$0xff] %v210
      %s910 = scalar_lea.vmem [#allocation1], 16
      %911 = vst [vmem:[%s910] ss:$2 sm:$0xff] %v212
      %s912 = scalar_lea.vmem [#allocation1], 17
      %913 = vst [vmem:[%s912] ss:$2 sm:$0xff] %v214
      %v914 = vld.sshfl [vmem:[#allocation1] sm:$0xff pattern:$0x75316420]
      %v915 = vld.sshfl [vmem:[#allocation1 + $0x10] sm:$0xff pattern:$0x75316420]
      %916 = vrot.lane.b32.xlu0 %v914, 32
      %v917 = vpop.permute.xlu0 %916
      %918 = vrot.lane.b32.xlu0 %v915, 32
      %v919 = vpop.permute.xlu0 %918
      %922 = vst [vmem:[#allocation1] ss:$2 sm:$0xff] %v208
      %s923 = scalar_lea.vmem [#allocation1], 1
      %924 = vst [vmem:[%s923] ss:$2 sm:$0xff] %v210
      %s925 = scalar_lea.vmem [#allocation1], 16
      %926 = vst [vmem:[%s925] ss:$2 sm:$0xff] %v212
      %s927 = scalar_lea.vmem [#allocation1], 17
      %928 = vst [vmem:[%s927] ss:$2 sm:$0xff] %v214
      %v929 = vld.sshfl [vmem:[#allocation1] sm:$0xff pattern:$0x75316420]
      %v930 = vld.sshfl [vmem:[#allocation1 + $0x10] sm:$0xff pattern:$0x75316420]
      %931 = vrot.lane.b32.xlu0 %v929, 64
      %v932 = vpop.permute.xlu0 %931
      %933 = vrot.lane.b32.xlu0 %v930, 64
      %v934 = vpop.permute.xlu0 %933
      %v937 = vsel %vm872, %v891, %v903
      %v938 = vsel %vm872, %v893, %v904
      %v939 = vsel %vm875, %v937, %v917
      %v940 = vsel %vm875, %v938, %v919
      %v941 = vsel %vm878, %v939, %v932
      %v942 = vsel %vm878, %v940, %v934
      %943 = vst [vmem:[#allocation1] ss:$2 sm:$0xff] %v208
      %s944 = scalar_lea.vmem [#allocation1], 1
      %945 = vst [vmem:[%s944] ss:$2 sm:$0xff] %v210
      %s946 = scalar_lea.vmem [#allocation1], 16
      %947 = vst [vmem:[%s946] ss:$2 sm:$0xff] %v212
      %s948 = scalar_lea.vmem [#allocation1], 17
      %949 = vst [vmem:[%s948] ss:$2 sm:$0xff] %v214
      %v950 = vld.sshfl [vmem:[#allocation1] sm:$0xff pattern:$0x75316420]
      %v951 = vld.sshfl [vmem:[#allocation1 + $0x10] sm:$0xff pattern:$0x75316420]
      %952 = vrot.lane.b32.xlu0 %v950, 64
      %v953 = vpop.permute.xlu0 %952
      %954 = vrot.lane.b32.xlu0 %v951, 64
      %v955 = vpop.permute.xlu0 %954
      %958 = vst [vmem:[#allocation1] ss:$2 sm:$0xff] %v208
      %s959 = scalar_lea.vmem [#allocation1], 1
      %960 = vst [vmem:[%s959] ss:$2 sm:$0xff] %v210
      %s961 = scalar_lea.vmem [#allocation1], 16
      %962 = vst [vmem:[%s961] ss:$2 sm:$0xff] %v212
      %s963 = scalar_lea.vmem [#allocation1], 17
      %964 = vst [vmem:[%s963] ss:$2 sm:$0xff] %v214
      %v965 = vld.sshfl [vmem:[#allocation1] sm:$0xff pattern:$0x75316420]
      %v966 = vld.sshfl [vmem:[#allocation1 + $0x10] sm:$0xff pattern:$0x75316420]
      %967 = vrot.lane.b32.xlu0 %v965, 96
      %v968 = vpop.permute.xlu0 %967
      %969 = vrot.lane.b32.xlu0 %v966, 96
      %v970 = vpop.permute.xlu0 %969
      %973 = vst [vmem:[#allocation1] ss:$2 sm:$0xff] %v208
      %s974 = scalar_lea.vmem [#allocation1], 1
      %975 = vst [vmem:[%s974] ss:$2 sm:$0xff] %v210
      %s976 = scalar_lea.vmem [#allocation1], 16
      %977 = vst [vmem:[%s976] ss:$2 sm:$0xff] %v212
      %s978 = scalar_lea.vmem [#allocation1], 17
      %979 = vst [vmem:[%s978] ss:$2 sm:$0xff] %v214
      %v980 = vld.sshfl [vmem:[#allocation1] sm:$0xff pattern:$0x75316420]
      %v981 = vld.sshfl [vmem:[#allocation1 + $0x10] sm:$0xff pattern:$0x75316420]
      %984 = vst [vmem:[#allocation1] ss:$2 sm:$0xff] %v208
      %s985 = scalar_lea.vmem [#allocation1], 1
      %986 = vst [vmem:[%s985] ss:$2 sm:$0xff] %v210
      %s987 = scalar_lea.vmem [#allocation1], 16
      %988 = vst [vmem:[%s987] ss:$2 sm:$0xff] %v212
      %s989 = scalar_lea.vmem [#allocation1], 17
      %990 = vst [vmem:[%s989] ss:$2 sm:$0xff] %v214
      %v991 = vld.sshfl [vmem:[#allocation1] sm:$0xff pattern:$0x75316420]
      %v992 = vld.sshfl [vmem:[#allocation1 + $0x10] sm:$0xff pattern:$0x75316420]
      %993 = vrot.lane.b32.xlu0 %v991, 32
      %v994 = vpop.permute.xlu0 %993
      %995 = vrot.lane.b32.xlu0 %v992, 32
      %v996 = vpop.permute.xlu0 %995
      %v999 = vsel %vm872, %v953, %v968
      %v1000 = vsel %vm872, %v955, %v970
      %v1001 = vsel %vm875, %v999, %v980
      %v1002 = vsel %vm875, %v1000, %v981
      %v1003 = vsel %vm878, %v1001, %v994
      %v1004 = vsel %vm878, %v1002, %v996
      %1005 = vst [vmem:[#allocation1] ss:$2 sm:$0xff] %v208
      %s1006 = scalar_lea.vmem [#allocation1], 1
      %1007 = vst [vmem:[%s1006] ss:$2 sm:$0xff] %v210
      %s1008 = scalar_lea.vmem [#allocation1], 16
      %1009 = vst [vmem:[%s1008] ss:$2 sm:$0xff] %v212
      %s1010 = scalar_lea.vmem [#allocation1], 17
      %1011 = vst [vmem:[%s1010] ss:$2 sm:$0xff] %v214
      %v1012 = vld.sshfl [vmem:[#allocation1] sm:$0xff pattern:$0x75316420]
      %v1013 = vld.sshfl [vmem:[#allocation1 + $0x10] sm:$0xff pattern:$0x75316420]
      %1014 = vrot.lane.b32.xlu0 %v1012, 32
      %v1015 = vpop.permute.xlu0 %1014
      %1016 = vrot.lane.b32.xlu0 %v1013, 32
      %v1017 = vpop.permute.xlu0 %1016
      %1020 = vst [vmem:[#allocation1] ss:$2 sm:$0xff] %v208
      %s1021 = scalar_lea.vmem [#allocation1], 1
      %1022 = vst [vmem:[%s1021] ss:$2 sm:$0xff] %v210
      %s1023 = scalar_lea.vmem [#allocation1], 16
      %1024 = vst [vmem:[%s1023] ss:$2 sm:$0xff] %v212
      %s1025 = scalar_lea.vmem [#allocation1], 17
      %1026 = vst [vmem:[%s1025] ss:$2 sm:$0xff] %v214
      %v1027 = vld.sshfl [vmem:[#allocation1] sm:$0xff pattern:$0x75316420]
      %v1028 = vld.sshfl [vmem:[#allocation1 + $0x10] sm:$0xff pattern:$0x75316420]
      %1029 = vrot.lane.b32.xlu0 %v1027, 64
      %v1030 = vpop.permute.xlu0 %1029
      %1031 = vrot.lane.b32.xlu0 %v1028, 64
      %v1032 = vpop.permute.xlu0 %1031
      %1035 = vst [vmem:[#allocation1] ss:$2 sm:$0xff] %v208
      %s1036 = scalar_lea.vmem [#allocation1], 1
      %1037 = vst [vmem:[%s1036] ss:$2 sm:$0xff] %v210
      %s1038 = scalar_lea.vmem [#allocation1], 16
      %1039 = vst [vmem:[%s1038] ss:$2 sm:$0xff] %v212
      %s1040 = scalar_lea.vmem [#allocation1], 17
      %1041 = vst [vmem:[%s1040] ss:$2 sm:$0xff] %v214
      %v1042 = vld.sshfl [vmem:[#allocation1] sm:$0xff pattern:$0x75316420]
      %v1043 = vld.sshfl [vmem:[#allocation1 + $0x10] sm:$0xff pattern:$0x75316420]
      %1044 = vrot.lane.b32.xlu0 %v1042, 96
      %v1045 = vpop.permute.xlu0 %1044
      %1046 = vrot.lane.b32.xlu0 %v1043, 96
      %v1047 = vpop.permute.xlu0 %1046
      %1050 = vst [vmem:[#allocation1] ss:$2 sm:$0xff] %v208
      %s1051 = scalar_lea.vmem [#allocation1], 1
      %1052 = vst [vmem:[%s1051] ss:$2 sm:$0xff] %v210
      %s1053 = scalar_lea.vmem [#allocation1], 16
      %1054 = vst [vmem:[%s1053] ss:$2 sm:$0xff] %v212
      %s1055 = scalar_lea.vmem [#allocation1], 17
      %1056 = vst [vmem:[%s1055] ss:$2 sm:$0xff] %v214
      %v1057 = vld.sshfl [vmem:[#allocation1] sm:$0xff pattern:$0x75316420]
      %v1058 = vld.sshfl [vmem:[#allocation1 + $0x10] sm:$0xff pattern:$0x75316420]
      %v1061 = vsel %vm872, %v1015, %v1030
      %v1062 = vsel %vm872, %v1017, %v1032
      %v1063 = vsel %vm875, %v1061, %v1045
      %v1064 = vsel %vm875, %v1062, %v1047
      %v1065 = vsel %vm878, %v1063, %v1057
      %v1066 = vsel %vm878, %v1064, %v1058
      %1067 = vst [vmem:[#allocation1] ss:$2 sm:$0xff] %v208
      %s1068 = scalar_lea.vmem [#allocation1], 1
      %1069 = vst [vmem:[%s1068] ss:$2 sm:$0xff] %v210
      %s1070 = scalar_lea.vmem [#allocation1], 16
      %1071 = vst [vmem:[%s1070] ss:$2 sm:$0xff] %v212
      %s1072 = scalar_lea.vmem [#allocation1], 17
      %1073 = vst [vmem:[%s1072] ss:$2 sm:$0xff] %v214
      %v1074 = vld.sshfl [vmem:[#allocation1 + $0x8] sm:$0xff pattern:$0x75316420]
      %v1075 = vld.sshfl [vmem:[#allocation1 + $0x18] sm:$0xff pattern:$0x75316420]
      %1078 = vst [vmem:[#allocation1] ss:$2 sm:$0xff] %v208
      %s1079 = scalar_lea.vmem [#allocation1], 1
      %1080 = vst [vmem:[%s1079] ss:$2 sm:$0xff] %v210
      %s1081 = scalar_lea.vmem [#allocation1], 16
      %1082 = vst [vmem:[%s1081] ss:$2 sm:$0xff] %v212
      %s1083 = scalar_lea.vmem [#allocation1], 17
      %1084 = vst [vmem:[%s1083] ss:$2 sm:$0xff] %v214
      %v1085 = vld.sshfl [vmem:[#allocation1 + $0x8] sm:$0xff pattern:$0x75316420]
      %v1086 = vld.sshfl [vmem:[#allocation1 + $0x18] sm:$0xff pattern:$0x75316420]
      %1087 = vrot.lane.b32.xlu0 %v1085, 32
      %v1088 = vpop.permute.xlu0 %1087
      %1089 = vrot.lane.b32.xlu0 %v1086, 32
      %v1090 = vpop.permute.xlu0 %1089
      %1093 = vst [vmem:[#allocation1] ss:$2 sm:$0xff] %v208
      %s1094 = scalar_lea.vmem [#allocation1], 1
      %1095 = vst [vmem:[%s1094] ss:$2 sm:$0xff] %v210
      %s1096 = scalar_lea.vmem [#allocation1], 16
      %1097 = vst [vmem:[%s1096] ss:$2 sm:$0xff] %v212
      %s1098 = scalar_lea.vmem [#allocation1], 17
      %1099 = vst [vmem:[%s1098] ss:$2 sm:$0xff] %v214
      %v1100 = vld.sshfl [vmem:[#allocation1 + $0x8] sm:$0xff pattern:$0x75316420]
      %v1101 = vld.sshfl [vmem:[#allocation1 + $0x18] sm:$0xff pattern:$0x75316420]
      %1102 = vrot.lane.b32.xlu0 %v1100, 64
      %v1103 = vpop.permute.xlu0 %1102
      %1104 = vrot.lane.b32.xlu0 %v1101, 64
      %v1105 = vpop.permute.xlu0 %1104
      %1108 = vst [vmem:[#allocation1] ss:$2 sm:$0xff] %v208
      %s1109 = scalar_lea.vmem [#allocation1], 1
      %1110 = vst [vmem:[%s1109] ss:$2 sm:$0xff] %v210
      %s1111 = scalar_lea.vmem [#allocation1], 16
      %1112 = vst [vmem:[%s1111] ss:$2 sm:$0xff] %v212
      %s1113 = scalar_lea.vmem [#allocation1], 17
      %1114 = vst [vmem:[%s1113] ss:$2 sm:$0xff] %v214
      %v1115 = vld.sshfl [vmem:[#allocation1 + $0x8] sm:$0xff pattern:$0x75316420]
      %v1116 = vld.sshfl [vmem:[#allocation1 + $0x18] sm:$0xff pattern:$0x75316420]
      %1117 = vrot.lane.b32.xlu0 %v1115, 96
      %v1118 = vpop.permute.xlu0 %1117
      %1119 = vrot.lane.b32.xlu0 %v1116, 96
      %v1120 = vpop.permute.xlu0 %1119
      %v1123 = vsel %vm872, %v1074, %v1088
      %v1124 = vsel %vm872, %v1075, %v1090
      %v1125 = vsel %vm875, %v1123, %v1103
      %v1126 = vsel %vm875, %v1124, %v1105
      %v1127 = vsel %vm878, %v1125, %v1118
      %v1128 = vsel %vm878, %v1126, %v1120
      %1129 = vst [vmem:[#allocation1] ss:$2 sm:$0xff] %v208
      %s1130 = scalar_lea.vmem [#allocation1], 1
      %1131 = vst [vmem:[%s1130] ss:$2 sm:$0xff] %v210
      %s1132 = scalar_lea.vmem [#allocation1], 16
      %1133 = vst [vmem:[%s1132] ss:$2 sm:$0xff] %v212
      %s1134 = scalar_lea.vmem [#allocation1], 17
      %1135 = vst [vmem:[%s1134] ss:$2 sm:$0xff] %v214
      %v1136 = vld.sshfl [vmem:[#allocation1 + $0x8] sm:$0xff pattern:$0x75316420]
      %v1137 = vld.sshfl [vmem:[#allocation1 + $0x18] sm:$0xff pattern:$0x75316420]
      %1138 = vrot.lane.b32.xlu0 %v1136, 96
      %v1139 = vpop.permute.xlu0 %1138
      %1140 = vrot.lane.b32.xlu0 %v1137, 96
      %v1141 = vpop.permute.xlu0 %1140
      %1144 = vst [vmem:[#allocation1] ss:$2 sm:$0xff] %v208
      %s1145 = scalar_lea.vmem [#allocation1], 1
      %1146 = vst [vmem:[%s1145] ss:$2 sm:$0xff] %v210
      %s1147 = scalar_lea.vmem [#allocation1], 16
      %1148 = vst [vmem:[%s1147] ss:$2 sm:$0xff] %v212
      %s1149 = scalar_lea.vmem [#allocation1], 17
      %1150 = vst [vmem:[%s1149] ss:$2 sm:$0xff] %v214
      %v1151 = vld.sshfl [vmem:[#allocation1 + $0x8] sm:$0xff pattern:$0x75316420]
      %v1152 = vld.sshfl [vmem:[#allocation1 + $0x18] sm:$0xff pattern:$0x75316420]
      %1155 = vst [vmem:[#allocation1] ss:$2 sm:$0xff] %v208
      %s1156 = scalar_lea.vmem [#allocation1], 1
      %1157 = vst [vmem:[%s1156] ss:$2 sm:$0xff] %v210
      %s1158 = scalar_lea.vmem [#allocation1], 16
      %1159 = vst [vmem:[%s1158] ss:$2 sm:$0xff] %v212
      %s1160 = scalar_lea.vmem [#allocation1], 17
      %1161 = vst [vmem:[%s1160] ss:$2 sm:$0xff] %v214
      %v1162 = vld.sshfl [vmem:[#allocation1 + $0x8] sm:$0xff pattern:$0x75316420]
      %v1163 = vld.sshfl [vmem:[#allocation1 + $0x18] sm:$0xff pattern:$0x75316420]
      %1164 = vrot.lane.b32.xlu0 %v1162, 32
      %v1165 = vpop.permute.xlu0 %1164
      %1166 = vrot.lane.b32.xlu0 %v1163, 32
      %v1167 = vpop.permute.xlu0 %1166
      %1170 = vst [vmem:[#allocation1] ss:$2 sm:$0xff] %v208
      %s1171 = scalar_lea.vmem [#allocation1], 1
      %1172 = vst [vmem:[%s1171] ss:$2 sm:$0xff] %v210
      %s1173 = scalar_lea.vmem [#allocation1], 16
      %1174 = vst [vmem:[%s1173] ss:$2 sm:$0xff] %v212
      %s1175 = scalar_lea.vmem [#allocation1], 17
      %1176 = vst [vmem:[%s1175] ss:$2 sm:$0xff] %v214
      %v1177 = vld.sshfl [vmem:[#allocation1 + $0x8] sm:$0xff pattern:$0x75316420]
      %v1178 = vld.sshfl [vmem:[#allocation1 + $0x18] sm:$0xff pattern:$0x75316420]
      %1179 = vrot.lane.b32.xlu0 %v1177, 64
      %v1180 = vpop.permute.xlu0 %1179
      %1181 = vrot.lane.b32.xlu0 %v1178, 64
      %v1182 = vpop.permute.xlu0 %1181
      %v1185 = vsel %vm872, %v1139, %v1151
      %v1186 = vsel %vm872, %v1141, %v1152
      %v1187 = vsel %vm875, %v1185, %v1165
      %v1188 = vsel %vm875, %v1186, %v1167
      %v1189 = vsel %vm878, %v1187, %v1180
      %v1190 = vsel %vm878, %v1188, %v1182
      %1191 = vst [vmem:[#allocation1] ss:$2 sm:$0xff] %v208
      %s1192 = scalar_lea.vmem [#allocation1], 1
      %1193 = vst [vmem:[%s1192] ss:$2 sm:$0xff] %v210
      %s1194 = scalar_lea.vmem [#allocation1], 16
      %1195 = vst [vmem:[%s1194] ss:$2 sm:$0xff] %v212
      %s1196 = scalar_lea.vmem [#allocation1], 17
      %1197 = vst [vmem:[%s1196] ss:$2 sm:$0xff] %v214
      %v1198 = vld.sshfl [vmem:[#allocation1 + $0x8] sm:$0xff pattern:$0x75316420]
      %v1199 = vld.sshfl [vmem:[#allocation1 + $0x18] sm:$0xff pattern:$0x75316420]
      %1200 = vrot.lane.b32.xlu0 %v1198, 64
      %v1201 = vpop.permute.xlu0 %1200
      %1202 = vrot.lane.b32.xlu0 %v1199, 64
      %v1203 = vpop.permute.xlu0 %1202
      %1206 = vst [vmem:[#allocation1] ss:$2 sm:$0xff] %v208
      %s1207 = scalar_lea.vmem [#allocation1], 1
      %1208 = vst [vmem:[%s1207] ss:$2 sm:$0xff] %v210
      %s1209 = scalar_lea.vmem [#allocation1], 16
      %1210 = vst [vmem:[%s1209] ss:$2 sm:$0xff] %v212
      %s1211 = scalar_lea.vmem [#allocation1], 17
      %1212 = vst [vmem:[%s1211] ss:$2 sm:$0xff] %v214
      %v1213 = vld.sshfl [vmem:[#allocation1 + $0x8] sm:$0xff pattern:$0x75316420]
      %v1214 = vld.sshfl [vmem:[#allocation1 + $0x18] sm:$0xff pattern:$0x75316420]
      %1215 = vrot.lane.b32.xlu0 %v1213, 96
      %v1216 = vpop.permute.xlu0 %1215
      %1217 = vrot.lane.b32.xlu0 %v1214, 96
      %v1218 = vpop.permute.xlu0 %1217
      %1221 = vst [vmem:[#allocation1] ss:$2 sm:$0xff] %v208
      %s1222 = scalar_lea.vmem [#allocation1], 1
      %1223 = vst [vmem:[%s1222] ss:$2 sm:$0xff] %v210
      %s1224 = scalar_lea.vmem [#allocation1], 16
      %1225 = vst [vmem:[%s1224] ss:$2 sm:$0xff] %v212
      %s1226 = scalar_lea.vmem [#allocation1], 17
      %1227 = vst [vmem:[%s1226] ss:$2 sm:$0xff] %v214
      %v1228 = vld.sshfl [vmem:[#allocation1 + $0x8] sm:$0xff pattern:$0x75316420]
      %v1229 = vld.sshfl [vmem:[#allocation1 + $0x18] sm:$0xff pattern:$0x75316420]
      %1232 = vst [vmem:[#allocation1] ss:$2 sm:$0xff] %v208
      %s1233 = scalar_lea.vmem [#allocation1], 1
      %1234 = vst [vmem:[%s1233] ss:$2 sm:$0xff] %v210
      %s1235 = scalar_lea.vmem [#allocation1], 16
      %1236 = vst [vmem:[%s1235] ss:$2 sm:$0xff] %v212
      %s1237 = scalar_lea.vmem [#allocation1], 17
      %1238 = vst [vmem:[%s1237] ss:$2 sm:$0xff] %v214
      %v1239 = vld.sshfl [vmem:[#allocation1 + $0x8] sm:$0xff pattern:$0x75316420]
      %v1240 = vld.sshfl [vmem:[#allocation1 + $0x18] sm:$0xff pattern:$0x75316420]
      %1241 = vrot.lane.b32.xlu0 %v1239, 32
      %v1242 = vpop.permute.xlu0 %1241
      %1243 = vrot.lane.b32.xlu0 %v1240, 32
      %v1244 = vpop.permute.xlu0 %1243
      %v1247 = vsel %vm872, %v1201, %v1216
      %v1248 = vsel %vm872, %v1203, %v1218
      %v1249 = vsel %vm875, %v1247, %v1228
      %v1250 = vsel %vm875, %v1248, %v1229
      %v1251 = vsel %vm878, %v1249, %v1242
      %v1252 = vsel %vm878, %v1250, %v1244
      %1253 = vst [vmem:[#allocation1] ss:$2 sm:$0xff] %v208
      %s1254 = scalar_lea.vmem [#allocation1], 1
      %1255 = vst [vmem:[%s1254] ss:$2 sm:$0xff] %v210
      %s1256 = scalar_lea.vmem [#allocation1], 16
      %1257 = vst [vmem:[%s1256] ss:$2 sm:$0xff] %v212
      %s1258 = scalar_lea.vmem [#allocation1], 17
      %1259 = vst [vmem:[%s1258] ss:$2 sm:$0xff] %v214
      %v1260 = vld.sshfl [vmem:[#allocation1 + $0x8] sm:$0xff pattern:$0x75316420]
      %v1261 = vld.sshfl [vmem:[#allocation1 + $0x18] sm:$0xff pattern:$0x75316420]
      %1262 = vrot.lane.b32.xlu0 %v1260, 32
      %v1263 = vpop.permute.xlu0 %1262
      %1264 = vrot.lane.b32.xlu0 %v1261, 32
      %v1265 = vpop.permute.xlu0 %1264
      %1268 = vst [vmem:[#allocation1] ss:$2 sm:$0xff] %v208
      %s1269 = scalar_lea.vmem [#allocation1], 1
      %1270 = vst [vmem:[%s1269] ss:$2 sm:$0xff] %v210
      %s1271 = scalar_lea.vmem [#allocation1], 16
      %1272 = vst [vmem:[%s1271] ss:$2 sm:$0xff] %v212
      %s1273 = scalar_lea.vmem [#allocation1], 17
      %1274 = vst [vmem:[%s1273] ss:$2 sm:$0xff] %v214
      %v1275 = vld.sshfl [vmem:[#allocation1 + $0x8] sm:$0xff pattern:$0x75316420]
      %v1276 = vld.sshfl [vmem:[#allocation1 + $0x18] sm:$0xff pattern:$0x75316420]
      %1277 = vrot.lane.b32.xlu0 %v1275, 64
      %v1278 = vpop.permute.xlu0 %1277
      %1279 = vrot.lane.b32.xlu0 %v1276, 64
      %v1280 = vpop.permute.xlu0 %1279
      %1283 = vst [vmem:[#allocation1] ss:$2 sm:$0xff] %v208
      %s1284 = scalar_lea.vmem [#allocation1], 1
      %1285 = vst [vmem:[%s1284] ss:$2 sm:$0xff] %v210
      %s1286 = scalar_lea.vmem [#allocation1], 16
      %1287 = vst [vmem:[%s1286] ss:$2 sm:$0xff] %v212
      %s1288 = scalar_lea.vmem [#allocation1], 17
      %1289 = vst [vmem:[%s1288] ss:$2 sm:$0xff] %v214
      %v1290 = vld.sshfl [vmem:[#allocation1 + $0x8] sm:$0xff pattern:$0x75316420]
      %v1291 = vld.sshfl [vmem:[#allocation1 + $0x18] sm:$0xff pattern:$0x75316420]
      %1292 = vrot.lane.b32.xlu0 %v1290, 96
      %v1293 = vpop.permute.xlu0 %1292
      %1294 = vrot.lane.b32.xlu0 %v1291, 96
      %v1295 = vpop.permute.xlu0 %1294
      %1298 = vst [vmem:[#allocation1] ss:$2 sm:$0xff] %v208
      %s1299 = scalar_lea.vmem [#allocation1], 1
      %1300 = vst [vmem:[%s1299] ss:$2 sm:$0xff] %v210
      %s1301 = scalar_lea.vmem [#allocation1], 16
      %1302 = vst [vmem:[%s1301] ss:$2 sm:$0xff] %v212
      %s1303 = scalar_lea.vmem [#allocation1], 17
      %1304 = vst [vmem:[%s1303] ss:$2 sm:$0xff] %v214
      %v1305 = vld.sshfl [vmem:[#allocation1 + $0x8] sm:$0xff pattern:$0x75316420]
      %v1306 = vld.sshfl [vmem:[#allocation1 + $0x18] sm:$0xff pattern:$0x75316420]
      %v1309 = vsel %vm872, %v1263, %v1278
      %v1310 = vsel %vm872, %v1265, %v1280
      %v1311 = vsel %vm875, %v1309, %v1293
      %v1312 = vsel %vm875, %v1310, %v1295
      %v1313 = vsel %vm878, %v1311, %v1305
      %v1314 = vsel %vm878, %v1312, %v1306
      %1319 = vst [vmem:[#allocation1] ss:$2 sm:$0xff] %v209
      %s1320 = scalar_lea.vmem [#allocation1], 1
      %1321 = vst [vmem:[%s1320] ss:$2 sm:$0xff] %v211
      %s1322 = scalar_lea.vmem [#allocation1], 16
      %1323 = vst [vmem:[%s1322] ss:$2 sm:$0xff] %v213
      %s1324 = scalar_lea.vmem [#allocation1], 17
      %1325 = vst [vmem:[%s1324] ss:$2 sm:$0xff] %v215
      %v1326 = vld.sshfl [vmem:[#allocation1] sm:$0xff pattern:$0x75316420]
      %v1327 = vld.sshfl [vmem:[#allocation1 + $0x10] sm:$0xff pattern:$0x75316420]
      %1330 = vst [vmem:[#allocation1] ss:$2 sm:$0xff] %v209
      %s1331 = scalar_lea.vmem [#allocation1], 1
      %1332 = vst [vmem:[%s1331] ss:$2 sm:$0xff] %v211
      %s1333 = scalar_lea.vmem [#allocation1], 16
      %1334 = vst [vmem:[%s1333] ss:$2 sm:$0xff] %v213
      %s1335 = scalar_lea.vmem [#allocation1], 17
      %1336 = vst [vmem:[%s1335] ss:$2 sm:$0xff] %v215
      %v1337 = vld.sshfl [vmem:[#allocation1] sm:$0xff pattern:$0x75316420]
      %v1338 = vld.sshfl [vmem:[#allocation1 + $0x10] sm:$0xff pattern:$0x75316420]
      %1339 = vrot.lane.b32.xlu0 %v1337, 32
      %v1340 = vpop.permute.xlu0 %1339
      %1341 = vrot.lane.b32.xlu0 %v1338, 32
      %v1342 = vpop.permute.xlu0 %1341
      %1345 = vst [vmem:[#allocation1] ss:$2 sm:$0xff] %v209
      %s1346 = scalar_lea.vmem [#allocation1], 1
      %1347 = vst [vmem:[%s1346] ss:$2 sm:$0xff] %v211
      %s1348 = scalar_lea.vmem [#allocation1], 16
      %1349 = vst [vmem:[%s1348] ss:$2 sm:$0xff] %v213
      %s1350 = scalar_lea.vmem [#allocation1], 17
      %1351 = vst [vmem:[%s1350] ss:$2 sm:$0xff] %v215
      %v1352 = vld.sshfl [vmem:[#allocation1] sm:$0xff pattern:$0x75316420]
      %v1353 = vld.sshfl [vmem:[#allocation1 + $0x10] sm:$0xff pattern:$0x75316420]
      %1354 = vrot.lane.b32.xlu0 %v1352, 64
      %v1355 = vpop.permute.xlu0 %1354
      %1356 = vrot.lane.b32.xlu0 %v1353, 64
      %v1357 = vpop.permute.xlu0 %1356
      %1360 = vst [vmem:[#allocation1] ss:$2 sm:$0xff] %v209
      %s1361 = scalar_lea.vmem [#allocation1], 1
      %1362 = vst [vmem:[%s1361] ss:$2 sm:$0xff] %v211
      %s1363 = scalar_lea.vmem [#allocation1], 16
      %1364 = vst [vmem:[%s1363] ss:$2 sm:$0xff] %v213
      %s1365 = scalar_lea.vmem [#allocation1], 17
      %1366 = vst [vmem:[%s1365] ss:$2 sm:$0xff] %v215
      %v1367 = vld.sshfl [vmem:[#allocation1] sm:$0xff pattern:$0x75316420]
      %v1368 = vld.sshfl [vmem:[#allocation1 + $0x10] sm:$0xff pattern:$0x75316420]
      %1369 = vrot.lane.b32.xlu0 %v1367, 96
      %v1370 = vpop.permute.xlu0 %1369
      %1371 = vrot.lane.b32.xlu0 %v1368, 96
      %v1372 = vpop.permute.xlu0 %1371
      %v1375 = vsel %vm872, %v1326, %v1340
      %v1376 = vsel %vm872, %v1327, %v1342
      %v1377 = vsel %vm875, %v1375, %v1355
      %v1378 = vsel %vm875, %v1376, %v1357
      %v1379 = vsel %vm878, %v1377, %v1370
      %v1380 = vsel %vm878, %v1378, %v1372
      %1385 = vst [vmem:[#allocation1] ss:$2 sm:$0xff] %v688
      %s1386 = scalar_lea.vmem [#allocation1], 1
      %1387 = vst [vmem:[%s1386] ss:$2 sm:$0xff] %v689
      %s1388 = scalar_lea.vmem [#allocation1], 16
      %1389 = vst [vmem:[%s1388] ss:$2 sm:$0xff] %v690
      %s1390 = scalar_lea.vmem [#allocation1], 17
      %1391 = vst [vmem:[%s1390] ss:$2 sm:$0xff] %v691
      %v1392 = vld.sshfl [vmem:[#allocation1] sm:$0xff pattern:$0x75316420]
      %v1393 = vld.sshfl [vmem:[#allocation1 + $0x10] sm:$0xff pattern:$0x75316420]
      %1400 = vst [vmem:[#allocation1] ss:$2 sm:$0xff] %v708
      %s1401 = scalar_lea.vmem [#allocation1], 1
      %1402 = vst [vmem:[%s1401] ss:$2 sm:$0xff] %v709
      %s1403 = scalar_lea.vmem [#allocation1], 16
      %1404 = vst [vmem:[%s1403] ss:$2 sm:$0xff] %v710
      %s1405 = scalar_lea.vmem [#allocation1], 17
      %1406 = vst [vmem:[%s1405] ss:$2 sm:$0xff] %v711
      %v1407 = vld.sshfl [vmem:[#allocation1] sm:$0xff pattern:$0x75316420]
      %v1408 = vld.sshfl [vmem:[#allocation1 + $0x10] sm:$0xff pattern:$0x75316420]
      %1409 = vrot.lane.b32.xlu0 %v1407, 116
      %v1410 = vpop.permute.xlu0 %1409
      %1411 = vrot.lane.b32.xlu0 %v1408, 116
      %v1412 = vpop.permute.xlu0 %1411
      %1419 = vst [vmem:[#allocation1] ss:$2 sm:$0xff] %v724
      %s1420 = scalar_lea.vmem [#allocation1], 1
      %1421 = vst [vmem:[%s1420] ss:$2 sm:$0xff] %v725
      %s1422 = scalar_lea.vmem [#allocation1], 16
      %1423 = vst [vmem:[%s1422] ss:$2 sm:$0xff] %v726
      %s1424 = scalar_lea.vmem [#allocation1], 17
      %1425 = vst [vmem:[%s1424] ss:$2 sm:$0xff] %v727
      %v1426 = vld.sshfl [vmem:[#allocation1] sm:$0xff pattern:$0x75316420]
      %v1427 = vld.sshfl [vmem:[#allocation1 + $0x10] sm:$0xff pattern:$0x75316420]
      %1428 = vrot.lane.b32.xlu0 %v1426, 104
      %v1429 = vpop.permute.xlu0 %1428
      %1430 = vrot.lane.b32.xlu0 %v1427, 104
      %v1431 = vpop.permute.xlu0 %1430
      %1438 = vst [vmem:[#allocation1] ss:$2 sm:$0xff] %v740
      %s1439 = scalar_lea.vmem [#allocation1], 1
      %1440 = vst [vmem:[%s1439] ss:$2 sm:$0xff] %v741
      %s1441 = scalar_lea.vmem [#allocation1], 16
      %1442 = vst [vmem:[%s1441] ss:$2 sm:$0xff] %v742
      %s1443 = scalar_lea.vmem [#allocation1], 17
      %1444 = vst [vmem:[%s1443] ss:$2 sm:$0xff] %v743
      %v1445 = vld.sshfl [vmem:[#allocation1] sm:$0xff pattern:$0x75316420]
      %v1446 = vld.sshfl [vmem:[#allocation1 + $0x10] sm:$0xff pattern:$0x75316420]
      %1447 = vrot.lane.b32.xlu0 %v1445, 92
      %v1448 = vpop.permute.xlu0 %1447
      %1449 = vrot.lane.b32.xlu0 %v1446, 92
      %v1450 = vpop.permute.xlu0 %1449
      %1457 = vst [vmem:[#allocation1] ss:$2 sm:$0xff] %v756
      %s1458 = scalar_lea.vmem [#allocation1], 1
      %1459 = vst [vmem:[%s1458] ss:$2 sm:$0xff] %v757
      %s1460 = scalar_lea.vmem [#allocation1], 16
      %1461 = vst [vmem:[%s1460] ss:$2 sm:$0xff] %v758
      %s1462 = scalar_lea.vmem [#allocation1], 17
      %1463 = vst [vmem:[%s1462] ss:$2 sm:$0xff] %v759
      %v1464 = vld.sshfl [vmem:[#allocation1] sm:$0xff pattern:$0x75316420]
      %v1465 = vld.sshfl [vmem:[#allocation1 + $0x10] sm:$0xff pattern:$0x75316420]
      %1466 = vrot.lane.b32.xlu0 %v1464, 80
      %v1467 = vpop.permute.xlu0 %1466
      %1468 = vrot.lane.b32.xlu0 %v1465, 80
      %v1469 = vpop.permute.xlu0 %1468
      %1476 = vst [vmem:[#allocation1] ss:$2 sm:$0xff] %v772
      %s1477 = scalar_lea.vmem [#allocation1], 1
      %1478 = vst [vmem:[%s1477] ss:$2 sm:$0xff] %v773
      %s1479 = scalar_lea.vmem [#allocation1], 16
      %1480 = vst [vmem:[%s1479] ss:$2 sm:$0xff] %v774
      %s1481 = scalar_lea.vmem [#allocation1], 17
      %1482 = vst [vmem:[%s1481] ss:$2 sm:$0xff] %v775
      %v1483 = vld.sshfl [vmem:[#allocation1] sm:$0xff pattern:$0x75316420]
      %v1484 = vld.sshfl [vmem:[#allocation1 + $0x10] sm:$0xff pattern:$0x75316420]
      %1485 = vrot.lane.b32.xlu0 %v1483, 68
      %v1486 = vpop.permute.xlu0 %1485
      %1487 = vrot.lane.b32.xlu0 %v1484, 68
      %v1488 = vpop.permute.xlu0 %1487
      %1495 = vst [vmem:[#allocation1] ss:$2 sm:$0xff] %v788
      %s1496 = scalar_lea.vmem [#allocation1], 1
      %1497 = vst [vmem:[%s1496] ss:$2 sm:$0xff] %v789
      %s1498 = scalar_lea.vmem [#allocation1], 16
      %1499 = vst [vmem:[%s1498] ss:$2 sm:$0xff] %v790
      %s1500 = scalar_lea.vmem [#allocation1], 17
      %1501 = vst [vmem:[%s1500] ss:$2 sm:$0xff] %v791
      %v1502 = vld.sshfl [vmem:[#allocation1] sm:$0xff pattern:$0x75316420]
      %v1503 = vld.sshfl [vmem:[#allocation1 + $0x10] sm:$0xff pattern:$0x75316420]
      %1504 = vrot.lane.b32.xlu0 %v1502, 56
      %v1505 = vpop.permute.xlu0 %1504
      %1506 = vrot.lane.b32.xlu0 %v1503, 56
      %v1507 = vpop.permute.xlu0 %1506
      %1514 = vst [vmem:[#allocation1] ss:$2 sm:$0xff] %v804
      %s1515 = scalar_lea.vmem [#allocation1], 1
      %1516 = vst [vmem:[%s1515] ss:$2 sm:$0xff] %v805
      %s1517 = scalar_lea.vmem [#allocation1], 16
      %1518 = vst [vmem:[%s1517] ss:$2 sm:$0xff] %v806
      %s1519 = scalar_lea.vmem [#allocation1], 17
      %1520 = vst [vmem:[%s1519] ss:$2 sm:$0xff] %v807
      %v1521 = vld.sshfl [vmem:[#allocation1] sm:$0xff pattern:$0x75316420]
      %v1522 = vld.sshfl [vmem:[#allocation1 + $0x10] sm:$0xff pattern:$0x75316420]
      %1523 = vrot.lane.b32.xlu0 %v1521, 44
      %v1524 = vpop.permute.xlu0 %1523
      %1525 = vrot.lane.b32.xlu0 %v1522, 44
      %v1526 = vpop.permute.xlu0 %1525
      %1533 = vst [vmem:[#allocation1] ss:$2 sm:$0xff] %v808
      %s1534 = scalar_lea.vmem [#allocation1], 1
      %1535 = vst [vmem:[%s1534] ss:$2 sm:$0xff] %v809
      %s1536 = scalar_lea.vmem [#allocation1], 16
      %1537 = vst [vmem:[%s1536] ss:$2 sm:$0xff] %v810
      %s1538 = scalar_lea.vmem [#allocation1], 17
      %1539 = vst [vmem:[%s1538] ss:$2 sm:$0xff] %v811
      %v1540 = vld.sshfl [vmem:[#allocation1] sm:$0xff pattern:$0x75316420]
      %v1541 = vld.sshfl [vmem:[#allocation1 + $0x10] sm:$0xff pattern:$0x75316420]
      %1542 = vrot.lane.b32.xlu0 %v1540, 32
      %v1543 = vpop.permute.xlu0 %1542
      %1544 = vrot.lane.b32.xlu0 %v1541, 32
      %v1545 = vpop.permute.xlu0 %1544
      %vm1548 = vcmask 31744
      %v1549 = vsel %vm1548, %v1392, %v1410
      %v1550 = vsel %vm1548, %v1393, %v1412
      %vm1551 = vcmask 64512
      %v1552 = vsel %vm1551, %v1549, %v1429
      %v1553 = vsel %vm1551, %v1550, %v1431
      %vm1554 = vcmask 97280
      %v1555 = vsel %vm1554, %v1552, %v1448
      %v1556 = vsel %vm1554, %v1553, %v1450
      %vm1557 = vcmask 130048
      %v1558 = vsel %vm1557, %v1555, %v1467
      %v1559 = vsel %vm1557, %v1556, %v1469
      %vm1560 = vcmask 162816
      %v1561 = vsel %vm1560, %v1558, %v1486
      %v1562 = vsel %vm1560, %v1559, %v1488
      %vm1563 = vcmask 195584
      %v1564 = vsel %vm1563, %v1561, %v1505
      %v1565 = vsel %vm1563, %v1562, %v1507
      %vm1566 = vcmask 228352
      %v1567 = vsel %vm1566, %v1564, %v1524
      %v1568 = vsel %vm1566, %v1565, %v1526
      %v1569 = vsel %vm872, %v1567, %v1543
      %v1570 = vsel %vm872, %v1568, %v1545
      %v1571 = vld [vmem:[%s2] sm:$0xff]
      %v1572 = vld [vmem:[%s2 + $0x8] sm:$0xff]
      %v1573 = vld [vmem:[%s2 + $0x10] sm:$0xff]
      %v1574 = vld [vmem:[%s2 + $0x18] sm:$0xff]
      %v1575 = vld [vmem:[%s2 + $0x20] sm:$0xff]
      %v1576 = vld [vmem:[%s2 + $0x28] sm:$0xff]
      %v1577 = vld [vmem:[%s2 + $0x30] sm:$0xff]
      %v1578 = vld [vmem:[%s2 + $0x38] sm:$0xff]
      %v1579 = vld [vmem:[%s2 + $0x40] sm:$0xff]
      %v1580 = vld [vmem:[%s2 + $0x48] sm:$0xff]
      %v1581 = vld [vmem:[%s2 + $0x50] sm:$0xff]
      %v1582 = vld [vmem:[%s2 + $0x58] sm:$0xff]
      %v1583 = vld [vmem:[%s2 + $0x60] sm:$0xff]
      %v1584 = vld [vmem:[%s2 + $0x68] sm:$0xff]
      %v1585 = vld [vmem:[%s2 + $0x70] sm:$0xff]
      %v1586 = vld [vmem:[%s2 + $0x78] sm:$0xff]
      %v1587 = vld [vmem:[%s2 + $0x80] sm:$0xff]
      %v1588 = vld [vmem:[%s2 + $0x88] sm:$0xff]
      %v1589 = vld [vmem:[%s2 + $0x90] sm:$0xff]
      %v1590 = vld [vmem:[%s2 + $0x98] sm:$0xff]
      %v1591 = vld [vmem:[%s2 + $0xa0] sm:$0xff]
      %v1592 = vld [vmem:[%s2 + $0xa8] sm:$0xff]
      %v1593 = vld [vmem:[%s2 + $0xb0] sm:$0xff]
      %v1594 = vld [vmem:[%s2 + $0xb8] sm:$0xff]
      %v1595 = vld [vmem:[%s2 + $0xc0] sm:$0xff]
      %v1596 = vld [vmem:[%s2 + $0xc8] sm:$0xff]
      %v1597 = vld [vmem:[%s2 + $0xd0] sm:$0xff]
      %v1598 = vld [vmem:[%s2 + $0xd8] sm:$0xff]
      %v1599 = vld [vmem:[%s2 + $0xe0] sm:$0xff]
      %v1600 = vld [vmem:[%s2 + $0xe8] sm:$0xff]
      %v1601 = vld [vmem:[%s2 + $0xf0] sm:$0xff]
      %v1602 = vld [vmem:[%s2 + $0xf8] sm:$0xff]
      %v1603 = vld [vmem:[%s2 + $0x100] sm:$0xff]
      %v1604 = vld [vmem:[%s2 + $0x108] sm:$0xff]
      %v1605 = vld [vmem:[%s2 + $0x110] sm:$0xff]
      %v1606 = vld [vmem:[%s2 + $0x118] sm:$0xff]
      %v1607 = vld [vmem:[%s2 + $0x120] sm:$0xf]
      %v1608 = vld [vmem:[%s2 + $0x128] sm:$0xf]
      %v1609 = vld [vmem:[%s2 + $0x130] sm:$0xf]
      %v1610 = vld [vmem:[%s2 + $0x138] sm:$0xf]
      %v1611 = vld [vmem:[%s2 + $0x140] sm:$0xf]
      %v1612 = vld [vmem:[%s2 + $0x148] sm:$0xf]
      %v1613 = vld [vmem:[%s2 + $0x150] sm:$0xf]
      %v1614 = vld [vmem:[%s2 + $0x158] sm:$0xf]
      %v1615 = vld [vmem:[%s2 + $0x160] sm:$0xf]
      %vm1616 = vcmask 293888
      %v1618 = vsel %vm1616, %v1569, 0
      %v1621 = vsel %vm1616, %v1570, 0
      %vm1623 = vcmask 1043456
      %v1625 = vsel %vm1623, %v1607, 0
      %v1628 = vsel %vm1623, %v1608, 0
      %v1631 = vsel %vm1623, %v1609, 0
      %v1634 = vsel %vm1623, %v1610, 0
      %v1637 = vsel %vm1623, %v1611, 0
      %v1640 = vsel %vm1623, %v1612, 0
      %v1643 = vsel %vm1623, %v1613, 0
      %v1646 = vsel %vm1623, %v1614, 0
      %v1649 = vsel %vm1623, %v1615, 0
      %1651 = vmatpush.msra.mxu0 0.0
      %1652 = vmatpush.msra.mxu0 0.0
      %1653 = vmatpush.msra.mxu0 0.0
      %1654 = vmatpush.msra.mxu0 0.0
      %1655 = vmatpush.msra.mxu0 0.0
      %1656 = vmatpush.msra.mxu0 0.0
      %1657 = vmatpush.msra.mxu0 0.0
      %1658 = vmatpush.msra.mxu0 0.0
      %1659 = vmatpush.msra.mxu0 0.0
      %1660 = vmatpush.msra.mxu0 0.0
      %1661 = vmatpush.msra.mxu0 0.0
      %1662 = vmatpush.msra.mxu0 %v1625
      %1663 = vmatpush.msra.mxu0 %v1598
      %1664 = vmatpush.msra.mxu0 %v1589
      %1665 = vmatpush.msra.mxu0 %v1580
      %1666 = vmatpush.msra.mxu0 %v1571
      %1667 = vmatmul.f32.gmra.mxu0 %v1618
      %v1668 = vpop.f32.mrf.mxu0
      %v1669 = vadd.f32 0.0, %v1668
      %1670 = vmatmul.f32.gmra.mxu0 %v1621
      %v1671 = vpop.f32.mrf.mxu0
      %v1672 = vadd.f32 0.0, %v1671
      %1673 = vdwg.mxu0
      %1674 = vmatpush.msra.mxu0 0.0
      %1675 = vmatpush.msra.mxu0 0.0
      %1676 = vmatpush.msra.mxu0 0.0
      %1677 = vmatpush.msra.mxu0 0.0
      %1678 = vmatpush.msra.mxu0 0.0
      %1679 = vmatpush.msra.mxu0 0.0
      %1680 = vmatpush.msra.mxu0 0.0
      %1681 = vmatpush.msra.mxu0 0.0
      %1682 = vmatpush.msra.mxu0 0.0
      %1683 = vmatpush.msra.mxu0 0.0
      %1684 = vmatpush.msra.mxu0 0.0
      %1685 = vmatpush.msra.mxu0 %v1628
      %1686 = vmatpush.msra.mxu0 %v1599
      %1687 = vmatpush.msra.mxu0 %v1590
      %1688 = vmatpush.msra.mxu0 %v1581
      %1689 = vmatpush.msra.mxu0 %v1572
      %1690 = vmatmul.f32.gmra.mxu0 %v1618
      %v1691 = vpop.f32.mrf.mxu0
      %v1692 = vadd.f32 0.0, %v1691
      %1693 = vmatmul.f32.gmra.mxu0 %v1621
      %v1694 = vpop.f32.mrf.mxu0
      %v1695 = vadd.f32 0.0, %v1694
      %1696 = vdwg.mxu0
      %1697 = vmatpush.msra.mxu0 0.0
      %1698 = vmatpush.msra.mxu0 0.0
      %1699 = vmatpush.msra.mxu0 0.0
      %1700 = vmatpush.msra.mxu0 0.0
      %1701 = vmatpush.msra.mxu0 0.0
      %1702 = vmatpush.msra.mxu0 0.0
      %1703 = vmatpush.msra.mxu0 0.0
      %1704 = vmatpush.msra.mxu0 0.0
      %1705 = vmatpush.msra.mxu0 0.0
      %1706 = vmatpush.msra.mxu0 0.0
      %1707 = vmatpush.msra.mxu0 0.0
      %1708 = vmatpush.msra.mxu0 %v1631
      %1709 = vmatpush.msra.mxu0 %v1600
      %1710 = vmatpush.msra.mxu0 %v1591
      %1711 = vmatpush.msra.mxu0 %v1582
      %1712 = vmatpush.msra.mxu0 %v1573
      %1713 = vmatmul.f32.gmra.mxu0 %v1618
      %v1714 = vpop.f32.mrf.mxu0
      %v1715 = vadd.f32 0.0, %v1714
      %1716 = vmatmul.f32.gmra.mxu0 %v1621
      %v1717 = vpop.f32.mrf.mxu0
      %v1718 = vadd.f32 0.0, %v1717
      %1719 = vdwg.mxu0
      %1720 = vmatpush.msra.mxu0 0.0
      %1721 = vmatpush.msra.mxu0 0.0
      %1722 = vmatpush.msra.mxu0 0.0
      %1723 = vmatpush.msra.mxu0 0.0
      %1724 = vmatpush.msra.mxu0 0.0
      %1725 = vmatpush.msra.mxu0 0.0
      %1726 = vmatpush.msra.mxu0 0.0
      %1727 = vmatpush.msra.mxu0 0.0
      %1728 = vmatpush.msra.mxu0 0.0
      %1729 = vmatpush.msra.mxu0 0.0
      %1730 = vmatpush.msra.mxu0 0.0
      %1731 = vmatpush.msra.mxu0 %v1634
      %1732 = vmatpush.msra.mxu0 %v1601
      %1733 = vmatpush.msra.mxu0 %v1592
      %1734 = vmatpush.msra.mxu0 %v1583
      %1735 = vmatpush.msra.mxu0 %v1574
      %1736 = vmatmul.f32.gmra.mxu0 %v1618
      %v1737 = vpop.f32.mrf.mxu0
      %v1738 = vadd.f32 0.0, %v1737
      %1739 = vmatmul.f32.gmra.mxu0 %v1621
      %v1740 = vpop.f32.mrf.mxu0
      %v1741 = vadd.f32 0.0, %v1740
      %1742 = vdwg.mxu0
      %1743 = vmatpush.msra.mxu0 0.0
      %1744 = vmatpush.msra.mxu0 0.0
      %1745 = vmatpush.msra.mxu0 0.0
      %1746 = vmatpush.msra.mxu0 0.0
      %1747 = vmatpush.msra.mxu0 0.0
      %1748 = vmatpush.msra.mxu0 0.0
      %1749 = vmatpush.msra.mxu0 0.0
      %1750 = vmatpush.msra.mxu0 0.0
      %1751 = vmatpush.msra.mxu0 0.0
      %1752 = vmatpush.msra.mxu0 0.0
      %1753 = vmatpush.msra.mxu0 0.0
      %1754 = vmatpush.msra.mxu0 %v1637
      %1755 = vmatpush.msra.mxu0 %v1602
      %1756 = vmatpush.msra.mxu0 %v1593
      %1757 = vmatpush.msra.mxu0 %v1584
      %1758 = vmatpush.msra.mxu0 %v1575
      %1759 = vmatmul.f32.gmra.mxu0 %v1618
      %v1760 = vpop.f32.mrf.mxu0
      %v1761 = vadd.f32 0.0, %v1760
      %1762 = vmatmul.f32.gmra.mxu0 %v1621
      %v1763 = vpop.f32.mrf.mxu0
      %v1764 = vadd.f32 0.0, %v1763
      %1765 = vdwg.mxu0
      %1766 = vmatpush.msra.mxu0 0.0
      %1767 = vmatpush.msra.mxu0 0.0
      %1768 = vmatpush.msra.mxu0 0.0
      %1769 = vmatpush.msra.mxu0 0.0
      %1770 = vmatpush.msra.mxu0 0.0
      %1771 = vmatpush.msra.mxu0 0.0
      %1772 = vmatpush.msra.mxu0 0.0
      %1773 = vmatpush.msra.mxu0 0.0
      %1774 = vmatpush.msra.mxu0 0.0
      %1775 = vmatpush.msra.mxu0 0.0
      %1776 = vmatpush.msra.mxu0 0.0
      %1777 = vmatpush.msra.mxu0 %v1640
      %1778 = vmatpush.msra.mxu0 %v1603
      %1779 = vmatpush.msra.mxu0 %v1594
      %1780 = vmatpush.msra.mxu0 %v1585
      %1781 = vmatpush.msra.mxu0 %v1576
      %1782 = vmatmul.f32.gmra.mxu0 %v1618
      %v1783 = vpop.f32.mrf.mxu0
      %v1784 = vadd.f32 0.0, %v1783
      %1785 = vmatmul.f32.gmra.mxu0 %v1621
      %v1786 = vpop.f32.mrf.mxu0
      %v1787 = vadd.f32 0.0, %v1786
      %1788 = vdwg.mxu0
      %1789 = vmatpush.msra.mxu0 0.0
      %1790 = vmatpush.msra.mxu0 0.0
      %1791 = vmatpush.msra.mxu0 0.0
      %1792 = vmatpush.msra.mxu0 0.0
      %1793 = vmatpush.msra.mxu0 0.0
      %1794 = vmatpush.msra.mxu0 0.0
      %1795 = vmatpush.msra.mxu0 0.0
      %1796 = vmatpush.msra.mxu0 0.0
      %1797 = vmatpush.msra.mxu0 0.0
      %1798 = vmatpush.msra.mxu0 0.0
      %1799 = vmatpush.msra.mxu0 0.0
      %1800 = vmatpush.msra.mxu0 %v1643
      %1801 = vmatpush.msra.mxu0 %v1604
      %1802 = vmatpush.msra.mxu0 %v1595
      %1803 = vmatpush.msra.mxu0 %v1586
      %1804 = vmatpush.msra.mxu0 %v1577
      %1805 = vmatmul.f32.gmra.mxu0 %v1618
      %v1806 = vpop.f32.mrf.mxu0
      %v1807 = vadd.f32 0.0, %v1806
      %1808 = vmatmul.f32.gmra.mxu0 %v1621
      %v1809 = vpop.f32.mrf.mxu0
      %v1810 = vadd.f32 0.0, %v1809
      %1811 = vdwg.mxu0
      %1812 = vmatpush.msra.mxu0 0.0
      %1813 = vmatpush.msra.mxu0 0.0
      %1814 = vmatpush.msra.mxu0 0.0
      %1815 = vmatpush.msra.mxu0 0.0
      %1816 = vmatpush.msra.mxu0 0.0
      %1817 = vmatpush.msra.mxu0 0.0
      %1818 = vmatpush.msra.mxu0 0.0
      %1819 = vmatpush.msra.mxu0 0.0
      %1820 = vmatpush.msra.mxu0 0.0
      %1821 = vmatpush.msra.mxu0 0.0
      %1822 = vmatpush.msra.mxu0 0.0
      %1823 = vmatpush.msra.mxu0 %v1646
      %1824 = vmatpush.msra.mxu0 %v1605
      %1825 = vmatpush.msra.mxu0 %v1596
      %1826 = vmatpush.msra.mxu0 %v1587
      %1827 = vmatpush.msra.mxu0 %v1578
      %1828 = vmatmul.f32.gmra.mxu0 %v1618
      %v1829 = vpop.f32.mrf.mxu0
      %v1830 = vadd.f32 0.0, %v1829
      %1831 = vmatmul.f32.gmra.mxu0 %v1621
      %v1832 = vpop.f32.mrf.mxu0
      %v1833 = vadd.f32 0.0, %v1832
      %1834 = vdwg.mxu0
      %1835 = vmatpush.msra.mxu0 0.0
      %1836 = vmatpush.msra.mxu0 0.0
      %1837 = vmatpush.msra.mxu0 0.0
      %1838 = vmatpush.msra.mxu0 0.0
      %1839 = vmatpush.msra.mxu0 0.0
      %1840 = vmatpush.msra.mxu0 0.0
      %1841 = vmatpush.msra.mxu0 0.0
      %1842 = vmatpush.msra.mxu0 0.0
      %1843 = vmatpush.msra.mxu0 0.0
      %1844 = vmatpush.msra.mxu0 0.0
      %1845 = vmatpush.msra.mxu0 0.0
      %1846 = vmatpush.msra.mxu0 %v1649
      %1847 = vmatpush.msra.mxu0 %v1606
      %1848 = vmatpush.msra.mxu0 %v1597
      %1849 = vmatpush.msra.mxu0 %v1588
      %1850 = vmatpush.msra.mxu0 %v1579
      %1851 = vmatmul.f32.gmra.mxu0 %v1618
      %v1852 = vpop.f32.mrf.mxu0
      %v1853 = vadd.f32 0.0, %v1852
      %1854 = vmatmul.f32.gmra.mxu0 %v1621
      %v1855 = vpop.f32.mrf.mxu0
      %v1856 = vadd.f32 0.0, %v1855
      %1857 = vdwg.mxu0
      %v1858 = vmul.f32 %v1669, %v879
      %v1859 = vmul.f32 %v1692, %v941
      %v1860 = vmul.f32 %v1715, %v1003
      %v1861 = vmul.f32 %v1738, %v1065
      %v1862 = vmul.f32 %v1761, %v1127
      %v1863 = vmul.f32 %v1784, %v1189
      %v1864 = vmul.f32 %v1807, %v1251
      %v1865 = vmul.f32 %v1830, %v1313
      %v1866 = vmul.f32 %v1853, %v1379
      %v1867 = vmul.f32 %v1672, %v880
      %v1868 = vmul.f32 %v1695, %v942
      %v1869 = vmul.f32 %v1718, %v1004
      %v1870 = vmul.f32 %v1741, %v1066
      %v1871 = vmul.f32 %v1764, %v1128
      %v1872 = vmul.f32 %v1787, %v1190
      %v1873 = vmul.f32 %v1810, %v1252
      %v1874 = vmul.f32 %v1833, %v1314
      %v1875 = vmul.f32 %v1856, %v1380
      %v1876 = vadd.f32 %v1858, %v1859
      %v1877 = vadd.f32 %v1867, %v1868
      %v1878 = vadd.f32 %v1876, %v1860
      %v1879 = vadd.f32 %v1877, %v1869
      %v1880 = vadd.f32 %v1878, %v1861
      %v1881 = vadd.f32 %v1879, %v1870
      %v1882 = vadd.f32 %v1880, %v1862
      %v1883 = vadd.f32 %v1881, %v1871
      %v1884 = vadd.f32 %v1882, %v1863
      %v1885 = vadd.f32 %v1883, %v1872
      %v1886 = vadd.f32 %v1884, %v1864
      %v1887 = vadd.f32 %v1885, %v1873
      %v1888 = vadd.f32 %v1886, %v1865
      %v1889 = vadd.f32 %v1887, %v1874
      %v1890 = vadd.f32 %v1888, %v1866
      %v1891 = vadd.f32 %v1889, %v1875
      %v1894 = vrot.slane %v1890, 4
      %v1895 = vrot.slane %v1891, 4
      %1898 = vst [vmem:[%s202] sm:$0xf] %v1890
      %1899 = vst [vmem:[%s202 + $0x10] sm:$0xf] %v1894
      %1900 = vst [vmem:[%s202 + $0x20] sm:$0xf] %v1891
      %1901 = vst [vmem:[%s202 + $0x30] sm:$0xf] %v1895
      %1902 = vst [vmem:[#allocation1] ss:$2 sm:$0xff] %v688
      %s1903 = scalar_lea.vmem [#allocation1], 1
      %1904 = vst [vmem:[%s1903] ss:$2 sm:$0xff] %v689
      %s1905 = scalar_lea.vmem [#allocation1], 16
      %1906 = vst [vmem:[%s1905] ss:$2 sm:$0xff] %v690
      %s1907 = scalar_lea.vmem [#allocation1], 17
      %1908 = vst [vmem:[%s1907] ss:$2 sm:$0xff] %v691
      %v1909 = vld.sshfl [vmem:[#allocation1] sm:$0xff pattern:$0x75316420]
      %v1910 = vld.sshfl [vmem:[#allocation1 + $0x10] sm:$0xff pattern:$0x75316420]
      %1911 = vrot.lane.b32.xlu0 %v1909, 124
      %v1912 = vpop.permute.xlu0 %1911
      %1913 = vrot.lane.b32.xlu0 %v1910, 124
      %v1914 = vpop.permute.xlu0 %1913
      %1917 = vst [vmem:[#allocation1] ss:$2 sm:$0xff] %v708
      %s1918 = scalar_lea.vmem [#allocation1], 1
      %1919 = vst [vmem:[%s1918] ss:$2 sm:$0xff] %v709
      %s1920 = scalar_lea.vmem [#allocation1], 16
      %1921 = vst [vmem:[%s1920] ss:$2 sm:$0xff] %v710
      %s1922 = scalar_lea.vmem [#allocation1], 17
      %1923 = vst [vmem:[%s1922] ss:$2 sm:$0xff] %v711
      %v1924 = vld.sshfl [vmem:[#allocation1] sm:$0xff pattern:$0x75316420]
      %v1925 = vld.sshfl [vmem:[#allocation1 + $0x10] sm:$0xff pattern:$0x75316420]
      %1926 = vrot.lane.b32.xlu0 %v1924, 112
      %v1927 = vpop.permute.xlu0 %1926
      %1928 = vrot.lane.b32.xlu0 %v1925, 112
      %v1929 = vpop.permute.xlu0 %1928
      %1932 = vst [vmem:[#allocation1] ss:$2 sm:$0xff] %v724
      %s1933 = scalar_lea.vmem [#allocation1], 1
      %1934 = vst [vmem:[%s1933] ss:$2 sm:$0xff] %v725
      %s1935 = scalar_lea.vmem [#allocation1], 16
      %1936 = vst [vmem:[%s1935] ss:$2 sm:$0xff] %v726
      %s1937 = scalar_lea.vmem [#allocation1], 17
      %1938 = vst [vmem:[%s1937] ss:$2 sm:$0xff] %v727
      %v1939 = vld.sshfl [vmem:[#allocation1] sm:$0xff pattern:$0x75316420]
      %v1940 = vld.sshfl [vmem:[#allocation1 + $0x10] sm:$0xff pattern:$0x75316420]
      %1941 = vrot.lane.b32.xlu0 %v1939, 100
      %v1942 = vpop.permute.xlu0 %1941
      %1943 = vrot.lane.b32.xlu0 %v1940, 100
      %v1944 = vpop.permute.xlu0 %1943
      %1947 = vst [vmem:[#allocation1] ss:$2 sm:$0xff] %v740
      %s1948 = scalar_lea.vmem [#allocation1], 1
      %1949 = vst [vmem:[%s1948] ss:$2 sm:$0xff] %v741
      %s1950 = scalar_lea.vmem [#allocation1], 16
      %1951 = vst [vmem:[%s1950] ss:$2 sm:$0xff] %v742
      %s1952 = scalar_lea.vmem [#allocation1], 17
      %1953 = vst [vmem:[%s1952] ss:$2 sm:$0xff] %v743
      %v1954 = vld.sshfl [vmem:[#allocation1] sm:$0xff pattern:$0x75316420]
      %v1955 = vld.sshfl [vmem:[#allocation1 + $0x10] sm:$0xff pattern:$0x75316420]
      %1956 = vrot.lane.b32.xlu0 %v1954, 88
      %v1957 = vpop.permute.xlu0 %1956
      %1958 = vrot.lane.b32.xlu0 %v1955, 88
      %v1959 = vpop.permute.xlu0 %1958
      %1962 = vst [vmem:[#allocation1] ss:$2 sm:$0xff] %v756
      %s1963 = scalar_lea.vmem [#allocation1], 1
      %1964 = vst [vmem:[%s1963] ss:$2 sm:$0xff] %v757
      %s1965 = scalar_lea.vmem [#allocation1], 16
      %1966 = vst [vmem:[%s1965] ss:$2 sm:$0xff] %v758
      %s1967 = scalar_lea.vmem [#allocation1], 17
      %1968 = vst [vmem:[%s1967] ss:$2 sm:$0xff] %v759
      %v1969 = vld.sshfl [vmem:[#allocation1] sm:$0xff pattern:$0x75316420]
      %v1970 = vld.sshfl [vmem:[#allocation1 + $0x10] sm:$0xff pattern:$0x75316420]
      %1971 = vrot.lane.b32.xlu0 %v1969, 76
      %v1972 = vpop.permute.xlu0 %1971
      %1973 = vrot.lane.b32.xlu0 %v1970, 76
      %v1974 = vpop.permute.xlu0 %1973
      %1977 = vst [vmem:[#allocation1] ss:$2 sm:$0xff] %v772
      %s1978 = scalar_lea.vmem [#allocation1], 1
      %1979 = vst [vmem:[%s1978] ss:$2 sm:$0xff] %v773
      %s1980 = scalar_lea.vmem [#allocation1], 16
      %1981 = vst [vmem:[%s1980] ss:$2 sm:$0xff] %v774
      %s1982 = scalar_lea.vmem [#allocation1], 17
      %1983 = vst [vmem:[%s1982] ss:$2 sm:$0xff] %v775
      %v1984 = vld.sshfl [vmem:[#allocation1] sm:$0xff pattern:$0x75316420]
      %v1985 = vld.sshfl [vmem:[#allocation1 + $0x10] sm:$0xff pattern:$0x75316420]
      %1986 = vrot.lane.b32.xlu0 %v1984, 64
      %v1987 = vpop.permute.xlu0 %1986
      %1988 = vrot.lane.b32.xlu0 %v1985, 64
      %v1989 = vpop.permute.xlu0 %1988
      %1992 = vst [vmem:[#allocation1] ss:$2 sm:$0xff] %v788
      %s1993 = scalar_lea.vmem [#allocation1], 1
      %1994 = vst [vmem:[%s1993] ss:$2 sm:$0xff] %v789
      %s1995 = scalar_lea.vmem [#allocation1], 16
      %1996 = vst [vmem:[%s1995] ss:$2 sm:$0xff] %v790
      %s1997 = scalar_lea.vmem [#allocation1], 17
      %1998 = vst [vmem:[%s1997] ss:$2 sm:$0xff] %v791
      %v1999 = vld.sshfl [vmem:[#allocation1] sm:$0xff pattern:$0x75316420]
      %v2000 = vld.sshfl [vmem:[#allocation1 + $0x10] sm:$0xff pattern:$0x75316420]
      %2001 = vrot.lane.b32.xlu0 %v1999, 52
      %v2002 = vpop.permute.xlu0 %2001
      %2003 = vrot.lane.b32.xlu0 %v2000, 52
      %v2004 = vpop.permute.xlu0 %2003
      %2007 = vst [vmem:[#allocation1] ss:$2 sm:$0xff] %v804
      %s2008 = scalar_lea.vmem [#allocation1], 1
      %2009 = vst [vmem:[%s2008] ss:$2 sm:$0xff] %v805
      %s2010 = scalar_lea.vmem [#allocation1], 16
      %2011 = vst [vmem:[%s2010] ss:$2 sm:$0xff] %v806
      %s2012 = scalar_lea.vmem [#allocation1], 17
      %2013 = vst [vmem:[%s2012] ss:$2 sm:$0xff] %v807
      %v2014 = vld.sshfl [vmem:[#allocation1] sm:$0xff pattern:$0x75316420]
      %v2015 = vld.sshfl [vmem:[#allocation1 + $0x10] sm:$0xff pattern:$0x75316420]
      %2016 = vrot.lane.b32.xlu0 %v2014, 40
      %v2017 = vpop.permute.xlu0 %2016
      %2018 = vrot.lane.b32.xlu0 %v2015, 40
      %v2019 = vpop.permute.xlu0 %2018
      %2022 = vst [vmem:[#allocation1] ss:$2 sm:$0xff] %v808
      %s2023 = scalar_lea.vmem [#allocation1], 1
      %2024 = vst [vmem:[%s2023] ss:$2 sm:$0xff] %v809
      %s2025 = scalar_lea.vmem [#allocation1], 16
      %2026 = vst [vmem:[%s2025] ss:$2 sm:$0xff] %v810
      %s2027 = scalar_lea.vmem [#allocation1], 17
      %2028 = vst [vmem:[%s2027] ss:$2 sm:$0xff] %v811
      %v2029 = vld.sshfl [vmem:[#allocation1] sm:$0xff pattern:$0x75316420]
      %v2030 = vld.sshfl [vmem:[#allocation1 + $0x10] sm:$0xff pattern:$0x75316420]
      %2031 = vrot.lane.b32.xlu0 %v2029, 28
      %v2032 = vpop.permute.xlu0 %2031
      %2033 = vrot.lane.b32.xlu0 %v2030, 28
      %v2034 = vpop.permute.xlu0 %2033
      %v2037 = vsel %vm1548, %v1912, %v1927
      %v2038 = vsel %vm1548, %v1914, %v1929
      %v2039 = vsel %vm1551, %v2037, %v1942
      %v2040 = vsel %vm1551, %v2038, %v1944
      %v2041 = vsel %vm1554, %v2039, %v1957
      %v2042 = vsel %vm1554, %v2040, %v1959
      %v2043 = vsel %vm1557, %v2041, %v1972
      %v2044 = vsel %vm1557, %v2042, %v1974
      %v2045 = vsel %vm1560, %v2043, %v1987
      %v2046 = vsel %vm1560, %v2044, %v1989
      %v2047 = vsel %vm1563, %v2045, %v2002
      %v2048 = vsel %vm1563, %v2046, %v2004
      %v2049 = vsel %vm1566, %v2047, %v2017
      %v2050 = vsel %vm1566, %v2048, %v2019
      %v2051 = vsel %vm872, %v2049, %v2032
      %v2052 = vsel %vm872, %v2050, %v2034
      %v2053 = vld [vmem:[%s2] sm:$0xff]
      %v2054 = vld [vmem:[%s2 + $0x8] sm:$0xff]
      %v2055 = vld [vmem:[%s2 + $0x10] sm:$0xff]
      %v2056 = vld [vmem:[%s2 + $0x18] sm:$0xff]
      %v2057 = vld [vmem:[%s2 + $0x20] sm:$0xff]
      %v2058 = vld [vmem:[%s2 + $0x28] sm:$0xff]
      %v2059 = vld [vmem:[%s2 + $0x30] sm:$0xff]
      %v2060 = vld [vmem:[%s2 + $0x38] sm:$0xff]
      %v2061 = vld [vmem:[%s2 + $0x40] sm:$0xff]
      %v2062 = vld [vmem:[%s2 + $0x48] sm:$0xff]
      %v2063 = vld [vmem:[%s2 + $0x50] sm:$0xff]
      %v2064 = vld [vmem:[%s2 + $0x58] sm:$0xff]
      %v2065 = vld [vmem:[%s2 + $0x60] sm:$0xff]
      %v2066 = vld [vmem:[%s2 + $0x68] sm:$0xff]
      %v2067 = vld [vmem:[%s2 + $0x70] sm:$0xff]
      %v2068 = vld [vmem:[%s2 + $0x78] sm:$0xff]
      %v2069 = vld [vmem:[%s2 + $0x80] sm:$0xff]
      %v2070 = vld [vmem:[%s2 + $0x88] sm:$0xff]
      %v2071 = vld [vmem:[%s2 + $0x90] sm:$0xff]
      %v2072 = vld [vmem:[%s2 + $0x98] sm:$0xff]
      %v2073 = vld [vmem:[%s2 + $0xa0] sm:$0xff]
      %v2074 = vld [vmem:[%s2 + $0xa8] sm:$0xff]
      %v2075 = vld [vmem:[%s2 + $0xb0] sm:$0xff]
      %v2076 = vld [vmem:[%s2 + $0xb8] sm:$0xff]
      %v2077 = vld [vmem:[%s2 + $0xc0] sm:$0xff]
      %v2078 = vld [vmem:[%s2 + $0xc8] sm:$0xff]
      %v2079 = vld [vmem:[%s2 + $0xd0] sm:$0xff]
      %v2080 = vld [vmem:[%s2 + $0xd8] sm:$0xff]
      %v2081 = vld [vmem:[%s2 + $0xe0] sm:$0xff]
      %v2082 = vld [vmem:[%s2 + $0xe8] sm:$0xff]
      %v2083 = vld [vmem:[%s2 + $0xf0] sm:$0xff]
      %v2084 = vld [vmem:[%s2 + $0xf8] sm:$0xff]
      %v2085 = vld [vmem:[%s2 + $0x100] sm:$0xff]
      %v2086 = vld [vmem:[%s2 + $0x108] sm:$0xff]
      %v2087 = vld [vmem:[%s2 + $0x110] sm:$0xff]
      %v2088 = vld [vmem:[%s2 + $0x118] sm:$0xff]
      %v2089 = vld [vmem:[%s2 + $0x120] sm:$0xf]
      %v2090 = vld [vmem:[%s2 + $0x128] sm:$0xf]
      %v2091 = vld [vmem:[%s2 + $0x130] sm:$0xf]
      %v2092 = vld [vmem:[%s2 + $0x138] sm:$0xf]
      %v2093 = vld [vmem:[%s2 + $0x140] sm:$0xf]
      %v2094 = vld [vmem:[%s2 + $0x148] sm:$0xf]
      %v2095 = vld [vmem:[%s2 + $0x150] sm:$0xf]
      %v2096 = vld [vmem:[%s2 + $0x158] sm:$0xf]
      %v2097 = vld [vmem:[%s2 + $0x160] sm:$0xf]
      %v2099 = vsel %vm1616, %v2051, 0
      %v2102 = vsel %vm1616, %v2052, 0
      %v2105 = vsel %vm1623, %v2089, 0
      %v2108 = vsel %vm1623, %v2090, 0
      %v2111 = vsel %vm1623, %v2091, 0
      %v2114 = vsel %vm1623, %v2092, 0
      %v2117 = vsel %vm1623, %v2093, 0
      %v2120 = vsel %vm1623, %v2094, 0
      %v2123 = vsel %vm1623, %v2095, 0
      %v2126 = vsel %vm1623, %v2096, 0
      %v2129 = vsel %vm1623, %v2097, 0
      %2131 = vmatpush.msra.mxu0 0.0
      %2132 = vmatpush.msra.mxu0 0.0
      %2133 = vmatpush.msra.mxu0 0.0
      %2134 = vmatpush.msra.mxu0 0.0
      %2135 = vmatpush.msra.mxu0 0.0
      %2136 = vmatpush.msra.mxu0 0.0
      %2137 = vmatpush.msra.mxu0 0.0
      %2138 = vmatpush.msra.mxu0 0.0
      %2139 = vmatpush.msra.mxu0 0.0
      %2140 = vmatpush.msra.mxu0 0.0
      %2141 = vmatpush.msra.mxu0 0.0
      %2142 = vmatpush.msra.mxu0 %v2105
      %2143 = vmatpush.msra.mxu0 %v2080
      %2144 = vmatpush.msra.mxu0 %v2071
      %2145 = vmatpush.msra.mxu0 %v2062
      %2146 = vmatpush.msra.mxu0 %v2053
      %2147 = vmatmul.f32.gmra.mxu0 %v2099
      %v2148 = vpop.f32.mrf.mxu0
      %v2149 = vadd.f32 0.0, %v2148
      %2150 = vmatmul.f32.gmra.mxu0 %v2102
      %v2151 = vpop.f32.mrf.mxu0
      %v2152 = vadd.f32 0.0, %v2151
      %2153 = vdwg.mxu0
      %2154 = vmatpush.msra.mxu0 0.0
      %2155 = vmatpush.msra.mxu0 0.0
      %2156 = vmatpush.msra.mxu0 0.0
      %2157 = vmatpush.msra.mxu0 0.0
      %2158 = vmatpush.msra.mxu0 0.0
      %2159 = vmatpush.msra.mxu0 0.0
      %2160 = vmatpush.msra.mxu0 0.0
      %2161 = vmatpush.msra.mxu0 0.0
      %2162 = vmatpush.msra.mxu0 0.0
      %2163 = vmatpush.msra.mxu0 0.0
      %2164 = vmatpush.msra.mxu0 0.0
      %2165 = vmatpush.msra.mxu0 %v2108
      %2166 = vmatpush.msra.mxu0 %v2081
      %2167 = vmatpush.msra.mxu0 %v2072
      %2168 = vmatpush.msra.mxu0 %v2063
      %2169 = vmatpush.msra.mxu0 %v2054
      %2170 = vmatmul.f32.gmra.mxu0 %v2099
      %v2171 = vpop.f32.mrf.mxu0
      %v2172 = vadd.f32 0.0, %v2171
      %2173 = vmatmul.f32.gmra.mxu0 %v2102
      %v2174 = vpop.f32.mrf.mxu0
      %v2175 = vadd.f32 0.0, %v2174
      %2176 = vdwg.mxu0
      %2177 = vmatpush.msra.mxu0 0.0
      %2178 = vmatpush.msra.mxu0 0.0
      %2179 = vmatpush.msra.mxu0 0.0
      %2180 = vmatpush.msra.mxu0 0.0
      %2181 = vmatpush.msra.mxu0 0.0
      %2182 = vmatpush.msra.mxu0 0.0
      %2183 = vmatpush.msra.mxu0 0.0
      %2184 = vmatpush.msra.mxu0 0.0
      %2185 = vmatpush.msra.mxu0 0.0
      %2186 = vmatpush.msra.mxu0 0.0
      %2187 = vmatpush.msra.mxu0 0.0
      %2188 = vmatpush.msra.mxu0 %v2111
      %2189 = vmatpush.msra.mxu0 %v2082
      %2190 = vmatpush.msra.mxu0 %v2073
      %2191 = vmatpush.msra.mxu0 %v2064
      %2192 = vmatpush.msra.mxu0 %v2055
      %2193 = vmatmul.f32.gmra.mxu0 %v2099
      %v2194 = vpop.f32.mrf.mxu0
      %v2195 = vadd.f32 0.0, %v2194
      %2196 = vmatmul.f32.gmra.mxu0 %v2102
      %v2197 = vpop.f32.mrf.mxu0
      %v2198 = vadd.f32 0.0, %v2197
      %2199 = vdwg.mxu0
      %2200 = vmatpush.msra.mxu0 0.0
      %2201 = vmatpush.msra.mxu0 0.0
      %2202 = vmatpush.msra.mxu0 0.0
      %2203 = vmatpush.msra.mxu0 0.0
      %2204 = vmatpush.msra.mxu0 0.0
      %2205 = vmatpush.msra.mxu0 0.0
      %2206 = vmatpush.msra.mxu0 0.0
      %2207 = vmatpush.msra.mxu0 0.0
      %2208 = vmatpush.msra.mxu0 0.0
      %2209 = vmatpush.msra.mxu0 0.0
      %2210 = vmatpush.msra.mxu0 0.0
      %2211 = vmatpush.msra.mxu0 %v2114
      %2212 = vmatpush.msra.mxu0 %v2083
      %2213 = vmatpush.msra.mxu0 %v2074
      %2214 = vmatpush.msra.mxu0 %v2065
      %2215 = vmatpush.msra.mxu0 %v2056
      %2216 = vmatmul.f32.gmra.mxu0 %v2099
      %v2217 = vpop.f32.mrf.mxu0
      %v2218 = vadd.f32 0.0, %v2217
      %2219 = vmatmul.f32.gmra.mxu0 %v2102
      %v2220 = vpop.f32.mrf.mxu0
      %v2221 = vadd.f32 0.0, %v2220
      %2222 = vdwg.mxu0
      %2223 = vmatpush.msra.mxu0 0.0
      %2224 = vmatpush.msra.mxu0 0.0
      %2225 = vmatpush.msra.mxu0 0.0
      %2226 = vmatpush.msra.mxu0 0.0
      %2227 = vmatpush.msra.mxu0 0.0
      %2228 = vmatpush.msra.mxu0 0.0
      %2229 = vmatpush.msra.mxu0 0.0
      %2230 = vmatpush.msra.mxu0 0.0
      %2231 = vmatpush.msra.mxu0 0.0
      %2232 = vmatpush.msra.mxu0 0.0
      %2233 = vmatpush.msra.mxu0 0.0
      %2234 = vmatpush.msra.mxu0 %v2117
      %2235 = vmatpush.msra.mxu0 %v2084
      %2236 = vmatpush.msra.mxu0 %v2075
      %2237 = vmatpush.msra.mxu0 %v2066
      %2238 = vmatpush.msra.mxu0 %v2057
      %2239 = vmatmul.f32.gmra.mxu0 %v2099
      %v2240 = vpop.f32.mrf.mxu0
      %v2241 = vadd.f32 0.0, %v2240
      %2242 = vmatmul.f32.gmra.mxu0 %v2102
      %v2243 = vpop.f32.mrf.mxu0
      %v2244 = vadd.f32 0.0, %v2243
      %2245 = vdwg.mxu0
      %2246 = vmatpush.msra.mxu0 0.0
      %2247 = vmatpush.msra.mxu0 0.0
      %2248 = vmatpush.msra.mxu0 0.0
      %2249 = vmatpush.msra.mxu0 0.0
      %2250 = vmatpush.msra.mxu0 0.0
      %2251 = vmatpush.msra.mxu0 0.0
      %2252 = vmatpush.msra.mxu0 0.0
      %2253 = vmatpush.msra.mxu0 0.0
      %2254 = vmatpush.msra.mxu0 0.0
      %2255 = vmatpush.msra.mxu0 0.0
      %2256 = vmatpush.msra.mxu0 0.0
      %2257 = vmatpush.msra.mxu0 %v2120
      %2258 = vmatpush.msra.mxu0 %v2085
      %2259 = vmatpush.msra.mxu0 %v2076
      %2260 = vmatpush.msra.mxu0 %v2067
      %2261 = vmatpush.msra.mxu0 %v2058
      %2262 = vmatmul.f32.gmra.mxu0 %v2099
      %v2263 = vpop.f32.mrf.mxu0
      %v2264 = vadd.f32 0.0, %v2263
      %2265 = vmatmul.f32.gmra.mxu0 %v2102
      %v2266 = vpop.f32.mrf.mxu0
      %v2267 = vadd.f32 0.0, %v2266
      %2268 = vdwg.mxu0
      %2269 = vmatpush.msra.mxu0 0.0
      %2270 = vmatpush.msra.mxu0 0.0
      %2271 = vmatpush.msra.mxu0 0.0
      %2272 = vmatpush.msra.mxu0 0.0
      %2273 = vmatpush.msra.mxu0 0.0
      %2274 = vmatpush.msra.mxu0 0.0
      %2275 = vmatpush.msra.mxu0 0.0
      %2276 = vmatpush.msra.mxu0 0.0
      %2277 = vmatpush.msra.mxu0 0.0
      %2278 = vmatpush.msra.mxu0 0.0
      %2279 = vmatpush.msra.mxu0 0.0
      %2280 = vmatpush.msra.mxu0 %v2123
      %2281 = vmatpush.msra.mxu0 %v2086
      %2282 = vmatpush.msra.mxu0 %v2077
      %2283 = vmatpush.msra.mxu0 %v2068
      %2284 = vmatpush.msra.mxu0 %v2059
      %2285 = vmatmul.f32.gmra.mxu0 %v2099
      %v2286 = vpop.f32.mrf.mxu0
      %v2287 = vadd.f32 0.0, %v2286
      %2288 = vmatmul.f32.gmra.mxu0 %v2102
      %v2289 = vpop.f32.mrf.mxu0
      %v2290 = vadd.f32 0.0, %v2289
      %2291 = vdwg.mxu0
      %2292 = vmatpush.msra.mxu0 0.0
      %2293 = vmatpush.msra.mxu0 0.0
      %2294 = vmatpush.msra.mxu0 0.0
      %2295 = vmatpush.msra.mxu0 0.0
      %2296 = vmatpush.msra.mxu0 0.0
      %2297 = vmatpush.msra.mxu0 0.0
      %2298 = vmatpush.msra.mxu0 0.0
      %2299 = vmatpush.msra.mxu0 0.0
      %2300 = vmatpush.msra.mxu0 0.0
      %2301 = vmatpush.msra.mxu0 0.0
      %2302 = vmatpush.msra.mxu0 0.0
      %2303 = vmatpush.msra.mxu0 %v2126
      %2304 = vmatpush.msra.mxu0 %v2087
      %2305 = vmatpush.msra.mxu0 %v2078
      %2306 = vmatpush.msra.mxu0 %v2069
      %2307 = vmatpush.msra.mxu0 %v2060
      %2308 = vmatmul.f32.gmra.mxu0 %v2099
      %v2309 = vpop.f32.mrf.mxu0
      %v2310 = vadd.f32 0.0, %v2309
      %2311 = vmatmul.f32.gmra.mxu0 %v2102
      %v2312 = vpop.f32.mrf.mxu0
      %v2313 = vadd.f32 0.0, %v2312
      %2314 = vdwg.mxu0
      %2315 = vmatpush.msra.mxu0 0.0
      %2316 = vmatpush.msra.mxu0 0.0
      %2317 = vmatpush.msra.mxu0 0.0
      %2318 = vmatpush.msra.mxu0 0.0
      %2319 = vmatpush.msra.mxu0 0.0
      %2320 = vmatpush.msra.mxu0 0.0
      %2321 = vmatpush.msra.mxu0 0.0
      %2322 = vmatpush.msra.mxu0 0.0
      %2323 = vmatpush.msra.mxu0 0.0
      %2324 = vmatpush.msra.mxu0 0.0
      %2325 = vmatpush.msra.mxu0 0.0
      %2326 = vmatpush.msra.mxu0 %v2129
      %2327 = vmatpush.msra.mxu0 %v2088
      %2328 = vmatpush.msra.mxu0 %v2079
      %2329 = vmatpush.msra.mxu0 %v2070
      %2330 = vmatpush.msra.mxu0 %v2061
      %2331 = vmatmul.f32.gmra.mxu0 %v2099
      %v2332 = vpop.f32.mrf.mxu0
      %v2333 = vadd.f32 0.0, %v2332
      %2334 = vmatmul.f32.gmra.mxu0 %v2102
      %v2335 = vpop.f32.mrf.mxu0
      %v2336 = vadd.f32 0.0, %v2335
      %2337 = vdwg.mxu0
      %v2338 = vmul.f32 %v2149, %v879
      %v2339 = vmul.f32 %v2172, %v941
      %v2340 = vmul.f32 %v2195, %v1003
      %v2341 = vmul.f32 %v2218, %v1065
      %v2342 = vmul.f32 %v2241, %v1127
      %v2343 = vmul.f32 %v2264, %v1189
      %v2344 = vmul.f32 %v2287, %v1251
      %v2345 = vmul.f32 %v2310, %v1313
      %v2346 = vmul.f32 %v2333, %v1379
      %v2347 = vmul.f32 %v2152, %v880
      %v2348 = vmul.f32 %v2175, %v942
      %v2349 = vmul.f32 %v2198, %v1004
      %v2350 = vmul.f32 %v2221, %v1066
      %v2351 = vmul.f32 %v2244, %v1128
      %v2352 = vmul.f32 %v2267, %v1190
      %v2353 = vmul.f32 %v2290, %v1252
      %v2354 = vmul.f32 %v2313, %v1314
      %v2355 = vmul.f32 %v2336, %v1380
      %v2356 = vadd.f32 %v2338, %v2339
      %v2357 = vadd.f32 %v2347, %v2348
      %v2358 = vadd.f32 %v2356, %v2340
      %v2359 = vadd.f32 %v2357, %v2349
      %v2360 = vadd.f32 %v2358, %v2341
      %v2361 = vadd.f32 %v2359, %v2350
      %v2362 = vadd.f32 %v2360, %v2342
      %v2363 = vadd.f32 %v2361, %v2351
      %v2364 = vadd.f32 %v2362, %v2343
      %v2365 = vadd.f32 %v2363, %v2352
      %v2366 = vadd.f32 %v2364, %v2344
      %v2367 = vadd.f32 %v2365, %v2353
      %v2368 = vadd.f32 %v2366, %v2345
      %v2369 = vadd.f32 %v2367, %v2354
      %v2370 = vadd.f32 %v2368, %v2346
      %v2371 = vadd.f32 %v2369, %v2355
      %v2374 = vrot.slane %v2370, 4
      %v2375 = vrot.slane %v2371, 4
      %s2378 = scalar_lea.vmem %s202, 4
      %2379 = vst [vmem:[%s2378] sm:$0xf] %v2370
      %2380 = vst [vmem:[%s2378 + $0x10] sm:$0xf] %v2374
      %2381 = vst [vmem:[%s2378 + $0x20] sm:$0xf] %v2371
      %2382 = vst [vmem:[%s2378 + $0x30] sm:$0xf] %v2375
      %2383 = vst [vmem:[#allocation1] ss:$2 sm:$0xff] %v688
      %s2384 = scalar_lea.vmem [#allocation1], 1
      %2385 = vst [vmem:[%s2384] ss:$2 sm:$0xff] %v689
      %s2386 = scalar_lea.vmem [#allocation1], 16
      %2387 = vst [vmem:[%s2386] ss:$2 sm:$0xff] %v690
      %s2388 = scalar_lea.vmem [#allocation1], 17
      %2389 = vst [vmem:[%s2388] ss:$2 sm:$0xff] %v691
      %v2390 = vld.sshfl [vmem:[#allocation1] sm:$0xff pattern:$0x75316420]
      %v2391 = vld.sshfl [vmem:[#allocation1 + $0x10] sm:$0xff pattern:$0x75316420]
      %2392 = vrot.lane.b32.xlu0 %v2390, 120
      %v2393 = vpop.permute.xlu0 %2392
      %2394 = vrot.lane.b32.xlu0 %v2391, 120
      %v2395 = vpop.permute.xlu0 %2394
      %2398 = vst [vmem:[#allocation1] ss:$2 sm:$0xff] %v708
      %s2399 = scalar_lea.vmem [#allocation1], 1
      %2400 = vst [vmem:[%s2399] ss:$2 sm:$0xff] %v709
      %s2401 = scalar_lea.vmem [#allocation1], 16
      %2402 = vst [vmem:[%s2401] ss:$2 sm:$0xff] %v710
      %s2403 = scalar_lea.vmem [#allocation1], 17
      %2404 = vst [vmem:[%s2403] ss:$2 sm:$0xff] %v711
      %v2405 = vld.sshfl [vmem:[#allocation1] sm:$0xff pattern:$0x75316420]
      %v2406 = vld.sshfl [vmem:[#allocation1 + $0x10] sm:$0xff pattern:$0x75316420]
      %2407 = vrot.lane.b32.xlu0 %v2405, 108
      %v2408 = vpop.permute.xlu0 %2407
      %2409 = vrot.lane.b32.xlu0 %v2406, 108
      %v2410 = vpop.permute.xlu0 %2409
      %2413 = vst [vmem:[#allocation1] ss:$2 sm:$0xff] %v724
      %s2414 = scalar_lea.vmem [#allocation1], 1
      %2415 = vst [vmem:[%s2414] ss:$2 sm:$0xff] %v725
      %s2416 = scalar_lea.vmem [#allocation1], 16
      %2417 = vst [vmem:[%s2416] ss:$2 sm:$0xff] %v726
      %s2418 = scalar_lea.vmem [#allocation1], 17
      %2419 = vst [vmem:[%s2418] ss:$2 sm:$0xff] %v727
      %v2420 = vld.sshfl [vmem:[#allocation1] sm:$0xff pattern:$0x75316420]
      %v2421 = vld.sshfl [vmem:[#allocation1 + $0x10] sm:$0xff pattern:$0x75316420]
      %2422 = vrot.lane.b32.xlu0 %v2420, 96
      %v2423 = vpop.permute.xlu0 %2422
      %2424 = vrot.lane.b32.xlu0 %v2421, 96
      %v2425 = vpop.permute.xlu0 %2424
      %2428 = vst [vmem:[#allocation1] ss:$2 sm:$0xff] %v740
      %s2429 = scalar_lea.vmem [#allocation1], 1
      %2430 = vst [vmem:[%s2429] ss:$2 sm:$0xff] %v741
      %s2431 = scalar_lea.vmem [#allocation1], 16
      %2432 = vst [vmem:[%s2431] ss:$2 sm:$0xff] %v742
      %s2433 = scalar_lea.vmem [#allocation1], 17
      %2434 = vst [vmem:[%s2433] ss:$2 sm:$0xff] %v743
      %v2435 = vld.sshfl [vmem:[#allocation1] sm:$0xff pattern:$0x75316420]
      %v2436 = vld.sshfl [vmem:[#allocation1 + $0x10] sm:$0xff pattern:$0x75316420]
      %2437 = vrot.lane.b32.xlu0 %v2435, 84
      %v2438 = vpop.permute.xlu0 %2437
      %2439 = vrot.lane.b32.xlu0 %v2436, 84
      %v2440 = vpop.permute.xlu0 %2439
      %2443 = vst [vmem:[#allocation1] ss:$2 sm:$0xff] %v756
      %s2444 = scalar_lea.vmem [#allocation1], 1
      %2445 = vst [vmem:[%s2444] ss:$2 sm:$0xff] %v757
      %s2446 = scalar_lea.vmem [#allocation1], 16
      %2447 = vst [vmem:[%s2446] ss:$2 sm:$0xff] %v758
      %s2448 = scalar_lea.vmem [#allocation1], 17
      %2449 = vst [vmem:[%s2448] ss:$2 sm:$0xff] %v759
      %v2450 = vld.sshfl [vmem:[#allocation1] sm:$0xff pattern:$0x75316420]
      %v2451 = vld.sshfl [vmem:[#allocation1 + $0x10] sm:$0xff pattern:$0x75316420]
      %2452 = vrot.lane.b32.xlu0 %v2450, 72
      %v2453 = vpop.permute.xlu0 %2452
      %2454 = vrot.lane.b32.xlu0 %v2451, 72
      %v2455 = vpop.permute.xlu0 %2454
      %2458 = vst [vmem:[#allocation1] ss:$2 sm:$0xff] %v772
      %s2459 = scalar_lea.vmem [#allocation1], 1
      %2460 = vst [vmem:[%s2459] ss:$2 sm:$0xff] %v773
      %s2461 = scalar_lea.vmem [#allocation1], 16
      %2462 = vst [vmem:[%s2461] ss:$2 sm:$0xff] %v774
      %s2463 = scalar_lea.vmem [#allocation1], 17
      %2464 = vst [vmem:[%s2463] ss:$2 sm:$0xff] %v775
      %v2465 = vld.sshfl [vmem:[#allocation1] sm:$0xff pattern:$0x75316420]
      %v2466 = vld.sshfl [vmem:[#allocation1 + $0x10] sm:$0xff pattern:$0x75316420]
      %2467 = vrot.lane.b32.xlu0 %v2465, 60
      %v2468 = vpop.permute.xlu0 %2467
      %2469 = vrot.lane.b32.xlu0 %v2466, 60
      %v2470 = vpop.permute.xlu0 %2469
      %2473 = vst [vmem:[#allocation1] ss:$2 sm:$0xff] %v788
      %s2474 = scalar_lea.vmem [#allocation1], 1
      %2475 = vst [vmem:[%s2474] ss:$2 sm:$0xff] %v789
      %s2476 = scalar_lea.vmem [#allocation1], 16
      %2477 = vst [vmem:[%s2476] ss:$2 sm:$0xff] %v790
      %s2478 = scalar_lea.vmem [#allocation1], 17
      %2479 = vst [vmem:[%s2478] ss:$2 sm:$0xff] %v791
      %v2480 = vld.sshfl [vmem:[#allocation1] sm:$0xff pattern:$0x75316420]
      %v2481 = vld.sshfl [vmem:[#allocation1 + $0x10] sm:$0xff pattern:$0x75316420]
      %2482 = vrot.lane.b32.xlu0 %v2480, 48
      %v2483 = vpop.permute.xlu0 %2482
      %2484 = vrot.lane.b32.xlu0 %v2481, 48
      %v2485 = vpop.permute.xlu0 %2484
      %2488 = vst [vmem:[#allocation1] ss:$2 sm:$0xff] %v804
      %s2489 = scalar_lea.vmem [#allocation1], 1
      %2490 = vst [vmem:[%s2489] ss:$2 sm:$0xff] %v805
      %s2491 = scalar_lea.vmem [#allocation1], 16
      %2492 = vst [vmem:[%s2491] ss:$2 sm:$0xff] %v806
      %s2493 = scalar_lea.vmem [#allocation1], 17
      %2494 = vst [vmem:[%s2493] ss:$2 sm:$0xff] %v807
      %v2495 = vld.sshfl [vmem:[#allocation1] sm:$0xff pattern:$0x75316420]
      %v2496 = vld.sshfl [vmem:[#allocation1 + $0x10] sm:$0xff pattern:$0x75316420]
      %2497 = vrot.lane.b32.xlu0 %v2495, 36
      %v2498 = vpop.permute.xlu0 %2497
      %2499 = vrot.lane.b32.xlu0 %v2496, 36
      %v2500 = vpop.permute.xlu0 %2499
      %2503 = vst [vmem:[#allocation1] ss:$2 sm:$0xff] %v808
      %s2504 = scalar_lea.vmem [#allocation1], 1
      %2505 = vst [vmem:[%s2504] ss:$2 sm:$0xff] %v809
      %s2506 = scalar_lea.vmem [#allocation1], 16
      %2507 = vst [vmem:[%s2506] ss:$2 sm:$0xff] %v810
      %s2508 = scalar_lea.vmem [#allocation1], 17
      %2509 = vst [vmem:[%s2508] ss:$2 sm:$0xff] %v811
      %v2510 = vld.sshfl [vmem:[#allocation1] sm:$0xff pattern:$0x75316420]
      %v2511 = vld.sshfl [vmem:[#allocation1 + $0x10] sm:$0xff pattern:$0x75316420]
      %2512 = vrot.lane.b32.xlu0 %v2510, 24
      %v2513 = vpop.permute.xlu0 %2512
      %2514 = vrot.lane.b32.xlu0 %v2511, 24
      %v2515 = vpop.permute.xlu0 %2514
      %v2518 = vsel %vm1548, %v2393, %v2408
      %v2519 = vsel %vm1548, %v2395, %v2410
      %v2520 = vsel %vm1551, %v2518, %v2423
      %v2521 = vsel %vm1551, %v2519, %v2425
      %v2522 = vsel %vm1554, %v2520, %v2438
      %v2523 = vsel %vm1554, %v2521, %v2440
      %v2524 = vsel %vm1557, %v2522, %v2453
      %v2525 = vsel %vm1557, %v2523, %v2455
      %v2526 = vsel %vm1560, %v2524, %v2468
      %v2527 = vsel %vm1560, %v2525, %v2470
      %v2528 = vsel %vm1563, %v2526, %v2483
      %v2529 = vsel %vm1563, %v2527, %v2485
      %v2530 = vsel %vm1566, %v2528, %v2498
      %v2531 = vsel %vm1566, %v2529, %v2500
      %v2532 = vsel %vm872, %v2530, %v2513
      %v2533 = vsel %vm872, %v2531, %v2515
      %v2534 = vld [vmem:[%s2] sm:$0xff]
      %v2535 = vld [vmem:[%s2 + $0x8] sm:$0xff]
      %v2536 = vld [vmem:[%s2 + $0x10] sm:$0xff]
      %v2537 = vld [vmem:[%s2 + $0x18] sm:$0xff]
      %v2538 = vld [vmem:[%s2 + $0x20] sm:$0xff]
      %v2539 = vld [vmem:[%s2 + $0x28] sm:$0xff]
      %v2540 = vld [vmem:[%s2 + $0x30] sm:$0xff]
      %v2541 = vld [vmem:[%s2 + $0x38] sm:$0xff]
      %v2542 = vld [vmem:[%s2 + $0x40] sm:$0xff]
      %v2543 = vld [vmem:[%s2 + $0x48] sm:$0xff]
      %v2544 = vld [vmem:[%s2 + $0x50] sm:$0xff]
      %v2545 = vld [vmem:[%s2 + $0x58] sm:$0xff]
      %v2546 = vld [vmem:[%s2 + $0x60] sm:$0xff]
      %v2547 = vld [vmem:[%s2 + $0x68] sm:$0xff]
      %v2548 = vld [vmem:[%s2 + $0x70] sm:$0xff]
      %v2549 = vld [vmem:[%s2 + $0x78] sm:$0xff]
      %v2550 = vld [vmem:[%s2 + $0x80] sm:$0xff]
      %v2551 = vld [vmem:[%s2 + $0x88] sm:$0xff]
      %v2552 = vld [vmem:[%s2 + $0x90] sm:$0xff]
      %v2553 = vld [vmem:[%s2 + $0x98] sm:$0xff]
      %v2554 = vld [vmem:[%s2 + $0xa0] sm:$0xff]
      %v2555 = vld [vmem:[%s2 + $0xa8] sm:$0xff]
      %v2556 = vld [vmem:[%s2 + $0xb0] sm:$0xff]
      %v2557 = vld [vmem:[%s2 + $0xb8] sm:$0xff]
      %v2558 = vld [vmem:[%s2 + $0xc0] sm:$0xff]
      %v2559 = vld [vmem:[%s2 + $0xc8] sm:$0xff]
      %v2560 = vld [vmem:[%s2 + $0xd0] sm:$0xff]
      %v2561 = vld [vmem:[%s2 + $0xd8] sm:$0xff]
      %v2562 = vld [vmem:[%s2 + $0xe0] sm:$0xff]
      %v2563 = vld [vmem:[%s2 + $0xe8] sm:$0xff]
      %v2564 = vld [vmem:[%s2 + $0xf0] sm:$0xff]
      %v2565 = vld [vmem:[%s2 + $0xf8] sm:$0xff]
      %v2566 = vld [vmem:[%s2 + $0x100] sm:$0xff]
      %v2567 = vld [vmem:[%s2 + $0x108] sm:$0xff]
      %v2568 = vld [vmem:[%s2 + $0x110] sm:$0xff]
      %v2569 = vld [vmem:[%s2 + $0x118] sm:$0xff]
      %v2570 = vld [vmem:[%s2 + $0x120] sm:$0xf]
      %v2571 = vld [vmem:[%s2 + $0x128] sm:$0xf]
      %v2572 = vld [vmem:[%s2 + $0x130] sm:$0xf]
      %v2573 = vld [vmem:[%s2 + $0x138] sm:$0xf]
      %v2574 = vld [vmem:[%s2 + $0x140] sm:$0xf]
      %v2575 = vld [vmem:[%s2 + $0x148] sm:$0xf]
      %v2576 = vld [vmem:[%s2 + $0x150] sm:$0xf]
      %v2577 = vld [vmem:[%s2 + $0x158] sm:$0xf]
      %v2578 = vld [vmem:[%s2 + $0x160] sm:$0xf]
      %v2580 = vsel %vm1616, %v2532, 0
      %v2583 = vsel %vm1616, %v2533, 0
      %v2586 = vsel %vm1623, %v2570, 0
      %v2589 = vsel %vm1623, %v2571, 0
      %v2592 = vsel %vm1623, %v2572, 0
      %v2595 = vsel %vm1623, %v2573, 0
      %v2598 = vsel %vm1623, %v2574, 0
      %v2601 = vsel %vm1623, %v2575, 0
      %v2604 = vsel %vm1623, %v2576, 0
      %v2607 = vsel %vm1623, %v2577, 0
      %v2610 = vsel %vm1623, %v2578, 0
      %2612 = vmatpush.msra.mxu0 0.0
      %2613 = vmatpush.msra.mxu0 0.0
      %2614 = vmatpush.msra.mxu0 0.0
      %2615 = vmatpush.msra.mxu0 0.0
      %2616 = vmatpush.msra.mxu0 0.0
      %2617 = vmatpush.msra.mxu0 0.0
      %2618 = vmatpush.msra.mxu0 0.0
      %2619 = vmatpush.msra.mxu0 0.0
      %2620 = vmatpush.msra.mxu0 0.0
      %2621 = vmatpush.msra.mxu0 0.0
      %2622 = vmatpush.msra.mxu0 0.0
      %2623 = vmatpush.msra.mxu0 %v2586
      %2624 = vmatpush.msra.mxu0 %v2561
      %2625 = vmatpush.msra.mxu0 %v2552
      %2626 = vmatpush.msra.mxu0 %v2543
      %2627 = vmatpush.msra.mxu0 %v2534
      %2628 = vmatmul.f32.gmra.mxu0 %v2580
      %v2629 = vpop.f32.mrf.mxu0
      %v2630 = vadd.f32 0.0, %v2629
      %2631 = vmatmul.f32.gmra.mxu0 %v2583
      %v2632 = vpop.f32.mrf.mxu0
      %v2633 = vadd.f32 0.0, %v2632
      %2634 = vdwg.mxu0
      %2635 = vmatpush.msra.mxu0 0.0
      %2636 = vmatpush.msra.mxu0 0.0
      %2637 = vmatpush.msra.mxu0 0.0
      %2638 = vmatpush.msra.mxu0 0.0
      %2639 = vmatpush.msra.mxu0 0.0
      %2640 = vmatpush.msra.mxu0 0.0
      %2641 = vmatpush.msra.mxu0 0.0
      %2642 = vmatpush.msra.mxu0 0.0
      %2643 = vmatpush.msra.mxu0 0.0
      %2644 = vmatpush.msra.mxu0 0.0
      %2645 = vmatpush.msra.mxu0 0.0
      %2646 = vmatpush.msra.mxu0 %v2589
      %2647 = vmatpush.msra.mxu0 %v2562
      %2648 = vmatpush.msra.mxu0 %v2553
      %2649 = vmatpush.msra.mxu0 %v2544
      %2650 = vmatpush.msra.mxu0 %v2535
      %2651 = vmatmul.f32.gmra.mxu0 %v2580
      %v2652 = vpop.f32.mrf.mxu0
      %v2653 = vadd.f32 0.0, %v2652
      %2654 = vmatmul.f32.gmra.mxu0 %v2583
      %v2655 = vpop.f32.mrf.mxu0
      %v2656 = vadd.f32 0.0, %v2655
      %2657 = vdwg.mxu0
      %2658 = vmatpush.msra.mxu0 0.0
      %2659 = vmatpush.msra.mxu0 0.0
      %2660 = vmatpush.msra.mxu0 0.0
      %2661 = vmatpush.msra.mxu0 0.0
      %2662 = vmatpush.msra.mxu0 0.0
      %2663 = vmatpush.msra.mxu0 0.0
      %2664 = vmatpush.msra.mxu0 0.0
      %2665 = vmatpush.msra.mxu0 0.0
      %2666 = vmatpush.msra.mxu0 0.0
      %2667 = vmatpush.msra.mxu0 0.0
      %2668 = vmatpush.msra.mxu0 0.0
      %2669 = vmatpush.msra.mxu0 %v2592
      %2670 = vmatpush.msra.mxu0 %v2563
      %2671 = vmatpush.msra.mxu0 %v2554
      %2672 = vmatpush.msra.mxu0 %v2545
      %2673 = vmatpush.msra.mxu0 %v2536
      %2674 = vmatmul.f32.gmra.mxu0 %v2580
      %v2675 = vpop.f32.mrf.mxu0
      %v2676 = vadd.f32 0.0, %v2675
      %2677 = vmatmul.f32.gmra.mxu0 %v2583
      %v2678 = vpop.f32.mrf.mxu0
      %v2679 = vadd.f32 0.0, %v2678
      %2680 = vdwg.mxu0
      %2681 = vmatpush.msra.mxu0 0.0
      %2682 = vmatpush.msra.mxu0 0.0
      %2683 = vmatpush.msra.mxu0 0.0
      %2684 = vmatpush.msra.mxu0 0.0
      %2685 = vmatpush.msra.mxu0 0.0
      %2686 = vmatpush.msra.mxu0 0.0
      %2687 = vmatpush.msra.mxu0 0.0
      %2688 = vmatpush.msra.mxu0 0.0
      %2689 = vmatpush.msra.mxu0 0.0
      %2690 = vmatpush.msra.mxu0 0.0
      %2691 = vmatpush.msra.mxu0 0.0
      %2692 = vmatpush.msra.mxu0 %v2595
      %2693 = vmatpush.msra.mxu0 %v2564
      %2694 = vmatpush.msra.mxu0 %v2555
      %2695 = vmatpush.msra.mxu0 %v2546
      %2696 = vmatpush.msra.mxu0 %v2537
      %2697 = vmatmul.f32.gmra.mxu0 %v2580
      %v2698 = vpop.f32.mrf.mxu0
      %v2699 = vadd.f32 0.0, %v2698
      %2700 = vmatmul.f32.gmra.mxu0 %v2583
      %v2701 = vpop.f32.mrf.mxu0
      %v2702 = vadd.f32 0.0, %v2701
      %2703 = vdwg.mxu0
      %2704 = vmatpush.msra.mxu0 0.0
      %2705 = vmatpush.msra.mxu0 0.0
      %2706 = vmatpush.msra.mxu0 0.0
      %2707 = vmatpush.msra.mxu0 0.0
      %2708 = vmatpush.msra.mxu0 0.0
      %2709 = vmatpush.msra.mxu0 0.0
      %2710 = vmatpush.msra.mxu0 0.0
      %2711 = vmatpush.msra.mxu0 0.0
      %2712 = vmatpush.msra.mxu0 0.0
      %2713 = vmatpush.msra.mxu0 0.0
      %2714 = vmatpush.msra.mxu0 0.0
      %2715 = vmatpush.msra.mxu0 %v2598
      %2716 = vmatpush.msra.mxu0 %v2565
      %2717 = vmatpush.msra.mxu0 %v2556
      %2718 = vmatpush.msra.mxu0 %v2547
      %2719 = vmatpush.msra.mxu0 %v2538
      %2720 = vmatmul.f32.gmra.mxu0 %v2580
      %v2721 = vpop.f32.mrf.mxu0
      %v2722 = vadd.f32 0.0, %v2721
      %2723 = vmatmul.f32.gmra.mxu0 %v2583
      %v2724 = vpop.f32.mrf.mxu0
      %v2725 = vadd.f32 0.0, %v2724
      %2726 = vdwg.mxu0
      %2727 = vmatpush.msra.mxu0 0.0
      %2728 = vmatpush.msra.mxu0 0.0
      %2729 = vmatpush.msra.mxu0 0.0
      %2730 = vmatpush.msra.mxu0 0.0
      %2731 = vmatpush.msra.mxu0 0.0
      %2732 = vmatpush.msra.mxu0 0.0
      %2733 = vmatpush.msra.mxu0 0.0
      %2734 = vmatpush.msra.mxu0 0.0
      %2735 = vmatpush.msra.mxu0 0.0
      %2736 = vmatpush.msra.mxu0 0.0
      %2737 = vmatpush.msra.mxu0 0.0
      %2738 = vmatpush.msra.mxu0 %v2601
      %2739 = vmatpush.msra.mxu0 %v2566
      %2740 = vmatpush.msra.mxu0 %v2557
      %2741 = vmatpush.msra.mxu0 %v2548
      %2742 = vmatpush.msra.mxu0 %v2539
      %2743 = vmatmul.f32.gmra.mxu0 %v2580
      %v2744 = vpop.f32.mrf.mxu0
      %v2745 = vadd.f32 0.0, %v2744
      %2746 = vmatmul.f32.gmra.mxu0 %v2583
      %v2747 = vpop.f32.mrf.mxu0
      %v2748 = vadd.f32 0.0, %v2747
      %2749 = vdwg.mxu0
      %2750 = vmatpush.msra.mxu0 0.0
      %2751 = vmatpush.msra.mxu0 0.0
      %2752 = vmatpush.msra.mxu0 0.0
      %2753 = vmatpush.msra.mxu0 0.0
      %2754 = vmatpush.msra.mxu0 0.0
      %2755 = vmatpush.msra.mxu0 0.0
      %2756 = vmatpush.msra.mxu0 0.0
      %2757 = vmatpush.msra.mxu0 0.0
      %2758 = vmatpush.msra.mxu0 0.0
      %2759 = vmatpush.msra.mxu0 0.0
      %2760 = vmatpush.msra.mxu0 0.0
      %2761 = vmatpush.msra.mxu0 %v2604
      %2762 = vmatpush.msra.mxu0 %v2567
      %2763 = vmatpush.msra.mxu0 %v2558
      %2764 = vmatpush.msra.mxu0 %v2549
      %2765 = vmatpush.msra.mxu0 %v2540
      %2766 = vmatmul.f32.gmra.mxu0 %v2580
      %v2767 = vpop.f32.mrf.mxu0
      %v2768 = vadd.f32 0.0, %v2767
      %2769 = vmatmul.f32.gmra.mxu0 %v2583
      %v2770 = vpop.f32.mrf.mxu0
      %v2771 = vadd.f32 0.0, %v2770
      %2772 = vdwg.mxu0
      %2773 = vmatpush.msra.mxu0 0.0
      %2774 = vmatpush.msra.mxu0 0.0
      %2775 = vmatpush.msra.mxu0 0.0
      %2776 = vmatpush.msra.mxu0 0.0
      %2777 = vmatpush.msra.mxu0 0.0
      %2778 = vmatpush.msra.mxu0 0.0
      %2779 = vmatpush.msra.mxu0 0.0
      %2780 = vmatpush.msra.mxu0 0.0
      %2781 = vmatpush.msra.mxu0 0.0
      %2782 = vmatpush.msra.mxu0 0.0
      %2783 = vmatpush.msra.mxu0 0.0
      %2784 = vmatpush.msra.mxu0 %v2607
      %2785 = vmatpush.msra.mxu0 %v2568
      %2786 = vmatpush.msra.mxu0 %v2559
      %2787 = vmatpush.msra.mxu0 %v2550
      %2788 = vmatpush.msra.mxu0 %v2541
      %2789 = vmatmul.f32.gmra.mxu0 %v2580
      %v2790 = vpop.f32.mrf.mxu0
      %v2791 = vadd.f32 0.0, %v2790
      %2792 = vmatmul.f32.gmra.mxu0 %v2583
      %v2793 = vpop.f32.mrf.mxu0
      %v2794 = vadd.f32 0.0, %v2793
      %2795 = vdwg.mxu0
      %2796 = vmatpush.msra.mxu0 0.0
      %2797 = vmatpush.msra.mxu0 0.0
      %2798 = vmatpush.msra.mxu0 0.0
      %2799 = vmatpush.msra.mxu0 0.0
      %2800 = vmatpush.msra.mxu0 0.0
      %2801 = vmatpush.msra.mxu0 0.0
      %2802 = vmatpush.msra.mxu0 0.0
      %2803 = vmatpush.msra.mxu0 0.0
      %2804 = vmatpush.msra.mxu0 0.0
      %2805 = vmatpush.msra.mxu0 0.0
      %2806 = vmatpush.msra.mxu0 0.0
      %2807 = vmatpush.msra.mxu0 %v2610
      %2808 = vmatpush.msra.mxu0 %v2569
      %2809 = vmatpush.msra.mxu0 %v2560
      %2810 = vmatpush.msra.mxu0 %v2551
      %2811 = vmatpush.msra.mxu0 %v2542
      %2812 = vmatmul.f32.gmra.mxu0 %v2580
      %v2813 = vpop.f32.mrf.mxu0
      %v2814 = vadd.f32 0.0, %v2813
      %2815 = vmatmul.f32.gmra.mxu0 %v2583
      %v2816 = vpop.f32.mrf.mxu0
      %v2817 = vadd.f32 0.0, %v2816
      %2818 = vdwg.mxu0
      %v2819 = vmul.f32 %v2630, %v879
      %v2820 = vmul.f32 %v2653, %v941
      %v2821 = vmul.f32 %v2676, %v1003
      %v2822 = vmul.f32 %v2699, %v1065
      %v2823 = vmul.f32 %v2722, %v1127
      %v2824 = vmul.f32 %v2745, %v1189
      %v2825 = vmul.f32 %v2768, %v1251
      %v2826 = vmul.f32 %v2791, %v1313
      %v2827 = vmul.f32 %v2814, %v1379
      %v2828 = vmul.f32 %v2633, %v880
      %v2829 = vmul.f32 %v2656, %v942
      %v2830 = vmul.f32 %v2679, %v1004
      %v2831 = vmul.f32 %v2702, %v1066
      %v2832 = vmul.f32 %v2725, %v1128
      %v2833 = vmul.f32 %v2748, %v1190
      %v2834 = vmul.f32 %v2771, %v1252
      %v2835 = vmul.f32 %v2794, %v1314
      %v2836 = vmul.f32 %v2817, %v1380
      %v2837 = vadd.f32 %v2819, %v2820
      %v2838 = vadd.f32 %v2828, %v2829
      %v2839 = vadd.f32 %v2837, %v2821
      %v2840 = vadd.f32 %v2838, %v2830
      %v2841 = vadd.f32 %v2839, %v2822
      %v2842 = vadd.f32 %v2840, %v2831
      %v2843 = vadd.f32 %v2841, %v2823
      %v2844 = vadd.f32 %v2842, %v2832
      %v2845 = vadd.f32 %v2843, %v2824
      %v2846 = vadd.f32 %v2844, %v2833
      %v2847 = vadd.f32 %v2845, %v2825
      %v2848 = vadd.f32 %v2846, %v2834
      %v2849 = vadd.f32 %v2847, %v2826
      %v2850 = vadd.f32 %v2848, %v2835
      %v2851 = vadd.f32 %v2849, %v2827
      %v2852 = vadd.f32 %v2850, %v2836
      %v2855 = vrot.slane %v2851, 4
      %v2856 = vrot.slane %v2852, 4
      %s2859 = scalar_lea.vmem %s202, 8
      %2860 = vst [vmem:[%s2859] sm:$0xf] %v2851
      %2861 = vst [vmem:[%s2859 + $0x10] sm:$0xf] %v2855
      %2862 = vst [vmem:[%s2859 + $0x20] sm:$0xf] %v2852
      %2863 = vst [vmem:[%s2859 + $0x30] sm:$0xf] %v2856
      %2864 = vst [vmem:[#allocation1] ss:$2 sm:$0xff] %v688
      %s2865 = scalar_lea.vmem [#allocation1], 1
      %2866 = vst [vmem:[%s2865] ss:$2 sm:$0xff] %v689
      %s2867 = scalar_lea.vmem [#allocation1], 16
      %2868 = vst [vmem:[%s2867] ss:$2 sm:$0xff] %v690
      %s2869 = scalar_lea.vmem [#allocation1], 17
      %2870 = vst [vmem:[%s2869] ss:$2 sm:$0xff] %v691
      %v2871 = vld.sshfl [vmem:[#allocation1] sm:$0xff pattern:$0x75316420]
      %v2872 = vld.sshfl [vmem:[#allocation1 + $0x10] sm:$0xff pattern:$0x75316420]
      %2873 = vrot.lane.b32.xlu0 %v2871, 116
      %v2874 = vpop.permute.xlu0 %2873
      %2875 = vrot.lane.b32.xlu0 %v2872, 116
      %v2876 = vpop.permute.xlu0 %2875
      %2879 = vst [vmem:[#allocation1] ss:$2 sm:$0xff] %v708
      %s2880 = scalar_lea.vmem [#allocation1], 1
      %2881 = vst [vmem:[%s2880] ss:$2 sm:$0xff] %v709
      %s2882 = scalar_lea.vmem [#allocation1], 16
      %2883 = vst [vmem:[%s2882] ss:$2 sm:$0xff] %v710
      %s2884 = scalar_lea.vmem [#allocation1], 17
      %2885 = vst [vmem:[%s2884] ss:$2 sm:$0xff] %v711
      %v2886 = vld.sshfl [vmem:[#allocation1] sm:$0xff pattern:$0x75316420]
      %v2887 = vld.sshfl [vmem:[#allocation1 + $0x10] sm:$0xff pattern:$0x75316420]
      %2888 = vrot.lane.b32.xlu0 %v2886, 104
      %v2889 = vpop.permute.xlu0 %2888
      %2890 = vrot.lane.b32.xlu0 %v2887, 104
      %v2891 = vpop.permute.xlu0 %2890
      %2894 = vst [vmem:[#allocation1] ss:$2 sm:$0xff] %v724
      %s2895 = scalar_lea.vmem [#allocation1], 1
      %2896 = vst [vmem:[%s2895] ss:$2 sm:$0xff] %v725
      %s2897 = scalar_lea.vmem [#allocation1], 16
      %2898 = vst [vmem:[%s2897] ss:$2 sm:$0xff] %v726
      %s2899 = scalar_lea.vmem [#allocation1], 17
      %2900 = vst [vmem:[%s2899] ss:$2 sm:$0xff] %v727
      %v2901 = vld.sshfl [vmem:[#allocation1] sm:$0xff pattern:$0x75316420]
      %v2902 = vld.sshfl [vmem:[#allocation1 + $0x10] sm:$0xff pattern:$0x75316420]
      %2903 = vrot.lane.b32.xlu0 %v2901, 92
      %v2904 = vpop.permute.xlu0 %2903
      %2905 = vrot.lane.b32.xlu0 %v2902, 92
      %v2906 = vpop.permute.xlu0 %2905
      %2909 = vst [vmem:[#allocation1] ss:$2 sm:$0xff] %v740
      %s2910 = scalar_lea.vmem [#allocation1], 1
      %2911 = vst [vmem:[%s2910] ss:$2 sm:$0xff] %v741
      %s2912 = scalar_lea.vmem [#allocation1], 16
      %2913 = vst [vmem:[%s2912] ss:$2 sm:$0xff] %v742
      %s2914 = scalar_lea.vmem [#allocation1], 17
      %2915 = vst [vmem:[%s2914] ss:$2 sm:$0xff] %v743
      %v2916 = vld.sshfl [vmem:[#allocation1] sm:$0xff pattern:$0x75316420]
      %v2917 = vld.sshfl [vmem:[#allocation1 + $0x10] sm:$0xff pattern:$0x75316420]
      %2918 = vrot.lane.b32.xlu0 %v2916, 80
      %v2919 = vpop.permute.xlu0 %2918
      %2920 = vrot.lane.b32.xlu0 %v2917, 80
      %v2921 = vpop.permute.xlu0 %2920
      %2924 = vst [vmem:[#allocation1] ss:$2 sm:$0xff] %v756
      %s2925 = scalar_lea.vmem [#allocation1], 1
      %2926 = vst [vmem:[%s2925] ss:$2 sm:$0xff] %v757
      %s2927 = scalar_lea.vmem [#allocation1], 16
      %2928 = vst [vmem:[%s2927] ss:$2 sm:$0xff] %v758
      %s2929 = scalar_lea.vmem [#allocation1], 17
      %2930 = vst [vmem:[%s2929] ss:$2 sm:$0xff] %v759
      %v2931 = vld.sshfl [vmem:[#allocation1] sm:$0xff pattern:$0x75316420]
      %v2932 = vld.sshfl [vmem:[#allocation1 + $0x10] sm:$0xff pattern:$0x75316420]
      %2933 = vrot.lane.b32.xlu0 %v2931, 68
      %v2934 = vpop.permute.xlu0 %2933
      %2935 = vrot.lane.b32.xlu0 %v2932, 68
      %v2936 = vpop.permute.xlu0 %2935
      %2939 = vst [vmem:[#allocation1] ss:$2 sm:$0xff] %v772
      %s2940 = scalar_lea.vmem [#allocation1], 1
      %2941 = vst [vmem:[%s2940] ss:$2 sm:$0xff] %v773
      %s2942 = scalar_lea.vmem [#allocation1], 16
      %2943 = vst [vmem:[%s2942] ss:$2 sm:$0xff] %v774
      %s2944 = scalar_lea.vmem [#allocation1], 17
      %2945 = vst [vmem:[%s2944] ss:$2 sm:$0xff] %v775
      %v2946 = vld.sshfl [vmem:[#allocation1] sm:$0xff pattern:$0x75316420]
      %v2947 = vld.sshfl [vmem:[#allocation1 + $0x10] sm:$0xff pattern:$0x75316420]
      %2948 = vrot.lane.b32.xlu0 %v2946, 56
      %v2949 = vpop.permute.xlu0 %2948
      %2950 = vrot.lane.b32.xlu0 %v2947, 56
      %v2951 = vpop.permute.xlu0 %2950
      %2954 = vst [vmem:[#allocation1] ss:$2 sm:$0xff] %v788
      %s2955 = scalar_lea.vmem [#allocation1], 1
      %2956 = vst [vmem:[%s2955] ss:$2 sm:$0xff] %v789
      %s2957 = scalar_lea.vmem [#allocation1], 16
      %2958 = vst [vmem:[%s2957] ss:$2 sm:$0xff] %v790
      %s2959 = scalar_lea.vmem [#allocation1], 17
      %2960 = vst [vmem:[%s2959] ss:$2 sm:$0xff] %v791
      %v2961 = vld.sshfl [vmem:[#allocation1] sm:$0xff pattern:$0x75316420]
      %v2962 = vld.sshfl [vmem:[#allocation1 + $0x10] sm:$0xff pattern:$0x75316420]
      %2963 = vrot.lane.b32.xlu0 %v2961, 44
      %v2964 = vpop.permute.xlu0 %2963
      %2965 = vrot.lane.b32.xlu0 %v2962, 44
      %v2966 = vpop.permute.xlu0 %2965
      %2969 = vst [vmem:[#allocation1] ss:$2 sm:$0xff] %v804
      %s2970 = scalar_lea.vmem [#allocation1], 1
      %2971 = vst [vmem:[%s2970] ss:$2 sm:$0xff] %v805
      %s2972 = scalar_lea.vmem [#allocation1], 16
      %2973 = vst [vmem:[%s2972] ss:$2 sm:$0xff] %v806
      %s2974 = scalar_lea.vmem [#allocation1], 17
      %2975 = vst [vmem:[%s2974] ss:$2 sm:$0xff] %v807
      %v2976 = vld.sshfl [vmem:[#allocation1] sm:$0xff pattern:$0x75316420]
      %v2977 = vld.sshfl [vmem:[#allocation1 + $0x10] sm:$0xff pattern:$0x75316420]
      %2978 = vrot.lane.b32.xlu0 %v2976, 32
      %v2979 = vpop.permute.xlu0 %2978
      %2980 = vrot.lane.b32.xlu0 %v2977, 32
      %v2981 = vpop.permute.xlu0 %2980
      %2984 = vst [vmem:[#allocation1] ss:$2 sm:$0xff] %v808
      %s2985 = scalar_lea.vmem [#allocation1], 1
      %2986 = vst [vmem:[%s2985] ss:$2 sm:$0xff] %v809
      %s2987 = scalar_lea.vmem [#allocation1], 16
      %2988 = vst [vmem:[%s2987] ss:$2 sm:$0xff] %v810
      %s2989 = scalar_lea.vmem [#allocation1], 17
      %2990 = vst [vmem:[%s2989] ss:$2 sm:$0xff] %v811
      %v2991 = vld.sshfl [vmem:[#allocation1] sm:$0xff pattern:$0x75316420]
      %v2992 = vld.sshfl [vmem:[#allocation1 + $0x10] sm:$0xff pattern:$0x75316420]
      %2993 = vrot.lane.b32.xlu0 %v2991, 20
      %v2994 = vpop.permute.xlu0 %2993
      %2995 = vrot.lane.b32.xlu0 %v2992, 20
      %v2996 = vpop.permute.xlu0 %2995
      %v2999 = vsel %vm1548, %v2874, %v2889
      %v3000 = vsel %vm1548, %v2876, %v2891
      %v3001 = vsel %vm1551, %v2999, %v2904
      %v3002 = vsel %vm1551, %v3000, %v2906
      %v3003 = vsel %vm1554, %v3001, %v2919
      %v3004 = vsel %vm1554, %v3002, %v2921
      %v3005 = vsel %vm1557, %v3003, %v2934
      %v3006 = vsel %vm1557, %v3004, %v2936
      %v3007 = vsel %vm1560, %v3005, %v2949
      %v3008 = vsel %vm1560, %v3006, %v2951
      %v3009 = vsel %vm1563, %v3007, %v2964
      %v3010 = vsel %vm1563, %v3008, %v2966
      %v3011 = vsel %vm1566, %v3009, %v2979
      %v3012 = vsel %vm1566, %v3010, %v2981
      %v3013 = vsel %vm872, %v3011, %v2994
      %v3014 = vsel %vm872, %v3012, %v2996
      %v3015 = vld [vmem:[%s2] sm:$0xff]
      %v3016 = vld [vmem:[%s2 + $0x8] sm:$0xff]
      %v3017 = vld [vmem:[%s2 + $0x10] sm:$0xff]
      %v3018 = vld [vmem:[%s2 + $0x18] sm:$0xff]
      %v3019 = vld [vmem:[%s2 + $0x20] sm:$0xff]
      %v3020 = vld [vmem:[%s2 + $0x28] sm:$0xff]
      %v3021 = vld [vmem:[%s2 + $0x30] sm:$0xff]
      %v3022 = vld [vmem:[%s2 + $0x38] sm:$0xff]
      %v3023 = vld [vmem:[%s2 + $0x40] sm:$0xff]
      %v3024 = vld [vmem:[%s2 + $0x48] sm:$0xff]
      %v3025 = vld [vmem:[%s2 + $0x50] sm:$0xff]
      %v3026 = vld [vmem:[%s2 + $0x58] sm:$0xff]
      %v3027 = vld [vmem:[%s2 + $0x60] sm:$0xff]
      %v3028 = vld [vmem:[%s2 + $0x68] sm:$0xff]
      %v3029 = vld [vmem:[%s2 + $0x70] sm:$0xff]
      %v3030 = vld [vmem:[%s2 + $0x78] sm:$0xff]
      %v3031 = vld [vmem:[%s2 + $0x80] sm:$0xff]
      %v3032 = vld [vmem:[%s2 + $0x88] sm:$0xff]
      %v3033 = vld [vmem:[%s2 + $0x90] sm:$0xff]
      %v3034 = vld [vmem:[%s2 + $0x98] sm:$0xff]
      %v3035 = vld [vmem:[%s2 + $0xa0] sm:$0xff]
      %v3036 = vld [vmem:[%s2 + $0xa8] sm:$0xff]
      %v3037 = vld [vmem:[%s2 + $0xb0] sm:$0xff]
      %v3038 = vld [vmem:[%s2 + $0xb8] sm:$0xff]
      %v3039 = vld [vmem:[%s2 + $0xc0] sm:$0xff]
      %v3040 = vld [vmem:[%s2 + $0xc8] sm:$0xff]
      %v3041 = vld [vmem:[%s2 + $0xd0] sm:$0xff]
      %v3042 = vld [vmem:[%s2 + $0xd8] sm:$0xff]
      %v3043 = vld [vmem:[%s2 + $0xe0] sm:$0xff]
      %v3044 = vld [vmem:[%s2 + $0xe8] sm:$0xff]
      %v3045 = vld [vmem:[%s2 + $0xf0] sm:$0xff]
      %v3046 = vld [vmem:[%s2 + $0xf8] sm:$0xff]
      %v3047 = vld [vmem:[%s2 + $0x100] sm:$0xff]
      %v3048 = vld [vmem:[%s2 + $0x108] sm:$0xff]
      %v3049 = vld [vmem:[%s2 + $0x110] sm:$0xff]
      %v3050 = vld [vmem:[%s2 + $0x118] sm:$0xff]
      %v3051 = vld [vmem:[%s2 + $0x120] sm:$0xf]
      %v3052 = vld [vmem:[%s2 + $0x128] sm:$0xf]
      %v3053 = vld [vmem:[%s2 + $0x130] sm:$0xf]
      %v3054 = vld [vmem:[%s2 + $0x138] sm:$0xf]
      %v3055 = vld [vmem:[%s2 + $0x140] sm:$0xf]
      %v3056 = vld [vmem:[%s2 + $0x148] sm:$0xf]
      %v3057 = vld [vmem:[%s2 + $0x150] sm:$0xf]
      %v3058 = vld [vmem:[%s2 + $0x158] sm:$0xf]
      %v3059 = vld [vmem:[%s2 + $0x160] sm:$0xf]
      %v3061 = vsel %vm1616, %v3013, 0
      %v3064 = vsel %vm1616, %v3014, 0
      %v3067 = vsel %vm1623, %v3051, 0
      %v3070 = vsel %vm1623, %v3052, 0
      %v3073 = vsel %vm1623, %v3053, 0
      %v3076 = vsel %vm1623, %v3054, 0
      %v3079 = vsel %vm1623, %v3055, 0
      %v3082 = vsel %vm1623, %v3056, 0
      %v3085 = vsel %vm1623, %v3057, 0
      %v3088 = vsel %vm1623, %v3058, 0
      %v3091 = vsel %vm1623, %v3059, 0
      %3093 = vmatpush.msra.mxu0 0.0
      %3094 = vmatpush.msra.mxu0 0.0
      %3095 = vmatpush.msra.mxu0 0.0
      %3096 = vmatpush.msra.mxu0 0.0
      %3097 = vmatpush.msra.mxu0 0.0
      %3098 = vmatpush.msra.mxu0 0.0
      %3099 = vmatpush.msra.mxu0 0.0
      %3100 = vmatpush.msra.mxu0 0.0
      %3101 = vmatpush.msra.mxu0 0.0
      %3102 = vmatpush.msra.mxu0 0.0
      %3103 = vmatpush.msra.mxu0 0.0
      %3104 = vmatpush.msra.mxu0 %v3067
      %3105 = vmatpush.msra.mxu0 %v3042
      %3106 = vmatpush.msra.mxu0 %v3033
      %3107 = vmatpush.msra.mxu0 %v3024
      %3108 = vmatpush.msra.mxu0 %v3015
      %3109 = vmatmul.f32.gmra.mxu0 %v3061
      %v3110 = vpop.f32.mrf.mxu0
      %v3111 = vadd.f32 0.0, %v3110
      %3112 = vmatmul.f32.gmra.mxu0 %v3064
      %v3113 = vpop.f32.mrf.mxu0
      %v3114 = vadd.f32 0.0, %v3113
      %3115 = vdwg.mxu0
      %3116 = vmatpush.msra.mxu0 0.0
      %3117 = vmatpush.msra.mxu0 0.0
      %3118 = vmatpush.msra.mxu0 0.0
      %3119 = vmatpush.msra.mxu0 0.0
      %3120 = vmatpush.msra.mxu0 0.0
      %3121 = vmatpush.msra.mxu0 0.0
      %3122 = vmatpush.msra.mxu0 0.0
      %3123 = vmatpush.msra.mxu0 0.0
      %3124 = vmatpush.msra.mxu0 0.0
      %3125 = vmatpush.msra.mxu0 0.0
      %3126 = vmatpush.msra.mxu0 0.0
      %3127 = vmatpush.msra.mxu0 %v3070
      %3128 = vmatpush.msra.mxu0 %v3043
      %3129 = vmatpush.msra.mxu0 %v3034
      %3130 = vmatpush.msra.mxu0 %v3025
      %3131 = vmatpush.msra.mxu0 %v3016
      %3132 = vmatmul.f32.gmra.mxu0 %v3061
      %v3133 = vpop.f32.mrf.mxu0
      %v3134 = vadd.f32 0.0, %v3133
      %3135 = vmatmul.f32.gmra.mxu0 %v3064
      %v3136 = vpop.f32.mrf.mxu0
      %v3137 = vadd.f32 0.0, %v3136
      %3138 = vdwg.mxu0
      %3139 = vmatpush.msra.mxu0 0.0
      %3140 = vmatpush.msra.mxu0 0.0
      %3141 = vmatpush.msra.mxu0 0.0
      %3142 = vmatpush.msra.mxu0 0.0
      %3143 = vmatpush.msra.mxu0 0.0
      %3144 = vmatpush.msra.mxu0 0.0
      %3145 = vmatpush.msra.mxu0 0.0
      %3146 = vmatpush.msra.mxu0 0.0
      %3147 = vmatpush.msra.mxu0 0.0
      %3148 = vmatpush.msra.mxu0 0.0
      %3149 = vmatpush.msra.mxu0 0.0
      %3150 = vmatpush.msra.mxu0 %v3073
      %3151 = vmatpush.msra.mxu0 %v3044
      %3152 = vmatpush.msra.mxu0 %v3035
      %3153 = vmatpush.msra.mxu0 %v3026
      %3154 = vmatpush.msra.mxu0 %v3017
      %3155 = vmatmul.f32.gmra.mxu0 %v3061
      %v3156 = vpop.f32.mrf.mxu0
      %v3157 = vadd.f32 0.0, %v3156
      %3158 = vmatmul.f32.gmra.mxu0 %v3064
      %v3159 = vpop.f32.mrf.mxu0
      %v3160 = vadd.f32 0.0, %v3159
      %3161 = vdwg.mxu0
      %3162 = vmatpush.msra.mxu0 0.0
      %3163 = vmatpush.msra.mxu0 0.0
      %3164 = vmatpush.msra.mxu0 0.0
      %3165 = vmatpush.msra.mxu0 0.0
      %3166 = vmatpush.msra.mxu0 0.0
      %3167 = vmatpush.msra.mxu0 0.0
      %3168 = vmatpush.msra.mxu0 0.0
      %3169 = vmatpush.msra.mxu0 0.0
      %3170 = vmatpush.msra.mxu0 0.0
      %3171 = vmatpush.msra.mxu0 0.0
      %3172 = vmatpush.msra.mxu0 0.0
      %3173 = vmatpush.msra.mxu0 %v3076
      %3174 = vmatpush.msra.mxu0 %v3045
      %3175 = vmatpush.msra.mxu0 %v3036
      %3176 = vmatpush.msra.mxu0 %v3027
      %3177 = vmatpush.msra.mxu0 %v3018
      %3178 = vmatmul.f32.gmra.mxu0 %v3061
      %v3179 = vpop.f32.mrf.mxu0
      %v3180 = vadd.f32 0.0, %v3179
      %3181 = vmatmul.f32.gmra.mxu0 %v3064
      %v3182 = vpop.f32.mrf.mxu0
      %v3183 = vadd.f32 0.0, %v3182
      %3184 = vdwg.mxu0
      %3185 = vmatpush.msra.mxu0 0.0
      %3186 = vmatpush.msra.mxu0 0.0
      %3187 = vmatpush.msra.mxu0 0.0
      %3188 = vmatpush.msra.mxu0 0.0
      %3189 = vmatpush.msra.mxu0 0.0
      %3190 = vmatpush.msra.mxu0 0.0
      %3191 = vmatpush.msra.mxu0 0.0
      %3192 = vmatpush.msra.mxu0 0.0
      %3193 = vmatpush.msra.mxu0 0.0
      %3194 = vmatpush.msra.mxu0 0.0
      %3195 = vmatpush.msra.mxu0 0.0
      %3196 = vmatpush.msra.mxu0 %v3079
      %3197 = vmatpush.msra.mxu0 %v3046
      %3198 = vmatpush.msra.mxu0 %v3037
      %3199 = vmatpush.msra.mxu0 %v3028
      %3200 = vmatpush.msra.mxu0 %v3019
      %3201 = vmatmul.f32.gmra.mxu0 %v3061
      %v3202 = vpop.f32.mrf.mxu0
      %v3203 = vadd.f32 0.0, %v3202
      %3204 = vmatmul.f32.gmra.mxu0 %v3064
      %v3205 = vpop.f32.mrf.mxu0
      %v3206 = vadd.f32 0.0, %v3205
      %3207 = vdwg.mxu0
      %3208 = vmatpush.msra.mxu0 0.0
      %3209 = vmatpush.msra.mxu0 0.0
      %3210 = vmatpush.msra.mxu0 0.0
      %3211 = vmatpush.msra.mxu0 0.0
      %3212 = vmatpush.msra.mxu0 0.0
      %3213 = vmatpush.msra.mxu0 0.0
      %3214 = vmatpush.msra.mxu0 0.0
      %3215 = vmatpush.msra.mxu0 0.0
      %3216 = vmatpush.msra.mxu0 0.0
      %3217 = vmatpush.msra.mxu0 0.0
      %3218 = vmatpush.msra.mxu0 0.0
      %3219 = vmatpush.msra.mxu0 %v3082
      %3220 = vmatpush.msra.mxu0 %v3047
      %3221 = vmatpush.msra.mxu0 %v3038
      %3222 = vmatpush.msra.mxu0 %v3029
      %3223 = vmatpush.msra.mxu0 %v3020
      %3224 = vmatmul.f32.gmra.mxu0 %v3061
      %v3225 = vpop.f32.mrf.mxu0
      %v3226 = vadd.f32 0.0, %v3225
      %3227 = vmatmul.f32.gmra.mxu0 %v3064
      %v3228 = vpop.f32.mrf.mxu0
      %v3229 = vadd.f32 0.0, %v3228
      %3230 = vdwg.mxu0
      %3231 = vmatpush.msra.mxu0 0.0
      %3232 = vmatpush.msra.mxu0 0.0
      %3233 = vmatpush.msra.mxu0 0.0
      %3234 = vmatpush.msra.mxu0 0.0
      %3235 = vmatpush.msra.mxu0 0.0
      %3236 = vmatpush.msra.mxu0 0.0
      %3237 = vmatpush.msra.mxu0 0.0
      %3238 = vmatpush.msra.mxu0 0.0
      %3239 = vmatpush.msra.mxu0 0.0
      %3240 = vmatpush.msra.mxu0 0.0
      %3241 = vmatpush.msra.mxu0 0.0
      %3242 = vmatpush.msra.mxu0 %v3085
      %3243 = vmatpush.msra.mxu0 %v3048
      %3244 = vmatpush.msra.mxu0 %v3039
      %3245 = vmatpush.msra.mxu0 %v3030
      %3246 = vmatpush.msra.mxu0 %v3021
      %3247 = vmatmul.f32.gmra.mxu0 %v3061
      %v3248 = vpop.f32.mrf.mxu0
      %v3249 = vadd.f32 0.0, %v3248
      %3250 = vmatmul.f32.gmra.mxu0 %v3064
      %v3251 = vpop.f32.mrf.mxu0
      %v3252 = vadd.f32 0.0, %v3251
      %3253 = vdwg.mxu0
      %3254 = vmatpush.msra.mxu0 0.0
      %3255 = vmatpush.msra.mxu0 0.0
      %3256 = vmatpush.msra.mxu0 0.0
      %3257 = vmatpush.msra.mxu0 0.0
      %3258 = vmatpush.msra.mxu0 0.0
      %3259 = vmatpush.msra.mxu0 0.0
      %3260 = vmatpush.msra.mxu0 0.0
      %3261 = vmatpush.msra.mxu0 0.0
      %3262 = vmatpush.msra.mxu0 0.0
      %3263 = vmatpush.msra.mxu0 0.0
      %3264 = vmatpush.msra.mxu0 0.0
      %3265 = vmatpush.msra.mxu0 %v3088
      %3266 = vmatpush.msra.mxu0 %v3049
      %3267 = vmatpush.msra.mxu0 %v3040
      %3268 = vmatpush.msra.mxu0 %v3031
      %3269 = vmatpush.msra.mxu0 %v3022
      %3270 = vmatmul.f32.gmra.mxu0 %v3061
      %v3271 = vpop.f32.mrf.mxu0
      %v3272 = vadd.f32 0.0, %v3271
      %3273 = vmatmul.f32.gmra.mxu0 %v3064
      %v3274 = vpop.f32.mrf.mxu0
      %v3275 = vadd.f32 0.0, %v3274
      %3276 = vdwg.mxu0
      %3277 = vmatpush.msra.mxu0 0.0
      %3278 = vmatpush.msra.mxu0 0.0
      %3279 = vmatpush.msra.mxu0 0.0
      %3280 = vmatpush.msra.mxu0 0.0
      %3281 = vmatpush.msra.mxu0 0.0
      %3282 = vmatpush.msra.mxu0 0.0
      %3283 = vmatpush.msra.mxu0 0.0
      %3284 = vmatpush.msra.mxu0 0.0
      %3285 = vmatpush.msra.mxu0 0.0
      %3286 = vmatpush.msra.mxu0 0.0
      %3287 = vmatpush.msra.mxu0 0.0
      %3288 = vmatpush.msra.mxu0 %v3091
      %3289 = vmatpush.msra.mxu0 %v3050
      %3290 = vmatpush.msra.mxu0 %v3041
      %3291 = vmatpush.msra.mxu0 %v3032
      %3292 = vmatpush.msra.mxu0 %v3023
      %3293 = vmatmul.f32.gmra.mxu0 %v3061
      %v3294 = vpop.f32.mrf.mxu0
      %v3295 = vadd.f32 0.0, %v3294
      %3296 = vmatmul.f32.gmra.mxu0 %v3064
      %v3297 = vpop.f32.mrf.mxu0
      %v3298 = vadd.f32 0.0, %v3297
      %3299 = vdwg.mxu0
      %v3300 = vmul.f32 %v3111, %v879
      %v3301 = vmul.f32 %v3134, %v941
      %v3302 = vmul.f32 %v3157, %v1003
      %v3303 = vmul.f32 %v3180, %v1065
      %v3304 = vmul.f32 %v3203, %v1127
      %v3305 = vmul.f32 %v3226, %v1189
      %v3306 = vmul.f32 %v3249, %v1251
      %v3307 = vmul.f32 %v3272, %v1313
      %v3308 = vmul.f32 %v3295, %v1379
      %v3309 = vmul.f32 %v3114, %v880
      %v3310 = vmul.f32 %v3137, %v942
      %v3311 = vmul.f32 %v3160, %v1004
      %v3312 = vmul.f32 %v3183, %v1066
      %v3313 = vmul.f32 %v3206, %v1128
      %v3314 = vmul.f32 %v3229, %v1190
      %v3315 = vmul.f32 %v3252, %v1252
      %v3316 = vmul.f32 %v3275, %v1314
      %v3317 = vmul.f32 %v3298, %v1380
      %v3318 = vadd.f32 %v3300, %v3301
      %v3319 = vadd.f32 %v3309, %v3310
      %v3320 = vadd.f32 %v3318, %v3302
      %v3321 = vadd.f32 %v3319, %v3311
      %v3322 = vadd.f32 %v3320, %v3303
      %v3323 = vadd.f32 %v3321, %v3312
      %v3324 = vadd.f32 %v3322, %v3304
      %v3325 = vadd.f32 %v3323, %v3313
      %v3326 = vadd.f32 %v3324, %v3305
      %v3327 = vadd.f32 %v3325, %v3314
      %v3328 = vadd.f32 %v3326, %v3306
      %v3329 = vadd.f32 %v3327, %v3315
      %v3330 = vadd.f32 %v3328, %v3307
      %v3331 = vadd.f32 %v3329, %v3316
      %v3332 = vadd.f32 %v3330, %v3308
      %v3333 = vadd.f32 %v3331, %v3317
      %v3336 = vrot.slane %v3332, 4
      %v3337 = vrot.slane %v3333, 4
      %s3340 = scalar_lea.vmem %s202, 12
      %3341 = vst [vmem:[%s3340] sm:$0xf] %v3332
      %3342 = vst [vmem:[%s3340 + $0x10] sm:$0xf] %v3336
      %3343 = vst [vmem:[%s3340 + $0x20] sm:$0xf] %v3333
      %3344 = vst [vmem:[%s3340 + $0x30] sm:$0xf] %v3337
      %s3345 = smul.u32 4, %s14
      %p3346 = scmp.lt.s32.totalorder %s3345, 7
      %s3347 = scalar_select %p3346, %s3345, 7
      %s3348 = smul.addr %s3347, 4
      %s3349 = smul.addr %s3348, 4
      %s3350 = scalar_lea.vmem %s3, %s3349
      // Predicated region
      $region33: #{triple_branch_tail_forward.4} parent=31 // pred_check
        %p3351 = pneg %p105
      $region34: #{triple_branch_tail_forward.4} parent=31 // pred_check_branch
        %3353 = sbr.rel (%p3351) target = $region36
      $region35: #{triple_branch_tail_forward.4} parent=31 // pred_region
        %s3354 = smul.u32 4, %s14
      $region36: #{triple_branch_tail_forward.4} parent=31 // pred_fallthru
        _
    $region32: #{triple_branch_tail_forward.4} parent=5 // pred_fallthru
      _
    %p3355 = scmp.le.s32.totalorder 2, %s9
    // Predicated region
    $region37: #{triple_branch_tail_forward.4} parent=5 // pred_check
      %p3356 = pneg %p3355
    $region38: #{triple_branch_tail_forward.4} parent=5 // pred_check_branch
      %3358 = sbr.rel (%p3356) target = $region40
    $region39: #{triple_branch_tail_forward.4} parent=5 // pred_region
      %s3359 = ssub.s32 %s9, 2
      // Predicated region
      $region41: #{triple_branch_tail_forward.4} parent=39 // pred_check
        %p3360 = pneg %p111
      $region42: #{triple_branch_tail_forward.4} parent=39 // pred_check_branch
        %3362 = sbr.rel (%p3360) target = $region44
      $region43: #{triple_branch_tail_forward.4} parent=39 // pred_region
        %s3363 = smul.u32 4, %s15
        %p3364 = scmp.lt.s32.totalorder %s3363, 7
        %s3365 = scalar_select %p3364, %s3363, 7
        %s3366 = smul.addr %s3365, 4
        %s3367 = smul.addr %s3366, 4
        %s3368 = scalar_lea.vmem %s3, %s3367
      $region44: #{triple_branch_tail_forward.4} parent=39 // pred_fallthru
        _
    $region40: #{triple_branch_tail_forward.4} parent=5 // pred_fallthru
      _
  $region6: #{triple_branch_tail_forward.4} parent=0 // loop_footer
    %s13 = sadd.s32 1, %s9
  $region7: #{triple_branch_tail_forward.4} parent=0 // loop_footer_branch
    %8 = sbr.rel target = $region3
  $region8: #{triple_branch_tail_forward.4} parent=0 // loop_exit
    _

// kernel: triple_branch_tail_forward.5
$region0: #{triple_branch_tail_forward.5}
  #allocation0 [shape = 'u32[]', space=smem, size = 0x4, offset = 0x4, fixed_abs, tag = 'smem constant byte address 0x4 - core index']
  #allocation1 [shape = 'u32[72,128]{1,0:T(1,128)}', space=vmem, size = 0x9000, scoped, tag = 'internal scratch']
  #allocation2 [shape = 'f32[1,1]{1,0:T(1,128)S(1)}', space=vmem, size = 0x200, scoped, tag = 'scoped memory for triple_branch_tail_forward.5']
  %s0 = inlined_call_operand.vmem [shape: f32[512,32], index: 0, kind: input, shape index: {}]
  %s1 = inlined_call_operand.vmem [shape: bf16[512,96], index: 1, kind: input, shape index: {}]
  %s2 = inlined_call_operand.vmem [shape: f32[32,192], index: 2, kind: input, shape index: {}]
  %s3 = inlined_call_operand.vmem [shape: f32[1,192], index: 3, kind: input, shape index: {}]
  %s4 = inlined_call_operand.vmem [shape: f32[192,256], index: 4, kind: input, shape index: {}]
  %s5 = inlined_call_operand.vmem [shape: f32[1,256], index: 5, kind: input, shape index: {}]
  %s6 = inlined_call_operand.vmem [shape: f32[128,4], index: 6, kind: input, shape index: {}]
  %s7 = inlined_call_operand.vmem [shape: f32[4,128], index: 7, kind: input, shape index: {}]
  %s8 = inlined_call_operand.vmem [shape: f32[384,12], index: 8, kind: input, shape index: {}]
  %s9 = inlined_call_operand.vmem [shape: f32[24,32], index: 9, kind: input, shape index: {}]
  %s10 = inlined_call_operand.vmem [shape: f32[1,32], index: 10, kind: input, shape index: {}]
  %s11 = inlined_call_operand.vmem [shape: f32[32,1], index: 11, kind: input, shape index: {}]
  %s12 = inlined_call_operand.<no memory space> [shape: f32[1,1], index: 12, kind: input, shape index: {}]
  %s13 = inlined_call_operand.vmem [shape: f32[512,16], index: 13, kind: output, shape index: {0}]
  %s14 = inlined_call_operand.vmem [shape: f32[512,128], index: 14, kind: output, shape index: {1}]
  %15 = xla_tuple %s13, %s14
  %s16 = sld [smem:[#allocation0]]
  $region93: #{triple_branch_tail_forward.5} parent=0
    _
  %s18 = ssub.s32 1, %s16
  %s19 = scalar_select 0, %s18, %s16
  %v20 = vstv %s12
  %21 = vst [vmem:[#allocation2] sm:$0x1] %v20
  loop: start=0, step=1, limit=4
  $region2: #{triple_branch_tail_forward.5} parent=0 // loop_pre_header
    _
  $region3: #{triple_branch_tail_forward.5} parent=0 // loop_header
    %s23 = sphi 0, %s27
    %p24 = scmp.ge.s32.totalorder %s23, 4
    %s33 = sphi 0, %s35
    %s36 = sphi 0, %s33
    %s37 = sphi 0, %s36
    %s53 = sphi 0, %s37
    %s59 = sphi 0, %s61
    %s62 = sphi 0, %s59
    %s63 = sphi 0, %s62
    %s79 = sphi 0, %s63
    %s83 = sphi 0, %s83
    %s85 = sphi 0, %s83
    %s86 = sphi 0, %s85
    %s100 = sphi 0, %s86
    %s104 = sphi 0, %s104
    %s106 = sphi 0, %s104
    %s107 = sphi 0, %s106
    %s121 = sphi 0, %s107
    %s125 = sphi 0, %s125
    %s127 = sphi 0, %s125
    %s128 = sphi 0, %s127
    %s142 = sphi 0, %s128
    %s146 = sphi 0, %s146
    %s148 = sphi 0, %s146
    %s149 = sphi 0, %s148
    %s163 = sphi 0, %s149
    %s167 = sphi 0, %s167
    %s169 = sphi 0, %s167
    %s170 = sphi 0, %s169
    %s184 = sphi 0, %s170
    %s188 = sphi 0, %s188
    %s190 = sphi 0, %s188
    %s191 = sphi 0, %s190
    %s205 = sphi 0, %s191
    %s209 = sphi 0, %s209
    %s211 = sphi 0, %s209
    %s212 = sphi 0, %s211
    %s226 = sphi 0, %s212
    %s230 = sphi 0, %s230
    %s232 = sphi 0, %s230
    %s233 = sphi 0, %s232
    %s247 = sphi 0, %s233
    %s251 = sphi 0, %s251
    %s253 = sphi 0, %s251
    %s254 = sphi 0, %s253
    %s268 = sphi 0, %s254
    %s272 = sphi 0, %s272
    %s274 = sphi 0, %s272
    %s275 = sphi 0, %s274
    %s289 = sphi 0, %s275
    %s293 = sphi 0, %s293
    %s295 = sphi 0, %s293
    %s296 = sphi 0, %s295
    %s310 = sphi 0, %s296
    %s316 = sphi 0, %s318
    %s319 = sphi 0, %s316
    %s320 = sphi 0, %s319
    %s336 = sphi 0, %s320
    %s342 = sphi 0, %s344
    %s345 = sphi 0, %s342
    %s346 = sphi 0, %s345
    %s362 = sphi 0, %s346
  $region4: #{triple_branch_tail_forward.5} parent=0 // loop_header_branch
    %26 = sbr.rel (%p24) target = $region8
  $region5: #{triple_branch_tail_forward.5} parent=0 // loop_body
    %s28 = ssub.s32 %s23, 1
    %s29 = ssub.s32 %s23, 2
    %s30 = sadd.s32 %s23, 1
    %s31 = ssub.s32 %s23, %s30
    %p32 = scmp.eq.s32.totalorder %s31, 0
    %s34 = sadd.s32 %s33, 1
    %s35 = scalar_select %p32, %s33, %s34
    %p38 = pneg %p32
    %p39 = scmp.eq.s32.totalorder %s23, 1
    %p40 = por %p38, %p39
    %p41 = scmp.ne.s32.totalorder %s33, %s36
    %p42 = scmp.eq.s32.totalorder %s23, 0
    %p43 = por %p41, %p42
    %p44 = scmp.ne.s32.totalorder %s33, %s36
    %p45 = scmp.eq.s32.totalorder %s28, 1
    %p46 = por %p44, %p45
    %p47 = scmp.ne.s32.totalorder %s36, %s37
    %p48 = scmp.eq.s32.totalorder %s28, 0
    %p49 = por %p47, %p48
    %p50 = scmp.ne.s32.totalorder %s36, %s37
    %p51 = scmp.eq.s32.totalorder %s29, 1
    %p52 = por %p50, %p51
    %p54 = scmp.ne.s32.totalorder %s37, %s53
    %p55 = scmp.eq.s32.totalorder %s29, 0
    %p56 = por %p54, %p55
    %s57 = ssub.s32 %s23, %s30
    %p58 = scmp.eq.s32.totalorder %s57, 0
    %s60 = sadd.s32 %s59, 1
    %s61 = scalar_select %p58, %s59, %s60
    %p64 = pneg %p58
    %p65 = scmp.eq.s32.totalorder %s23, 1
    %p66 = por %p64, %p65
    %p67 = scmp.ne.s32.totalorder %s59, %s62
    %p68 = scmp.eq.s32.totalorder %s23, 0
    %p69 = por %p67, %p68
    %p70 = scmp.ne.s32.totalorder %s59, %s62
    %p71 = scmp.eq.s32.totalorder %s28, 1
    %p72 = por %p70, %p71
    %p73 = scmp.ne.s32.totalorder %s62, %s63
    %p74 = scmp.eq.s32.totalorder %s28, 0
    %p75 = por %p73, %p74
    %p76 = scmp.ne.s32.totalorder %s62, %s63
    %p77 = scmp.eq.s32.totalorder %s29, 1
    %p78 = por %p76, %p77
    %p80 = scmp.ne.s32.totalorder %s63, %s79
    %p81 = scmp.eq.s32.totalorder %s29, 0
    %p82 = por %p80, %p81
    %s84 = sadd.s32 %s83, 1
    %p87 = scmp.eq.s32.totalorder %s23, 1
    %p88 = scmp.ne.s32.totalorder %s83, %s85
    %p89 = scmp.eq.s32.totalorder %s23, 0
    %p90 = por %p88, %p89
    %p91 = scmp.ne.s32.totalorder %s83, %s85
    %p92 = scmp.eq.s32.totalorder %s28, 1
    %p93 = por %p91, %p92
    %p94 = scmp.ne.s32.totalorder %s85, %s86
    %p95 = scmp.eq.s32.totalorder %s28, 0
    %p96 = por %p94, %p95
    %p97 = scmp.ne.s32.totalorder %s85, %s86
    %p98 = scmp.eq.s32.totalorder %s29, 1
    %p99 = por %p97, %p98
    %p101 = scmp.ne.s32.totalorder %s86, %s100
    %p102 = scmp.eq.s32.totalorder %s29, 0
    %p103 = por %p101, %p102
    %s105 = sadd.s32 %s104, 1
    %p108 = scmp.eq.s32.totalorder %s23, 1
    %p109 = scmp.ne.s32.totalorder %s104, %s106
    %p110 = scmp.eq.s32.totalorder %s23, 0
    %p111 = por %p109, %p110
    %p112 = scmp.ne.s32.totalorder %s104, %s106
    %p113 = scmp.eq.s32.totalorder %s28, 1
    %p114 = por %p112, %p113
    %p115 = scmp.ne.s32.totalorder %s106, %s107
    %p116 = scmp.eq.s32.totalorder %s28, 0
    %p117 = por %p115, %p116
    %p118 = scmp.ne.s32.totalorder %s106, %s107
    %p119 = scmp.eq.s32.totalorder %s29, 1
    %p120 = por %p118, %p119
    %p122 = scmp.ne.s32.totalorder %s107, %s121
    %p123 = scmp.eq.s32.totalorder %s29, 0
    %p124 = por %p122, %p123
    %s126 = sadd.s32 %s125, 1
    %p129 = scmp.eq.s32.totalorder %s23, 1
    %p130 = scmp.ne.s32.totalorder %s125, %s127
    %p131 = scmp.eq.s32.totalorder %s23, 0
    %p132 = por %p130, %p131
    %p133 = scmp.ne.s32.totalorder %s125, %s127
    %p134 = scmp.eq.s32.totalorder %s28, 1
    %p135 = por %p133, %p134
    %p136 = scmp.ne.s32.totalorder %s127, %s128
    %p137 = scmp.eq.s32.totalorder %s28, 0
    %p138 = por %p136, %p137
    %p139 = scmp.ne.s32.totalorder %s127, %s128
    %p140 = scmp.eq.s32.totalorder %s29, 1
    %p141 = por %p139, %p140
    %p143 = scmp.ne.s32.totalorder %s128, %s142
    %p144 = scmp.eq.s32.totalorder %s29, 0
    %p145 = por %p143, %p144
    %s147 = sadd.s32 %s146, 1
    %p150 = scmp.eq.s32.totalorder %s23, 1
    %p151 = scmp.ne.s32.totalorder %s146, %s148
    %p152 = scmp.eq.s32.totalorder %s23, 0
    %p153 = por %p151, %p152
    %p154 = scmp.ne.s32.totalorder %s146, %s148
    %p155 = scmp.eq.s32.totalorder %s28, 1
    %p156 = por %p154, %p155
    %p157 = scmp.ne.s32.totalorder %s148, %s149
    %p158 = scmp.eq.s32.totalorder %s28, 0
    %p159 = por %p157, %p158
    %p160 = scmp.ne.s32.totalorder %s148, %s149
    %p161 = scmp.eq.s32.totalorder %s29, 1
    %p162 = por %p160, %p161
    %p164 = scmp.ne.s32.totalorder %s149, %s163
    %p165 = scmp.eq.s32.totalorder %s29, 0
    %p166 = por %p164, %p165
    %s168 = sadd.s32 %s167, 1
    %p171 = scmp.eq.s32.totalorder %s23, 1
    %p172 = scmp.ne.s32.totalorder %s167, %s169
    %p173 = scmp.eq.s32.totalorder %s23, 0
    %p174 = por %p172, %p173
    %p175 = scmp.ne.s32.totalorder %s167, %s169
    %p176 = scmp.eq.s32.totalorder %s28, 1
    %p177 = por %p175, %p176
    %p178 = scmp.ne.s32.totalorder %s169, %s170
    %p179 = scmp.eq.s32.totalorder %s28, 0
    %p180 = por %p178, %p179
    %p181 = scmp.ne.s32.totalorder %s169, %s170
    %p182 = scmp.eq.s32.totalorder %s29, 1
    %p183 = por %p181, %p182
    %p185 = scmp.ne.s32.totalorder %s170, %s184
    %p186 = scmp.eq.s32.totalorder %s29, 0
    %p187 = por %p185, %p186
    %s189 = sadd.s32 %s188, 1
    %p192 = scmp.eq.s32.totalorder %s23, 1
    %p193 = scmp.ne.s32.totalorder %s188, %s190
    %p194 = scmp.eq.s32.totalorder %s23, 0
    %p195 = por %p193, %p194
    %p196 = scmp.ne.s32.totalorder %s188, %s190
    %p197 = scmp.eq.s32.totalorder %s28, 1
    %p198 = por %p196, %p197
    %p199 = scmp.ne.s32.totalorder %s190, %s191
    %p200 = scmp.eq.s32.totalorder %s28, 0
    %p201 = por %p199, %p200
    %p202 = scmp.ne.s32.totalorder %s190, %s191
    %p203 = scmp.eq.s32.totalorder %s29, 1
    %p204 = por %p202, %p203
    %p206 = scmp.ne.s32.totalorder %s191, %s205
    %p207 = scmp.eq.s32.totalorder %s29, 0
    %p208 = por %p206, %p207
    %s210 = sadd.s32 %s209, 1
    %p213 = scmp.eq.s32.totalorder %s23, 1
    %p214 = scmp.ne.s32.totalorder %s209, %s211
    %p215 = scmp.eq.s32.totalorder %s23, 0
    %p216 = por %p214, %p215
    %p217 = scmp.ne.s32.totalorder %s209, %s211
    %p218 = scmp.eq.s32.totalorder %s28, 1
    %p219 = por %p217, %p218
    %p220 = scmp.ne.s32.totalorder %s211, %s212
    %p221 = scmp.eq.s32.totalorder %s28, 0
    %p222 = por %p220, %p221
    %p223 = scmp.ne.s32.totalorder %s211, %s212
    %p224 = scmp.eq.s32.totalorder %s29, 1
    %p225 = por %p223, %p224
    %p227 = scmp.ne.s32.totalorder %s212, %s226
    %p228 = scmp.eq.s32.totalorder %s29, 0
    %p229 = por %p227, %p228
    %s231 = sadd.s32 %s230, 1
    %p234 = scmp.eq.s32.totalorder %s23, 1
    %p235 = scmp.ne.s32.totalorder %s230, %s232
    %p236 = scmp.eq.s32.totalorder %s23, 0
    %p237 = por %p235, %p236
    %p238 = scmp.ne.s32.totalorder %s230, %s232
    %p239 = scmp.eq.s32.totalorder %s28, 1
    %p240 = por %p238, %p239
    %p241 = scmp.ne.s32.totalorder %s232, %s233
    %p242 = scmp.eq.s32.totalorder %s28, 0
    %p243 = por %p241, %p242
    %p244 = scmp.ne.s32.totalorder %s232, %s233
    %p245 = scmp.eq.s32.totalorder %s29, 1
    %p246 = por %p244, %p245
    %p248 = scmp.ne.s32.totalorder %s233, %s247
    %p249 = scmp.eq.s32.totalorder %s29, 0
    %p250 = por %p248, %p249
    %s252 = sadd.s32 %s251, 1
    %p255 = scmp.eq.s32.totalorder %s23, 1
    %p256 = scmp.ne.s32.totalorder %s251, %s253
    %p257 = scmp.eq.s32.totalorder %s23, 0
    %p258 = por %p256, %p257
    %p259 = scmp.ne.s32.totalorder %s251, %s253
    %p260 = scmp.eq.s32.totalorder %s28, 1
    %p261 = por %p259, %p260
    %p262 = scmp.ne.s32.totalorder %s253, %s254
    %p263 = scmp.eq.s32.totalorder %s28, 0
    %p264 = por %p262, %p263
    %p265 = scmp.ne.s32.totalorder %s253, %s254
    %p266 = scmp.eq.s32.totalorder %s29, 1
    %p267 = por %p265, %p266
    %p269 = scmp.ne.s32.totalorder %s254, %s268
    %p270 = scmp.eq.s32.totalorder %s29, 0
    %p271 = por %p269, %p270
    %s273 = sadd.s32 %s272, 1
    %p276 = scmp.eq.s32.totalorder %s23, 1
    %p277 = scmp.ne.s32.totalorder %s272, %s274
    %p278 = scmp.eq.s32.totalorder %s23, 0
    %p279 = por %p277, %p278
    %p280 = scmp.ne.s32.totalorder %s272, %s274
    %p281 = scmp.eq.s32.totalorder %s28, 1
    %p282 = por %p280, %p281
    %p283 = scmp.ne.s32.totalorder %s274, %s275
    %p284 = scmp.eq.s32.totalorder %s28, 0
    %p285 = por %p283, %p284
    %p286 = scmp.ne.s32.totalorder %s274, %s275
    %p287 = scmp.eq.s32.totalorder %s29, 1
    %p288 = por %p286, %p287
    %p290 = scmp.ne.s32.totalorder %s275, %s289
    %p291 = scmp.eq.s32.totalorder %s29, 0
    %p292 = por %p290, %p291
    %s294 = sadd.s32 %s293, 1
    %p297 = scmp.eq.s32.totalorder %s23, 1
    %p298 = scmp.ne.s32.totalorder %s293, %s295
    %p299 = scmp.eq.s32.totalorder %s23, 0
    %p300 = por %p298, %p299
    %p301 = scmp.ne.s32.totalorder %s293, %s295
    %p302 = scmp.eq.s32.totalorder %s28, 1
    %p303 = por %p301, %p302
    %p304 = scmp.ne.s32.totalorder %s295, %s296
    %p305 = scmp.eq.s32.totalorder %s28, 0
    %p306 = por %p304, %p305
    %p307 = scmp.ne.s32.totalorder %s295, %s296
    %p308 = scmp.eq.s32.totalorder %s29, 1
    %p309 = por %p307, %p308
    %p311 = scmp.ne.s32.totalorder %s296, %s310
    %p312 = scmp.eq.s32.totalorder %s29, 0
    %p313 = por %p311, %p312
    %s314 = ssub.s32 %s23, %s30
    %p315 = scmp.eq.s32.totalorder %s314, 0
    %s317 = sadd.s32 %s316, 1
    %s318 = scalar_select %p315, %s316, %s317
    %p321 = pneg %p315
    %p322 = scmp.eq.s32.totalorder %s23, 1
    %p323 = por %p321, %p322
    %p324 = scmp.ne.s32.totalorder %s316, %s319
    %p325 = scmp.eq.s32.totalorder %s23, 0
    %p326 = por %p324, %p325
    %p327 = scmp.ne.s32.totalorder %s316, %s319
    %p328 = scmp.eq.s32.totalorder %s28, 1
    %p329 = por %p327, %p328
    %p330 = scmp.ne.s32.totalorder %s319, %s320
    %p331 = scmp.eq.s32.totalorder %s28, 0
    %p332 = por %p330, %p331
    %p333 = scmp.ne.s32.totalorder %s319, %s320
    %p334 = scmp.eq.s32.totalorder %s29, 1
    %p335 = por %p333, %p334
    %p337 = scmp.ne.s32.totalorder %s320, %s336
    %p338 = scmp.eq.s32.totalorder %s29, 0
    %p339 = por %p337, %p338
    %s340 = ssub.s32 %s23, %s30
    %p341 = scmp.eq.s32.totalorder %s340, 0
    %s343 = sadd.s32 %s342, 1
    %s344 = scalar_select %p341, %s342, %s343
    %p347 = pneg %p341
    %p348 = scmp.eq.s32.totalorder %s23, 1
    %p349 = por %p347, %p348
    %p350 = scmp.ne.s32.totalorder %s342, %s345
    %p351 = scmp.eq.s32.totalorder %s23, 0
    %p352 = por %p350, %p351
    %p353 = scmp.ne.s32.totalorder %s342, %s345
    %p354 = scmp.eq.s32.totalorder %s28, 1
    %p355 = por %p353, %p354
    %p356 = scmp.ne.s32.totalorder %s345, %s346
    %p357 = scmp.eq.s32.totalorder %s28, 0
    %p358 = por %p356, %p357
    %p359 = scmp.ne.s32.totalorder %s345, %s346
    %p360 = scmp.eq.s32.totalorder %s29, 1
    %p361 = por %p359, %p360
    %p363 = scmp.ne.s32.totalorder %s346, %s362
    %p364 = scmp.eq.s32.totalorder %s29, 0
    %p365 = por %p363, %p364
    %p366 = scmp.le.s32.totalorder 1, %s23
    %p367 = scmp.lt.s32.totalorder %s23, 3
    %p368 = pnand %p366, %p367
    %p369 = pneg %p368
    // Predicated region
    $region9: #{triple_branch_tail_forward.5} parent=5 // pred_check
      _
    $region10: #{triple_branch_tail_forward.5} parent=5 // pred_check_branch
      %371 = sbr.rel (%p368) target = $region12
    $region11: #{triple_branch_tail_forward.5} parent=5 // pred_region
      %s372 = ssub.s32 %s23, 1
      // Predicated region
      $region13: #{triple_branch_tail_forward.5} parent=11 // pred_check
        %p373 = pneg %p96
      $region14: #{triple_branch_tail_forward.5} parent=11 // pred_check_branch
        %375 = sbr.rel (%p373) target = $region16
      $region15: #{triple_branch_tail_forward.5} parent=11 // pred_region
        _
      $region16: #{triple_branch_tail_forward.5} parent=11 // pred_fallthru
        _
      // Predicated region
      $region17: #{triple_branch_tail_forward.5} parent=11 // pred_check
        %p376 = pneg %p117
      $region18: #{triple_branch_tail_forward.5} parent=11 // pred_check_branch
        %378 = sbr.rel (%p376) target = $region20
      $region19: #{triple_branch_tail_forward.5} parent=11 // pred_region
        _
      $region20: #{triple_branch_tail_forward.5} parent=11 // pred_fallthru
        _
      // Predicated region
      $region21: #{triple_branch_tail_forward.5} parent=11 // pred_check
        %p379 = pneg %p138
      $region22: #{triple_branch_tail_forward.5} parent=11 // pred_check_branch
        %381 = sbr.rel (%p379) target = $region24
      $region23: #{triple_branch_tail_forward.5} parent=11 // pred_region
        _
      $region24: #{triple_branch_tail_forward.5} parent=11 // pred_fallthru
        _
      // Predicated region
      $region25: #{triple_branch_tail_forward.5} parent=11 // pred_check
        %p382 = pneg %p159
      $region26: #{triple_branch_tail_forward.5} parent=11 // pred_check_branch
        %384 = sbr.rel (%p382) target = $region28
      $region27: #{triple_branch_tail_forward.5} parent=11 // pred_region
        _
      $region28: #{triple_branch_tail_forward.5} parent=11 // pred_fallthru
        _
      // Predicated region
      $region29: #{triple_branch_tail_forward.5} parent=11 // pred_check
        %p385 = pneg %p180
      $region30: #{triple_branch_tail_forward.5} parent=11 // pred_check_branch
        %387 = sbr.rel (%p385) target = $region32
      $region31: #{triple_branch_tail_forward.5} parent=11 // pred_region
        _
      $region32: #{triple_branch_tail_forward.5} parent=11 // pred_fallthru
        _
      // Predicated region
      $region33: #{triple_branch_tail_forward.5} parent=11 // pred_check
        %p388 = pneg %p201
      $region34: #{triple_branch_tail_forward.5} parent=11 // pred_check_branch
        %390 = sbr.rel (%p388) target = $region36
      $region35: #{triple_branch_tail_forward.5} parent=11 // pred_region
        _
      $region36: #{triple_branch_tail_forward.5} parent=11 // pred_fallthru
        _
      // Predicated region
      $region37: #{triple_branch_tail_forward.5} parent=11 // pred_check
        %p391 = pneg %p222
      $region38: #{triple_branch_tail_forward.5} parent=11 // pred_check_branch
        %393 = sbr.rel (%p391) target = $region40
      $region39: #{triple_branch_tail_forward.5} parent=11 // pred_region
        _
      $region40: #{triple_branch_tail_forward.5} parent=11 // pred_fallthru
        _
      // Predicated region
      $region41: #{triple_branch_tail_forward.5} parent=11 // pred_check
        %p394 = pneg %p243
      $region42: #{triple_branch_tail_forward.5} parent=11 // pred_check_branch
        %396 = sbr.rel (%p394) target = $region44
      $region43: #{triple_branch_tail_forward.5} parent=11 // pred_region
        _
      $region44: #{triple_branch_tail_forward.5} parent=11 // pred_fallthru
        _
      // Predicated region
      $region45: #{triple_branch_tail_forward.5} parent=11 // pred_check
        %p397 = pneg %p264
      $region46: #{triple_branch_tail_forward.5} parent=11 // pred_check_branch
        %399 = sbr.rel (%p397) target = $region48
      $region47: #{triple_branch_tail_forward.5} parent=11 // pred_region
        _
      $region48: #{triple_branch_tail_forward.5} parent=11 // pred_fallthru
        _
      // Predicated region
      $region49: #{triple_branch_tail_forward.5} parent=11 // pred_check
        %p400 = pneg %p285
      $region50: #{triple_branch_tail_forward.5} parent=11 // pred_check_branch
        %402 = sbr.rel (%p400) target = $region52
      $region51: #{triple_branch_tail_forward.5} parent=11 // pred_region
        _
      $region52: #{triple_branch_tail_forward.5} parent=11 // pred_fallthru
        _
      // Predicated region
      $region53: #{triple_branch_tail_forward.5} parent=11 // pred_check
        %p403 = pneg %p306
      $region54: #{triple_branch_tail_forward.5} parent=11 // pred_check_branch
        %405 = sbr.rel (%p403) target = $region56
      $region55: #{triple_branch_tail_forward.5} parent=11 // pred_region
        _
      $region56: #{triple_branch_tail_forward.5} parent=11 // pred_fallthru
        _
    $region12: #{triple_branch_tail_forward.5} parent=5 // pred_fallthru
      _
    %p406 = scmp.lt.s32.totalorder %s23, 2
    // Predicated region
    $region57: #{triple_branch_tail_forward.5} parent=5 // pred_check
      %p407 = pneg %p406
    $region58: #{triple_branch_tail_forward.5} parent=5 // pred_check_branch
      %409 = sbr.rel (%p407) target = $region60
    $region59: #{triple_branch_tail_forward.5} parent=5 // pred_region
      // Predicated region
      $region61: #{triple_branch_tail_forward.5} parent=59 // pred_check
        %p410 = pneg %p43
      $region62: #{triple_branch_tail_forward.5} parent=59 // pred_check_branch
        %412 = sbr.rel (%p410) target = $region64
      $region63: #{triple_branch_tail_forward.5} parent=59 // pred_region
        %s413 = smul.u32 32, %s23
        %p414 = scmp.lt.s32.totalorder %s413, 63
        %s415 = scalar_select %p414, %s413, 63
        %s416 = smul.addr %s415, 8
        %s417 = scalar_lea.vmem %s0, %s416
        %s418 = smul.u32 32, %s23
      $region64: #{triple_branch_tail_forward.5} parent=59 // pred_fallthru
        _
      // Predicated region
      $region65: #{triple_branch_tail_forward.5} parent=59 // pred_check
        %p419 = pneg %p69
      $region66: #{triple_branch_tail_forward.5} parent=59 // pred_check_branch
        %421 = sbr.rel (%p419) target = $region68
      $region67: #{triple_branch_tail_forward.5} parent=59 // pred_region
        %s422 = smul.u32 32, %s23
        %p423 = scmp.lt.s32.totalorder %s422, 63
        %s424 = scalar_select %p423, %s422, 63
        %s425 = smul.addr %s424, 4
        %s426 = scalar_lea.vmem %s1, %s425
        %s427 = smul.u32 32, %s23
      $region68: #{triple_branch_tail_forward.5} parent=59 // pred_fallthru
        _
    $region60: #{triple_branch_tail_forward.5} parent=5 // pred_fallthru
      _
    %p428 = scmp.le.s32.totalorder 1, %s23
    %p429 = scmp.lt.s32.totalorder %s23, 3
    %p430 = pnand %p428, %p429
    %p431 = pneg %p430
    // Predicated region
    $region69: #{triple_branch_tail_forward.5} parent=5 // pred_check
      _
    $region70: #{triple_branch_tail_forward.5} parent=5 // pred_check_branch
      %433 = sbr.rel (%p430) target = $region72
    $region71: #{triple_branch_tail_forward.5} parent=5 // pred_region
      %s434 = ssub.s32 %s23, 1
      %s435 = smul.u32 32, %s28
      %p436 = scmp.lt.s32.totalorder %s435, 63
      %s437 = scalar_select %p436, %s435, 63
      %s438 = smul.addr %s437, 8
      %s439 = scalar_lea.vmem %s0, %s438
      %p440 = pneg %p49
      %p441 = pneg %p46
      %s442 = smul.u32 32, %s28
      %p443 = scmp.lt.s32.totalorder %s442, 63
      %s444 = scalar_select %p443, %s442, 63
      %s445 = smul.addr %s444, 4
      %s446 = scalar_lea.vmem %s1, %s445
      %p447 = pneg %p75
      %p448 = pneg %p72
      %p449 = pneg %p96
      %p450 = pneg %p93
      %p451 = pneg %p117
      %p452 = pneg %p114
      %p453 = pneg %p138
      %p454 = pneg %p135
      %p455 = pneg %p159
      %p456 = pneg %p156
      %p457 = pneg %p180
      %p458 = pneg %p177
      %p459 = pneg %p201
      %p460 = pneg %p198
      %p461 = pneg %p222
      %p462 = pneg %p219
      %p463 = pneg %p243
      %p464 = pneg %p240
      %p465 = pneg %p264
      %p466 = pneg %p261
      %p467 = pneg %p285
      %p468 = pneg %p282
      %p469 = pneg %p306
      %p470 = pneg %p303
      %p471 = pneg %p332
      %p472 = pneg %p329
      %s473 = smul.u32 32, %s28
      %p474 = scmp.lt.s32.totalorder %s473, 63
      %s475 = scalar_select %p474, %s473, 63
      %s476 = smul.addr %s475, 8
      %s477 = scalar_lea.vmem %s13, %s476
      %p478 = pneg %p358
      %p479 = pneg %p355
      %s480 = smul.u32 32, %s28
      %p481 = scmp.lt.s32.totalorder %s480, 63
      %s482 = scalar_select %p481, %s480, 63
      %s483 = smul.addr %s482, 8
      %s484 = scalar_lea.vmem %s14, %s483
      %s485 = smul.u32 32, %s28
      %p486 = scmp.lt.s32.totalorder %s485, 63
      %s487 = scalar_select %p486, %s485, 63
      %s488 = smul.addr %s487, 8
      %s489 = scalar_lea.vmem %s0, %s488
      %s490 = smul.u32 32, %s28
      %s491 = smul.u32 32, %s28
      %p492 = scmp.lt.s32.totalorder %s491, 63
      %s493 = scalar_select %p492, %s491, 63
      %s494 = smul.addr %s493, 4
      %s495 = scalar_lea.vmem %s1, %s494
      %s496 = smul.u32 32, %s28
      %s497 = smul.u32 32, %s28
      %p498 = scmp.lt.s32.totalorder %s497, 63
      %s499 = scalar_select %p498, %s497, 63
      %s500 = smul.addr %s499, 8
      %s501 = scalar_lea.vmem %s13, %s500
      %s502 = smul.u32 32, %s28
      %s503 = smul.u32 32, %s28
      %p504 = scmp.lt.s32.totalorder %s503, 63
      %s505 = scalar_select %p504, %s503, 63
      %s506 = smul.addr %s505, 8
      %s507 = scalar_lea.vmem %s14, %s506
      %s508 = smul.u32 32, %s28
      %v509 = vld [vmem:[%s489] sm:$0xff]
      %v510 = vld [vmem:[%s489 + $0x8] sm:$0xff]
      %v511 = vld [vmem:[%s489 + $0x10] sm:$0xff]
      %v512 = vld [vmem:[%s489 + $0x18] sm:$0xff]
      %v513 = vld [vmem:[%s489 + $0x20] sm:$0xff]
      %v514 = vld [vmem:[%s489 + $0x28] sm:$0xff]
      %v515 = vld [vmem:[%s489 + $0x30] sm:$0xff]
      %v516 = vld [vmem:[%s489 + $0x38] sm:$0xff]
      %v517 = vld [vmem:[%s489 + $0x40] sm:$0xff]
      %v518 = vld [vmem:[%s489 + $0x48] sm:$0xff]
      %v519 = vld [vmem:[%s489 + $0x50] sm:$0xff]
      %v520 = vld [vmem:[%s489 + $0x58] sm:$0xff]
      %v521 = vld [vmem:[%s489 + $0x60] sm:$0xff]
      %v522 = vld [vmem:[%s489 + $0x68] sm:$0xff]
      %v523 = vld [vmem:[%s489 + $0x70] sm:$0xff]
      %v524 = vld [vmem:[%s489 + $0x78] sm:$0xff]
      %v525 = vld [vmem:[%s489 + $0x80] sm:$0xff]
      %v526 = vld [vmem:[%s489 + $0x88] sm:$0xff]
      %v527 = vld [vmem:[%s489 + $0x90] sm:$0xff]
      %v528 = vld [vmem:[%s489 + $0x98] sm:$0xff]
      %v529 = vld [vmem:[%s489 + $0xa0] sm:$0xff]
      %v530 = vld [vmem:[%s489 + $0xa8] sm:$0xff]
      %v531 = vld [vmem:[%s489 + $0xb0] sm:$0xff]
      %v532 = vld [vmem:[%s489 + $0xb8] sm:$0xff]
      %v533 = vld [vmem:[%s489 + $0xc0] sm:$0xff]
      %v534 = vld [vmem:[%s489 + $0xc8] sm:$0xff]
      %v535 = vld [vmem:[%s489 + $0xd0] sm:$0xff]
      %v536 = vld [vmem:[%s489 + $0xd8] sm:$0xff]
      %v537 = vld [vmem:[%s489 + $0xe0] sm:$0xff]
      %v538 = vld [vmem:[%s489 + $0xe8] sm:$0xff]
      %v539 = vld [vmem:[%s489 + $0xf0] sm:$0xff]
      %v540 = vld [vmem:[%s489 + $0xf8] sm:$0xff]
      %v541 = vmax.f32 %v509, 0.0
      %v542 = vmax.f32 %v510, 0.0
      %v543 = vmax.f32 %v511, 0.0
      %v544 = vmax.f32 %v512, 0.0
      %v545 = vmax.f32 %v513, 0.0
      %v546 = vmax.f32 %v514, 0.0
      %v547 = vmax.f32 %v515, 0.0
      %v548 = vmax.f32 %v516, 0.0
      %v549 = vmax.f32 %v517, 0.0
      %v550 = vmax.f32 %v518, 0.0
      %v551 = vmax.f32 %v519, 0.0
      %v552 = vmax.f32 %v520, 0.0
      %v553 = vmax.f32 %v521, 0.0
      %v554 = vmax.f32 %v522, 0.0
      %v555 = vmax.f32 %v523, 0.0
      %v556 = vmax.f32 %v524, 0.0
      %v557 = vmax.f32 %v525, 0.0
      %v558 = vmax.f32 %v526, 0.0
      %v559 = vmax.f32 %v527, 0.0
      %v560 = vmax.f32 %v528, 0.0
      %v561 = vmax.f32 %v529, 0.0
      %v562 = vmax.f32 %v530, 0.0
      %v563 = vmax.f32 %v531, 0.0
      %v564 = vmax.f32 %v532, 0.0
      %v565 = vmax.f32 %v533, 0.0
      %v566 = vmax.f32 %v534, 0.0
      %v567 = vmax.f32 %v535, 0.0
      %v568 = vmax.f32 %v536, 0.0
      %v569 = vmax.f32 %v537, 0.0
      %v570 = vmax.f32 %v538, 0.0
      %v571 = vmax.f32 %v539, 0.0
      %v572 = vmax.f32 %v540, 0.0
      %v573 = vld [vmem:[%s2] sm:$0xff]
      %v574 = vld [vmem:[%s2 + $0x8] sm:$0xff]
      %v575 = vld [vmem:[%s2 + $0x10] sm:$0xff]
      %v576 = vld [vmem:[%s2 + $0x18] sm:$0xff]
      %v577 = vld [vmem:[%s2 + $0x20] sm:$0xff]
      %v578 = vld [vmem:[%s2 + $0x28] sm:$0xff]
      %v579 = vld [vmem:[%s2 + $0x30] sm:$0xff]
      %v580 = vld [vmem:[%s2 + $0x38] sm:$0xff]
      %v581 = vld [vmem:[%s3] sm:$0x3]
      %v583 = vperm.slane %v581, 0
      %v584 = vperm.slane %v581, 1
      %vm587 = vcmask 261120
      %v589 = vsel %vm587, %v541, 0
      %v592 = vsel %vm587, %v542, 0
      %v595 = vsel %vm587, %v543, 0
      %v598 = vsel %vm587, %v544, 0
      %v601 = vsel %vm587, %v545, 0
      %v604 = vsel %vm587, %v546, 0
      %v607 = vsel %vm587, %v547, 0
      %v610 = vsel %vm587, %v548, 0
      %v613 = vsel %vm587, %v549, 0
      %v616 = vsel %vm587, %v550, 0
      %v619 = vsel %vm587, %v551, 0
      %v622 = vsel %vm587, %v552, 0
      %v625 = vsel %vm587, %v553, 0
      %v628 = vsel %vm587, %v554, 0
      %v631 = vsel %vm587, %v555, 0
      %v634 = vsel %vm587, %v556, 0
      %v637 = vsel %vm587, %v557, 0
      %v640 = vsel %vm587, %v558, 0
      %v643 = vsel %vm587, %v559, 0
      %v646 = vsel %vm587, %v560, 0
      %v649 = vsel %vm587, %v561, 0
      %v652 = vsel %vm587, %v562, 0
      %v655 = vsel %vm587, %v563, 0
      %v658 = vsel %vm587, %v564, 0
      %v661 = vsel %vm587, %v565, 0
      %v664 = vsel %vm587, %v566, 0
      %v667 = vsel %vm587, %v567, 0
      %v670 = vsel %vm587, %v568, 0
      %v673 = vsel %vm587, %v569, 0
      %v676 = vsel %vm587, %v570, 0
      %v679 = vsel %vm587, %v571, 0
      %v682 = vsel %vm587, %v572, 0
      %684 = vmatpush.msra.mxu0 0.0
      %685 = vmatpush.msra.mxu0 0.0
      %686 = vmatpush.msra.mxu0 0.0
      %687 = vmatpush.msra.mxu0 0.0
      %688 = vmatpush.msra.mxu0 0.0
      %689 = vmatpush.msra.mxu0 0.0
      %690 = vmatpush.msra.mxu0 0.0
      %691 = vmatpush.msra.mxu0 0.0
      %692 = vmatpush.msra.mxu0 0.0
      %693 = vmatpush.msra.mxu0 0.0
      %694 = vmatpush.msra.mxu0 0.0
      %695 = vmatpush.msra.mxu0 0.0
      %696 = vmatpush.msra.mxu0 %v579
      %697 = vmatpush.msra.mxu0 %v577
      %698 = vmatpush.msra.mxu0 %v575
      %699 = vmatpush.msra.mxu0 %v573
      %700 = vmatmul.f32.gmra.mxu0 %v589
      %v701 = vpop.f32.mrf.mxu0
      %v702 = vadd.f32 %v583, %v701
      %703 = vmatmul.f32.gmra.mxu0 %v592
      %v704 = vpop.f32.mrf.mxu0
      %v705 = vadd.f32 %v583, %v704
      %706 = vmatmul.f32.gmra.mxu0 %v595
      %v707 = vpop.f32.mrf.mxu0
      %v708 = vadd.f32 %v583, %v707
      %709 = vmatmul.f32.gmra.mxu0 %v598
      %v710 = vpop.f32.mrf.mxu0
      %v711 = vadd.f32 %v583, %v710
      %712 = vmatmul.f32.gmra.mxu0 %v601
      %v713 = vpop.f32.mrf.mxu0
      %v714 = vadd.f32 %v583, %v713
      %715 = vmatmul.f32.gmra.mxu0 %v604
      %v716 = vpop.f32.mrf.mxu0
      %v717 = vadd.f32 %v583, %v716
      %718 = vmatmul.f32.gmra.mxu0 %v607
      %v719 = vpop.f32.mrf.mxu0
      %v720 = vadd.f32 %v583, %v719
      %721 = vmatmul.f32.gmra.mxu0 %v610
      %v722 = vpop.f32.mrf.mxu0
      %v723 = vadd.f32 %v583, %v722
      %724 = vmatmul.f32.gmra.mxu0 %v613
      %v725 = vpop.f32.mrf.mxu0
      %v726 = vadd.f32 %v583, %v725
      %727 = vmatmul.f32.gmra.mxu0 %v616
      %v728 = vpop.f32.mrf.mxu0
      %v729 = vadd.f32 %v583, %v728
      %730 = vmatmul.f32.gmra.mxu0 %v619
      %v731 = vpop.f32.mrf.mxu0
      %v732 = vadd.f32 %v583, %v731
      %733 = vmatmul.f32.gmra.mxu0 %v622
      %v734 = vpop.f32.mrf.mxu0
      %v735 = vadd.f32 %v583, %v734
      %736 = vmatmul.f32.gmra.mxu0 %v625
      %v737 = vpop.f32.mrf.mxu0
      %v738 = vadd.f32 %v583, %v737
      %739 = vmatmul.f32.gmra.mxu0 %v628
      %v740 = vpop.f32.mrf.mxu0
      %v741 = vadd.f32 %v583, %v740
      %742 = vmatmul.f32.gmra.mxu0 %v631
      %v743 = vpop.f32.mrf.mxu0
      %v744 = vadd.f32 %v583, %v743
      %745 = vmatmul.f32.gmra.mxu0 %v634
      %v746 = vpop.f32.mrf.mxu0
      %v747 = vadd.f32 %v583, %v746
      %748 = vmatmul.f32.gmra.mxu0 %v637
      %v749 = vpop.f32.mrf.mxu0
      %v750 = vadd.f32 %v583, %v749
      %751 = vmatmul.f32.gmra.mxu0 %v640
      %v752 = vpop.f32.mrf.mxu0
      %v753 = vadd.f32 %v583, %v752
      %754 = vmatmul.f32.gmra.mxu0 %v643
      %v755 = vpop.f32.mrf.mxu0
      %v756 = vadd.f32 %v583, %v755
      %757 = vmatmul.f32.gmra.mxu0 %v646
      %v758 = vpop.f32.mrf.mxu0
      %v759 = vadd.f32 %v583, %v758
      %760 = vmatmul.f32.gmra.mxu0 %v649
      %v761 = vpop.f32.mrf.mxu0
      %v762 = vadd.f32 %v583, %v761
      %763 = vmatmul.f32.gmra.mxu0 %v652
      %v764 = vpop.f32.mrf.mxu0
      %v765 = vadd.f32 %v583, %v764
      %766 = vmatmul.f32.gmra.mxu0 %v655
      %v767 = vpop.f32.mrf.mxu0
      %v768 = vadd.f32 %v583, %v767
      %769 = vmatmul.f32.gmra.mxu0 %v658
      %v770 = vpop.f32.mrf.mxu0
      %v771 = vadd.f32 %v583, %v770
      %772 = vmatmul.f32.gmra.mxu0 %v661
      %v773 = vpop.f32.mrf.mxu0
      %v774 = vadd.f32 %v583, %v773
      %775 = vmatmul.f32.gmra.mxu0 %v664
      %v776 = vpop.f32.mrf.mxu0
      %v777 = vadd.f32 %v583, %v776
      %778 = vmatmul.f32.gmra.mxu0 %v667
      %v779 = vpop.f32.mrf.mxu0
      %v780 = vadd.f32 %v583, %v779
      %781 = vmatmul.f32.gmra.mxu0 %v670
      %v782 = vpop.f32.mrf.mxu0
      %v783 = vadd.f32 %v583, %v782
      %784 = vmatmul.f32.gmra.mxu0 %v673
      %v785 = vpop.f32.mrf.mxu0
      %v786 = vadd.f32 %v583, %v785
      %787 = vmatmul.f32.gmra.mxu0 %v676
      %v788 = vpop.f32.mrf.mxu0
      %v789 = vadd.f32 %v583, %v788
      %790 = vmatmul.f32.gmra.mxu0 %v679
      %v791 = vpop.f32.mrf.mxu0
      %v792 = vadd.f32 %v583, %v791
      %793 = vmatmul.f32.gmra.mxu0 %v682
      %v794 = vpop.f32.mrf.mxu0
      %v795 = vadd.f32 %v583, %v794
      %796 = vdwg.mxu0
      %797 = vmatpush.msra.mxu0 0.0
      %798 = vmatpush.msra.mxu0 0.0
      %799 = vmatpush.msra.mxu0 0.0
      %800 = vmatpush.msra.mxu0 0.0
      %801 = vmatpush.msra.mxu0 0.0
      %802 = vmatpush.msra.mxu0 0.0
      %803 = vmatpush.msra.mxu0 0.0
      %804 = vmatpush.msra.mxu0 0.0
      %805 = vmatpush.msra.mxu0 0.0
      %806 = vmatpush.msra.mxu0 0.0
      %807 = vmatpush.msra.mxu0 0.0
      %808 = vmatpush.msra.mxu0 0.0
      %809 = vmatpush.msra.mxu0 %v580
      %810 = vmatpush.msra.mxu0 %v578
      %811 = vmatpush.msra.mxu0 %v576
      %812 = vmatpush.msra.mxu0 %v574
      %813 = vmatmul.f32.gmra.mxu0 %v589
      %v814 = vpop.f32.mrf.mxu0
      %v815 = vadd.f32 %v584, %v814
      %816 = vmatmul.f32.gmra.mxu0 %v592
      %v817 = vpop.f32.mrf.mxu0
      %v818 = vadd.f32 %v584, %v817
      %819 = vmatmul.f32.gmra.mxu0 %v595
      %v820 = vpop.f32.mrf.mxu0
      %v821 = vadd.f32 %v584, %v820
      %822 = vmatmul.f32.gmra.mxu0 %v598
      %v823 = vpop.f32.mrf.mxu0
      %v824 = vadd.f32 %v584, %v823
      %825 = vmatmul.f32.gmra.mxu0 %v601
      %v826 = vpop.f32.mrf.mxu0
      %v827 = vadd.f32 %v584, %v826
      %828 = vmatmul.f32.gmra.mxu0 %v604
      %v829 = vpop.f32.mrf.mxu0
      %v830 = vadd.f32 %v584, %v829
      %831 = vmatmul.f32.gmra.mxu0 %v607
      %v832 = vpop.f32.mrf.mxu0
      %v833 = vadd.f32 %v584, %v832
      %834 = vmatmul.f32.gmra.mxu0 %v610
      %v835 = vpop.f32.mrf.mxu0
      %v836 = vadd.f32 %v584, %v835
      %837 = vmatmul.f32.gmra.mxu0 %v613
      %v838 = vpop.f32.mrf.mxu0
      %v839 = vadd.f32 %v584, %v838
      %840 = vmatmul.f32.gmra.mxu0 %v616
      %v841 = vpop.f32.mrf.mxu0
      %v842 = vadd.f32 %v584, %v841
      %843 = vmatmul.f32.gmra.mxu0 %v619
      %v844 = vpop.f32.mrf.mxu0
      %v845 = vadd.f32 %v584, %v844
      %846 = vmatmul.f32.gmra.mxu0 %v622
      %v847 = vpop.f32.mrf.mxu0
      %v848 = vadd.f32 %v584, %v847
      %849 = vmatmul.f32.gmra.mxu0 %v625
      %v850 = vpop.f32.mrf.mxu0
      %v851 = vadd.f32 %v584, %v850
      %852 = vmatmul.f32.gmra.mxu0 %v628
      %v853 = vpop.f32.mrf.mxu0
      %v854 = vadd.f32 %v584, %v853
      %855 = vmatmul.f32.gmra.mxu0 %v631
      %v856 = vpop.f32.mrf.mxu0
      %v857 = vadd.f32 %v584, %v856
      %858 = vmatmul.f32.gmra.mxu0 %v634
      %v859 = vpop.f32.mrf.mxu0
      %v860 = vadd.f32 %v584, %v859
      %861 = vmatmul.f32.gmra.mxu0 %v637
      %v862 = vpop.f32.mrf.mxu0
      %v863 = vadd.f32 %v584, %v862
      %864 = vmatmul.f32.gmra.mxu0 %v640
      %v865 = vpop.f32.mrf.mxu0
      %v866 = vadd.f32 %v584, %v865
      %867 = vmatmul.f32.gmra.mxu0 %v643
      %v868 = vpop.f32.mrf.mxu0
      %v869 = vadd.f32 %v584, %v868
      %870 = vmatmul.f32.gmra.mxu0 %v646
      %v871 = vpop.f32.mrf.mxu0
      %v872 = vadd.f32 %v584, %v871
      %873 = vmatmul.f32.gmra.mxu0 %v649
      %v874 = vpop.f32.mrf.mxu0
      %v875 = vadd.f32 %v584, %v874
      %876 = vmatmul.f32.gmra.mxu0 %v652
      %v877 = vpop.f32.mrf.mxu0
      %v878 = vadd.f32 %v584, %v877
      %879 = vmatmul.f32.gmra.mxu0 %v655
      %v880 = vpop.f32.mrf.mxu0
      %v881 = vadd.f32 %v584, %v880
      %882 = vmatmul.f32.gmra.mxu0 %v658
      %v883 = vpop.f32.mrf.mxu0
      %v884 = vadd.f32 %v584, %v883
      %885 = vmatmul.f32.gmra.mxu0 %v661
      %v886 = vpop.f32.mrf.mxu0
      %v887 = vadd.f32 %v584, %v886
      %888 = vmatmul.f32.gmra.mxu0 %v664
      %v889 = vpop.f32.mrf.mxu0
      %v890 = vadd.f32 %v584, %v889
      %891 = vmatmul.f32.gmra.mxu0 %v667
      %v892 = vpop.f32.mrf.mxu0
      %v893 = vadd.f32 %v584, %v892
      %894 = vmatmul.f32.gmra.mxu0 %v670
      %v895 = vpop.f32.mrf.mxu0
      %v896 = vadd.f32 %v584, %v895
      %897 = vmatmul.f32.gmra.mxu0 %v673
      %v898 = vpop.f32.mrf.mxu0
      %v899 = vadd.f32 %v584, %v898
      %900 = vmatmul.f32.gmra.mxu0 %v676
      %v901 = vpop.f32.mrf.mxu0
      %v902 = vadd.f32 %v584, %v901
      %903 = vmatmul.f32.gmra.mxu0 %v679
      %v904 = vpop.f32.mrf.mxu0
      %v905 = vadd.f32 %v584, %v904
      %906 = vmatmul.f32.gmra.mxu0 %v682
      %v907 = vpop.f32.mrf.mxu0
      %v908 = vadd.f32 %v584, %v907
      %909 = vdwg.mxu0
      %v910 = vmax.f32 %v702, 0.0
      %v911 = vmax.f32 %v815, 0.0
      %v912 = vmax.f32 %v705, 0.0
      %v913 = vmax.f32 %v818, 0.0
      %v914 = vmax.f32 %v708, 0.0
      %v915 = vmax.f32 %v821, 0.0
      %v916 = vmax.f32 %v711, 0.0
      %v917 = vmax.f32 %v824, 0.0
      %v918 = vmax.f32 %v714, 0.0
      %v919 = vmax.f32 %v827, 0.0
      %v920 = vmax.f32 %v717, 0.0
      %v921 = vmax.f32 %v830, 0.0
      %v922 = vmax.f32 %v720, 0.0
      %v923 = vmax.f32 %v833, 0.0
      %v924 = vmax.f32 %v723, 0.0
      %v925 = vmax.f32 %v836, 0.0
      %v926 = vmax.f32 %v726, 0.0
      %v927 = vmax.f32 %v839, 0.0
      %v928 = vmax.f32 %v729, 0.0
      %v929 = vmax.f32 %v842, 0.0
      %v930 = vmax.f32 %v732, 0.0
      %v931 = vmax.f32 %v845, 0.0
      %v932 = vmax.f32 %v735, 0.0
      %v933 = vmax.f32 %v848, 0.0
      %v934 = vmax.f32 %v738, 0.0
      %v935 = vmax.f32 %v851, 0.0
      %v936 = vmax.f32 %v741, 0.0
      %v937 = vmax.f32 %v854, 0.0
      %v938 = vmax.f32 %v744, 0.0
      %v939 = vmax.f32 %v857, 0.0
      %v940 = vmax.f32 %v747, 0.0
      %v941 = vmax.f32 %v860, 0.0
      %v942 = vmax.f32 %v750, 0.0
      %v943 = vmax.f32 %v863, 0.0
      %v944 = vmax.f32 %v753, 0.0
      %v945 = vmax.f32 %v866, 0.0
      %v946 = vmax.f32 %v756, 0.0
      %v947 = vmax.f32 %v869, 0.0
      %v948 = vmax.f32 %v759, 0.0
      %v949 = vmax.f32 %v872, 0.0
      %v950 = vmax.f32 %v762, 0.0
      %v951 = vmax.f32 %v875, 0.0
      %v952 = vmax.f32 %v765, 0.0
      %v953 = vmax.f32 %v878, 0.0
      %v954 = vmax.f32 %v768, 0.0
      %v955 = vmax.f32 %v881, 0.0
      %v956 = vmax.f32 %v771, 0.0
      %v957 = vmax.f32 %v884, 0.0
      %v958 = vmax.f32 %v774, 0.0
      %v959 = vmax.f32 %v887, 0.0
      %v960 = vmax.f32 %v777, 0.0
      %v961 = vmax.f32 %v890, 0.0
      %v962 = vmax.f32 %v780, 0.0
      %v963 = vmax.f32 %v893, 0.0
      %v964 = vmax.f32 %v783, 0.0
      %v965 = vmax.f32 %v896, 0.0
      %v966 = vmax.f32 %v786, 0.0
      %v967 = vmax.f32 %v899, 0.0
      %v968 = vmax.f32 %v789, 0.0
      %v969 = vmax.f32 %v902, 0.0
      %v970 = vmax.f32 %v792, 0.0
      %v971 = vmax.f32 %v905, 0.0
      %v972 = vmax.f32 %v795, 0.0
      %v973 = vmax.f32 %v908, 0.0
      %v974 = vld [vmem:[%s4] sm:$0xff]
      %v975 = vld [vmem:[%s4 + $0x8] sm:$0xff]
      %v976 = vld [vmem:[%s4 + $0x10] sm:$0xff]
      %v977 = vld [vmem:[%s4 + $0x18] sm:$0xff]
      %v978 = vld [vmem:[%s4 + $0x20] sm:$0xff]
      %v979 = vld [vmem:[%s4 + $0x28] sm:$0xff]
      %v980 = vld [vmem:[%s4 + $0x30] sm:$0xff]
      %v981 = vld [vmem:[%s4 + $0x38] sm:$0xff]
      %v982 = vld [vmem:[%s4 + $0x40] sm:$0xff]
      %v983 = vld [vmem:[%s4 + $0x48] sm:$0xff]
      %v984 = vld [vmem:[%s4 + $0x50] sm:$0xff]
      %v985 = vld [vmem:[%s4 + $0x58] sm:$0xff]
      %v986 = vld [vmem:[%s4 + $0x60] sm:$0xff]
      %v987 = vld [vmem:[%s4 + $0x68] sm:$0xff]
      %v988 = vld [vmem:[%s4 + $0x70] sm:$0xff]
      %v989 = vld [vmem:[%s4 + $0x78] sm:$0xff]
      %v990 = vld [vmem:[%s4 + $0x80] sm:$0xff]
      %v991 = vld [vmem:[%s4 + $0x88] sm:$0xff]
      %v992 = vld [vmem:[%s4 + $0x90] sm:$0xff]
      %v993 = vld [vmem:[%s4 + $0x98] sm:$0xff]
      %v994 = vld [vmem:[%s4 + $0xa0] sm:$0xff]
      %v995 = vld [vmem:[%s4 + $0xa8] sm:$0xff]
      %v996 = vld [vmem:[%s4 + $0xb0] sm:$0xff]
      %v997 = vld [vmem:[%s4 + $0xb8] sm:$0xff]
      %v998 = vld [vmem:[%s4 + $0xc0] sm:$0xff]
      %v999 = vld [vmem:[%s4 + $0xc8] sm:$0xff]
      %v1000 = vld [vmem:[%s4 + $0xd0] sm:$0xff]
      %v1001 = vld [vmem:[%s4 + $0xd8] sm:$0xff]
      %v1002 = vld [vmem:[%s4 + $0xe0] sm:$0xff]
      %v1003 = vld [vmem:[%s4 + $0xe8] sm:$0xff]
      %v1004 = vld [vmem:[%s4 + $0xf0] sm:$0xff]
      %v1005 = vld [vmem:[%s4 + $0xf8] sm:$0xff]
      %v1006 = vld [vmem:[%s4 + $0x100] sm:$0xff]
      %v1007 = vld [vmem:[%s4 + $0x108] sm:$0xff]
      %v1008 = vld [vmem:[%s4 + $0x110] sm:$0xff]
      %v1009 = vld [vmem:[%s4 + $0x118] sm:$0xff]
      %v1010 = vld [vmem:[%s4 + $0x120] sm:$0xff]
      %v1011 = vld [vmem:[%s4 + $0x128] sm:$0xff]
      %v1012 = vld [vmem:[%s4 + $0x130] sm:$0xff]
      %v1013 = vld [vmem:[%s4 + $0x138] sm:$0xff]
      %v1014 = vld [vmem:[%s4 + $0x140] sm:$0xff]
      %v1015 = vld [vmem:[%s4 + $0x148] sm:$0xff]
      %v1016 = vld [vmem:[%s4 + $0x150] sm:$0xff]
      %v1017 = vld [vmem:[%s4 + $0x158] sm:$0xff]
      %v1018 = vld [vmem:[%s4 + $0x160] sm:$0xff]
      %v1019 = vld [vmem:[%s4 + $0x168] sm:$0xff]
      %v1020 = vld [vmem:[%s4 + $0x170] sm:$0xff]
      %v1021 = vld [vmem:[%s4 + $0x178] sm:$0xff]
      %v1022 = vld [vmem:[%s5] sm:$0x3]
      %v1024 = vperm.slane %v1022, 0
      %v1025 = vperm.slane %v1022, 1
      %vm1028 = vcmask 523264
      %v1030 = vsel %vm1028, %v911, 0
      %v1033 = vsel %vm1028, %v913, 0
      %v1036 = vsel %vm1028, %v915, 0
      %v1039 = vsel %vm1028, %v917, 0
      %v1042 = vsel %vm1028, %v919, 0
      %v1045 = vsel %vm1028, %v921, 0
      %v1048 = vsel %vm1028, %v923, 0
      %v1051 = vsel %vm1028, %v925, 0
      %v1054 = vsel %vm1028, %v927, 0
      %v1057 = vsel %vm1028, %v929, 0
      %v1060 = vsel %vm1028, %v931, 0
      %v1063 = vsel %vm1028, %v933, 0
      %v1066 = vsel %vm1028, %v935, 0
      %v1069 = vsel %vm1028, %v937, 0
      %v1072 = vsel %vm1028, %v939, 0
      %v1075 = vsel %vm1028, %v941, 0
      %v1078 = vsel %vm1028, %v943, 0
      %v1081 = vsel %vm1028, %v945, 0
      %v1084 = vsel %vm1028, %v947, 0
      %v1087 = vsel %vm1028, %v949, 0
      %v1090 = vsel %vm1028, %v951, 0
      %v1093 = vsel %vm1028, %v953, 0
      %v1096 = vsel %vm1028, %v955, 0
      %v1099 = vsel %vm1028, %v957, 0
      %v1102 = vsel %vm1028, %v959, 0
      %v1105 = vsel %vm1028, %v961, 0
      %v1108 = vsel %vm1028, %v963, 0
      %v1111 = vsel %vm1028, %v965, 0
      %v1114 = vsel %vm1028, %v967, 0
      %v1117 = vsel %vm1028, %v969, 0
      %v1120 = vsel %vm1028, %v971, 0
      %v1123 = vsel %vm1028, %v973, 0
      %1125 = vmatpush.msra.mxu0 %v1004
      %1126 = vmatpush.msra.mxu0 %v1002
      %1127 = vmatpush.msra.mxu0 %v1000
      %1128 = vmatpush.msra.mxu0 %v998
      %1129 = vmatpush.msra.mxu0 %v996
      %1130 = vmatpush.msra.mxu0 %v994
      %1131 = vmatpush.msra.mxu0 %v992
      %1132 = vmatpush.msra.mxu0 %v990
      %1133 = vmatpush.msra.mxu0 %v988
      %1134 = vmatpush.msra.mxu0 %v986
      %1135 = vmatpush.msra.mxu0 %v984
      %1136 = vmatpush.msra.mxu0 %v982
      %1137 = vmatpush.msra.mxu0 %v980
      %1138 = vmatpush.msra.mxu0 %v978
      %1139 = vmatpush.msra.mxu0 %v976
      %1140 = vmatpush.msra.mxu0 %v974
      %1141 = vmatmul.f32.gmra.mxu0 %v910
      %v1142 = vpop.f32.mrf.mxu0
      %v1143 = vadd.f32 %v1024, %v1142
      %1144 = vmatmul.f32.gmra.mxu0 %v912
      %v1145 = vpop.f32.mrf.mxu0
      %v1146 = vadd.f32 %v1024, %v1145
      %1147 = vmatmul.f32.gmra.mxu0 %v914
      %v1148 = vpop.f32.mrf.mxu0
      %v1149 = vadd.f32 %v1024, %v1148
      %1150 = vmatmul.f32.gmra.mxu0 %v916
      %v1151 = vpop.f32.mrf.mxu0
      %v1152 = vadd.f32 %v1024, %v1151
      %1153 = vmatmul.f32.gmra.mxu0 %v918
      %v1154 = vpop.f32.mrf.mxu0
      %v1155 = vadd.f32 %v1024, %v1154
      %1156 = vmatmul.f32.gmra.mxu0 %v920
      %v1157 = vpop.f32.mrf.mxu0
      %v1158 = vadd.f32 %v1024, %v1157
      %1159 = vmatmul.f32.gmra.mxu0 %v922
      %v1160 = vpop.f32.mrf.mxu0
      %v1161 = vadd.f32 %v1024, %v1160
      %1162 = vmatmul.f32.gmra.mxu0 %v924
      %v1163 = vpop.f32.mrf.mxu0
      %v1164 = vadd.f32 %v1024, %v1163
      %1165 = vmatmul.f32.gmra.mxu0 %v926
      %v1166 = vpop.f32.mrf.mxu0
      %v1167 = vadd.f32 %v1024, %v1166
      %1168 = vmatmul.f32.gmra.mxu0 %v928
      %v1169 = vpop.f32.mrf.mxu0
      %v1170 = vadd.f32 %v1024, %v1169
      %1171 = vmatmul.f32.gmra.mxu0 %v930
      %v1172 = vpop.f32.mrf.mxu0
      %v1173 = vadd.f32 %v1024, %v1172
      %1174 = vmatmul.f32.gmra.mxu0 %v932
      %v1175 = vpop.f32.mrf.mxu0
      %v1176 = vadd.f32 %v1024, %v1175
      %1177 = vmatmul.f32.gmra.mxu0 %v934
      %v1178 = vpop.f32.mrf.mxu0
      %v1179 = vadd.f32 %v1024, %v1178
      %1180 = vmatmul.f32.gmra.mxu0 %v936
      %v1181 = vpop.f32.mrf.mxu0
      %v1182 = vadd.f32 %v1024, %v1181
      %1183 = vmatmul.f32.gmra.mxu0 %v938
      %v1184 = vpop.f32.mrf.mxu0
      %v1185 = vadd.f32 %v1024, %v1184
      %1186 = vmatmul.f32.gmra.mxu0 %v940
      %v1187 = vpop.f32.mrf.mxu0
      %v1188 = vadd.f32 %v1024, %v1187
      %1189 = vmatmul.f32.gmra.mxu0 %v942
      %v1190 = vpop.f32.mrf.mxu0
      %v1191 = vadd.f32 %v1024, %v1190
      %1192 = vmatmul.f32.gmra.mxu0 %v944
      %v1193 = vpop.f32.mrf.mxu0
      %v1194 = vadd.f32 %v1024, %v1193
      %1195 = vmatmul.f32.gmra.mxu0 %v946
      %v1196 = vpop.f32.mrf.mxu0
      %v1197 = vadd.f32 %v1024, %v1196
      %1198 = vmatmul.f32.gmra.mxu0 %v948
      %v1199 = vpop.f32.mrf.mxu0
      %v1200 = vadd.f32 %v1024, %v1199
      %1201 = vmatmul.f32.gmra.mxu0 %v950
      %v1202 = vpop.f32.mrf.mxu0
      %v1203 = vadd.f32 %v1024, %v1202
      %1204 = vmatmul.f32.gmra.mxu0 %v952
      %v1205 = vpop.f32.mrf.mxu0
      %v1206 = vadd.f32 %v1024, %v1205
      %1207 = vmatmul.f32.gmra.mxu0 %v954
      %v1208 = vpop.f32.mrf.mxu0
      %v1209 = vadd.f32 %v1024, %v1208
      %1210 = vmatmul.f32.gmra.mxu0 %v956
      %v1211 = vpop.f32.mrf.mxu0
      %v1212 = vadd.f32 %v1024, %v1211
      %1213 = vmatmul.f32.gmra.mxu0 %v958
      %v1214 = vpop.f32.mrf.mxu0
      %v1215 = vadd.f32 %v1024, %v1214
      %1216 = vmatmul.f32.gmra.mxu0 %v960
      %v1217 = vpop.f32.mrf.mxu0
      %v1218 = vadd.f32 %v1024, %v1217
      %1219 = vmatmul.f32.gmra.mxu0 %v962
      %v1220 = vpop.f32.mrf.mxu0
      %v1221 = vadd.f32 %v1024, %v1220
      %1222 = vmatmul.f32.gmra.mxu0 %v964
      %v1223 = vpop.f32.mrf.mxu0
      %v1224 = vadd.f32 %v1024, %v1223
      %1225 = vmatmul.f32.gmra.mxu0 %v966
      %v1226 = vpop.f32.mrf.mxu0
      %v1227 = vadd.f32 %v1024, %v1226
      %1228 = vmatmul.f32.gmra.mxu0 %v968
      %v1229 = vpop.f32.mrf.mxu0
      %v1230 = vadd.f32 %v1024, %v1229
      %1231 = vmatmul.f32.gmra.mxu0 %v970
      %v1232 = vpop.f32.mrf.mxu0
      %v1233 = vadd.f32 %v1024, %v1232
      %1234 = vmatmul.f32.gmra.mxu0 %v972
      %v1235 = vpop.f32.mrf.mxu0
      %v1236 = vadd.f32 %v1024, %v1235
      %1237 = vdwg.mxu0
      %1238 = vmatpush.msra.mxu0 0.0
      %1239 = vmatpush.msra.mxu0 0.0
      %1240 = vmatpush.msra.mxu0 0.0
      %1241 = vmatpush.msra.mxu0 0.0
      %1242 = vmatpush.msra.mxu0 0.0
      %1243 = vmatpush.msra.mxu0 0.0
      %1244 = vmatpush.msra.mxu0 0.0
      %1245 = vmatpush.msra.mxu0 0.0
      %1246 = vmatpush.msra.mxu0 %v1020
      %1247 = vmatpush.msra.mxu0 %v1018
      %1248 = vmatpush.msra.mxu0 %v1016
      %1249 = vmatpush.msra.mxu0 %v1014
      %1250 = vmatpush.msra.mxu0 %v1012
      %1251 = vmatpush.msra.mxu0 %v1010
      %1252 = vmatpush.msra.mxu0 %v1008
      %1253 = vmatpush.msra.mxu0 %v1006
      %1254 = vmatmul.f32.gmra.mxu0 %v1030
      %v1255 = vpop.f32.mrf.mxu0
      %v1256 = vadd.f32 %v1143, %v1255
      %1257 = vmatmul.f32.gmra.mxu0 %v1033
      %v1258 = vpop.f32.mrf.mxu0
      %v1259 = vadd.f32 %v1146, %v1258
      %1260 = vmatmul.f32.gmra.mxu0 %v1036
      %v1261 = vpop.f32.mrf.mxu0
      %v1262 = vadd.f32 %v1149, %v1261
      %1263 = vmatmul.f32.gmra.mxu0 %v1039
      %v1264 = vpop.f32.mrf.mxu0
      %v1265 = vadd.f32 %v1152, %v1264
      %1266 = vmatmul.f32.gmra.mxu0 %v1042
      %v1267 = vpop.f32.mrf.mxu0
      %v1268 = vadd.f32 %v1155, %v1267
      %1269 = vmatmul.f32.gmra.mxu0 %v1045
      %v1270 = vpop.f32.mrf.mxu0
      %v1271 = vadd.f32 %v1158, %v1270
      %1272 = vmatmul.f32.gmra.mxu0 %v1048
      %v1273 = vpop.f32.mrf.mxu0
      %v1274 = vadd.f32 %v1161, %v1273
      %1275 = vmatmul.f32.gmra.mxu0 %v1051
      %v1276 = vpop.f32.mrf.mxu0
      %v1277 = vadd.f32 %v1164, %v1276
      %1278 = vmatmul.f32.gmra.mxu0 %v1054
      %v1279 = vpop.f32.mrf.mxu0
      %v1280 = vadd.f32 %v1167, %v1279
      %1281 = vmatmul.f32.gmra.mxu0 %v1057
      %v1282 = vpop.f32.mrf.mxu0
      %v1283 = vadd.f32 %v1170, %v1282
      %1284 = vmatmul.f32.gmra.mxu0 %v1060
      %v1285 = vpop.f32.mrf.mxu0
      %v1286 = vadd.f32 %v1173, %v1285
      %1287 = vmatmul.f32.gmra.mxu0 %v1063
      %v1288 = vpop.f32.mrf.mxu0
      %v1289 = vadd.f32 %v1176, %v1288
      %1290 = vmatmul.f32.gmra.mxu0 %v1066
      %v1291 = vpop.f32.mrf.mxu0
      %v1292 = vadd.f32 %v1179, %v1291
      %1293 = vmatmul.f32.gmra.mxu0 %v1069
      %v1294 = vpop.f32.mrf.mxu0
      %v1295 = vadd.f32 %v1182, %v1294
      %1296 = vmatmul.f32.gmra.mxu0 %v1072
      %v1297 = vpop.f32.mrf.mxu0
      %v1298 = vadd.f32 %v1185, %v1297
      %1299 = vmatmul.f32.gmra.mxu0 %v1075
      %v1300 = vpop.f32.mrf.mxu0
      %v1301 = vadd.f32 %v1188, %v1300
      %1302 = vmatmul.f32.gmra.mxu0 %v1078
      %v1303 = vpop.f32.mrf.mxu0
      %v1304 = vadd.f32 %v1191, %v1303
      %1305 = vmatmul.f32.gmra.mxu0 %v1081
      %v1306 = vpop.f32.mrf.mxu0
      %v1307 = vadd.f32 %v1194, %v1306
      %1308 = vmatmul.f32.gmra.mxu0 %v1084
      %v1309 = vpop.f32.mrf.mxu0
      %v1310 = vadd.f32 %v1197, %v1309
      %1311 = vmatmul.f32.gmra.mxu0 %v1087
      %v1312 = vpop.f32.mrf.mxu0
      %v1313 = vadd.f32 %v1200, %v1312
      %1314 = vmatmul.f32.gmra.mxu0 %v1090
      %v1315 = vpop.f32.mrf.mxu0
      %v1316 = vadd.f32 %v1203, %v1315
      %1317 = vmatmul.f32.gmra.mxu0 %v1093
      %v1318 = vpop.f32.mrf.mxu0
      %v1319 = vadd.f32 %v1206, %v1318
      %1320 = vmatmul.f32.gmra.mxu0 %v1096
      %v1321 = vpop.f32.mrf.mxu0
      %v1322 = vadd.f32 %v1209, %v1321
      %1323 = vmatmul.f32.gmra.mxu0 %v1099
      %v1324 = vpop.f32.mrf.mxu0
      %v1325 = vadd.f32 %v1212, %v1324
      %1326 = vmatmul.f32.gmra.mxu0 %v1102
      %v1327 = vpop.f32.mrf.mxu0
      %v1328 = vadd.f32 %v1215, %v1327
      %1329 = vmatmul.f32.gmra.mxu0 %v1105
      %v1330 = vpop.f32.mrf.mxu0
      %v1331 = vadd.f32 %v1218, %v1330
      %1332 = vmatmul.f32.gmra.mxu0 %v1108
      %v1333 = vpop.f32.mrf.mxu0
      %v1334 = vadd.f32 %v1221, %v1333
      %1335 = vmatmul.f32.gmra.mxu0 %v1111
      %v1336 = vpop.f32.mrf.mxu0
      %v1337 = vadd.f32 %v1224, %v1336
      %1338 = vmatmul.f32.gmra.mxu0 %v1114
      %v1339 = vpop.f32.mrf.mxu0
      %v1340 = vadd.f32 %v1227, %v1339
      %1341 = vmatmul.f32.gmra.mxu0 %v1117
      %v1342 = vpop.f32.mrf.mxu0
      %v1343 = vadd.f32 %v1230, %v1342
      %1344 = vmatmul.f32.gmra.mxu0 %v1120
      %v1345 = vpop.f32.mrf.mxu0
      %v1346 = vadd.f32 %v1233, %v1345
      %1347 = vmatmul.f32.gmra.mxu0 %v1123
      %v1348 = vpop.f32.mrf.mxu0
      %v1349 = vadd.f32 %v1236, %v1348
      %1350 = vdwg.mxu0
      %1351 = vmatpush.msra.mxu0 %v1005
      %1352 = vmatpush.msra.mxu0 %v1003
      %1353 = vmatpush.msra.mxu0 %v1001
      %1354 = vmatpush.msra.mxu0 %v999
      %1355 = vmatpush.msra.mxu0 %v997
      %1356 = vmatpush.msra.mxu0 %v995
      %1357 = vmatpush.msra.mxu0 %v993
      %1358 = vmatpush.msra.mxu0 %v991
      %1359 = vmatpush.msra.mxu0 %v989
      %1360 = vmatpush.msra.mxu0 %v987
      %1361 = vmatpush.msra.mxu0 %v985
      %1362 = vmatpush.msra.mxu0 %v983
      %1363 = vmatpush.msra.mxu0 %v981
      %1364 = vmatpush.msra.mxu0 %v979
      %1365 = vmatpush.msra.mxu0 %v977
      %1366 = vmatpush.msra.mxu0 %v975
      %1367 = vmatmul.f32.gmra.mxu0 %v910
      %v1368 = vpop.f32.mrf.mxu0
      %v1369 = vadd.f32 %v1025, %v1368
      %1370 = vmatmul.f32.gmra.mxu0 %v912
      %v1371 = vpop.f32.mrf.mxu0
      %v1372 = vadd.f32 %v1025, %v1371
      %1373 = vmatmul.f32.gmra.mxu0 %v914
      %v1374 = vpop.f32.mrf.mxu0
      %v1375 = vadd.f32 %v1025, %v1374
      %1376 = vmatmul.f32.gmra.mxu0 %v916
      %v1377 = vpop.f32.mrf.mxu0
      %v1378 = vadd.f32 %v1025, %v1377
      %1379 = vmatmul.f32.gmra.mxu0 %v918
      %v1380 = vpop.f32.mrf.mxu0
      %v1381 = vadd.f32 %v1025, %v1380
      %1382 = vmatmul.f32.gmra.mxu0 %v920
      %v1383 = vpop.f32.mrf.mxu0
      %v1384 = vadd.f32 %v1025, %v1383
      %1385 = vmatmul.f32.gmra.mxu0 %v922
      %v1386 = vpop.f32.mrf.mxu0
      %v1387 = vadd.f32 %v1025, %v1386
      %1388 = vmatmul.f32.gmra.mxu0 %v924
      %v1389 = vpop.f32.mrf.mxu0
      %v1390 = vadd.f32 %v1025, %v1389
      %1391 = vmatmul.f32.gmra.mxu0 %v926
      %v1392 = vpop.f32.mrf.mxu0
      %v1393 = vadd.f32 %v1025, %v1392
      %1394 = vmatmul.f32.gmra.mxu0 %v928
      %v1395 = vpop.f32.mrf.mxu0
      %v1396 = vadd.f32 %v1025, %v1395
      %1397 = vmatmul.f32.gmra.mxu0 %v930
      %v1398 = vpop.f32.mrf.mxu0
      %v1399 = vadd.f32 %v1025, %v1398
      %1400 = vmatmul.f32.gmra.mxu0 %v932
      %v1401 = vpop.f32.mrf.mxu0
      %v1402 = vadd.f32 %v1025, %v1401
      %1403 = vmatmul.f32.gmra.mxu0 %v934
      %v1404 = vpop.f32.mrf.mxu0
      %v1405 = vadd.f32 %v1025, %v1404
      %1406 = vmatmul.f32.gmra.mxu0 %v936
      %v1407 = vpop.f32.mrf.mxu0
      %v1408 = vadd.f32 %v1025, %v1407
      %1409 = vmatmul.f32.gmra.mxu0 %v938
      %v1410 = vpop.f32.mrf.mxu0
      %v1411 = vadd.f32 %v1025, %v1410
      %1412 = vmatmul.f32.gmra.mxu0 %v940
      %v1413 = vpop.f32.mrf.mxu0
      %v1414 = vadd.f32 %v1025, %v1413
      %1415 = vmatmul.f32.gmra.mxu0 %v942
      %v1416 = vpop.f32.mrf.mxu0
      %v1417 = vadd.f32 %v1025, %v1416
      %1418 = vmatmul.f32.gmra.mxu0 %v944
      %v1419 = vpop.f32.mrf.mxu0
      %v1420 = vadd.f32 %v1025, %v1419
      %1421 = vmatmul.f32.gmra.mxu0 %v946
      %v1422 = vpop.f32.mrf.mxu0
      %v1423 = vadd.f32 %v1025, %v1422
      %1424 = vmatmul.f32.gmra.mxu0 %v948
      %v1425 = vpop.f32.mrf.mxu0
      %v1426 = vadd.f32 %v1025, %v1425
      %1427 = vmatmul.f32.gmra.mxu0 %v950
      %v1428 = vpop.f32.mrf.mxu0
      %v1429 = vadd.f32 %v1025, %v1428
      %1430 = vmatmul.f32.gmra.mxu0 %v952
      %v1431 = vpop.f32.mrf.mxu0
      %v1432 = vadd.f32 %v1025, %v1431
      %1433 = vmatmul.f32.gmra.mxu0 %v954
      %v1434 = vpop.f32.mrf.mxu0
      %v1435 = vadd.f32 %v1025, %v1434
      %1436 = vmatmul.f32.gmra.mxu0 %v956
      %v1437 = vpop.f32.mrf.mxu0
      %v1438 = vadd.f32 %v1025, %v1437
      %1439 = vmatmul.f32.gmra.mxu0 %v958
      %v1440 = vpop.f32.mrf.mxu0
      %v1441 = vadd.f32 %v1025, %v1440
      %1442 = vmatmul.f32.gmra.mxu0 %v960
      %v1443 = vpop.f32.mrf.mxu0
      %v1444 = vadd.f32 %v1025, %v1443
      %1445 = vmatmul.f32.gmra.mxu0 %v962
      %v1446 = vpop.f32.mrf.mxu0
      %v1447 = vadd.f32 %v1025, %v1446
      %1448 = vmatmul.f32.gmra.mxu0 %v964
      %v1449 = vpop.f32.mrf.mxu0
      %v1450 = vadd.f32 %v1025, %v1449
      %1451 = vmatmul.f32.gmra.mxu0 %v966
      %v1452 = vpop.f32.mrf.mxu0
      %v1453 = vadd.f32 %v1025, %v1452
      %1454 = vmatmul.f32.gmra.mxu0 %v968
      %v1455 = vpop.f32.mrf.mxu0
      %v1456 = vadd.f32 %v1025, %v1455
      %1457 = vmatmul.f32.gmra.mxu0 %v970
      %v1458 = vpop.f32.mrf.mxu0
      %v1459 = vadd.f32 %v1025, %v1458
      %1460 = vmatmul.f32.gmra.mxu0 %v972
      %v1461 = vpop.f32.mrf.mxu0
      %v1462 = vadd.f32 %v1025, %v1461
      %1463 = vdwg.mxu0
      %1464 = vmatpush.msra.mxu0 0.0
      %1465 = vmatpush.msra.mxu0 0.0
      %1466 = vmatpush.msra.mxu0 0.0
      %1467 = vmatpush.msra.mxu0 0.0
      %1468 = vmatpush.msra.mxu0 0.0
      %1469 = vmatpush.msra.mxu0 0.0
      %1470 = vmatpush.msra.mxu0 0.0
      %1471 = vmatpush.msra.mxu0 0.0
      %1472 = vmatpush.msra.mxu0 %v1021
      %1473 = vmatpush.msra.mxu0 %v1019
      %1474 = vmatpush.msra.mxu0 %v1017
      %1475 = vmatpush.msra.mxu0 %v1015
      %1476 = vmatpush.msra.mxu0 %v1013
      %1477 = vmatpush.msra.mxu0 %v1011
      %1478 = vmatpush.msra.mxu0 %v1009
      %1479 = vmatpush.msra.mxu0 %v1007
      %1480 = vmatmul.f32.gmra.mxu0 %v1030
      %v1481 = vpop.f32.mrf.mxu0
      %v1482 = vadd.f32 %v1369, %v1481
      %1483 = vmatmul.f32.gmra.mxu0 %v1033
      %v1484 = vpop.f32.mrf.mxu0
      %v1485 = vadd.f32 %v1372, %v1484
      %1486 = vmatmul.f32.gmra.mxu0 %v1036
      %v1487 = vpop.f32.mrf.mxu0
      %v1488 = vadd.f32 %v1375, %v1487
      %1489 = vmatmul.f32.gmra.mxu0 %v1039
      %v1490 = vpop.f32.mrf.mxu0
      %v1491 = vadd.f32 %v1378, %v1490
      %1492 = vmatmul.f32.gmra.mxu0 %v1042
      %v1493 = vpop.f32.mrf.mxu0
      %v1494 = vadd.f32 %v1381, %v1493
      %1495 = vmatmul.f32.gmra.mxu0 %v1045
      %v1496 = vpop.f32.mrf.mxu0
      %v1497 = vadd.f32 %v1384, %v1496
      %1498 = vmatmul.f32.gmra.mxu0 %v1048
      %v1499 = vpop.f32.mrf.mxu0
      %v1500 = vadd.f32 %v1387, %v1499
      %1501 = vmatmul.f32.gmra.mxu0 %v1051
      %v1502 = vpop.f32.mrf.mxu0
      %v1503 = vadd.f32 %v1390, %v1502
      %1504 = vmatmul.f32.gmra.mxu0 %v1054
      %v1505 = vpop.f32.mrf.mxu0
      %v1506 = vadd.f32 %v1393, %v1505
      %1507 = vmatmul.f32.gmra.mxu0 %v1057
      %v1508 = vpop.f32.mrf.mxu0
      %v1509 = vadd.f32 %v1396, %v1508
      %1510 = vmatmul.f32.gmra.mxu0 %v1060
      %v1511 = vpop.f32.mrf.mxu0
      %v1512 = vadd.f32 %v1399, %v1511
      %1513 = vmatmul.f32.gmra.mxu0 %v1063
      %v1514 = vpop.f32.mrf.mxu0
      %v1515 = vadd.f32 %v1402, %v1514
      %1516 = vmatmul.f32.gmra.mxu0 %v1066
      %v1517 = vpop.f32.mrf.mxu0
      %v1518 = vadd.f32 %v1405, %v1517
      %1519 = vmatmul.f32.gmra.mxu0 %v1069
      %v1520 = vpop.f32.mrf.mxu0
      %v1521 = vadd.f32 %v1408, %v1520
      %1522 = vmatmul.f32.gmra.mxu0 %v1072
      %v1523 = vpop.f32.mrf.mxu0
      %v1524 = vadd.f32 %v1411, %v1523
      %1525 = vmatmul.f32.gmra.mxu0 %v1075
      %v1526 = vpop.f32.mrf.mxu0
      %v1527 = vadd.f32 %v1414, %v1526
      %1528 = vmatmul.f32.gmra.mxu0 %v1078
      %v1529 = vpop.f32.mrf.mxu0
      %v1530 = vadd.f32 %v1417, %v1529
      %1531 = vmatmul.f32.gmra.mxu0 %v1081
      %v1532 = vpop.f32.mrf.mxu0
      %v1533 = vadd.f32 %v1420, %v1532
      %1534 = vmatmul.f32.gmra.mxu0 %v1084
      %v1535 = vpop.f32.mrf.mxu0
      %v1536 = vadd.f32 %v1423, %v1535
      %1537 = vmatmul.f32.gmra.mxu0 %v1087
      %v1538 = vpop.f32.mrf.mxu0
      %v1539 = vadd.f32 %v1426, %v1538
      %1540 = vmatmul.f32.gmra.mxu0 %v1090
      %v1541 = vpop.f32.mrf.mxu0
      %v1542 = vadd.f32 %v1429, %v1541
      %1543 = vmatmul.f32.gmra.mxu0 %v1093
      %v1544 = vpop.f32.mrf.mxu0
      %v1545 = vadd.f32 %v1432, %v1544
      %1546 = vmatmul.f32.gmra.mxu0 %v1096
      %v1547 = vpop.f32.mrf.mxu0
      %v1548 = vadd.f32 %v1435, %v1547
      %1549 = vmatmul.f32.gmra.mxu0 %v1099
      %v1550 = vpop.f32.mrf.mxu0
      %v1551 = vadd.f32 %v1438, %v1550
      %1552 = vmatmul.f32.gmra.mxu0 %v1102
      %v1553 = vpop.f32.mrf.mxu0
      %v1554 = vadd.f32 %v1441, %v1553
      %1555 = vmatmul.f32.gmra.mxu0 %v1105
      %v1556 = vpop.f32.mrf.mxu0
      %v1557 = vadd.f32 %v1444, %v1556
      %1558 = vmatmul.f32.gmra.mxu0 %v1108
      %v1559 = vpop.f32.mrf.mxu0
      %v1560 = vadd.f32 %v1447, %v1559
      %1561 = vmatmul.f32.gmra.mxu0 %v1111
      %v1562 = vpop.f32.mrf.mxu0
      %v1563 = vadd.f32 %v1450, %v1562
      %1564 = vmatmul.f32.gmra.mxu0 %v1114
      %v1565 = vpop.f32.mrf.mxu0
      %v1566 = vadd.f32 %v1453, %v1565
      %1567 = vmatmul.f32.gmra.mxu0 %v1117
      %v1568 = vpop.f32.mrf.mxu0
      %v1569 = vadd.f32 %v1456, %v1568
      %1570 = vmatmul.f32.gmra.mxu0 %v1120
      %v1571 = vpop.f32.mrf.mxu0
      %v1572 = vadd.f32 %v1459, %v1571
      %1573 = vmatmul.f32.gmra.mxu0 %v1123
      %v1574 = vpop.f32.mrf.mxu0
      %v1575 = vadd.f32 %v1462, %v1574
      %1576 = vdwg.mxu0
      %v1577 = vsel %vm587, %v1256, -inf
      %1578 = vmax.xlane.f32.xlu0 %v1577
      %v1579 = vpop.xlane.xlu0 %1578
      %v1580 = vsel %vm587, %v1259, -inf
      %1581 = vmax.xlane.f32.xlu0 %v1580
      %v1582 = vpop.xlane.xlu0 %1581
      %v1583 = vsel %vm587, %v1262, -inf
      %1584 = vmax.xlane.f32.xlu0 %v1583
      %v1585 = vpop.xlane.xlu0 %1584
      %v1586 = vsel %vm587, %v1265, -inf
      %1587 = vmax.xlane.f32.xlu0 %v1586
      %v1588 = vpop.xlane.xlu0 %1587
      %v1589 = vsel %vm587, %v1268, -inf
      %1590 = vmax.xlane.f32.xlu0 %v1589
      %v1591 = vpop.xlane.xlu0 %1590
      %v1592 = vsel %vm587, %v1271, -inf
      %1593 = vmax.xlane.f32.xlu0 %v1592
      %v1594 = vpop.xlane.xlu0 %1593
      %v1595 = vsel %vm587, %v1274, -inf
      %1596 = vmax.xlane.f32.xlu0 %v1595
      %v1597 = vpop.xlane.xlu0 %1596
      %v1598 = vsel %vm587, %v1277, -inf
      %1599 = vmax.xlane.f32.xlu0 %v1598
      %v1600 = vpop.xlane.xlu0 %1599
      %v1601 = vsel %vm587, %v1280, -inf
      %1602 = vmax.xlane.f32.xlu0 %v1601
      %v1603 = vpop.xlane.xlu0 %1602
      %v1604 = vsel %vm587, %v1283, -inf
      %1605 = vmax.xlane.f32.xlu0 %v1604
      %v1606 = vpop.xlane.xlu0 %1605
      %v1607 = vsel %vm587, %v1286, -inf
      %1608 = vmax.xlane.f32.xlu0 %v1607
      %v1609 = vpop.xlane.xlu0 %1608
      %v1610 = vsel %vm587, %v1289, -inf
      %1611 = vmax.xlane.f32.xlu0 %v1610
      %v1612 = vpop.xlane.xlu0 %1611
      %v1613 = vsel %vm587, %v1292, -inf
      %1614 = vmax.xlane.f32.xlu0 %v1613
      %v1615 = vpop.xlane.xlu0 %1614
      %v1616 = vsel %vm587, %v1295, -inf
      %1617 = vmax.xlane.f32.xlu0 %v1616
      %v1618 = vpop.xlane.xlu0 %1617
      %v1619 = vsel %vm587, %v1298, -inf
      %1620 = vmax.xlane.f32.xlu0 %v1619
      %v1621 = vpop.xlane.xlu0 %1620
      %v1622 = vsel %vm587, %v1301, -inf
      %1623 = vmax.xlane.f32.xlu0 %v1622
      %v1624 = vpop.xlane.xlu0 %1623
      %v1625 = vsel %vm587, %v1304, -inf
      %1626 = vmax.xlane.f32.xlu0 %v1625
      %v1627 = vpop.xlane.xlu0 %1626
      %v1628 = vsel %vm587, %v1307, -inf
      %1629 = vmax.xlane.f32.xlu0 %v1628
      %v1630 = vpop.xlane.xlu0 %1629
      %v1631 = vsel %vm587, %v1310, -inf
      %1632 = vmax.xlane.f32.xlu0 %v1631
      %v1633 = vpop.xlane.xlu0 %1632
      %v1634 = vsel %vm587, %v1313, -inf
      %1635 = vmax.xlane.f32.xlu0 %v1634
      %v1636 = vpop.xlane.xlu0 %1635
      %v1637 = vsel %vm587, %v1316, -inf
      %1638 = vmax.xlane.f32.xlu0 %v1637
      %v1639 = vpop.xlane.xlu0 %1638
      %v1640 = vsel %vm587, %v1319, -inf
      %1641 = vmax.xlane.f32.xlu0 %v1640
      %v1642 = vpop.xlane.xlu0 %1641
      %v1643 = vsel %vm587, %v1322, -inf
      %1644 = vmax.xlane.f32.xlu0 %v1643
      %v1645 = vpop.xlane.xlu0 %1644
      %v1646 = vsel %vm587, %v1325, -inf
      %1647 = vmax.xlane.f32.xlu0 %v1646
      %v1648 = vpop.xlane.xlu0 %1647
      %v1649 = vsel %vm587, %v1328, -inf
      %1650 = vmax.xlane.f32.xlu0 %v1649
      %v1651 = vpop.xlane.xlu0 %1650
      %v1652 = vsel %vm587, %v1331, -inf
      %1653 = vmax.xlane.f32.xlu0 %v1652
      %v1654 = vpop.xlane.xlu0 %1653
      %v1655 = vsel %vm587, %v1334, -inf
      %1656 = vmax.xlane.f32.xlu0 %v1655
      %v1657 = vpop.xlane.xlu0 %1656
      %v1658 = vsel %vm587, %v1337, -inf
      %1659 = vmax.xlane.f32.xlu0 %v1658
      %v1660 = vpop.xlane.xlu0 %1659
      %v1661 = vsel %vm587, %v1340, -inf
      %1662 = vmax.xlane.f32.xlu0 %v1661
      %v1663 = vpop.xlane.xlu0 %1662
      %v1664 = vsel %vm587, %v1343, -inf
      %1665 = vmax.xlane.f32.xlu0 %v1664
      %v1666 = vpop.xlane.xlu0 %1665
      %v1667 = vsel %vm587, %v1346, -inf
      %1668 = vmax.xlane.f32.xlu0 %v1667
      %v1669 = vpop.xlane.xlu0 %1668
      %v1670 = vsel %vm587, %v1349, -inf
      %1671 = vmax.xlane.f32.xlu0 %v1670
      %v1672 = vpop.xlane.xlu0 %1671
      %v1673 = vsub.f32 %v1256, %v1579
      %v1674 = vsub.f32 %v1259, %v1582
      %v1675 = vsub.f32 %v1262, %v1585
      %v1676 = vsub.f32 %v1265, %v1588
      %v1677 = vsub.f32 %v1268, %v1591
      %v1678 = vsub.f32 %v1271, %v1594
      %v1679 = vsub.f32 %v1274, %v1597
      %v1680 = vsub.f32 %v1277, %v1600
      %v1681 = vsub.f32 %v1280, %v1603
      %v1682 = vsub.f32 %v1283, %v1606
      %v1683 = vsub.f32 %v1286, %v1609
      %v1684 = vsub.f32 %v1289, %v1612
      %v1685 = vsub.f32 %v1292, %v1615
      %v1686 = vsub.f32 %v1295, %v1618
      %v1687 = vsub.f32 %v1298, %v1621
      %v1688 = vsub.f32 %v1301, %v1624
      %v1689 = vsub.f32 %v1304, %v1627
      %v1690 = vsub.f32 %v1307, %v1630
      %v1691 = vsub.f32 %v1310, %v1633
      %v1692 = vsub.f32 %v1313, %v1636
      %v1693 = vsub.f32 %v1316, %v1639
      %v1694 = vsub.f32 %v1319, %v1642
      %v1695 = vsub.f32 %v1322, %v1645
      %v1696 = vsub.f32 %v1325, %v1648
      %v1697 = vsub.f32 %v1328, %v1651
      %v1698 = vsub.f32 %v1331, %v1654
      %v1699 = vsub.f32 %v1334, %v1657
      %v1700 = vsub.f32 %v1337, %v1660
      %v1701 = vsub.f32 %v1340, %v1663
      %v1702 = vsub.f32 %v1343, %v1666
      %v1703 = vsub.f32 %v1346, %v1669
      %v1704 = vsub.f32 %v1349, %v1672
      %v1705 = vmul.f32 %v1673, 1.442695
      %v1706 = vpow.pop %v1705
      %v1707 = vmul.f32 %v1674, 1.442695
      %v1708 = vpow.pop %v1707
      %v1709 = vmul.f32 %v1675, 1.442695
      %v1710 = vpow.pop %v1709
      %v1711 = vmul.f32 %v1676, 1.442695
      %v1712 = vpow.pop %v1711
      %v1713 = vmul.f32 %v1677, 1.442695
      %v1714 = vpow.pop %v1713
      %v1715 = vmul.f32 %v1678, 1.442695
      %v1716 = vpow.pop %v1715
      %v1717 = vmul.f32 %v1679, 1.442695
      %v1718 = vpow.pop %v1717
      %v1719 = vmul.f32 %v1680, 1.442695
      %v1720 = vpow.pop %v1719
      %v1721 = vmul.f32 %v1681, 1.442695
      %v1722 = vpow.pop %v1721
      %v1723 = vmul.f32 %v1682, 1.442695
      %v1724 = vpow.pop %v1723
      %v1725 = vmul.f32 %v1683, 1.442695
      %v1726 = vpow.pop %v1725
      %v1727 = vmul.f32 %v1684, 1.442695
      %v1728 = vpow.pop %v1727
      %v1729 = vmul.f32 %v1685, 1.442695
      %v1730 = vpow.pop %v1729
      %v1731 = vmul.f32 %v1686, 1.442695
      %v1732 = vpow.pop %v1731
      %v1733 = vmul.f32 %v1687, 1.442695
      %v1734 = vpow.pop %v1733
      %v1735 = vmul.f32 %v1688, 1.442695
      %v1736 = vpow.pop %v1735
      %v1737 = vmul.f32 %v1689, 1.442695
      %v1738 = vpow.pop %v1737
      %v1739 = vmul.f32 %v1690, 1.442695
      %v1740 = vpow.pop %v1739
      %v1741 = vmul.f32 %v1691, 1.442695
      %v1742 = vpow.pop %v1741
      %v1743 = vmul.f32 %v1692, 1.442695
      %v1744 = vpow.pop %v1743
      %v1745 = vmul.f32 %v1693, 1.442695
      %v1746 = vpow.pop %v1745
      %v1747 = vmul.f32 %v1694, 1.442695
      %v1748 = vpow.pop %v1747
      %v1749 = vmul.f32 %v1695, 1.442695
      %v1750 = vpow.pop %v1749
      %v1751 = vmul.f32 %v1696, 1.442695
      %v1752 = vpow.pop %v1751
      %v1753 = vmul.f32 %v1697, 1.442695
      %v1754 = vpow.pop %v1753
      %v1755 = vmul.f32 %v1698, 1.442695
      %v1756 = vpow.pop %v1755
      %v1757 = vmul.f32 %v1699, 1.442695
      %v1758 = vpow.pop %v1757
      %v1759 = vmul.f32 %v1700, 1.442695
      %v1760 = vpow.pop %v1759
      %v1761 = vmul.f32 %v1701, 1.442695
      %v1762 = vpow.pop %v1761
      %v1763 = vmul.f32 %v1702, 1.442695
      %v1764 = vpow.pop %v1763
      %v1765 = vmul.f32 %v1703, 1.442695
      %v1766 = vpow.pop %v1765
      %v1767 = vmul.f32 %v1704, 1.442695
      %v1768 = vpow.pop %v1767
      %vm1769 = vcmask 523520
      %v1770 = vsel %vm1769, %v1256, -inf
      %1771 = vmax.xlane.f32.xlu0 %v1770
      %v1772 = vpop.xlane.xlu0 %1771
      %v1773 = vsel %vm1769, %v1259, -inf
      %1774 = vmax.xlane.f32.xlu0 %v1773
      %v1775 = vpop.xlane.xlu0 %1774
      %v1776 = vsel %vm1769, %v1262, -inf
      %1777 = vmax.xlane.f32.xlu0 %v1776
      %v1778 = vpop.xlane.xlu0 %1777
      %v1779 = vsel %vm1769, %v1265, -inf
      %1780 = vmax.xlane.f32.xlu0 %v1779
      %v1781 = vpop.xlane.xlu0 %1780
      %v1782 = vsel %vm1769, %v1268, -inf
      %1783 = vmax.xlane.f32.xlu0 %v1782
      %v1784 = vpop.xlane.xlu0 %1783
      %v1785 = vsel %vm1769, %v1271, -inf
      %1786 = vmax.xlane.f32.xlu0 %v1785
      %v1787 = vpop.xlane.xlu0 %1786
      %v1788 = vsel %vm1769, %v1274, -inf
      %1789 = vmax.xlane.f32.xlu0 %v1788
      %v1790 = vpop.xlane.xlu0 %1789
      %v1791 = vsel %vm1769, %v1277, -inf
      %1792 = vmax.xlane.f32.xlu0 %v1791
      %v1793 = vpop.xlane.xlu0 %1792
      %v1794 = vsel %vm1769, %v1280, -inf
      %1795 = vmax.xlane.f32.xlu0 %v1794
      %v1796 = vpop.xlane.xlu0 %1795
      %v1797 = vsel %vm1769, %v1283, -inf
      %1798 = vmax.xlane.f32.xlu0 %v1797
      %v1799 = vpop.xlane.xlu0 %1798
      %v1800 = vsel %vm1769, %v1286, -inf
      %1801 = vmax.xlane.f32.xlu0 %v1800
      %v1802 = vpop.xlane.xlu0 %1801
      %v1803 = vsel %vm1769, %v1289, -inf
      %1804 = vmax.xlane.f32.xlu0 %v1803
      %v1805 = vpop.xlane.xlu0 %1804
      %v1806 = vsel %vm1769, %v1292, -inf
      %1807 = vmax.xlane.f32.xlu0 %v1806
      %v1808 = vpop.xlane.xlu0 %1807
      %v1809 = vsel %vm1769, %v1295, -inf
      %1810 = vmax.xlane.f32.xlu0 %v1809
      %v1811 = vpop.xlane.xlu0 %1810
      %v1812 = vsel %vm1769, %v1298, -inf
      %1813 = vmax.xlane.f32.xlu0 %v1812
      %v1814 = vpop.xlane.xlu0 %1813
      %v1815 = vsel %vm1769, %v1301, -inf
      %1816 = vmax.xlane.f32.xlu0 %v1815
      %v1817 = vpop.xlane.xlu0 %1816
      %v1818 = vsel %vm1769, %v1304, -inf
      %1819 = vmax.xlane.f32.xlu0 %v1818
      %v1820 = vpop.xlane.xlu0 %1819
      %v1821 = vsel %vm1769, %v1307, -inf
      %1822 = vmax.xlane.f32.xlu0 %v1821
      %v1823 = vpop.xlane.xlu0 %1822
      %v1824 = vsel %vm1769, %v1310, -inf
      %1825 = vmax.xlane.f32.xlu0 %v1824
      %v1826 = vpop.xlane.xlu0 %1825
      %v1827 = vsel %vm1769, %v1313, -inf
      %1828 = vmax.xlane.f32.xlu0 %v1827
      %v1829 = vpop.xlane.xlu0 %1828
      %v1830 = vsel %vm1769, %v1316, -inf
      %1831 = vmax.xlane.f32.xlu0 %v1830
      %v1832 = vpop.xlane.xlu0 %1831
      %v1833 = vsel %vm1769, %v1319, -inf
      %1834 = vmax.xlane.f32.xlu0 %v1833
      %v1835 = vpop.xlane.xlu0 %1834
      %v1836 = vsel %vm1769, %v1322, -inf
      %1837 = vmax.xlane.f32.xlu0 %v1836
      %v1838 = vpop.xlane.xlu0 %1837
      %v1839 = vsel %vm1769, %v1325, -inf
      %1840 = vmax.xlane.f32.xlu0 %v1839
      %v1841 = vpop.xlane.xlu0 %1840
      %v1842 = vsel %vm1769, %v1328, -inf
      %1843 = vmax.xlane.f32.xlu0 %v1842
      %v1844 = vpop.xlane.xlu0 %1843
      %v1845 = vsel %vm1769, %v1331, -inf
      %1846 = vmax.xlane.f32.xlu0 %v1845
      %v1847 = vpop.xlane.xlu0 %1846
      %v1848 = vsel %vm1769, %v1334, -inf
      %1849 = vmax.xlane.f32.xlu0 %v1848
      %v1850 = vpop.xlane.xlu0 %1849
      %v1851 = vsel %vm1769, %v1337, -inf
      %1852 = vmax.xlane.f32.xlu0 %v1851
      %v1853 = vpop.xlane.xlu0 %1852
      %v1854 = vsel %vm1769, %v1340, -inf
      %1855 = vmax.xlane.f32.xlu0 %v1854
      %v1856 = vpop.xlane.xlu0 %1855
      %v1857 = vsel %vm1769, %v1343, -inf
      %1858 = vmax.xlane.f32.xlu0 %v1857
      %v1859 = vpop.xlane.xlu0 %1858
      %v1860 = vsel %vm1769, %v1346, -inf
      %1861 = vmax.xlane.f32.xlu0 %v1860
      %v1862 = vpop.xlane.xlu0 %1861
      %v1863 = vsel %vm1769, %v1349, -inf
      %1864 = vmax.xlane.f32.xlu0 %v1863
      %v1865 = vpop.xlane.xlu0 %1864
      %v1866 = vsub.f32 %v1256, %v1772
      %v1867 = vsub.f32 %v1259, %v1775
      %v1868 = vsub.f32 %v1262, %v1778
      %v1869 = vsub.f32 %v1265, %v1781
      %v1870 = vsub.f32 %v1268, %v1784
      %v1871 = vsub.f32 %v1271, %v1787
      %v1872 = vsub.f32 %v1274, %v1790
      %v1873 = vsub.f32 %v1277, %v1793
      %v1874 = vsub.f32 %v1280, %v1796
      %v1875 = vsub.f32 %v1283, %v1799
      %v1876 = vsub.f32 %v1286, %v1802
      %v1877 = vsub.f32 %v1289, %v1805
      %v1878 = vsub.f32 %v1292, %v1808
      %v1879 = vsub.f32 %v1295, %v1811
      %v1880 = vsub.f32 %v1298, %v1814
      %v1881 = vsub.f32 %v1301, %v1817
      %v1882 = vsub.f32 %v1304, %v1820
      %v1883 = vsub.f32 %v1307, %v1823
      %v1884 = vsub.f32 %v1310, %v1826
      %v1885 = vsub.f32 %v1313, %v1829
      %v1886 = vsub.f32 %v1316, %v1832
      %v1887 = vsub.f32 %v1319, %v1835
      %v1888 = vsub.f32 %v1322, %v1838
      %v1889 = vsub.f32 %v1325, %v1841
      %v1890 = vsub.f32 %v1328, %v1844
      %v1891 = vsub.f32 %v1331, %v1847
      %v1892 = vsub.f32 %v1334, %v1850
      %v1893 = vsub.f32 %v1337, %v1853
      %v1894 = vsub.f32 %v1340, %v1856
      %v1895 = vsub.f32 %v1343, %v1859
      %v1896 = vsub.f32 %v1346, %v1862
      %v1897 = vsub.f32 %v1349, %v1865
      %v1898 = vmul.f32 %v1866, 1.442695
      %v1899 = vpow.pop %v1898
      %v1900 = vmul.f32 %v1867, 1.442695
      %v1901 = vpow.pop %v1900
      %v1902 = vmul.f32 %v1868, 1.442695
      %v1903 = vpow.pop %v1902
      %v1904 = vmul.f32 %v1869, 1.442695
      %v1905 = vpow.pop %v1904
      %v1906 = vmul.f32 %v1870, 1.442695
      %v1907 = vpow.pop %v1906
      %v1908 = vmul.f32 %v1871, 1.442695
      %v1909 = vpow.pop %v1908
      %v1910 = vmul.f32 %v1872, 1.442695
      %v1911 = vpow.pop %v1910
      %v1912 = vmul.f32 %v1873, 1.442695
      %v1913 = vpow.pop %v1912
      %v1914 = vmul.f32 %v1874, 1.442695
      %v1915 = vpow.pop %v1914
      %v1916 = vmul.f32 %v1875, 1.442695
      %v1917 = vpow.pop %v1916
      %v1918 = vmul.f32 %v1876, 1.442695
      %v1919 = vpow.pop %v1918
      %v1920 = vmul.f32 %v1877, 1.442695
      %v1921 = vpow.pop %v1920
      %v1922 = vmul.f32 %v1878, 1.442695
      %v1923 = vpow.pop %v1922
      %v1924 = vmul.f32 %v1879, 1.442695
      %v1925 = vpow.pop %v1924
      %v1926 = vmul.f32 %v1880, 1.442695
      %v1927 = vpow.pop %v1926
      %v1928 = vmul.f32 %v1881, 1.442695
      %v1929 = vpow.pop %v1928
      %v1930 = vmul.f32 %v1882, 1.442695
      %v1931 = vpow.pop %v1930
      %v1932 = vmul.f32 %v1883, 1.442695
      %v1933 = vpow.pop %v1932
      %v1934 = vmul.f32 %v1884, 1.442695
      %v1935 = vpow.pop %v1934
      %v1936 = vmul.f32 %v1885, 1.442695
      %v1937 = vpow.pop %v1936
      %v1938 = vmul.f32 %v1886, 1.442695
      %v1939 = vpow.pop %v1938
      %v1940 = vmul.f32 %v1887, 1.442695
      %v1941 = vpow.pop %v1940
      %v1942 = vmul.f32 %v1888, 1.442695
      %v1943 = vpow.pop %v1942
      %v1944 = vmul.f32 %v1889, 1.442695
      %v1945 = vpow.pop %v1944
      %v1946 = vmul.f32 %v1890, 1.442695
      %v1947 = vpow.pop %v1946
      %v1948 = vmul.f32 %v1891, 1.442695
      %v1949 = vpow.pop %v1948
      %v1950 = vmul.f32 %v1892, 1.442695
      %v1951 = vpow.pop %v1950
      %v1952 = vmul.f32 %v1893, 1.442695
      %v1953 = vpow.pop %v1952
      %v1954 = vmul.f32 %v1894, 1.442695
      %v1955 = vpow.pop %v1954
      %v1956 = vmul.f32 %v1895, 1.442695
      %v1957 = vpow.pop %v1956
      %v1958 = vmul.f32 %v1896, 1.442695
      %v1959 = vpow.pop %v1958
      %v1960 = vmul.f32 %v1897, 1.442695
      %v1961 = vpow.pop %v1960
      %vm1962 = vcmask 785920
      %v1963 = vsel %vm1962, %v1256, -inf
      %1964 = vmax.xlane.f32.xlu0 %v1963
      %v1965 = vpop.xlane.xlu0 %1964
      %v1966 = vsel %vm1962, %v1259, -inf
      %1967 = vmax.xlane.f32.xlu0 %v1966
      %v1968 = vpop.xlane.xlu0 %1967
      %v1969 = vsel %vm1962, %v1262, -inf
      %1970 = vmax.xlane.f32.xlu0 %v1969
      %v1971 = vpop.xlane.xlu0 %1970
      %v1972 = vsel %vm1962, %v1265, -inf
      %1973 = vmax.xlane.f32.xlu0 %v1972
      %v1974 = vpop.xlane.xlu0 %1973
      %v1975 = vsel %vm1962, %v1268, -inf
      %1976 = vmax.xlane.f32.xlu0 %v1975
      %v1977 = vpop.xlane.xlu0 %1976
      %v1978 = vsel %vm1962, %v1271, -inf
      %1979 = vmax.xlane.f32.xlu0 %v1978
      %v1980 = vpop.xlane.xlu0 %1979
      %v1981 = vsel %vm1962, %v1274, -inf
      %1982 = vmax.xlane.f32.xlu0 %v1981
      %v1983 = vpop.xlane.xlu0 %1982
      %v1984 = vsel %vm1962, %v1277, -inf
      %1985 = vmax.xlane.f32.xlu0 %v1984
      %v1986 = vpop.xlane.xlu0 %1985
      %v1987 = vsel %vm1962, %v1280, -inf
      %1988 = vmax.xlane.f32.xlu0 %v1987
      %v1989 = vpop.xlane.xlu0 %1988
      %v1990 = vsel %vm1962, %v1283, -inf
      %1991 = vmax.xlane.f32.xlu0 %v1990
      %v1992 = vpop.xlane.xlu0 %1991
      %v1993 = vsel %vm1962, %v1286, -inf
      %1994 = vmax.xlane.f32.xlu0 %v1993
      %v1995 = vpop.xlane.xlu0 %1994
      %v1996 = vsel %vm1962, %v1289, -inf
      %1997 = vmax.xlane.f32.xlu0 %v1996
      %v1998 = vpop.xlane.xlu0 %1997
      %v1999 = vsel %vm1962, %v1292, -inf
      %2000 = vmax.xlane.f32.xlu0 %v1999
      %v2001 = vpop.xlane.xlu0 %2000
      %v2002 = vsel %vm1962, %v1295, -inf
      %2003 = vmax.xlane.f32.xlu0 %v2002
      %v2004 = vpop.xlane.xlu0 %2003
      %v2005 = vsel %vm1962, %v1298, -inf
      %2006 = vmax.xlane.f32.xlu0 %v2005
      %v2007 = vpop.xlane.xlu0 %2006
      %v2008 = vsel %vm1962, %v1301, -inf
      %2009 = vmax.xlane.f32.xlu0 %v2008
      %v2010 = vpop.xlane.xlu0 %2009
      %v2011 = vsel %vm1962, %v1304, -inf
      %2012 = vmax.xlane.f32.xlu0 %v2011
      %v2013 = vpop.xlane.xlu0 %2012
      %v2014 = vsel %vm1962, %v1307, -inf
      %2015 = vmax.xlane.f32.xlu0 %v2014
      %v2016 = vpop.xlane.xlu0 %2015
      %v2017 = vsel %vm1962, %v1310, -inf
      %2018 = vmax.xlane.f32.xlu0 %v2017
      %v2019 = vpop.xlane.xlu0 %2018
      %v2020 = vsel %vm1962, %v1313, -inf
      %2021 = vmax.xlane.f32.xlu0 %v2020
      %v2022 = vpop.xlane.xlu0 %2021
      %v2023 = vsel %vm1962, %v1316, -inf
      %2024 = vmax.xlane.f32.xlu0 %v2023
      %v2025 = vpop.xlane.xlu0 %2024
      %v2026 = vsel %vm1962, %v1319, -inf
      %2027 = vmax.xlane.f32.xlu0 %v2026
      %v2028 = vpop.xlane.xlu0 %2027
      %v2029 = vsel %vm1962, %v1322, -inf
      %2030 = vmax.xlane.f32.xlu0 %v2029
      %v2031 = vpop.xlane.xlu0 %2030
      %v2032 = vsel %vm1962, %v1325, -inf
      %2033 = vmax.xlane.f32.xlu0 %v2032
      %v2034 = vpop.xlane.xlu0 %2033
      %v2035 = vsel %vm1962, %v1328, -inf
      %2036 = vmax.xlane.f32.xlu0 %v2035
      %v2037 = vpop.xlane.xlu0 %2036
      %v2038 = vsel %vm1962, %v1331, -inf
      %2039 = vmax.xlane.f32.xlu0 %v2038
      %v2040 = vpop.xlane.xlu0 %2039
      %v2041 = vsel %vm1962, %v1334, -inf
      %2042 = vmax.xlane.f32.xlu0 %v2041
      %v2043 = vpop.xlane.xlu0 %2042
      %v2044 = vsel %vm1962, %v1337, -inf
      %2045 = vmax.xlane.f32.xlu0 %v2044
      %v2046 = vpop.xlane.xlu0 %2045
      %v2047 = vsel %vm1962, %v1340, -inf
      %2048 = vmax.xlane.f32.xlu0 %v2047
      %v2049 = vpop.xlane.xlu0 %2048
      %v2050 = vsel %vm1962, %v1343, -inf
      %2051 = vmax.xlane.f32.xlu0 %v2050
      %v2052 = vpop.xlane.xlu0 %2051
      %v2053 = vsel %vm1962, %v1346, -inf
      %2054 = vmax.xlane.f32.xlu0 %v2053
      %v2055 = vpop.xlane.xlu0 %2054
      %v2056 = vsel %vm1962, %v1349, -inf
      %2057 = vmax.xlane.f32.xlu0 %v2056
      %v2058 = vpop.xlane.xlu0 %2057
      %v2059 = vsub.f32 %v1256, %v1965
      %v2060 = vsub.f32 %v1259, %v1968
      %v2061 = vsub.f32 %v1262, %v1971
      %v2062 = vsub.f32 %v1265, %v1974
      %v2063 = vsub.f32 %v1268, %v1977
      %v2064 = vsub.f32 %v1271, %v1980
      %v2065 = vsub.f32 %v1274, %v1983
      %v2066 = vsub.f32 %v1277, %v1986
      %v2067 = vsub.f32 %v1280, %v1989
      %v2068 = vsub.f32 %v1283, %v1992
      %v2069 = vsub.f32 %v1286, %v1995
      %v2070 = vsub.f32 %v1289, %v1998
      %v2071 = vsub.f32 %v1292, %v2001
      %v2072 = vsub.f32 %v1295, %v2004
      %v2073 = vsub.f32 %v1298, %v2007
      %v2074 = vsub.f32 %v1301, %v2010
      %v2075 = vsub.f32 %v1304, %v2013
      %v2076 = vsub.f32 %v1307, %v2016
      %v2077 = vsub.f32 %v1310, %v2019
      %v2078 = vsub.f32 %v1313, %v2022
      %v2079 = vsub.f32 %v1316, %v2025
      %v2080 = vsub.f32 %v1319, %v2028
      %v2081 = vsub.f32 %v1322, %v2031
      %v2082 = vsub.f32 %v1325, %v2034
      %v2083 = vsub.f32 %v1328, %v2037
      %v2084 = vsub.f32 %v1331, %v2040
      %v2085 = vsub.f32 %v1334, %v2043
      %v2086 = vsub.f32 %v1337, %v2046
      %v2087 = vsub.f32 %v1340, %v2049
      %v2088 = vsub.f32 %v1343, %v2052
      %v2089 = vsub.f32 %v1346, %v2055
      %v2090 = vsub.f32 %v1349, %v2058
      %v2091 = vmul.f32 %v2059, 1.442695
      %v2092 = vpow.pop %v2091
      %v2093 = vmul.f32 %v2060, 1.442695
      %v2094 = vpow.pop %v2093
      %v2095 = vmul.f32 %v2061, 1.442695
      %v2096 = vpow.pop %v2095
      %v2097 = vmul.f32 %v2062, 1.442695
      %v2098 = vpow.pop %v2097
      %v2099 = vmul.f32 %v2063, 1.442695
      %v2100 = vpow.pop %v2099
      %v2101 = vmul.f32 %v2064, 1.442695
      %v2102 = vpow.pop %v2101
      %v2103 = vmul.f32 %v2065, 1.442695
      %v2104 = vpow.pop %v2103
      %v2105 = vmul.f32 %v2066, 1.442695
      %v2106 = vpow.pop %v2105
      %v2107 = vmul.f32 %v2067, 1.442695
      %v2108 = vpow.pop %v2107
      %v2109 = vmul.f32 %v2068, 1.442695
      %v2110 = vpow.pop %v2109
      %v2111 = vmul.f32 %v2069, 1.442695
      %v2112 = vpow.pop %v2111
      %v2113 = vmul.f32 %v2070, 1.442695
      %v2114 = vpow.pop %v2113
      %v2115 = vmul.f32 %v2071, 1.442695
      %v2116 = vpow.pop %v2115
      %v2117 = vmul.f32 %v2072, 1.442695
      %v2118 = vpow.pop %v2117
      %v2119 = vmul.f32 %v2073, 1.442695
      %v2120 = vpow.pop %v2119
      %v2121 = vmul.f32 %v2074, 1.442695
      %v2122 = vpow.pop %v2121
      %v2123 = vmul.f32 %v2075, 1.442695
      %v2124 = vpow.pop %v2123
      %v2125 = vmul.f32 %v2076, 1.442695
      %v2126 = vpow.pop %v2125
      %v2127 = vmul.f32 %v2077, 1.442695
      %v2128 = vpow.pop %v2127
      %v2129 = vmul.f32 %v2078, 1.442695
      %v2130 = vpow.pop %v2129
      %v2131 = vmul.f32 %v2079, 1.442695
      %v2132 = vpow.pop %v2131
      %v2133 = vmul.f32 %v2080, 1.442695
      %v2134 = vpow.pop %v2133
      %v2135 = vmul.f32 %v2081, 1.442695
      %v2136 = vpow.pop %v2135
      %v2137 = vmul.f32 %v2082, 1.442695
      %v2138 = vpow.pop %v2137
      %v2139 = vmul.f32 %v2083, 1.442695
      %v2140 = vpow.pop %v2139
      %v2141 = vmul.f32 %v2084, 1.442695
      %v2142 = vpow.pop %v2141
      %v2143 = vmul.f32 %v2085, 1.442695
      %v2144 = vpow.pop %v2143
      %v2145 = vmul.f32 %v2086, 1.442695
      %v2146 = vpow.pop %v2145
      %v2147 = vmul.f32 %v2087, 1.442695
      %v2148 = vpow.pop %v2147
      %v2149 = vmul.f32 %v2088, 1.442695
      %v2150 = vpow.pop %v2149
      %v2151 = vmul.f32 %v2089, 1.442695
      %v2152 = vpow.pop %v2151
      %v2153 = vmul.f32 %v2090, 1.442695
      %v2154 = vpow.pop %v2153
      %vm2155 = vcmask 1048320
      %v2156 = vsel %vm2155, %v1256, -inf
      %2157 = vmax.xlane.f32.xlu0 %v2156
      %v2158 = vpop.xlane.xlu0 %2157
      %v2159 = vsel %vm2155, %v1259, -inf
      %2160 = vmax.xlane.f32.xlu0 %v2159
      %v2161 = vpop.xlane.xlu0 %2160
      %v2162 = vsel %vm2155, %v1262, -inf
      %2163 = vmax.xlane.f32.xlu0 %v2162
      %v2164 = vpop.xlane.xlu0 %2163
      %v2165 = vsel %vm2155, %v1265, -inf
      %2166 = vmax.xlane.f32.xlu0 %v2165
      %v2167 = vpop.xlane.xlu0 %2166
      %v2168 = vsel %vm2155, %v1268, -inf
      %2169 = vmax.xlane.f32.xlu0 %v2168
      %v2170 = vpop.xlane.xlu0 %2169
      %v2171 = vsel %vm2155, %v1271, -inf
      %2172 = vmax.xlane.f32.xlu0 %v2171
      %v2173 = vpop.xlane.xlu0 %2172
      %v2174 = vsel %vm2155, %v1274, -inf
      %2175 = vmax.xlane.f32.xlu0 %v2174
      %v2176 = vpop.xlane.xlu0 %2175
      %v2177 = vsel %vm2155, %v1277, -inf
      %2178 = vmax.xlane.f32.xlu0 %v2177
      %v2179 = vpop.xlane.xlu0 %2178
      %v2180 = vsel %vm2155, %v1280, -inf
      %2181 = vmax.xlane.f32.xlu0 %v2180
      %v2182 = vpop.xlane.xlu0 %2181
      %v2183 = vsel %vm2155, %v1283, -inf
      %2184 = vmax.xlane.f32.xlu0 %v2183
      %v2185 = vpop.xlane.xlu0 %2184
      %v2186 = vsel %vm2155, %v1286, -inf
      %2187 = vmax.xlane.f32.xlu0 %v2186
      %v2188 = vpop.xlane.xlu0 %2187
      %v2189 = vsel %vm2155, %v1289, -inf
      %2190 = vmax.xlane.f32.xlu0 %v2189
      %v2191 = vpop.xlane.xlu0 %2190
      %v2192 = vsel %vm2155, %v1292, -inf
      %2193 = vmax.xlane.f32.xlu0 %v2192
      %v2194 = vpop.xlane.xlu0 %2193
      %v2195 = vsel %vm2155, %v1295, -inf
      %2196 = vmax.xlane.f32.xlu0 %v2195
      %v2197 = vpop.xlane.xlu0 %2196
      %v2198 = vsel %vm2155, %v1298, -inf
      %2199 = vmax.xlane.f32.xlu0 %v2198
      %v2200 = vpop.xlane.xlu0 %2199
      %v2201 = vsel %vm2155, %v1301, -inf
      %2202 = vmax.xlane.f32.xlu0 %v2201
      %v2203 = vpop.xlane.xlu0 %2202
      %v2204 = vsel %vm2155, %v1304, -inf
      %2205 = vmax.xlane.f32.xlu0 %v2204
      %v2206 = vpop.xlane.xlu0 %2205
      %v2207 = vsel %vm2155, %v1307, -inf
      %2208 = vmax.xlane.f32.xlu0 %v2207
      %v2209 = vpop.xlane.xlu0 %2208
      %v2210 = vsel %vm2155, %v1310, -inf
      %2211 = vmax.xlane.f32.xlu0 %v2210
      %v2212 = vpop.xlane.xlu0 %2211
      %v2213 = vsel %vm2155, %v1313, -inf
      %2214 = vmax.xlane.f32.xlu0 %v2213
      %v2215 = vpop.xlane.xlu0 %2214
      %v2216 = vsel %vm2155, %v1316, -inf
      %2217 = vmax.xlane.f32.xlu0 %v2216
      %v2218 = vpop.xlane.xlu0 %2217
      %v2219 = vsel %vm2155, %v1319, -inf
      %2220 = vmax.xlane.f32.xlu0 %v2219
      %v2221 = vpop.xlane.xlu0 %2220
      %v2222 = vsel %vm2155, %v1322, -inf
      %2223 = vmax.xlane.f32.xlu0 %v2222
      %v2224 = vpop.xlane.xlu0 %2223
      %v2225 = vsel %vm2155, %v1325, -inf
      %2226 = vmax.xlane.f32.xlu0 %v2225
      %v2227 = vpop.xlane.xlu0 %2226
      %v2228 = vsel %vm2155, %v1328, -inf
      %2229 = vmax.xlane.f32.xlu0 %v2228
      %v2230 = vpop.xlane.xlu0 %2229
      %v2231 = vsel %vm2155, %v1331, -inf
      %2232 = vmax.xlane.f32.xlu0 %v2231
      %v2233 = vpop.xlane.xlu0 %2232
      %v2234 = vsel %vm2155, %v1334, -inf
      %2235 = vmax.xlane.f32.xlu0 %v2234
      %v2236 = vpop.xlane.xlu0 %2235
      %v2237 = vsel %vm2155, %v1337, -inf
      %2238 = vmax.xlane.f32.xlu0 %v2237
      %v2239 = vpop.xlane.xlu0 %2238
      %v2240 = vsel %vm2155, %v1340, -inf
      %2241 = vmax.xlane.f32.xlu0 %v2240
      %v2242 = vpop.xlane.xlu0 %2241
      %v2243 = vsel %vm2155, %v1343, -inf
      %2244 = vmax.xlane.f32.xlu0 %v2243
      %v2245 = vpop.xlane.xlu0 %2244
      %v2246 = vsel %vm2155, %v1346, -inf
      %2247 = vmax.xlane.f32.xlu0 %v2246
      %v2248 = vpop.xlane.xlu0 %2247
      %v2249 = vsel %vm2155, %v1349, -inf
      %2250 = vmax.xlane.f32.xlu0 %v2249
      %v2251 = vpop.xlane.xlu0 %2250
      %v2252 = vsub.f32 %v1256, %v2158
      %v2253 = vsub.f32 %v1259, %v2161
      %v2254 = vsub.f32 %v1262, %v2164
      %v2255 = vsub.f32 %v1265, %v2167
      %v2256 = vsub.f32 %v1268, %v2170
      %v2257 = vsub.f32 %v1271, %v2173
      %v2258 = vsub.f32 %v1274, %v2176
      %v2259 = vsub.f32 %v1277, %v2179
      %v2260 = vsub.f32 %v1280, %v2182
      %v2261 = vsub.f32 %v1283, %v2185
      %v2262 = vsub.f32 %v1286, %v2188
      %v2263 = vsub.f32 %v1289, %v2191
      %v2264 = vsub.f32 %v1292, %v2194
      %v2265 = vsub.f32 %v1295, %v2197
      %v2266 = vsub.f32 %v1298, %v2200
      %v2267 = vsub.f32 %v1301, %v2203
      %v2268 = vsub.f32 %v1304, %v2206
      %v2269 = vsub.f32 %v1307, %v2209
      %v2270 = vsub.f32 %v1310, %v2212
      %v2271 = vsub.f32 %v1313, %v2215
      %v2272 = vsub.f32 %v1316, %v2218
      %v2273 = vsub.f32 %v1319, %v2221
      %v2274 = vsub.f32 %v1322, %v2224
      %v2275 = vsub.f32 %v1325, %v2227
      %v2276 = vsub.f32 %v1328, %v2230
      %v2277 = vsub.f32 %v1331, %v2233
      %v2278 = vsub.f32 %v1334, %v2236
      %v2279 = vsub.f32 %v1337, %v2239
      %v2280 = vsub.f32 %v1340, %v2242
      %v2281 = vsub.f32 %v1343, %v2245
      %v2282 = vsub.f32 %v1346, %v2248
      %v2283 = vsub.f32 %v1349, %v2251
      %v2284 = vmul.f32 %v2252, 1.442695
      %v2285 = vpow.pop %v2284
      %v2286 = vmul.f32 %v2253, 1.442695
      %v2287 = vpow.pop %v2286
      %v2288 = vmul.f32 %v2254, 1.442695
      %v2289 = vpow.pop %v2288
      %v2290 = vmul.f32 %v2255, 1.442695
      %v2291 = vpow.pop %v2290
      %v2292 = vmul.f32 %v2256, 1.442695
      %v2293 = vpow.pop %v2292
      %v2294 = vmul.f32 %v2257, 1.442695
      %v2295 = vpow.pop %v2294
      %v2296 = vmul.f32 %v2258, 1.442695
      %v2297 = vpow.pop %v2296
      %v2298 = vmul.f32 %v2259, 1.442695
      %v2299 = vpow.pop %v2298
      %v2300 = vmul.f32 %v2260, 1.442695
      %v2301 = vpow.pop %v2300
      %v2302 = vmul.f32 %v2261, 1.442695
      %v2303 = vpow.pop %v2302
      %v2304 = vmul.f32 %v2262, 1.442695
      %v2305 = vpow.pop %v2304
      %v2306 = vmul.f32 %v2263, 1.442695
      %v2307 = vpow.pop %v2306
      %v2308 = vmul.f32 %v2264, 1.442695
      %v2309 = vpow.pop %v2308
      %v2310 = vmul.f32 %v2265, 1.442695
      %v2311 = vpow.pop %v2310
      %v2312 = vmul.f32 %v2266, 1.442695
      %v2313 = vpow.pop %v2312
      %v2314 = vmul.f32 %v2267, 1.442695
      %v2315 = vpow.pop %v2314
      %v2316 = vmul.f32 %v2268, 1.442695
      %v2317 = vpow.pop %v2316
      %v2318 = vmul.f32 %v2269, 1.442695
      %v2319 = vpow.pop %v2318
      %v2320 = vmul.f32 %v2270, 1.442695
      %v2321 = vpow.pop %v2320
      %v2322 = vmul.f32 %v2271, 1.442695
      %v2323 = vpow.pop %v2322
      %v2324 = vmul.f32 %v2272, 1.442695
      %v2325 = vpow.pop %v2324
      %v2326 = vmul.f32 %v2273, 1.442695
      %v2327 = vpow.pop %v2326
      %v2328 = vmul.f32 %v2274, 1.442695
      %v2329 = vpow.pop %v2328
      %v2330 = vmul.f32 %v2275, 1.442695
      %v2331 = vpow.pop %v2330
      %v2332 = vmul.f32 %v2276, 1.442695
      %v2333 = vpow.pop %v2332
      %v2334 = vmul.f32 %v2277, 1.442695
      %v2335 = vpow.pop %v2334
      %v2336 = vmul.f32 %v2278, 1.442695
      %v2337 = vpow.pop %v2336
      %v2338 = vmul.f32 %v2279, 1.442695
      %v2339 = vpow.pop %v2338
      %v2340 = vmul.f32 %v2280, 1.442695
      %v2341 = vpow.pop %v2340
      %v2342 = vmul.f32 %v2281, 1.442695
      %v2343 = vpow.pop %v2342
      %v2344 = vmul.f32 %v2282, 1.442695
      %v2345 = vpow.pop %v2344
      %v2346 = vmul.f32 %v2283, 1.442695
      %v2347 = vpow.pop %v2346
      %v2348 = vsel %vm587, %v1706, %v1899
      %v2349 = vsel %vm587, %v1708, %v1901
      %v2350 = vsel %vm587, %v1710, %v1903
      %v2351 = vsel %vm587, %v1712, %v1905
      %v2352 = vsel %vm587, %v1714, %v1907
      %v2353 = vsel %vm587, %v1716, %v1909
      %v2354 = vsel %vm587, %v1718, %v1911
      %v2355 = vsel %vm587, %v1720, %v1913
      %v2356 = vsel %vm587, %v1722, %v1915
      %v2357 = vsel %vm587, %v1724, %v1917
      %v2358 = vsel %vm587, %v1726, %v1919
      %v2359 = vsel %vm587, %v1728, %v1921
      %v2360 = vsel %vm587, %v1730, %v1923
      %v2361 = vsel %vm587, %v1732, %v1925
      %v2362 = vsel %vm587, %v1734, %v1927
      %v2363 = vsel %vm587, %v1736, %v1929
      %v2364 = vsel %vm587, %v1738, %v1931
      %v2365 = vsel %vm587, %v1740, %v1933
      %v2366 = vsel %vm587, %v1742, %v1935
      %v2367 = vsel %vm587, %v1744, %v1937
      %v2368 = vsel %vm587, %v1746, %v1939
      %v2369 = vsel %vm587, %v1748, %v1941
      %v2370 = vsel %vm587, %v1750, %v1943
      %v2371 = vsel %vm587, %v1752, %v1945
      %v2372 = vsel %vm587, %v1754, %v1947
      %v2373 = vsel %vm587, %v1756, %v1949
      %v2374 = vsel %vm587, %v1758, %v1951
      %v2375 = vsel %vm587, %v1760, %v1953
      %v2376 = vsel %vm587, %v1762, %v1955
      %v2377 = vsel %vm587, %v1764, %v1957
      %v2378 = vsel %vm587, %v1766, %v1959
      %v2379 = vsel %vm587, %v1768, %v1961
      %v2380 = vsel %vm1028, %v2348, %v2092
      %v2381 = vsel %vm1028, %v2349, %v2094
      %v2382 = vsel %vm1028, %v2350, %v2096
      %v2383 = vsel %vm1028, %v2351, %v2098
      %v2384 = vsel %vm1028, %v2352, %v2100
      %v2385 = vsel %vm1028, %v2353, %v2102
      %v2386 = vsel %vm1028, %v2354, %v2104
      %v2387 = vsel %vm1028, %v2355, %v2106
      %v2388 = vsel %vm1028, %v2356, %v2108
      %v2389 = vsel %vm1028, %v2357, %v2110
      %v2390 = vsel %vm1028, %v2358, %v2112
      %v2391 = vsel %vm1028, %v2359, %v2114
      %v2392 = vsel %vm1028, %v2360, %v2116
      %v2393 = vsel %vm1028, %v2361, %v2118
      %v2394 = vsel %vm1028, %v2362, %v2120
      %v2395 = vsel %vm1028, %v2363, %v2122
      %v2396 = vsel %vm1028, %v2364, %v2124
      %v2397 = vsel %vm1028, %v2365, %v2126
      %v2398 = vsel %vm1028, %v2366, %v2128
      %v2399 = vsel %vm1028, %v2367, %v2130
      %v2400 = vsel %vm1028, %v2368, %v2132
      %v2401 = vsel %vm1028, %v2369, %v2134
      %v2402 = vsel %vm1028, %v2370, %v2136
      %v2403 = vsel %vm1028, %v2371, %v2138
      %v2404 = vsel %vm1028, %v2372, %v2140
      %v2405 = vsel %vm1028, %v2373, %v2142
      %v2406 = vsel %vm1028, %v2374, %v2144
      %v2407 = vsel %vm1028, %v2375, %v2146
      %v2408 = vsel %vm1028, %v2376, %v2148
      %v2409 = vsel %vm1028, %v2377, %v2150
      %v2410 = vsel %vm1028, %v2378, %v2152
      %v2411 = vsel %vm1028, %v2379, %v2154
      %vm2412 = vcmask 785408
      %v2413 = vsel %vm2412, %v2380, %v2285
      %v2414 = vsel %vm2412, %v2381, %v2287
      %v2415 = vsel %vm2412, %v2382, %v2289
      %v2416 = vsel %vm2412, %v2383, %v2291
      %v2417 = vsel %vm2412, %v2384, %v2293
      %v2418 = vsel %vm2412, %v2385, %v2295
      %v2419 = vsel %vm2412, %v2386, %v2297
      %v2420 = vsel %vm2412, %v2387, %v2299
      %v2421 = vsel %vm2412, %v2388, %v2301
      %v2422 = vsel %vm2412, %v2389, %v2303
      %v2423 = vsel %vm2412, %v2390, %v2305
      %v2424 = vsel %vm2412, %v2391, %v2307
      %v2425 = vsel %vm2412, %v2392, %v2309
      %v2426 = vsel %vm2412, %v2393, %v2311
      %v2427 = vsel %vm2412, %v2394, %v2313
      %v2428 = vsel %vm2412, %v2395, %v2315
      %v2429 = vsel %vm2412, %v2396, %v2317
      %v2430 = vsel %vm2412, %v2397, %v2319
      %v2431 = vsel %vm2412, %v2398, %v2321
      %v2432 = vsel %vm2412, %v2399, %v2323
      %v2433 = vsel %vm2412, %v2400, %v2325
      %v2434 = vsel %vm2412, %v2401, %v2327
      %v2435 = vsel %vm2412, %v2402, %v2329
      %v2436 = vsel %vm2412, %v2403, %v2331
      %v2437 = vsel %vm2412, %v2404, %v2333
      %v2438 = vsel %vm2412, %v2405, %v2335
      %v2439 = vsel %vm2412, %v2406, %v2337
      %v2440 = vsel %vm2412, %v2407, %v2339
      %v2441 = vsel %vm2412, %v2408, %v2341
      %v2442 = vsel %vm2412, %v2409, %v2343
      %v2443 = vsel %vm2412, %v2410, %v2345
      %v2444 = vsel %vm2412, %v2411, %v2347
      %v2445 = vld [vmem:[%s6] sm:$0xff]
      %v2446 = vld [vmem:[%s6 + $0x8] sm:$0xff]
      %v2447 = vld [vmem:[%s6 + $0x10] sm:$0xff]
      %v2448 = vld [vmem:[%s6 + $0x18] sm:$0xff]
      %v2449 = vld [vmem:[%s6 + $0x20] sm:$0xff]
      %v2450 = vld [vmem:[%s6 + $0x28] sm:$0xff]
      %v2451 = vld [vmem:[%s6 + $0x30] sm:$0xff]
      %v2452 = vld [vmem:[%s6 + $0x38] sm:$0xff]
      %v2453 = vld [vmem:[%s6 + $0x40] sm:$0xff]
      %v2454 = vld [vmem:[%s6 + $0x48] sm:$0xff]
      %v2455 = vld [vmem:[%s6 + $0x50] sm:$0xff]
      %v2456 = vld [vmem:[%s6 + $0x58] sm:$0xff]
      %v2457 = vld [vmem:[%s6 + $0x60] sm:$0xff]
      %v2458 = vld [vmem:[%s6 + $0x68] sm:$0xff]
      %v2459 = vld [vmem:[%s6 + $0x70] sm:$0xff]
      %v2460 = vld [vmem:[%s6 + $0x78] sm:$0xff]
      %2461 = vmatpush.msra.mxu0 %v2460
      %2462 = vmatpush.msra.mxu0 %v2459
      %2463 = vmatpush.msra.mxu0 %v2458
      %2464 = vmatpush.msra.mxu0 %v2457
      %2465 = vmatpush.msra.mxu0 %v2456
      %2466 = vmatpush.msra.mxu0 %v2455
      %2467 = vmatpush.msra.mxu0 %v2454
      %2468 = vmatpush.msra.mxu0 %v2453
      %2469 = vmatpush.msra.mxu0 %v2452
      %2470 = vmatpush.msra.mxu0 %v2451
      %2471 = vmatpush.msra.mxu0 %v2450
      %2472 = vmatpush.msra.mxu0 %v2449
      %2473 = vmatpush.msra.mxu0 %v2448
      %2474 = vmatpush.msra.mxu0 %v2447
      %2475 = vmatpush.msra.mxu0 %v2446
      %2476 = vmatpush.msra.mxu0 %v2445
      %2477 = vmatmul.f32.gmra.mxu0 %v2413
      %v2478 = vpop.f32.mrf.mxu0
      %v2479 = vadd.f32 0.0, %v2478
      %2480 = vmatmul.f32.gmra.mxu0 %v2414
      %v2481 = vpop.f32.mrf.mxu0
      %v2482 = vadd.f32 0.0, %v2481
      %2483 = vmatmul.f32.gmra.mxu0 %v2415
      %v2484 = vpop.f32.mrf.mxu0
      %v2485 = vadd.f32 0.0, %v2484
      %2486 = vmatmul.f32.gmra.mxu0 %v2416
      %v2487 = vpop.f32.mrf.mxu0
      %v2488 = vadd.f32 0.0, %v2487
      %2489 = vmatmul.f32.gmra.mxu0 %v2417
      %v2490 = vpop.f32.mrf.mxu0
      %v2491 = vadd.f32 0.0, %v2490
      %2492 = vmatmul.f32.gmra.mxu0 %v2418
      %v2493 = vpop.f32.mrf.mxu0
      %v2494 = vadd.f32 0.0, %v2493
      %2495 = vmatmul.f32.gmra.mxu0 %v2419
      %v2496 = vpop.f32.mrf.mxu0
      %v2497 = vadd.f32 0.0, %v2496
      %2498 = vmatmul.f32.gmra.mxu0 %v2420
      %v2499 = vpop.f32.mrf.mxu0
      %v2500 = vadd.f32 0.0, %v2499
      %2501 = vmatmul.f32.gmra.mxu0 %v2421
      %v2502 = vpop.f32.mrf.mxu0
      %v2503 = vadd.f32 0.0, %v2502
      %2504 = vmatmul.f32.gmra.mxu0 %v2422
      %v2505 = vpop.f32.mrf.mxu0
      %v2506 = vadd.f32 0.0, %v2505
      %2507 = vmatmul.f32.gmra.mxu0 %v2423
      %v2508 = vpop.f32.mrf.mxu0
      %v2509 = vadd.f32 0.0, %v2508
      %2510 = vmatmul.f32.gmra.mxu0 %v2424
      %v2511 = vpop.f32.mrf.mxu0
      %v2512 = vadd.f32 0.0, %v2511
      %2513 = vmatmul.f32.gmra.mxu0 %v2425
      %v2514 = vpop.f32.mrf.mxu0
      %v2515 = vadd.f32 0.0, %v2514
      %2516 = vmatmul.f32.gmra.mxu0 %v2426
      %v2517 = vpop.f32.mrf.mxu0
      %v2518 = vadd.f32 0.0, %v2517
      %2519 = vmatmul.f32.gmra.mxu0 %v2427
      %v2520 = vpop.f32.mrf.mxu0
      %v2521 = vadd.f32 0.0, %v2520
      %2522 = vmatmul.f32.gmra.mxu0 %v2428
      %v2523 = vpop.f32.mrf.mxu0
      %v2524 = vadd.f32 0.0, %v2523
      %2525 = vmatmul.f32.gmra.mxu0 %v2429
      %v2526 = vpop.f32.mrf.mxu0
      %v2527 = vadd.f32 0.0, %v2526
      %2528 = vmatmul.f32.gmra.mxu0 %v2430
      %v2529 = vpop.f32.mrf.mxu0
      %v2530 = vadd.f32 0.0, %v2529
      %2531 = vmatmul.f32.gmra.mxu0 %v2431
      %v2532 = vpop.f32.mrf.mxu0
      %v2533 = vadd.f32 0.0, %v2532
      %2534 = vmatmul.f32.gmra.mxu0 %v2432
      %v2535 = vpop.f32.mrf.mxu0
      %v2536 = vadd.f32 0.0, %v2535
      %2537 = vmatmul.f32.gmra.mxu0 %v2433
      %v2538 = vpop.f32.mrf.mxu0
      %v2539 = vadd.f32 0.0, %v2538
      %2540 = vmatmul.f32.gmra.mxu0 %v2434
      %v2541 = vpop.f32.mrf.mxu0
      %v2542 = vadd.f32 0.0, %v2541
      %2543 = vmatmul.f32.gmra.mxu0 %v2435
      %v2544 = vpop.f32.mrf.mxu0
      %v2545 = vadd.f32 0.0, %v2544
      %2546 = vmatmul.f32.gmra.mxu0 %v2436
      %v2547 = vpop.f32.mrf.mxu0
      %v2548 = vadd.f32 0.0, %v2547
      %2549 = vmatmul.f32.gmra.mxu0 %v2437
      %v2550 = vpop.f32.mrf.mxu0
      %v2551 = vadd.f32 0.0, %v2550
      %2552 = vmatmul.f32.gmra.mxu0 %v2438
      %v2553 = vpop.f32.mrf.mxu0
      %v2554 = vadd.f32 0.0, %v2553
      %2555 = vmatmul.f32.gmra.mxu0 %v2439
      %v2556 = vpop.f32.mrf.mxu0
      %v2557 = vadd.f32 0.0, %v2556
      %2558 = vmatmul.f32.gmra.mxu0 %v2440
      %v2559 = vpop.f32.mrf.mxu0
      %v2560 = vadd.f32 0.0, %v2559
      %2561 = vmatmul.f32.gmra.mxu0 %v2441
      %v2562 = vpop.f32.mrf.mxu0
      %v2563 = vadd.f32 0.0, %v2562
      %2564 = vmatmul.f32.gmra.mxu0 %v2442
      %v2565 = vpop.f32.mrf.mxu0
      %v2566 = vadd.f32 0.0, %v2565
      %2567 = vmatmul.f32.gmra.mxu0 %v2443
      %v2568 = vpop.f32.mrf.mxu0
      %v2569 = vadd.f32 0.0, %v2568
      %2570 = vmatmul.f32.gmra.mxu0 %v2444
      %v2571 = vpop.f32.mrf.mxu0
      %v2572 = vadd.f32 0.0, %v2571
      %2573 = vdwg.mxu0
      %v2574 = vrcp.pop %v2479
      %v2575 = vrcp.pop %v2482
      %v2576 = vrcp.pop %v2485
      %v2577 = vrcp.pop %v2488
      %v2578 = vrcp.pop %v2491
      %v2579 = vrcp.pop %v2494
      %v2580 = vrcp.pop %v2497
      %v2581 = vrcp.pop %v2500
      %v2582 = vrcp.pop %v2503
      %v2583 = vrcp.pop %v2506
      %v2584 = vrcp.pop %v2509
      %v2585 = vrcp.pop %v2512
      %v2586 = vrcp.pop %v2515
      %v2587 = vrcp.pop %v2518
      %v2588 = vrcp.pop %v2521
      %v2589 = vrcp.pop %v2524
      %v2590 = vrcp.pop %v2527
      %v2591 = vrcp.pop %v2530
      %v2592 = vrcp.pop %v2533
      %v2593 = vrcp.pop %v2536
      %v2594 = vrcp.pop %v2539
      %v2595 = vrcp.pop %v2542
      %v2596 = vrcp.pop %v2545
      %v2597 = vrcp.pop %v2548
      %v2598 = vrcp.pop %v2551
      %v2599 = vrcp.pop %v2554
      %v2600 = vrcp.pop %v2557
      %v2601 = vrcp.pop %v2560
      %v2602 = vrcp.pop %v2563
      %v2603 = vrcp.pop %v2566
      %v2604 = vrcp.pop %v2569
      %v2605 = vrcp.pop %v2572
      %v2606 = vld [vmem:[%s7] sm:$0xf]
      %vm2607 = vcmask 31744
      %v2609 = vsel %vm2607, %v2574, 0
      %v2612 = vsel %vm2607, %v2575, 0
      %v2615 = vsel %vm2607, %v2576, 0
      %v2618 = vsel %vm2607, %v2577, 0
      %v2621 = vsel %vm2607, %v2578, 0
      %v2624 = vsel %vm2607, %v2579, 0
      %v2627 = vsel %vm2607, %v2580, 0
      %v2630 = vsel %vm2607, %v2581, 0
      %v2633 = vsel %vm2607, %v2582, 0
      %v2636 = vsel %vm2607, %v2583, 0
      %v2639 = vsel %vm2607, %v2584, 0
      %v2642 = vsel %vm2607, %v2585, 0
      %v2645 = vsel %vm2607, %v2586, 0
      %v2648 = vsel %vm2607, %v2587, 0
      %v2651 = vsel %vm2607, %v2588, 0
      %v2654 = vsel %vm2607, %v2589, 0
      %v2657 = vsel %vm2607, %v2590, 0
      %v2660 = vsel %vm2607, %v2591, 0
      %v2663 = vsel %vm2607, %v2592, 0
      %v2666 = vsel %vm2607, %v2593, 0
      %v2669 = vsel %vm2607, %v2594, 0
      %v2672 = vsel %vm2607, %v2595, 0
      %v2675 = vsel %vm2607, %v2596, 0
      %v2678 = vsel %vm2607, %v2597, 0
      %v2681 = vsel %vm2607, %v2598, 0
      %v2684 = vsel %vm2607, %v2599, 0
      %v2687 = vsel %vm2607, %v2600, 0
      %v2690 = vsel %vm2607, %v2601, 0
      %v2693 = vsel %vm2607, %v2602, 0
      %v2696 = vsel %vm2607, %v2603, 0
      %v2699 = vsel %vm2607, %v2604, 0
      %v2702 = vsel %vm2607, %v2605, 0
      %vm2704 = vcmask 1043456
      %v2706 = vsel %vm2704, %v2606, 0
      %2708 = vmatpush.msra.mxu0 0.0
      %2709 = vmatpush.msra.mxu0 0.0
      %2710 = vmatpush.msra.mxu0 0.0
      %2711 = vmatpush.msra.mxu0 0.0
      %2712 = vmatpush.msra.mxu0 0.0
      %2713 = vmatpush.msra.mxu0 0.0
      %2714 = vmatpush.msra.mxu0 0.0
      %2715 = vmatpush.msra.mxu0 0.0
      %2716 = vmatpush.msra.mxu0 0.0
      %2717 = vmatpush.msra.mxu0 0.0
      %2718 = vmatpush.msra.mxu0 0.0
      %2719 = vmatpush.msra.mxu0 0.0
      %2720 = vmatpush.msra.mxu0 0.0
      %2721 = vmatpush.msra.mxu0 0.0
      %2722 = vmatpush.msra.mxu0 0.0
      %2723 = vmatpush.msra.mxu0 %v2706
      %2724 = vmatmul.f32.gmra.mxu0 %v2609
      %v2725 = vpop.f32.mrf.mxu0
      %v2726 = vadd.f32 0.0, %v2725
      %2727 = vmatmul.f32.gmra.mxu0 %v2612
      %v2728 = vpop.f32.mrf.mxu0
      %v2729 = vadd.f32 0.0, %v2728
      %2730 = vmatmul.f32.gmra.mxu0 %v2615
      %v2731 = vpop.f32.mrf.mxu0
      %v2732 = vadd.f32 0.0, %v2731
      %2733 = vmatmul.f32.gmra.mxu0 %v2618
      %v2734 = vpop.f32.mrf.mxu0
      %v2735 = vadd.f32 0.0, %v2734
      %2736 = vmatmul.f32.gmra.mxu0 %v2621
      %v2737 = vpop.f32.mrf.mxu0
      %v2738 = vadd.f32 0.0, %v2737
      %2739 = vmatmul.f32.gmra.mxu0 %v2624
      %v2740 = vpop.f32.mrf.mxu0
      %v2741 = vadd.f32 0.0, %v2740
      %2742 = vmatmul.f32.gmra.mxu0 %v2627
      %v2743 = vpop.f32.mrf.mxu0
      %v2744 = vadd.f32 0.0, %v2743
      %2745 = vmatmul.f32.gmra.mxu0 %v2630
      %v2746 = vpop.f32.mrf.mxu0
      %v2747 = vadd.f32 0.0, %v2746
      %2748 = vmatmul.f32.gmra.mxu0 %v2633
      %v2749 = vpop.f32.mrf.mxu0
      %v2750 = vadd.f32 0.0, %v2749
      %2751 = vmatmul.f32.gmra.mxu0 %v2636
      %v2752 = vpop.f32.mrf.mxu0
      %v2753 = vadd.f32 0.0, %v2752
      %2754 = vmatmul.f32.gmra.mxu0 %v2639
      %v2755 = vpop.f32.mrf.mxu0
      %v2756 = vadd.f32 0.0, %v2755
      %2757 = vmatmul.f32.gmra.mxu0 %v2642
      %v2758 = vpop.f32.mrf.mxu0
      %v2759 = vadd.f32 0.0, %v2758
      %2760 = vmatmul.f32.gmra.mxu0 %v2645
      %v2761 = vpop.f32.mrf.mxu0
      %v2762 = vadd.f32 0.0, %v2761
      %2763 = vmatmul.f32.gmra.mxu0 %v2648
      %v2764 = vpop.f32.mrf.mxu0
      %v2765 = vadd.f32 0.0, %v2764
      %2766 = vmatmul.f32.gmra.mxu0 %v2651
      %v2767 = vpop.f32.mrf.mxu0
      %v2768 = vadd.f32 0.0, %v2767
      %2769 = vmatmul.f32.gmra.mxu0 %v2654
      %v2770 = vpop.f32.mrf.mxu0
      %v2771 = vadd.f32 0.0, %v2770
      %2772 = vmatmul.f32.gmra.mxu0 %v2657
      %v2773 = vpop.f32.mrf.mxu0
      %v2774 = vadd.f32 0.0, %v2773
      %2775 = vmatmul.f32.gmra.mxu0 %v2660
      %v2776 = vpop.f32.mrf.mxu0
      %v2777 = vadd.f32 0.0, %v2776
      %2778 = vmatmul.f32.gmra.mxu0 %v2663
      %v2779 = vpop.f32.mrf.mxu0
      %v2780 = vadd.f32 0.0, %v2779
      %2781 = vmatmul.f32.gmra.mxu0 %v2666
      %v2782 = vpop.f32.mrf.mxu0
      %v2783 = vadd.f32 0.0, %v2782
      %2784 = vmatmul.f32.gmra.mxu0 %v2669
      %v2785 = vpop.f32.mrf.mxu0
      %v2786 = vadd.f32 0.0, %v2785
      %2787 = vmatmul.f32.gmra.mxu0 %v2672
      %v2788 = vpop.f32.mrf.mxu0
      %v2789 = vadd.f32 0.0, %v2788
      %2790 = vmatmul.f32.gmra.mxu0 %v2675
      %v2791 = vpop.f32.mrf.mxu0
      %v2792 = vadd.f32 0.0, %v2791
      %2793 = vmatmul.f32.gmra.mxu0 %v2678
      %v2794 = vpop.f32.mrf.mxu0
      %v2795 = vadd.f32 0.0, %v2794
      %2796 = vmatmul.f32.gmra.mxu0 %v2681
      %v2797 = vpop.f32.mrf.mxu0
      %v2798 = vadd.f32 0.0, %v2797
      %2799 = vmatmul.f32.gmra.mxu0 %v2684
      %v2800 = vpop.f32.mrf.mxu0
      %v2801 = vadd.f32 0.0, %v2800
      %2802 = vmatmul.f32.gmra.mxu0 %v2687
      %v2803 = vpop.f32.mrf.mxu0
      %v2804 = vadd.f32 0.0, %v2803
      %2805 = vmatmul.f32.gmra.mxu0 %v2690
      %v2806 = vpop.f32.mrf.mxu0
      %v2807 = vadd.f32 0.0, %v2806
      %2808 = vmatmul.f32.gmra.mxu0 %v2693
      %v2809 = vpop.f32.mrf.mxu0
      %v2810 = vadd.f32 0.0, %v2809
      %2811 = vmatmul.f32.gmra.mxu0 %v2696
      %v2812 = vpop.f32.mrf.mxu0
      %v2813 = vadd.f32 0.0, %v2812
      %2814 = vmatmul.f32.gmra.mxu0 %v2699
      %v2815 = vpop.f32.mrf.mxu0
      %v2816 = vadd.f32 0.0, %v2815
      %2817 = vmatmul.f32.gmra.mxu0 %v2702
      %v2818 = vpop.f32.mrf.mxu0
      %v2819 = vadd.f32 0.0, %v2818
      %2820 = vdwg.mxu0
      %v2821 = vmul.f32 %v2413, %v2726
      %v2822 = vmul.f32 %v2414, %v2729
      %v2823 = vmul.f32 %v2415, %v2732
      %v2824 = vmul.f32 %v2416, %v2735
      %v2825 = vmul.f32 %v2417, %v2738
      %v2826 = vmul.f32 %v2418, %v2741
      %v2827 = vmul.f32 %v2419, %v2744
      %v2828 = vmul.f32 %v2420, %v2747
      %v2829 = vmul.f32 %v2421, %v2750
      %v2830 = vmul.f32 %v2422, %v2753
      %v2831 = vmul.f32 %v2423, %v2756
      %v2832 = vmul.f32 %v2424, %v2759
      %v2833 = vmul.f32 %v2425, %v2762
      %v2834 = vmul.f32 %v2426, %v2765
      %v2835 = vmul.f32 %v2427, %v2768
      %v2836 = vmul.f32 %v2428, %v2771
      %v2837 = vmul.f32 %v2429, %v2774
      %v2838 = vmul.f32 %v2430, %v2777
      %v2839 = vmul.f32 %v2431, %v2780
      %v2840 = vmul.f32 %v2432, %v2783
      %v2841 = vmul.f32 %v2433, %v2786
      %v2842 = vmul.f32 %v2434, %v2789
      %v2843 = vmul.f32 %v2435, %v2792
      %v2844 = vmul.f32 %v2436, %v2795
      %v2845 = vmul.f32 %v2437, %v2798
      %v2846 = vmul.f32 %v2438, %v2801
      %v2847 = vmul.f32 %v2439, %v2804
      %v2848 = vmul.f32 %v2440, %v2807
      %v2849 = vmul.f32 %v2441, %v2810
      %v2850 = vmul.f32 %v2442, %v2813
      %v2851 = vmul.f32 %v2443, %v2816
      %v2852 = vmul.f32 %v2444, %v2819
      %2853 = vst [vmem:[%s507] sm:$0xff] %v2821
      %2854 = vst [vmem:[%s507 + $0x8] sm:$0xff] %v2822
      %2855 = vst [vmem:[%s507 + $0x10] sm:$0xff] %v2823
      %2856 = vst [vmem:[%s507 + $0x18] sm:$0xff] %v2824
      %2857 = vst [vmem:[%s507 + $0x20] sm:$0xff] %v2825
      %2858 = vst [vmem:[%s507 + $0x28] sm:$0xff] %v2826
      %2859 = vst [vmem:[%s507 + $0x30] sm:$0xff] %v2827
      %2860 = vst [vmem:[%s507 + $0x38] sm:$0xff] %v2828
      %2861 = vst [vmem:[%s507 + $0x40] sm:$0xff] %v2829
      %2862 = vst [vmem:[%s507 + $0x48] sm:$0xff] %v2830
      %2863 = vst [vmem:[%s507 + $0x50] sm:$0xff] %v2831
      %2864 = vst [vmem:[%s507 + $0x58] sm:$0xff] %v2832
      %2865 = vst [vmem:[%s507 + $0x60] sm:$0xff] %v2833
      %2866 = vst [vmem:[%s507 + $0x68] sm:$0xff] %v2834
      %2867 = vst [vmem:[%s507 + $0x70] sm:$0xff] %v2835
      %2868 = vst [vmem:[%s507 + $0x78] sm:$0xff] %v2836
      %2869 = vst [vmem:[%s507 + $0x80] sm:$0xff] %v2837
      %2870 = vst [vmem:[%s507 + $0x88] sm:$0xff] %v2838
      %2871 = vst [vmem:[%s507 + $0x90] sm:$0xff] %v2839
      %2872 = vst [vmem:[%s507 + $0x98] sm:$0xff] %v2840
      %2873 = vst [vmem:[%s507 + $0xa0] sm:$0xff] %v2841
      %2874 = vst [vmem:[%s507 + $0xa8] sm:$0xff] %v2842
      %2875 = vst [vmem:[%s507 + $0xb0] sm:$0xff] %v2843
      %2876 = vst [vmem:[%s507 + $0xb8] sm:$0xff] %v2844
      %2877 = vst [vmem:[%s507 + $0xc0] sm:$0xff] %v2845
      %2878 = vst [vmem:[%s507 + $0xc8] sm:$0xff] %v2846
      %2879 = vst [vmem:[%s507 + $0xd0] sm:$0xff] %v2847
      %2880 = vst [vmem:[%s507 + $0xd8] sm:$0xff] %v2848
      %2881 = vst [vmem:[%s507 + $0xe0] sm:$0xff] %v2849
      %2882 = vst [vmem:[%s507 + $0xe8] sm:$0xff] %v2850
      %2883 = vst [vmem:[%s507 + $0xf0] sm:$0xff] %v2851
      %2884 = vst [vmem:[%s507 + $0xf8] sm:$0xff] %v2852
      %v2885 = vld [vmem:[%s495] sm:$0xf]
      %v2886 = vld [vmem:[%s495 + $0x4] sm:$0xf]
      %v2887 = vld [vmem:[%s495 + $0x8] sm:$0xf]
      %v2888 = vld [vmem:[%s495 + $0xc] sm:$0xf]
      %v2889 = vld [vmem:[%s495 + $0x10] sm:$0xf]
      %v2890 = vld [vmem:[%s495 + $0x14] sm:$0xf]
      %v2891 = vld [vmem:[%s495 + $0x18] sm:$0xf]
      %v2892 = vld [vmem:[%s495 + $0x1c] sm:$0xf]
      %v2893 = vld [vmem:[%s495 + $0x20] sm:$0xf]
      %v2894 = vld [vmem:[%s495 + $0x24] sm:$0xf]
      %v2895 = vld [vmem:[%s495 + $0x28] sm:$0xf]
      %v2896 = vld [vmem:[%s495 + $0x2c] sm:$0xf]
      %v2897 = vld [vmem:[%s495 + $0x30] sm:$0xf]
      %v2898 = vld [vmem:[%s495 + $0x34] sm:$0xf]
      %v2899 = vld [vmem:[%s495 + $0x38] sm:$0xf]
      %v2900 = vld [vmem:[%s495 + $0x3c] sm:$0xf]
      %v2901 = vld [vmem:[%s495 + $0x40] sm:$0xf]
      %v2902 = vld [vmem:[%s495 + $0x44] sm:$0xf]
      %v2903 = vld [vmem:[%s495 + $0x48] sm:$0xf]
      %v2904 = vld [vmem:[%s495 + $0x4c] sm:$0xf]
      %v2905 = vld [vmem:[%s495 + $0x50] sm:$0xf]
      %v2906 = vld [vmem:[%s495 + $0x54] sm:$0xf]
      %v2907 = vld [vmem:[%s495 + $0x58] sm:$0xf]
      %v2908 = vld [vmem:[%s495 + $0x5c] sm:$0xf]
      %v2909 = vld [vmem:[%s495 + $0x60] sm:$0xf]
      %v2910 = vld [vmem:[%s495 + $0x64] sm:$0xf]
      %v2911 = vld [vmem:[%s495 + $0x68] sm:$0xf]
      %v2912 = vld [vmem:[%s495 + $0x6c] sm:$0xf]
      %v2913 = vld [vmem:[%s495 + $0x70] sm:$0xf]
      %v2914 = vld [vmem:[%s495 + $0x74] sm:$0xf]
      %v2915 = vld [vmem:[%s495 + $0x78] sm:$0xf]
      %v2916 = vld [vmem:[%s495 + $0x7c] sm:$0xf]
      %v2917 = vunpack.c.l.bf16 %v2885
      %v2918 = vunpack.c.l.bf16 %v2886
      %v2919 = vunpack.c.l.bf16 %v2887
      %v2920 = vunpack.c.l.bf16 %v2888
      %v2921 = vunpack.c.l.bf16 %v2889
      %v2922 = vunpack.c.l.bf16 %v2890
      %v2923 = vunpack.c.l.bf16 %v2891
      %v2924 = vunpack.c.l.bf16 %v2892
      %v2925 = vunpack.c.l.bf16 %v2893
      %v2926 = vunpack.c.l.bf16 %v2894
      %v2927 = vunpack.c.l.bf16 %v2895
      %v2928 = vunpack.c.l.bf16 %v2896
      %v2929 = vunpack.c.l.bf16 %v2897
      %v2930 = vunpack.c.l.bf16 %v2898
      %v2931 = vunpack.c.l.bf16 %v2899
      %v2932 = vunpack.c.l.bf16 %v2900
      %v2933 = vunpack.c.l.bf16 %v2901
      %v2934 = vunpack.c.l.bf16 %v2902
      %v2935 = vunpack.c.l.bf16 %v2903
      %v2936 = vunpack.c.l.bf16 %v2904
      %v2937 = vunpack.c.l.bf16 %v2905
      %v2938 = vunpack.c.l.bf16 %v2906
      %v2939 = vunpack.c.l.bf16 %v2907
      %v2940 = vunpack.c.l.bf16 %v2908
      %v2941 = vunpack.c.l.bf16 %v2909
      %v2942 = vunpack.c.l.bf16 %v2910
      %v2943 = vunpack.c.l.bf16 %v2911
      %v2944 = vunpack.c.l.bf16 %v2912
      %v2945 = vunpack.c.l.bf16 %v2913
      %v2946 = vunpack.c.l.bf16 %v2914
      %v2947 = vunpack.c.l.bf16 %v2915
      %v2948 = vunpack.c.l.bf16 %v2916
      %2981 = vrot.lane.b32.xlu0 %v2917, 32
      %v2982 = vpop.permute.xlu0 %2981
      %2983 = vrot.lane.b32.xlu0 %v2918, 32
      %v2984 = vpop.permute.xlu0 %2983
      %2985 = vrot.lane.b32.xlu0 %v2919, 32
      %v2986 = vpop.permute.xlu0 %2985
      %2987 = vrot.lane.b32.xlu0 %v2920, 32
      %v2988 = vpop.permute.xlu0 %2987
      %2989 = vrot.lane.b32.xlu0 %v2921, 32
      %v2990 = vpop.permute.xlu0 %2989
      %2991 = vrot.lane.b32.xlu0 %v2922, 32
      %v2992 = vpop.permute.xlu0 %2991
      %2993 = vrot.lane.b32.xlu0 %v2923, 32
      %v2994 = vpop.permute.xlu0 %2993
      %2995 = vrot.lane.b32.xlu0 %v2924, 32
      %v2996 = vpop.permute.xlu0 %2995
      %2997 = vrot.lane.b32.xlu0 %v2925, 32
      %v2998 = vpop.permute.xlu0 %2997
      %2999 = vrot.lane.b32.xlu0 %v2926, 32
      %v3000 = vpop.permute.xlu0 %2999
      %3001 = vrot.lane.b32.xlu0 %v2927, 32
      %v3002 = vpop.permute.xlu0 %3001
      %3003 = vrot.lane.b32.xlu0 %v2928, 32
      %v3004 = vpop.permute.xlu0 %3003
      %3005 = vrot.lane.b32.xlu0 %v2929, 32
      %v3006 = vpop.permute.xlu0 %3005
      %3007 = vrot.lane.b32.xlu0 %v2930, 32
      %v3008 = vpop.permute.xlu0 %3007
      %3009 = vrot.lane.b32.xlu0 %v2931, 32
      %v3010 = vpop.permute.xlu0 %3009
      %3011 = vrot.lane.b32.xlu0 %v2932, 32
      %v3012 = vpop.permute.xlu0 %3011
      %3013 = vrot.lane.b32.xlu0 %v2933, 32
      %v3014 = vpop.permute.xlu0 %3013
      %3015 = vrot.lane.b32.xlu0 %v2934, 32
      %v3016 = vpop.permute.xlu0 %3015
      %3017 = vrot.lane.b32.xlu0 %v2935, 32
      %v3018 = vpop.permute.xlu0 %3017
      %3019 = vrot.lane.b32.xlu0 %v2936, 32
      %v3020 = vpop.permute.xlu0 %3019
      %3021 = vrot.lane.b32.xlu0 %v2937, 32
      %v3022 = vpop.permute.xlu0 %3021
      %3023 = vrot.lane.b32.xlu0 %v2938, 32
      %v3024 = vpop.permute.xlu0 %3023
      %3025 = vrot.lane.b32.xlu0 %v2939, 32
      %v3026 = vpop.permute.xlu0 %3025
      %3027 = vrot.lane.b32.xlu0 %v2940, 32
      %v3028 = vpop.permute.xlu0 %3027
      %3029 = vrot.lane.b32.xlu0 %v2941, 32
      %v3030 = vpop.permute.xlu0 %3029
      %3031 = vrot.lane.b32.xlu0 %v2942, 32
      %v3032 = vpop.permute.xlu0 %3031
      %3033 = vrot.lane.b32.xlu0 %v2943, 32
      %v3034 = vpop.permute.xlu0 %3033
      %3035 = vrot.lane.b32.xlu0 %v2944, 32
      %v3036 = vpop.permute.xlu0 %3035
      %3037 = vrot.lane.b32.xlu0 %v2945, 32
      %v3038 = vpop.permute.xlu0 %3037
      %3039 = vrot.lane.b32.xlu0 %v2946, 32
      %v3040 = vpop.permute.xlu0 %3039
      %3041 = vrot.lane.b32.xlu0 %v2947, 32
      %v3042 = vpop.permute.xlu0 %3041
      %3043 = vrot.lane.b32.xlu0 %v2948, 32
      %v3044 = vpop.permute.xlu0 %3043
      %3077 = vrot.lane.b32.xlu0 %v2917, 64
      %v3078 = vpop.permute.xlu0 %3077
      %3079 = vrot.lane.b32.xlu0 %v2918, 64
      %v3080 = vpop.permute.xlu0 %3079
      %3081 = vrot.lane.b32.xlu0 %v2919, 64
      %v3082 = vpop.permute.xlu0 %3081
      %3083 = vrot.lane.b32.xlu0 %v2920, 64
      %v3084 = vpop.permute.xlu0 %3083
      %3085 = vrot.lane.b32.xlu0 %v2921, 64
      %v3086 = vpop.permute.xlu0 %3085
      %3087 = vrot.lane.b32.xlu0 %v2922, 64
      %v3088 = vpop.permute.xlu0 %3087
      %3089 = vrot.lane.b32.xlu0 %v2923, 64
      %v3090 = vpop.permute.xlu0 %3089
      %3091 = vrot.lane.b32.xlu0 %v2924, 64
      %v3092 = vpop.permute.xlu0 %3091
      %3093 = vrot.lane.b32.xlu0 %v2925, 64
      %v3094 = vpop.permute.xlu0 %3093
      %3095 = vrot.lane.b32.xlu0 %v2926, 64
      %v3096 = vpop.permute.xlu0 %3095
      %3097 = vrot.lane.b32.xlu0 %v2927, 64
      %v3098 = vpop.permute.xlu0 %3097
      %3099 = vrot.lane.b32.xlu0 %v2928, 64
      %v3100 = vpop.permute.xlu0 %3099
      %3101 = vrot.lane.b32.xlu0 %v2929, 64
      %v3102 = vpop.permute.xlu0 %3101
      %3103 = vrot.lane.b32.xlu0 %v2930, 64
      %v3104 = vpop.permute.xlu0 %3103
      %3105 = vrot.lane.b32.xlu0 %v2931, 64
      %v3106 = vpop.permute.xlu0 %3105
      %3107 = vrot.lane.b32.xlu0 %v2932, 64
      %v3108 = vpop.permute.xlu0 %3107
      %3109 = vrot.lane.b32.xlu0 %v2933, 64
      %v3110 = vpop.permute.xlu0 %3109
      %3111 = vrot.lane.b32.xlu0 %v2934, 64
      %v3112 = vpop.permute.xlu0 %3111
      %3113 = vrot.lane.b32.xlu0 %v2935, 64
      %v3114 = vpop.permute.xlu0 %3113
      %3115 = vrot.lane.b32.xlu0 %v2936, 64
      %v3116 = vpop.permute.xlu0 %3115
      %3117 = vrot.lane.b32.xlu0 %v2937, 64
      %v3118 = vpop.permute.xlu0 %3117
      %3119 = vrot.lane.b32.xlu0 %v2938, 64
      %v3120 = vpop.permute.xlu0 %3119
      %3121 = vrot.lane.b32.xlu0 %v2939, 64
      %v3122 = vpop.permute.xlu0 %3121
      %3123 = vrot.lane.b32.xlu0 %v2940, 64
      %v3124 = vpop.permute.xlu0 %3123
      %3125 = vrot.lane.b32.xlu0 %v2941, 64
      %v3126 = vpop.permute.xlu0 %3125
      %3127 = vrot.lane.b32.xlu0 %v2942, 64
      %v3128 = vpop.permute.xlu0 %3127
      %3129 = vrot.lane.b32.xlu0 %v2943, 64
      %v3130 = vpop.permute.xlu0 %3129
      %3131 = vrot.lane.b32.xlu0 %v2944, 64
      %v3132 = vpop.permute.xlu0 %3131
      %3133 = vrot.lane.b32.xlu0 %v2945, 64
      %v3134 = vpop.permute.xlu0 %3133
      %3135 = vrot.lane.b32.xlu0 %v2946, 64
      %v3136 = vpop.permute.xlu0 %3135
      %3137 = vrot.lane.b32.xlu0 %v2947, 64
      %v3138 = vpop.permute.xlu0 %3137
      %3139 = vrot.lane.b32.xlu0 %v2948, 64
      %v3140 = vpop.permute.xlu0 %3139
      %3173 = vrot.lane.b32.xlu0 %v2917, 96
      %v3174 = vpop.permute.xlu0 %3173
      %3175 = vrot.lane.b32.xlu0 %v2918, 96
      %v3176 = vpop.permute.xlu0 %3175
      %3177 = vrot.lane.b32.xlu0 %v2919, 96
      %v3178 = vpop.permute.xlu0 %3177
      %3179 = vrot.lane.b32.xlu0 %v2920, 96
      %v3180 = vpop.permute.xlu0 %3179
      %3181 = vrot.lane.b32.xlu0 %v2921, 96
      %v3182 = vpop.permute.xlu0 %3181
      %3183 = vrot.lane.b32.xlu0 %v2922, 96
      %v3184 = vpop.permute.xlu0 %3183
      %3185 = vrot.lane.b32.xlu0 %v2923, 96
      %v3186 = vpop.permute.xlu0 %3185
      %3187 = vrot.lane.b32.xlu0 %v2924, 96
      %v3188 = vpop.permute.xlu0 %3187
      %3189 = vrot.lane.b32.xlu0 %v2925, 96
      %v3190 = vpop.permute.xlu0 %3189
      %3191 = vrot.lane.b32.xlu0 %v2926, 96
      %v3192 = vpop.permute.xlu0 %3191
      %3193 = vrot.lane.b32.xlu0 %v2927, 96
      %v3194 = vpop.permute.xlu0 %3193
      %3195 = vrot.lane.b32.xlu0 %v2928, 96
      %v3196 = vpop.permute.xlu0 %3195
      %3197 = vrot.lane.b32.xlu0 %v2929, 96
      %v3198 = vpop.permute.xlu0 %3197
      %3199 = vrot.lane.b32.xlu0 %v2930, 96
      %v3200 = vpop.permute.xlu0 %3199
      %3201 = vrot.lane.b32.xlu0 %v2931, 96
      %v3202 = vpop.permute.xlu0 %3201
      %3203 = vrot.lane.b32.xlu0 %v2932, 96
      %v3204 = vpop.permute.xlu0 %3203
      %3205 = vrot.lane.b32.xlu0 %v2933, 96
      %v3206 = vpop.permute.xlu0 %3205
      %3207 = vrot.lane.b32.xlu0 %v2934, 96
      %v3208 = vpop.permute.xlu0 %3207
      %3209 = vrot.lane.b32.xlu0 %v2935, 96
      %v3210 = vpop.permute.xlu0 %3209
      %3211 = vrot.lane.b32.xlu0 %v2936, 96
      %v3212 = vpop.permute.xlu0 %3211
      %3213 = vrot.lane.b32.xlu0 %v2937, 96
      %v3214 = vpop.permute.xlu0 %3213
      %3215 = vrot.lane.b32.xlu0 %v2938, 96
      %v3216 = vpop.permute.xlu0 %3215
      %3217 = vrot.lane.b32.xlu0 %v2939, 96
      %v3218 = vpop.permute.xlu0 %3217
      %3219 = vrot.lane.b32.xlu0 %v2940, 96
      %v3220 = vpop.permute.xlu0 %3219
      %3221 = vrot.lane.b32.xlu0 %v2941, 96
      %v3222 = vpop.permute.xlu0 %3221
      %3223 = vrot.lane.b32.xlu0 %v2942, 96
      %v3224 = vpop.permute.xlu0 %3223
      %3225 = vrot.lane.b32.xlu0 %v2943, 96
      %v3226 = vpop.permute.xlu0 %3225
      %3227 = vrot.lane.b32.xlu0 %v2944, 96
      %v3228 = vpop.permute.xlu0 %3227
      %3229 = vrot.lane.b32.xlu0 %v2945, 96
      %v3230 = vpop.permute.xlu0 %3229
      %3231 = vrot.lane.b32.xlu0 %v2946, 96
      %v3232 = vpop.permute.xlu0 %3231
      %3233 = vrot.lane.b32.xlu0 %v2947, 96
      %v3234 = vpop.permute.xlu0 %3233
      %3235 = vrot.lane.b32.xlu0 %v2948, 96
      %v3236 = vpop.permute.xlu0 %3235
      %v3269 = vsel %vm587, %v2917, %v2982
      %v3270 = vsel %vm587, %v2918, %v2984
      %v3271 = vsel %vm587, %v2919, %v2986
      %v3272 = vsel %vm587, %v2920, %v2988
      %v3273 = vsel %vm587, %v2921, %v2990
      %v3274 = vsel %vm587, %v2922, %v2992
      %v3275 = vsel %vm587, %v2923, %v2994
      %v3276 = vsel %vm587, %v2924, %v2996
      %v3277 = vsel %vm587, %v2925, %v2998
      %v3278 = vsel %vm587, %v2926, %v3000
      %v3279 = vsel %vm587, %v2927, %v3002
      %v3280 = vsel %vm587, %v2928, %v3004
      %v3281 = vsel %vm587, %v2929, %v3006
      %v3282 = vsel %vm587, %v2930, %v3008
      %v3283 = vsel %vm587, %v2931, %v3010
      %v3284 = vsel %vm587, %v2932, %v3012
      %v3285 = vsel %vm587, %v2933, %v3014
      %v3286 = vsel %vm587, %v2934, %v3016
      %v3287 = vsel %vm587, %v2935, %v3018
      %v3288 = vsel %vm587, %v2936, %v3020
      %v3289 = vsel %vm587, %v2937, %v3022
      %v3290 = vsel %vm587, %v2938, %v3024
      %v3291 = vsel %vm587, %v2939, %v3026
      %v3292 = vsel %vm587, %v2940, %v3028
      %v3293 = vsel %vm587, %v2941, %v3030
      %v3294 = vsel %vm587, %v2942, %v3032
      %v3295 = vsel %vm587, %v2943, %v3034
      %v3296 = vsel %vm587, %v2944, %v3036
      %v3297 = vsel %vm587, %v2945, %v3038
      %v3298 = vsel %vm587, %v2946, %v3040
      %v3299 = vsel %vm587, %v2947, %v3042
      %v3300 = vsel %vm587, %v2948, %v3044
      %v3301 = vsel %vm1028, %v3269, %v3078
      %v3302 = vsel %vm1028, %v3270, %v3080
      %v3303 = vsel %vm1028, %v3271, %v3082
      %v3304 = vsel %vm1028, %v3272, %v3084
      %v3305 = vsel %vm1028, %v3273, %v3086
      %v3306 = vsel %vm1028, %v3274, %v3088
      %v3307 = vsel %vm1028, %v3275, %v3090
      %v3308 = vsel %vm1028, %v3276, %v3092
      %v3309 = vsel %vm1028, %v3277, %v3094
      %v3310 = vsel %vm1028, %v3278, %v3096
      %v3311 = vsel %vm1028, %v3279, %v3098
      %v3312 = vsel %vm1028, %v3280, %v3100
      %v3313 = vsel %vm1028, %v3281, %v3102
      %v3314 = vsel %vm1028, %v3282, %v3104
      %v3315 = vsel %vm1028, %v3283, %v3106
      %v3316 = vsel %vm1028, %v3284, %v3108
      %v3317 = vsel %vm1028, %v3285, %v3110
      %v3318 = vsel %vm1028, %v3286, %v3112
      %v3319 = vsel %vm1028, %v3287, %v3114
      %v3320 = vsel %vm1028, %v3288, %v3116
      %v3321 = vsel %vm1028, %v3289, %v3118
      %v3322 = vsel %vm1028, %v3290, %v3120
      %v3323 = vsel %vm1028, %v3291, %v3122
      %v3324 = vsel %vm1028, %v3292, %v3124
      %v3325 = vsel %vm1028, %v3293, %v3126
      %v3326 = vsel %vm1028, %v3294, %v3128
      %v3327 = vsel %vm1028, %v3295, %v3130
      %v3328 = vsel %vm1028, %v3296, %v3132
      %v3329 = vsel %vm1028, %v3297, %v3134
      %v3330 = vsel %vm1028, %v3298, %v3136
      %v3331 = vsel %vm1028, %v3299, %v3138
      %v3332 = vsel %vm1028, %v3300, %v3140
      %v3333 = vsel %vm2412, %v3301, %v3174
      %v3334 = vsel %vm2412, %v3302, %v3176
      %v3335 = vsel %vm2412, %v3303, %v3178
      %v3336 = vsel %vm2412, %v3304, %v3180
      %v3337 = vsel %vm2412, %v3305, %v3182
      %v3338 = vsel %vm2412, %v3306, %v3184
      %v3339 = vsel %vm2412, %v3307, %v3186
      %v3340 = vsel %vm2412, %v3308, %v3188
      %v3341 = vsel %vm2412, %v3309, %v3190
      %v3342 = vsel %vm2412, %v3310, %v3192
      %v3343 = vsel %vm2412, %v3311, %v3194
      %v3344 = vsel %vm2412, %v3312, %v3196
      %v3345 = vsel %vm2412, %v3313, %v3198
      %v3346 = vsel %vm2412, %v3314, %v3200
      %v3347 = vsel %vm2412, %v3315, %v3202
      %v3348 = vsel %vm2412, %v3316, %v3204
      %v3349 = vsel %vm2412, %v3317, %v3206
      %v3350 = vsel %vm2412, %v3318, %v3208
      %v3351 = vsel %vm2412, %v3319, %v3210
      %v3352 = vsel %vm2412, %v3320, %v3212
      %v3353 = vsel %vm2412, %v3321, %v3214
      %v3354 = vsel %vm2412, %v3322, %v3216
      %v3355 = vsel %vm2412, %v3323, %v3218
      %v3356 = vsel %vm2412, %v3324, %v3220
      %v3357 = vsel %vm2412, %v3325, %v3222
      %v3358 = vsel %vm2412, %v3326, %v3224
      %v3359 = vsel %vm2412, %v3327, %v3226
      %v3360 = vsel %vm2412, %v3328, %v3228
      %v3361 = vsel %vm2412, %v3329, %v3230
      %v3362 = vsel %vm2412, %v3330, %v3232
      %v3363 = vsel %vm2412, %v3331, %v3234
      %v3364 = vsel %vm2412, %v3332, %v3236
      %v3365 = vmul.f32 %v3333, %v2821
      %v3366 = vmul.f32 %v3334, %v2822
      %v3367 = vmul.f32 %v3335, %v2823
      %v3368 = vmul.f32 %v3336, %v2824
      %v3369 = vmul.f32 %v3337, %v2825
      %v3370 = vmul.f32 %v3338, %v2826
      %v3371 = vmul.f32 %v3339, %v2827
      %v3372 = vmul.f32 %v3340, %v2828
      %v3373 = vmul.f32 %v3341, %v2829
      %v3374 = vmul.f32 %v3342, %v2830
      %v3375 = vmul.f32 %v3343, %v2831
      %v3376 = vmul.f32 %v3344, %v2832
      %v3377 = vmul.f32 %v3345, %v2833
      %v3378 = vmul.f32 %v3346, %v2834
      %v3379 = vmul.f32 %v3347, %v2835
      %v3380 = vmul.f32 %v3348, %v2836
      %v3381 = vmul.f32 %v3349, %v2837
      %v3382 = vmul.f32 %v3350, %v2838
      %v3383 = vmul.f32 %v3351, %v2839
      %v3384 = vmul.f32 %v3352, %v2840
      %v3385 = vmul.f32 %v3353, %v2841
      %v3386 = vmul.f32 %v3354, %v2842
      %v3387 = vmul.f32 %v3355, %v2843
      %v3388 = vmul.f32 %v3356, %v2844
      %v3389 = vmul.f32 %v3357, %v2845
      %v3390 = vmul.f32 %v3358, %v2846
      %v3391 = vmul.f32 %v3359, %v2847
      %v3392 = vmul.f32 %v3360, %v2848
      %v3393 = vmul.f32 %v3361, %v2849
      %v3394 = vmul.f32 %v3362, %v2850
      %v3395 = vmul.f32 %v3363, %v2851
      %v3396 = vmul.f32 %v3364, %v2852
      %v3397 = vsel %vm587, %v3174, %v2917
      %v3398 = vsel %vm587, %v3176, %v2918
      %v3399 = vsel %vm587, %v3178, %v2919
      %v3400 = vsel %vm587, %v3180, %v2920
      %v3401 = vsel %vm587, %v3182, %v2921
      %v3402 = vsel %vm587, %v3184, %v2922
      %v3403 = vsel %vm587, %v3186, %v2923
      %v3404 = vsel %vm587, %v3188, %v2924
      %v3405 = vsel %vm587, %v3190, %v2925
      %v3406 = vsel %vm587, %v3192, %v2926
      %v3407 = vsel %vm587, %v3194, %v2927
      %v3408 = vsel %vm587, %v3196, %v2928
      %v3409 = vsel %vm587, %v3198, %v2929
      %v3410 = vsel %vm587, %v3200, %v2930
      %v3411 = vsel %vm587, %v3202, %v2931
      %v3412 = vsel %vm587, %v3204, %v2932
      %v3413 = vsel %vm587, %v3206, %v2933
      %v3414 = vsel %vm587, %v3208, %v2934
      %v3415 = vsel %vm587, %v3210, %v2935
      %v3416 = vsel %vm587, %v3212, %v2936
      %v3417 = vsel %vm587, %v3214, %v2937
      %v3418 = vsel %vm587, %v3216, %v2938
      %v3419 = vsel %vm587, %v3218, %v2939
      %v3420 = vsel %vm587, %v3220, %v2940
      %v3421 = vsel %vm587, %v3222, %v2941
      %v3422 = vsel %vm587, %v3224, %v2942
      %v3423 = vsel %vm587, %v3226, %v2943
      %v3424 = vsel %vm587, %v3228, %v2944
      %v3425 = vsel %vm587, %v3230, %v2945
      %v3426 = vsel %vm587, %v3232, %v2946
      %v3427 = vsel %vm587, %v3234, %v2947
      %v3428 = vsel %vm587, %v3236, %v2948
      %v3429 = vsel %vm1028, %v3397, %v2982
      %v3430 = vsel %vm1028, %v3398, %v2984
      %v3431 = vsel %vm1028, %v3399, %v2986
      %v3432 = vsel %vm1028, %v3400, %v2988
      %v3433 = vsel %vm1028, %v3401, %v2990
      %v3434 = vsel %vm1028, %v3402, %v2992
      %v3435 = vsel %vm1028, %v3403, %v2994
      %v3436 = vsel %vm1028, %v3404, %v2996
      %v3437 = vsel %vm1028, %v3405, %v2998
      %v3438 = vsel %vm1028, %v3406, %v3000
      %v3439 = vsel %vm1028, %v3407, %v3002
      %v3440 = vsel %vm1028, %v3408, %v3004
      %v3441 = vsel %vm1028, %v3409, %v3006
      %v3442 = vsel %vm1028, %v3410, %v3008
      %v3443 = vsel %vm1028, %v3411, %v3010
      %v3444 = vsel %vm1028, %v3412, %v3012
      %v3445 = vsel %vm1028, %v3413, %v3014
      %v3446 = vsel %vm1028, %v3414, %v3016
      %v3447 = vsel %vm1028, %v3415, %v3018
      %v3448 = vsel %vm1028, %v3416, %v3020
      %v3449 = vsel %vm1028, %v3417, %v3022
      %v3450 = vsel %vm1028, %v3418, %v3024
      %v3451 = vsel %vm1028, %v3419, %v3026
      %v3452 = vsel %vm1028, %v3420, %v3028
      %v3453 = vsel %vm1028, %v3421, %v3030
      %v3454 = vsel %vm1028, %v3422, %v3032
      %v3455 = vsel %vm1028, %v3423, %v3034
      %v3456 = vsel %vm1028, %v3424, %v3036
      %v3457 = vsel %vm1028, %v3425, %v3038
      %v3458 = vsel %vm1028, %v3426, %v3040
      %v3459 = vsel %vm1028, %v3427, %v3042
      %v3460 = vsel %vm1028, %v3428, %v3044
      %v3461 = vsel %vm2412, %v3429, %v3078
      %v3462 = vsel %vm2412, %v3430, %v3080
      %v3463 = vsel %vm2412, %v3431, %v3082
      %v3464 = vsel %vm2412, %v3432, %v3084
      %v3465 = vsel %vm2412, %v3433, %v3086
      %v3466 = vsel %vm2412, %v3434, %v3088
      %v3467 = vsel %vm2412, %v3435, %v3090
      %v3468 = vsel %vm2412, %v3436, %v3092
      %v3469 = vsel %vm2412, %v3437, %v3094
      %v3470 = vsel %vm2412, %v3438, %v3096
      %v3471 = vsel %vm2412, %v3439, %v3098
      %v3472 = vsel %vm2412, %v3440, %v3100
      %v3473 = vsel %vm2412, %v3441, %v3102
      %v3474 = vsel %vm2412, %v3442, %v3104
      %v3475 = vsel %vm2412, %v3443, %v3106
      %v3476 = vsel %vm2412, %v3444, %v3108
      %v3477 = vsel %vm2412, %v3445, %v3110
      %v3478 = vsel %vm2412, %v3446, %v3112
      %v3479 = vsel %vm2412, %v3447, %v3114
      %v3480 = vsel %vm2412, %v3448, %v3116
      %v3481 = vsel %vm2412, %v3449, %v3118
      %v3482 = vsel %vm2412, %v3450, %v3120
      %v3483 = vsel %vm2412, %v3451, %v3122
      %v3484 = vsel %vm2412, %v3452, %v3124
      %v3485 = vsel %vm2412, %v3453, %v3126
      %v3486 = vsel %vm2412, %v3454, %v3128
      %v3487 = vsel %vm2412, %v3455, %v3130
      %v3488 = vsel %vm2412, %v3456, %v3132
      %v3489 = vsel %vm2412, %v3457, %v3134
      %v3490 = vsel %vm2412, %v3458, %v3136
      %v3491 = vsel %vm2412, %v3459, %v3138
      %v3492 = vsel %vm2412, %v3460, %v3140
      %v3493 = vmul.f32 %v3461, %v2821
      %v3494 = vmul.f32 %v3462, %v2822
      %v3495 = vmul.f32 %v3463, %v2823
      %v3496 = vmul.f32 %v3464, %v2824
      %v3497 = vmul.f32 %v3465, %v2825
      %v3498 = vmul.f32 %v3466, %v2826
      %v3499 = vmul.f32 %v3467, %v2827
      %v3500 = vmul.f32 %v3468, %v2828
      %v3501 = vmul.f32 %v3469, %v2829
      %v3502 = vmul.f32 %v3470, %v2830
      %v3503 = vmul.f32 %v3471, %v2831
      %v3504 = vmul.f32 %v3472, %v2832
      %v3505 = vmul.f32 %v3473, %v2833
      %v3506 = vmul.f32 %v3474, %v2834
      %v3507 = vmul.f32 %v3475, %v2835
      %v3508 = vmul.f32 %v3476, %v2836
      %v3509 = vmul.f32 %v3477, %v2837
      %v3510 = vmul.f32 %v3478, %v2838
      %v3511 = vmul.f32 %v3479, %v2839
      %v3512 = vmul.f32 %v3480, %v2840
      %v3513 = vmul.f32 %v3481, %v2841
      %v3514 = vmul.f32 %v3482, %v2842
      %v3515 = vmul.f32 %v3483, %v2843
      %v3516 = vmul.f32 %v3484, %v2844
      %v3517 = vmul.f32 %v3485, %v2845
      %v3518 = vmul.f32 %v3486, %v2846
      %v3519 = vmul.f32 %v3487, %v2847
      %v3520 = vmul.f32 %v3488, %v2848
      %v3521 = vmul.f32 %v3489, %v2849
      %v3522 = vmul.f32 %v3490, %v2850
      %v3523 = vmul.f32 %v3491, %v2851
      %v3524 = vmul.f32 %v3492, %v2852
      %v3525 = vsel %vm587, %v3078, %v3174
      %v3526 = vsel %vm587, %v3080, %v3176
      %v3527 = vsel %vm587, %v3082, %v3178
      %v3528 = vsel %vm587, %v3084, %v3180
      %v3529 = vsel %vm587, %v3086, %v3182
      %v3530 = vsel %vm587, %v3088, %v3184
      %v3531 = vsel %vm587, %v3090, %v3186
      %v3532 = vsel %vm587, %v3092, %v3188
      %v3533 = vsel %vm587, %v3094, %v3190
      %v3534 = vsel %vm587, %v3096, %v3192
      %v3535 = vsel %vm587, %v3098, %v3194
      %v3536 = vsel %vm587, %v3100, %v3196
      %v3537 = vsel %vm587, %v3102, %v3198
      %v3538 = vsel %vm587, %v3104, %v3200
      %v3539 = vsel %vm587, %v3106, %v3202
      %v3540 = vsel %vm587, %v3108, %v3204
      %v3541 = vsel %vm587, %v3110, %v3206
      %v3542 = vsel %vm587, %v3112, %v3208
      %v3543 = vsel %vm587, %v3114, %v3210
      %v3544 = vsel %vm587, %v3116, %v3212
      %v3545 = vsel %vm587, %v3118, %v3214
      %v3546 = vsel %vm587, %v3120, %v3216
      %v3547 = vsel %vm587, %v3122, %v3218
      %v3548 = vsel %vm587, %v3124, %v3220
      %v3549 = vsel %vm587, %v3126, %v3222
      %v3550 = vsel %vm587, %v3128, %v3224
      %v3551 = vsel %vm587, %v3130, %v3226
      %v3552 = vsel %vm587, %v3132, %v3228
      %v3553 = vsel %vm587, %v3134, %v3230
      %v3554 = vsel %vm587, %v3136, %v3232
      %v3555 = vsel %vm587, %v3138, %v3234
      %v3556 = vsel %vm587, %v3140, %v3236
      %v3557 = vsel %vm1028, %v3525, %v2917
      %v3558 = vsel %vm1028, %v3526, %v2918
      %v3559 = vsel %vm1028, %v3527, %v2919
      %v3560 = vsel %vm1028, %v3528, %v2920
      %v3561 = vsel %vm1028, %v3529, %v2921
      %v3562 = vsel %vm1028, %v3530, %v2922
      %v3563 = vsel %vm1028, %v3531, %v2923
      %v3564 = vsel %vm1028, %v3532, %v2924
      %v3565 = vsel %vm1028, %v3533, %v2925
      %v3566 = vsel %vm1028, %v3534, %v2926
      %v3567 = vsel %vm1028, %v3535, %v2927
      %v3568 = vsel %vm1028, %v3536, %v2928
      %v3569 = vsel %vm1028, %v3537, %v2929
      %v3570 = vsel %vm1028, %v3538, %v2930
      %v3571 = vsel %vm1028, %v3539, %v2931
      %v3572 = vsel %vm1028, %v3540, %v2932
      %v3573 = vsel %vm1028, %v3541, %v2933
      %v3574 = vsel %vm1028, %v3542, %v2934
      %v3575 = vsel %vm1028, %v3543, %v2935
      %v3576 = vsel %vm1028, %v3544, %v2936
      %v3577 = vsel %vm1028, %v3545, %v2937
      %v3578 = vsel %vm1028, %v3546, %v2938
      %v3579 = vsel %vm1028, %v3547, %v2939
      %v3580 = vsel %vm1028, %v3548, %v2940
      %v3581 = vsel %vm1028, %v3549, %v2941
      %v3582 = vsel %vm1028, %v3550, %v2942
      %v3583 = vsel %vm1028, %v3551, %v2943
      %v3584 = vsel %vm1028, %v3552, %v2944
      %v3585 = vsel %vm1028, %v3553, %v2945
      %v3586 = vsel %vm1028, %v3554, %v2946
      %v3587 = vsel %vm1028, %v3555, %v2947
      %v3588 = vsel %vm1028, %v3556, %v2948
      %v3589 = vsel %vm2412, %v3557, %v2982
      %v3590 = vsel %vm2412, %v3558, %v2984
      %v3591 = vsel %vm2412, %v3559, %v2986
      %v3592 = vsel %vm2412, %v3560, %v2988
      %v3593 = vsel %vm2412, %v3561, %v2990
      %v3594 = vsel %vm2412, %v3562, %v2992
      %v3595 = vsel %vm2412, %v3563, %v2994
      %v3596 = vsel %vm2412, %v3564, %v2996
      %v3597 = vsel %vm2412, %v3565, %v2998
      %v3598 = vsel %vm2412, %v3566, %v3000
      %v3599 = vsel %vm2412, %v3567, %v3002
      %v3600 = vsel %vm2412, %v3568, %v3004
      %v3601 = vsel %vm2412, %v3569, %v3006
      %v3602 = vsel %vm2412, %v3570, %v3008
      %v3603 = vsel %vm2412, %v3571, %v3010
      %v3604 = vsel %vm2412, %v3572, %v3012
      %v3605 = vsel %vm2412, %v3573, %v3014
      %v3606 = vsel %vm2412, %v3574, %v3016
      %v3607 = vsel %vm2412, %v3575, %v3018
      %v3608 = vsel %vm2412, %v3576, %v3020
      %v3609 = vsel %vm2412, %v3577, %v3022
      %v3610 = vsel %vm2412, %v3578, %v3024
      %v3611 = vsel %vm2412, %v3579, %v3026
      %v3612 = vsel %vm2412, %v3580, %v3028
      %v3613 = vsel %vm2412, %v3581, %v3030
      %v3614 = vsel %vm2412, %v3582, %v3032
      %v3615 = vsel %vm2412, %v3583, %v3034
      %v3616 = vsel %vm2412, %v3584, %v3036
      %v3617 = vsel %vm2412, %v3585, %v3038
      %v3618 = vsel %vm2412, %v3586, %v3040
      %v3619 = vsel %vm2412, %v3587, %v3042
      %v3620 = vsel %vm2412, %v3588, %v3044
      %v3621 = vmul.f32 %v3589, %v2821
      %v3622 = vmul.f32 %v3590, %v2822
      %v3623 = vmul.f32 %v3591, %v2823
      %v3624 = vmul.f32 %v3592, %v2824
      %v3625 = vmul.f32 %v3593, %v2825
      %v3626 = vmul.f32 %v3594, %v2826
      %v3627 = vmul.f32 %v3595, %v2827
      %v3628 = vmul.f32 %v3596, %v2828
      %v3629 = vmul.f32 %v3597, %v2829
      %v3630 = vmul.f32 %v3598, %v2830
      %v3631 = vmul.f32 %v3599, %v2831
      %v3632 = vmul.f32 %v3600, %v2832
      %v3633 = vmul.f32 %v3601, %v2833
      %v3634 = vmul.f32 %v3602, %v2834
      %v3635 = vmul.f32 %v3603, %v2835
      %v3636 = vmul.f32 %v3604, %v2836
      %v3637 = vmul.f32 %v3605, %v2837
      %v3638 = vmul.f32 %v3606, %v2838
      %v3639 = vmul.f32 %v3607, %v2839
      %v3640 = vmul.f32 %v3608, %v2840
      %v3641 = vmul.f32 %v3609, %v2841
      %v3642 = vmul.f32 %v3610, %v2842
      %v3643 = vmul.f32 %v3611, %v2843
      %v3644 = vmul.f32 %v3612, %v2844
      %v3645 = vmul.f32 %v3613, %v2845
      %v3646 = vmul.f32 %v3614, %v2846
      %v3647 = vmul.f32 %v3615, %v2847
      %v3648 = vmul.f32 %v3616, %v2848
      %v3649 = vmul.f32 %v3617, %v2849
      %v3650 = vmul.f32 %v3618, %v2850
      %v3651 = vmul.f32 %v3619, %v2851
      %v3652 = vmul.f32 %v3620, %v2852
      %v3653 = vld [vmem:[%s8] sm:$0xff]
      %v3654 = vld [vmem:[%s8 + $0x8] sm:$0xff]
      %v3655 = vld [vmem:[%s8 + $0x10] sm:$0xff]
      %v3656 = vld [vmem:[%s8 + $0x18] sm:$0xff]
      %v3657 = vld [vmem:[%s8 + $0x20] sm:$0xff]
      %v3658 = vld [vmem:[%s8 + $0x28] sm:$0xff]
      %v3659 = vld [vmem:[%s8 + $0x30] sm:$0xff]
      %v3660 = vld [vmem:[%s8 + $0x38] sm:$0xff]
      %v3661 = vld [vmem:[%s8 + $0x40] sm:$0xff]
      %v3662 = vld [vmem:[%s8 + $0x48] sm:$0xff]
      %v3663 = vld [vmem:[%s8 + $0x50] sm:$0xff]
      %v3664 = vld [vmem:[%s8 + $0x58] sm:$0xff]
      %v3665 = vld [vmem:[%s8 + $0x60] sm:$0xff]
      %v3666 = vld [vmem:[%s8 + $0x68] sm:$0xff]
      %v3667 = vld [vmem:[%s8 + $0x70] sm:$0xff]
      %v3668 = vld [vmem:[%s8 + $0x78] sm:$0xff]
      %v3669 = vld [vmem:[%s8 + $0x80] sm:$0xff]
      %v3670 = vld [vmem:[%s8 + $0x88] sm:$0xff]
      %v3671 = vld [vmem:[%s8 + $0x90] sm:$0xff]
      %v3672 = vld [vmem:[%s8 + $0x98] sm:$0xff]
      %v3673 = vld [vmem:[%s8 + $0xa0] sm:$0xff]
      %v3674 = vld [vmem:[%s8 + $0xa8] sm:$0xff]
      %v3675 = vld [vmem:[%s8 + $0xb0] sm:$0xff]
      %v3676 = vld [vmem:[%s8 + $0xb8] sm:$0xff]
      %v3677 = vld [vmem:[%s8 + $0xc0] sm:$0xff]
      %v3678 = vld [vmem:[%s8 + $0xc8] sm:$0xff]
      %v3679 = vld [vmem:[%s8 + $0xd0] sm:$0xff]
      %v3680 = vld [vmem:[%s8 + $0xd8] sm:$0xff]
      %v3681 = vld [vmem:[%s8 + $0xe0] sm:$0xff]
      %v3682 = vld [vmem:[%s8 + $0xe8] sm:$0xff]
      %v3683 = vld [vmem:[%s8 + $0xf0] sm:$0xff]
      %v3684 = vld [vmem:[%s8 + $0xf8] sm:$0xff]
      %v3685 = vld [vmem:[%s8 + $0x100] sm:$0xff]
      %v3686 = vld [vmem:[%s8 + $0x108] sm:$0xff]
      %v3687 = vld [vmem:[%s8 + $0x110] sm:$0xff]
      %v3688 = vld [vmem:[%s8 + $0x118] sm:$0xff]
      %v3689 = vld [vmem:[%s8 + $0x120] sm:$0xff]
      %v3690 = vld [vmem:[%s8 + $0x128] sm:$0xff]
      %v3691 = vld [vmem:[%s8 + $0x130] sm:$0xff]
      %v3692 = vld [vmem:[%s8 + $0x138] sm:$0xff]
      %v3693 = vld [vmem:[%s8 + $0x140] sm:$0xff]
      %v3694 = vld [vmem:[%s8 + $0x148] sm:$0xff]
      %v3695 = vld [vmem:[%s8 + $0x150] sm:$0xff]
      %v3696 = vld [vmem:[%s8 + $0x158] sm:$0xff]
      %v3697 = vld [vmem:[%s8 + $0x160] sm:$0xff]
      %v3698 = vld [vmem:[%s8 + $0x168] sm:$0xff]
      %v3699 = vld [vmem:[%s8 + $0x170] sm:$0xff]
      %v3700 = vld [vmem:[%s8 + $0x178] sm:$0xff]
      %3701 = vmatpush.msra.mxu0 %v3668
      %3702 = vmatpush.msra.mxu0 %v3667
      %3703 = vmatpush.msra.mxu0 %v3666
      %3704 = vmatpush.msra.mxu0 %v3665
      %3705 = vmatpush.msra.mxu0 %v3664
      %3706 = vmatpush.msra.mxu0 %v3663
      %3707 = vmatpush.msra.mxu0 %v3662
      %3708 = vmatpush.msra.mxu0 %v3661
      %3709 = vmatpush.msra.mxu0 %v3660
      %3710 = vmatpush.msra.mxu0 %v3659
      %3711 = vmatpush.msra.mxu0 %v3658
      %3712 = vmatpush.msra.mxu0 %v3657
      %3713 = vmatpush.msra.mxu0 %v3656
      %3714 = vmatpush.msra.mxu0 %v3655
      %3715 = vmatpush.msra.mxu0 %v3654
      %3716 = vmatpush.msra.mxu0 %v3653
      %3717 = vmatmul.f32.gmra.mxu0 %v3365
      %v3718 = vpop.f32.mrf.mxu0
      %v3719 = vadd.f32 %v1482, %v3718
      %3720 = vmatmul.f32.gmra.mxu0 %v3366
      %v3721 = vpop.f32.mrf.mxu0
      %v3722 = vadd.f32 %v1485, %v3721
      %3723 = vmatmul.f32.gmra.mxu0 %v3367
      %v3724 = vpop.f32.mrf.mxu0
      %v3725 = vadd.f32 %v1488, %v3724
      %3726 = vmatmul.f32.gmra.mxu0 %v3368
      %v3727 = vpop.f32.mrf.mxu0
      %v3728 = vadd.f32 %v1491, %v3727
      %3729 = vmatmul.f32.gmra.mxu0 %v3369
      %v3730 = vpop.f32.mrf.mxu0
      %v3731 = vadd.f32 %v1494, %v3730
      %3732 = vmatmul.f32.gmra.mxu0 %v3370
      %v3733 = vpop.f32.mrf.mxu0
      %v3734 = vadd.f32 %v1497, %v3733
      %3735 = vmatmul.f32.gmra.mxu0 %v3371
      %v3736 = vpop.f32.mrf.mxu0
      %v3737 = vadd.f32 %v1500, %v3736
      %3738 = vmatmul.f32.gmra.mxu0 %v3372
      %v3739 = vpop.f32.mrf.mxu0
      %v3740 = vadd.f32 %v1503, %v3739
      %3741 = vmatmul.f32.gmra.mxu0 %v3373
      %v3742 = vpop.f32.mrf.mxu0
      %v3743 = vadd.f32 %v1506, %v3742
      %3744 = vmatmul.f32.gmra.mxu0 %v3374
      %v3745 = vpop.f32.mrf.mxu0
      %v3746 = vadd.f32 %v1509, %v3745
      %3747 = vmatmul.f32.gmra.mxu0 %v3375
      %v3748 = vpop.f32.mrf.mxu0
      %v3749 = vadd.f32 %v1512, %v3748
      %3750 = vmatmul.f32.gmra.mxu0 %v3376
      %v3751 = vpop.f32.mrf.mxu0
      %v3752 = vadd.f32 %v1515, %v3751
      %3753 = vmatmul.f32.gmra.mxu0 %v3377
      %v3754 = vpop.f32.mrf.mxu0
      %v3755 = vadd.f32 %v1518, %v3754
      %3756 = vmatmul.f32.gmra.mxu0 %v3378
      %v3757 = vpop.f32.mrf.mxu0
      %v3758 = vadd.f32 %v1521, %v3757
      %3759 = vmatmul.f32.gmra.mxu0 %v3379
      %v3760 = vpop.f32.mrf.mxu0
      %v3761 = vadd.f32 %v1524, %v3760
      %3762 = vmatmul.f32.gmra.mxu0 %v3380
      %v3763 = vpop.f32.mrf.mxu0
      %v3764 = vadd.f32 %v1527, %v3763
      %3765 = vmatmul.f32.gmra.mxu0 %v3381
      %v3766 = vpop.f32.mrf.mxu0
      %v3767 = vadd.f32 %v1530, %v3766
      %3768 = vmatmul.f32.gmra.mxu0 %v3382
      %v3769 = vpop.f32.mrf.mxu0
      %v3770 = vadd.f32 %v1533, %v3769
      %3771 = vmatmul.f32.gmra.mxu0 %v3383
      %v3772 = vpop.f32.mrf.mxu0
      %v3773 = vadd.f32 %v1536, %v3772
      %3774 = vmatmul.f32.gmra.mxu0 %v3384
      %v3775 = vpop.f32.mrf.mxu0
      %v3776 = vadd.f32 %v1539, %v3775
      %3777 = vmatmul.f32.gmra.mxu0 %v3385
      %v3778 = vpop.f32.mrf.mxu0
      %v3779 = vadd.f32 %v1542, %v3778
      %3780 = vmatmul.f32.gmra.mxu0 %v3386
      %v3781 = vpop.f32.mrf.mxu0
      %v3782 = vadd.f32 %v1545, %v3781
      %3783 = vmatmul.f32.gmra.mxu0 %v3387
      %v3784 = vpop.f32.mrf.mxu0
      %v3785 = vadd.f32 %v1548, %v3784
      %3786 = vmatmul.f32.gmra.mxu0 %v3388
      %v3787 = vpop.f32.mrf.mxu0
      %v3788 = vadd.f32 %v1551, %v3787
      %3789 = vmatmul.f32.gmra.mxu0 %v3389
      %v3790 = vpop.f32.mrf.mxu0
      %v3791 = vadd.f32 %v1554, %v3790
      %3792 = vmatmul.f32.gmra.mxu0 %v3390
      %v3793 = vpop.f32.mrf.mxu0
      %v3794 = vadd.f32 %v1557, %v3793
      %3795 = vmatmul.f32.gmra.mxu0 %v3391
      %v3796 = vpop.f32.mrf.mxu0
      %v3797 = vadd.f32 %v1560, %v3796
      %3798 = vmatmul.f32.gmra.mxu0 %v3392
      %v3799 = vpop.f32.mrf.mxu0
      %v3800 = vadd.f32 %v1563, %v3799
      %3801 = vmatmul.f32.gmra.mxu0 %v3393
      %v3802 = vpop.f32.mrf.mxu0
      %v3803 = vadd.f32 %v1566, %v3802
      %3804 = vmatmul.f32.gmra.mxu0 %v3394
      %v3805 = vpop.f32.mrf.mxu0
      %v3806 = vadd.f32 %v1569, %v3805
      %3807 = vmatmul.f32.gmra.mxu0 %v3395
      %v3808 = vpop.f32.mrf.mxu0
      %v3809 = vadd.f32 %v1572, %v3808
      %3810 = vmatmul.f32.gmra.mxu0 %v3396
      %v3811 = vpop.f32.mrf.mxu0
      %v3812 = vadd.f32 %v1575, %v3811
      %3813 = vdwg.mxu0
      %3814 = vmatpush.msra.mxu0 %v3684
      %3815 = vmatpush.msra.mxu0 %v3683
      %3816 = vmatpush.msra.mxu0 %v3682
      %3817 = vmatpush.msra.mxu0 %v3681
      %3818 = vmatpush.msra.mxu0 %v3680
      %3819 = vmatpush.msra.mxu0 %v3679
      %3820 = vmatpush.msra.mxu0 %v3678
      %3821 = vmatpush.msra.mxu0 %v3677
      %3822 = vmatpush.msra.mxu0 %v3676
      %3823 = vmatpush.msra.mxu0 %v3675
      %3824 = vmatpush.msra.mxu0 %v3674
      %3825 = vmatpush.msra.mxu0 %v3673
      %3826 = vmatpush.msra.mxu0 %v3672
      %3827 = vmatpush.msra.mxu0 %v3671
      %3828 = vmatpush.msra.mxu0 %v3670
      %3829 = vmatpush.msra.mxu0 %v3669
      %3830 = vmatmul.f32.gmra.mxu0 %v3493
      %v3831 = vpop.f32.mrf.mxu0
      %v3832 = vadd.f32 %v3719, %v3831
      %3833 = vmatmul.f32.gmra.mxu0 %v3494
      %v3834 = vpop.f32.mrf.mxu0
      %v3835 = vadd.f32 %v3722, %v3834
      %3836 = vmatmul.f32.gmra.mxu0 %v3495
      %v3837 = vpop.f32.mrf.mxu0
      %v3838 = vadd.f32 %v3725, %v3837
      %3839 = vmatmul.f32.gmra.mxu0 %v3496
      %v3840 = vpop.f32.mrf.mxu0
      %v3841 = vadd.f32 %v3728, %v3840
      %3842 = vmatmul.f32.gmra.mxu0 %v3497
      %v3843 = vpop.f32.mrf.mxu0
      %v3844 = vadd.f32 %v3731, %v3843
      %3845 = vmatmul.f32.gmra.mxu0 %v3498
      %v3846 = vpop.f32.mrf.mxu0
      %v3847 = vadd.f32 %v3734, %v3846
      %3848 = vmatmul.f32.gmra.mxu0 %v3499
      %v3849 = vpop.f32.mrf.mxu0
      %v3850 = vadd.f32 %v3737, %v3849
      %3851 = vmatmul.f32.gmra.mxu0 %v3500
      %v3852 = vpop.f32.mrf.mxu0
      %v3853 = vadd.f32 %v3740, %v3852
      %3854 = vmatmul.f32.gmra.mxu0 %v3501
      %v3855 = vpop.f32.mrf.mxu0
      %v3856 = vadd.f32 %v3743, %v3855
      %3857 = vmatmul.f32.gmra.mxu0 %v3502
      %v3858 = vpop.f32.mrf.mxu0
      %v3859 = vadd.f32 %v3746, %v3858
      %3860 = vmatmul.f32.gmra.mxu0 %v3503
      %v3861 = vpop.f32.mrf.mxu0
      %v3862 = vadd.f32 %v3749, %v3861
      %3863 = vmatmul.f32.gmra.mxu0 %v3504
      %v3864 = vpop.f32.mrf.mxu0
      %v3865 = vadd.f32 %v3752, %v3864
      %3866 = vmatmul.f32.gmra.mxu0 %v3505
      %v3867 = vpop.f32.mrf.mxu0
      %v3868 = vadd.f32 %v3755, %v3867
      %3869 = vmatmul.f32.gmra.mxu0 %v3506
      %v3870 = vpop.f32.mrf.mxu0
      %v3871 = vadd.f32 %v3758, %v3870
      %3872 = vmatmul.f32.gmra.mxu0 %v3507
      %v3873 = vpop.f32.mrf.mxu0
      %v3874 = vadd.f32 %v3761, %v3873
      %3875 = vmatmul.f32.gmra.mxu0 %v3508
      %v3876 = vpop.f32.mrf.mxu0
      %v3877 = vadd.f32 %v3764, %v3876
      %3878 = vmatmul.f32.gmra.mxu0 %v3509
      %v3879 = vpop.f32.mrf.mxu0
      %v3880 = vadd.f32 %v3767, %v3879
      %3881 = vmatmul.f32.gmra.mxu0 %v3510
      %v3882 = vpop.f32.mrf.mxu0
      %v3883 = vadd.f32 %v3770, %v3882
      %3884 = vmatmul.f32.gmra.mxu0 %v3511
      %v3885 = vpop.f32.mrf.mxu0
      %v3886 = vadd.f32 %v3773, %v3885
      %3887 = vmatmul.f32.gmra.mxu0 %v3512
      %v3888 = vpop.f32.mrf.mxu0
      %v3889 = vadd.f32 %v3776, %v3888
      %3890 = vmatmul.f32.gmra.mxu0 %v3513
      %v3891 = vpop.f32.mrf.mxu0
      %v3892 = vadd.f32 %v3779, %v3891
      %3893 = vmatmul.f32.gmra.mxu0 %v3514
      %v3894 = vpop.f32.mrf.mxu0
      %v3895 = vadd.f32 %v3782, %v3894
      %3896 = vmatmul.f32.gmra.mxu0 %v3515
      %v3897 = vpop.f32.mrf.mxu0
      %v3898 = vadd.f32 %v3785, %v3897
      %3899 = vmatmul.f32.gmra.mxu0 %v3516
      %v3900 = vpop.f32.mrf.mxu0
      %v3901 = vadd.f32 %v3788, %v3900
      %3902 = vmatmul.f32.gmra.mxu0 %v3517
      %v3903 = vpop.f32.mrf.mxu0
      %v3904 = vadd.f32 %v3791, %v3903
      %3905 = vmatmul.f32.gmra.mxu0 %v3518
      %v3906 = vpop.f32.mrf.mxu0
      %v3907 = vadd.f32 %v3794, %v3906
      %3908 = vmatmul.f32.gmra.mxu0 %v3519
      %v3909 = vpop.f32.mrf.mxu0
      %v3910 = vadd.f32 %v3797, %v3909
      %3911 = vmatmul.f32.gmra.mxu0 %v3520
      %v3912 = vpop.f32.mrf.mxu0
      %v3913 = vadd.f32 %v3800, %v3912
      %3914 = vmatmul.f32.gmra.mxu0 %v3521
      %v3915 = vpop.f32.mrf.mxu0
      %v3916 = vadd.f32 %v3803, %v3915
      %3917 = vmatmul.f32.gmra.mxu0 %v3522
      %v3918 = vpop.f32.mrf.mxu0
      %v3919 = vadd.f32 %v3806, %v3918
      %3920 = vmatmul.f32.gmra.mxu0 %v3523
      %v3921 = vpop.f32.mrf.mxu0
      %v3922 = vadd.f32 %v3809, %v3921
      %3923 = vmatmul.f32.gmra.mxu0 %v3524
      %v3924 = vpop.f32.mrf.mxu0
      %v3925 = vadd.f32 %v3812, %v3924
      %3926 = vdwg.mxu0
      %3927 = vmatpush.msra.mxu0 %v3700
      %3928 = vmatpush.msra.mxu0 %v3699
      %3929 = vmatpush.msra.mxu0 %v3698
      %3930 = vmatpush.msra.mxu0 %v3697
      %3931 = vmatpush.msra.mxu0 %v3696
      %3932 = vmatpush.msra.mxu0 %v3695
      %3933 = vmatpush.msra.mxu0 %v3694
      %3934 = vmatpush.msra.mxu0 %v3693
      %3935 = vmatpush.msra.mxu0 %v3692
      %3936 = vmatpush.msra.mxu0 %v3691
      %3937 = vmatpush.msra.mxu0 %v3690
      %3938 = vmatpush.msra.mxu0 %v3689
      %3939 = vmatpush.msra.mxu0 %v3688
      %3940 = vmatpush.msra.mxu0 %v3687
      %3941 = vmatpush.msra.mxu0 %v3686
      %3942 = vmatpush.msra.mxu0 %v3685
      %3943 = vmatmul.f32.gmra.mxu0 %v3621
      %v3944 = vpop.f32.mrf.mxu0
      %v3945 = vadd.f32 %v3832, %v3944
      %3946 = vmatmul.f32.gmra.mxu0 %v3622
      %v3947 = vpop.f32.mrf.mxu0
      %v3948 = vadd.f32 %v3835, %v3947
      %3949 = vmatmul.f32.gmra.mxu0 %v3623
      %v3950 = vpop.f32.mrf.mxu0
      %v3951 = vadd.f32 %v3838, %v3950
      %3952 = vmatmul.f32.gmra.mxu0 %v3624
      %v3953 = vpop.f32.mrf.mxu0
      %v3954 = vadd.f32 %v3841, %v3953
      %3955 = vmatmul.f32.gmra.mxu0 %v3625
      %v3956 = vpop.f32.mrf.mxu0
      %v3957 = vadd.f32 %v3844, %v3956
      %3958 = vmatmul.f32.gmra.mxu0 %v3626
      %v3959 = vpop.f32.mrf.mxu0
      %v3960 = vadd.f32 %v3847, %v3959
      %3961 = vmatmul.f32.gmra.mxu0 %v3627
      %v3962 = vpop.f32.mrf.mxu0
      %v3963 = vadd.f32 %v3850, %v3962
      %3964 = vmatmul.f32.gmra.mxu0 %v3628
      %v3965 = vpop.f32.mrf.mxu0
      %v3966 = vadd.f32 %v3853, %v3965
      %3967 = vmatmul.f32.gmra.mxu0 %v3629
      %v3968 = vpop.f32.mrf.mxu0
      %v3969 = vadd.f32 %v3856, %v3968
      %3970 = vmatmul.f32.gmra.mxu0 %v3630
      %v3971 = vpop.f32.mrf.mxu0
      %v3972 = vadd.f32 %v3859, %v3971
      %3973 = vmatmul.f32.gmra.mxu0 %v3631
      %v3974 = vpop.f32.mrf.mxu0
      %v3975 = vadd.f32 %v3862, %v3974
      %3976 = vmatmul.f32.gmra.mxu0 %v3632
      %v3977 = vpop.f32.mrf.mxu0
      %v3978 = vadd.f32 %v3865, %v3977
      %3979 = vmatmul.f32.gmra.mxu0 %v3633
      %v3980 = vpop.f32.mrf.mxu0
      %v3981 = vadd.f32 %v3868, %v3980
      %3982 = vmatmul.f32.gmra.mxu0 %v3634
      %v3983 = vpop.f32.mrf.mxu0
      %v3984 = vadd.f32 %v3871, %v3983
      %3985 = vmatmul.f32.gmra.mxu0 %v3635
      %v3986 = vpop.f32.mrf.mxu0
      %v3987 = vadd.f32 %v3874, %v3986
      %3988 = vmatmul.f32.gmra.mxu0 %v3636
      %v3989 = vpop.f32.mrf.mxu0
      %v3990 = vadd.f32 %v3877, %v3989
      %3991 = vmatmul.f32.gmra.mxu0 %v3637
      %v3992 = vpop.f32.mrf.mxu0
      %v3993 = vadd.f32 %v3880, %v3992
      %3994 = vmatmul.f32.gmra.mxu0 %v3638
      %v3995 = vpop.f32.mrf.mxu0
      %v3996 = vadd.f32 %v3883, %v3995
      %3997 = vmatmul.f32.gmra.mxu0 %v3639
      %v3998 = vpop.f32.mrf.mxu0
      %v3999 = vadd.f32 %v3886, %v3998
      %4000 = vmatmul.f32.gmra.mxu0 %v3640
      %v4001 = vpop.f32.mrf.mxu0
      %v4002 = vadd.f32 %v3889, %v4001
      %4003 = vmatmul.f32.gmra.mxu0 %v3641
      %v4004 = vpop.f32.mrf.mxu0
      %v4005 = vadd.f32 %v3892, %v4004
      %4006 = vmatmul.f32.gmra.mxu0 %v3642
      %v4007 = vpop.f32.mrf.mxu0
      %v4008 = vadd.f32 %v3895, %v4007
      %4009 = vmatmul.f32.gmra.mxu0 %v3643
      %v4010 = vpop.f32.mrf.mxu0
      %v4011 = vadd.f32 %v3898, %v4010
      %4012 = vmatmul.f32.gmra.mxu0 %v3644
      %v4013 = vpop.f32.mrf.mxu0
      %v4014 = vadd.f32 %v3901, %v4013
      %4015 = vmatmul.f32.gmra.mxu0 %v3645
      %v4016 = vpop.f32.mrf.mxu0
      %v4017 = vadd.f32 %v3904, %v4016
      %4018 = vmatmul.f32.gmra.mxu0 %v3646
      %v4019 = vpop.f32.mrf.mxu0
      %v4020 = vadd.f32 %v3907, %v4019
      %4021 = vmatmul.f32.gmra.mxu0 %v3647
      %v4022 = vpop.f32.mrf.mxu0
      %v4023 = vadd.f32 %v3910, %v4022
      %4024 = vmatmul.f32.gmra.mxu0 %v3648
      %v4025 = vpop.f32.mrf.mxu0
      %v4026 = vadd.f32 %v3913, %v4025
      %4027 = vmatmul.f32.gmra.mxu0 %v3649
      %v4028 = vpop.f32.mrf.mxu0
      %v4029 = vadd.f32 %v3916, %v4028
      %4030 = vmatmul.f32.gmra.mxu0 %v3650
      %v4031 = vpop.f32.mrf.mxu0
      %v4032 = vadd.f32 %v3919, %v4031
      %4033 = vmatmul.f32.gmra.mxu0 %v3651
      %v4034 = vpop.f32.mrf.mxu0
      %v4035 = vadd.f32 %v3922, %v4034
      %4036 = vmatmul.f32.gmra.mxu0 %v3652
      %v4037 = vpop.f32.mrf.mxu0
      %v4038 = vadd.f32 %v3925, %v4037
      %4039 = vdwg.mxu0
      %4072 = vrot.lane.b32.xlu0 %v1482, 108
      %v4073 = vpop.permute.xlu0 %4072
      %4074 = vrot.lane.b32.xlu0 %v1485, 108
      %v4075 = vpop.permute.xlu0 %4074
      %4076 = vrot.lane.b32.xlu0 %v1488, 108
      %v4077 = vpop.permute.xlu0 %4076
      %4078 = vrot.lane.b32.xlu0 %v1491, 108
      %v4079 = vpop.permute.xlu0 %4078
      %4080 = vrot.lane.b32.xlu0 %v1494, 108
      %v4081 = vpop.permute.xlu0 %4080
      %4082 = vrot.lane.b32.xlu0 %v1497, 108
      %v4083 = vpop.permute.xlu0 %4082
      %4084 = vrot.lane.b32.xlu0 %v1500, 108
      %v4085 = vpop.permute.xlu0 %4084
      %4086 = vrot.lane.b32.xlu0 %v1503, 108
      %v4087 = vpop.permute.xlu0 %4086
      %4088 = vrot.lane.b32.xlu0 %v1506, 108
      %v4089 = vpop.permute.xlu0 %4088
      %4090 = vrot.lane.b32.xlu0 %v1509, 108
      %v4091 = vpop.permute.xlu0 %4090
      %4092 = vrot.lane.b32.xlu0 %v1512, 108
      %v4093 = vpop.permute.xlu0 %4092
      %4094 = vrot.lane.b32.xlu0 %v1515, 108
      %v4095 = vpop.permute.xlu0 %4094
      %4096 = vrot.lane.b32.xlu0 %v1518, 108
      %v4097 = vpop.permute.xlu0 %4096
      %4098 = vrot.lane.b32.xlu0 %v1521, 108
      %v4099 = vpop.permute.xlu0 %4098
      %4100 = vrot.lane.b32.xlu0 %v1524, 108
      %v4101 = vpop.permute.xlu0 %4100
      %4102 = vrot.lane.b32.xlu0 %v1527, 108
      %v4103 = vpop.permute.xlu0 %4102
      %4104 = vrot.lane.b32.xlu0 %v1530, 108
      %v4105 = vpop.permute.xlu0 %4104
      %4106 = vrot.lane.b32.xlu0 %v1533, 108
      %v4107 = vpop.permute.xlu0 %4106
      %4108 = vrot.lane.b32.xlu0 %v1536, 108
      %v4109 = vpop.permute.xlu0 %4108
      %4110 = vrot.lane.b32.xlu0 %v1539, 108
      %v4111 = vpop.permute.xlu0 %4110
      %4112 = vrot.lane.b32.xlu0 %v1542, 108
      %v4113 = vpop.permute.xlu0 %4112
      %4114 = vrot.lane.b32.xlu0 %v1545, 108
      %v4115 = vpop.permute.xlu0 %4114
      %4116 = vrot.lane.b32.xlu0 %v1548, 108
      %v4117 = vpop.permute.xlu0 %4116
      %4118 = vrot.lane.b32.xlu0 %v1551, 108
      %v4119 = vpop.permute.xlu0 %4118
      %4120 = vrot.lane.b32.xlu0 %v1554, 108
      %v4121 = vpop.permute.xlu0 %4120
      %4122 = vrot.lane.b32.xlu0 %v1557, 108
      %v4123 = vpop.permute.xlu0 %4122
      %4124 = vrot.lane.b32.xlu0 %v1560, 108
      %v4125 = vpop.permute.xlu0 %4124
      %4126 = vrot.lane.b32.xlu0 %v1563, 108
      %v4127 = vpop.permute.xlu0 %4126
      %4128 = vrot.lane.b32.xlu0 %v1566, 108
      %v4129 = vpop.permute.xlu0 %4128
      %4130 = vrot.lane.b32.xlu0 %v1569, 108
      %v4131 = vpop.permute.xlu0 %4130
      %4132 = vrot.lane.b32.xlu0 %v1572, 108
      %v4133 = vpop.permute.xlu0 %4132
      %4134 = vrot.lane.b32.xlu0 %v1575, 108
      %v4135 = vpop.permute.xlu0 %4134
      %vm4168 = vcmask 97280
      %v4169 = vsel %vm4168, %v3945, %v4073
      %v4170 = vsel %vm4168, %v3948, %v4075
      %v4171 = vsel %vm4168, %v3951, %v4077
      %v4172 = vsel %vm4168, %v3954, %v4079
      %v4173 = vsel %vm4168, %v3957, %v4081
      %v4174 = vsel %vm4168, %v3960, %v4083
      %v4175 = vsel %vm4168, %v3963, %v4085
      %v4176 = vsel %vm4168, %v3966, %v4087
      %v4177 = vsel %vm4168, %v3969, %v4089
      %v4178 = vsel %vm4168, %v3972, %v4091
      %v4179 = vsel %vm4168, %v3975, %v4093
      %v4180 = vsel %vm4168, %v3978, %v4095
      %v4181 = vsel %vm4168, %v3981, %v4097
      %v4182 = vsel %vm4168, %v3984, %v4099
      %v4183 = vsel %vm4168, %v3987, %v4101
      %v4184 = vsel %vm4168, %v3990, %v4103
      %v4185 = vsel %vm4168, %v3993, %v4105
      %v4186 = vsel %vm4168, %v3996, %v4107
      %v4187 = vsel %vm4168, %v3999, %v4109
      %v4188 = vsel %vm4168, %v4002, %v4111
      %v4189 = vsel %vm4168, %v4005, %v4113
      %v4190 = vsel %vm4168, %v4008, %v4115
      %v4191 = vsel %vm4168, %v4011, %v4117
      %v4192 = vsel %vm4168, %v4014, %v4119
      %v4193 = vsel %vm4168, %v4017, %v4121
      %v4194 = vsel %vm4168, %v4020, %v4123
      %v4195 = vsel %vm4168, %v4023, %v4125
      %v4196 = vsel %vm4168, %v4026, %v4127
      %v4197 = vsel %vm4168, %v4029, %v4129
      %v4198 = vsel %vm4168, %v4032, %v4131
      %v4199 = vsel %vm4168, %v4035, %v4133
      %v4200 = vsel %vm4168, %v4038, %v4135
      %v4201 = vmax.f32 %v4169, 0.0
      %v4202 = vmax.f32 %v4170, 0.0
      %v4203 = vmax.f32 %v4171, 0.0
      %v4204 = vmax.f32 %v4172, 0.0
      %v4205 = vmax.f32 %v4173, 0.0
      %v4206 = vmax.f32 %v4174, 0.0
      %v4207 = vmax.f32 %v4175, 0.0
      %v4208 = vmax.f32 %v4176, 0.0
      %v4209 = vmax.f32 %v4177, 0.0
      %v4210 = vmax.f32 %v4178, 0.0
      %v4211 = vmax.f32 %v4179, 0.0
      %v4212 = vmax.f32 %v4180, 0.0
      %v4213 = vmax.f32 %v4181, 0.0
      %v4214 = vmax.f32 %v4182, 0.0
      %v4215 = vmax.f32 %v4183, 0.0
      %v4216 = vmax.f32 %v4184, 0.0
      %v4217 = vmax.f32 %v4185, 0.0
      %v4218 = vmax.f32 %v4186, 0.0
      %v4219 = vmax.f32 %v4187, 0.0
      %v4220 = vmax.f32 %v4188, 0.0
      %v4221 = vmax.f32 %v4189, 0.0
      %v4222 = vmax.f32 %v4190, 0.0
      %v4223 = vmax.f32 %v4191, 0.0
      %v4224 = vmax.f32 %v4192, 0.0
      %v4225 = vmax.f32 %v4193, 0.0
      %v4226 = vmax.f32 %v4194, 0.0
      %v4227 = vmax.f32 %v4195, 0.0
      %v4228 = vmax.f32 %v4196, 0.0
      %v4229 = vmax.f32 %v4197, 0.0
      %v4230 = vmax.f32 %v4198, 0.0
      %v4231 = vmax.f32 %v4199, 0.0
      %v4232 = vmax.f32 %v4200, 0.0
      %v4233 = vld [vmem:[%s9] sm:$0xff]
      %v4234 = vld [vmem:[%s9 + $0x8] sm:$0xff]
      %v4235 = vld [vmem:[%s9 + $0x10] sm:$0xff]
      %v4236 = vld [vmem:[%s10] sm:$0x1]
      %v4238 = vperm.slane %v4236, 0
      %vm4240 = vcmask 195584
      %v4242 = vsel %vm4240, %v4201, 0
      %v4245 = vsel %vm4240, %v4202, 0
      %v4248 = vsel %vm4240, %v4203, 0
      %v4251 = vsel %vm4240, %v4204, 0
      %v4254 = vsel %vm4240, %v4205, 0
      %v4257 = vsel %vm4240, %v4206, 0
      %v4260 = vsel %vm4240, %v4207, 0
      %v4263 = vsel %vm4240, %v4208, 0
      %v4266 = vsel %vm4240, %v4209, 0
      %v4269 = vsel %vm4240, %v4210, 0
      %v4272 = vsel %vm4240, %v4211, 0
      %v4275 = vsel %vm4240, %v4212, 0
      %v4278 = vsel %vm4240, %v4213, 0
      %v4281 = vsel %vm4240, %v4214, 0
      %v4284 = vsel %vm4240, %v4215, 0
      %v4287 = vsel %vm4240, %v4216, 0
      %v4290 = vsel %vm4240, %v4217, 0
      %v4293 = vsel %vm4240, %v4218, 0
      %v4296 = vsel %vm4240, %v4219, 0
      %v4299 = vsel %vm4240, %v4220, 0
      %v4302 = vsel %vm4240, %v4221, 0
      %v4305 = vsel %vm4240, %v4222, 0
      %v4308 = vsel %vm4240, %v4223, 0
      %v4311 = vsel %vm4240, %v4224, 0
      %v4314 = vsel %vm4240, %v4225, 0
      %v4317 = vsel %vm4240, %v4226, 0
      %v4320 = vsel %vm4240, %v4227, 0
      %v4323 = vsel %vm4240, %v4228, 0
      %v4326 = vsel %vm4240, %v4229, 0
      %v4329 = vsel %vm4240, %v4230, 0
      %v4332 = vsel %vm4240, %v4231, 0
      %v4335 = vsel %vm4240, %v4232, 0
      %4337 = vmatpush.msra.mxu0 0.0
      %4338 = vmatpush.msra.mxu0 0.0
      %4339 = vmatpush.msra.mxu0 0.0
      %4340 = vmatpush.msra.mxu0 0.0
      %4341 = vmatpush.msra.mxu0 0.0
      %4342 = vmatpush.msra.mxu0 0.0
      %4343 = vmatpush.msra.mxu0 0.0
      %4344 = vmatpush.msra.mxu0 0.0
      %4345 = vmatpush.msra.mxu0 0.0
      %4346 = vmatpush.msra.mxu0 0.0
      %4347 = vmatpush.msra.mxu0 0.0
      %4348 = vmatpush.msra.mxu0 0.0
      %4349 = vmatpush.msra.mxu0 0.0
      %4350 = vmatpush.msra.mxu0 %v4235
      %4351 = vmatpush.msra.mxu0 %v4234
      %4352 = vmatpush.msra.mxu0 %v4233
      %4353 = vmatmul.f32.gmra.mxu0 %v4242
      %v4354 = vpop.f32.mrf.mxu0
      %v4355 = vadd.f32 %v4238, %v4354
      %4356 = vmatmul.f32.gmra.mxu0 %v4245
      %v4357 = vpop.f32.mrf.mxu0
      %v4358 = vadd.f32 %v4238, %v4357
      %4359 = vmatmul.f32.gmra.mxu0 %v4248
      %v4360 = vpop.f32.mrf.mxu0
      %v4361 = vadd.f32 %v4238, %v4360
      %4362 = vmatmul.f32.gmra.mxu0 %v4251
      %v4363 = vpop.f32.mrf.mxu0
      %v4364 = vadd.f32 %v4238, %v4363
      %4365 = vmatmul.f32.gmra.mxu0 %v4254
      %v4366 = vpop.f32.mrf.mxu0
      %v4367 = vadd.f32 %v4238, %v4366
      %4368 = vmatmul.f32.gmra.mxu0 %v4257
      %v4369 = vpop.f32.mrf.mxu0
      %v4370 = vadd.f32 %v4238, %v4369
      %4371 = vmatmul.f32.gmra.mxu0 %v4260
      %v4372 = vpop.f32.mrf.mxu0
      %v4373 = vadd.f32 %v4238, %v4372
      %4374 = vmatmul.f32.gmra.mxu0 %v4263
      %v4375 = vpop.f32.mrf.mxu0
      %v4376 = vadd.f32 %v4238, %v4375
      %4377 = vmatmul.f32.gmra.mxu0 %v4266
      %v4378 = vpop.f32.mrf.mxu0
      %v4379 = vadd.f32 %v4238, %v4378
      %4380 = vmatmul.f32.gmra.mxu0 %v4269
      %v4381 = vpop.f32.mrf.mxu0
      %v4382 = vadd.f32 %v4238, %v4381
      %4383 = vmatmul.f32.gmra.mxu0 %v4272
      %v4384 = vpop.f32.mrf.mxu0
      %v4385 = vadd.f32 %v4238, %v4384
      %4386 = vmatmul.f32.gmra.mxu0 %v4275
      %v4387 = vpop.f32.mrf.mxu0
      %v4388 = vadd.f32 %v4238, %v4387
      %4389 = vmatmul.f32.gmra.mxu0 %v4278
      %v4390 = vpop.f32.mrf.mxu0
      %v4391 = vadd.f32 %v4238, %v4390
      %4392 = vmatmul.f32.gmra.mxu0 %v4281
      %v4393 = vpop.f32.mrf.mxu0
      %v4394 = vadd.f32 %v4238, %v4393
      %4395 = vmatmul.f32.gmra.mxu0 %v4284
      %v4396 = vpop.f32.mrf.mxu0
      %v4397 = vadd.f32 %v4238, %v4396
      %4398 = vmatmul.f32.gmra.mxu0 %v4287
      %v4399 = vpop.f32.mrf.mxu0
      %v4400 = vadd.f32 %v4238, %v4399
      %4401 = vmatmul.f32.gmra.mxu0 %v4290
      %v4402 = vpop.f32.mrf.mxu0
      %v4403 = vadd.f32 %v4238, %v4402
      %4404 = vmatmul.f32.gmra.mxu0 %v4293
      %v4405 = vpop.f32.mrf.mxu0
      %v4406 = vadd.f32 %v4238, %v4405
      %4407 = vmatmul.f32.gmra.mxu0 %v4296
      %v4408 = vpop.f32.mrf.mxu0
      %v4409 = vadd.f32 %v4238, %v4408
      %4410 = vmatmul.f32.gmra.mxu0 %v4299
      %v4411 = vpop.f32.mrf.mxu0
      %v4412 = vadd.f32 %v4238, %v4411
      %4413 = vmatmul.f32.gmra.mxu0 %v4302
      %v4414 = vpop.f32.mrf.mxu0
      %v4415 = vadd.f32 %v4238, %v4414
      %4416 = vmatmul.f32.gmra.mxu0 %v4305
      %v4417 = vpop.f32.mrf.mxu0
      %v4418 = vadd.f32 %v4238, %v4417
      %4419 = vmatmul.f32.gmra.mxu0 %v4308
      %v4420 = vpop.f32.mrf.mxu0
      %v4421 = vadd.f32 %v4238, %v4420
      %4422 = vmatmul.f32.gmra.mxu0 %v4311
      %v4423 = vpop.f32.mrf.mxu0
      %v4424 = vadd.f32 %v4238, %v4423
      %4425 = vmatmul.f32.gmra.mxu0 %v4314
      %v4426 = vpop.f32.mrf.mxu0
      %v4427 = vadd.f32 %v4238, %v4426
      %4428 = vmatmul.f32.gmra.mxu0 %v4317
      %v4429 = vpop.f32.mrf.mxu0
      %v4430 = vadd.f32 %v4238, %v4429
      %4431 = vmatmul.f32.gmra.mxu0 %v4320
      %v4432 = vpop.f32.mrf.mxu0
      %v4433 = vadd.f32 %v4238, %v4432
      %4434 = vmatmul.f32.gmra.mxu0 %v4323
      %v4435 = vpop.f32.mrf.mxu0
      %v4436 = vadd.f32 %v4238, %v4435
      %4437 = vmatmul.f32.gmra.mxu0 %v4326
      %v4438 = vpop.f32.mrf.mxu0
      %v4439 = vadd.f32 %v4238, %v4438
      %4440 = vmatmul.f32.gmra.mxu0 %v4329
      %v4441 = vpop.f32.mrf.mxu0
      %v4442 = vadd.f32 %v4238, %v4441
      %4443 = vmatmul.f32.gmra.mxu0 %v4332
      %v4444 = vpop.f32.mrf.mxu0
      %v4445 = vadd.f32 %v4238, %v4444
      %4446 = vmatmul.f32.gmra.mxu0 %v4335
      %v4447 = vpop.f32.mrf.mxu0
      %v4448 = vadd.f32 %v4238, %v4447
      %4449 = vdwg.mxu0
      %v4450 = vmax.f32 %v4355, 0.0
      %v4451 = vmax.f32 %v4358, 0.0
      %v4452 = vmax.f32 %v4361, 0.0
      %v4453 = vmax.f32 %v4364, 0.0
      %v4454 = vmax.f32 %v4367, 0.0
      %v4455 = vmax.f32 %v4370, 0.0
      %v4456 = vmax.f32 %v4373, 0.0
      %v4457 = vmax.f32 %v4376, 0.0
      %v4458 = vmax.f32 %v4379, 0.0
      %v4459 = vmax.f32 %v4382, 0.0
      %v4460 = vmax.f32 %v4385, 0.0
      %v4461 = vmax.f32 %v4388, 0.0
      %v4462 = vmax.f32 %v4391, 0.0
      %v4463 = vmax.f32 %v4394, 0.0
      %v4464 = vmax.f32 %v4397, 0.0
      %v4465 = vmax.f32 %v4400, 0.0
      %v4466 = vmax.f32 %v4403, 0.0
      %v4467 = vmax.f32 %v4406, 0.0
      %v4468 = vmax.f32 %v4409, 0.0
      %v4469 = vmax.f32 %v4412, 0.0
      %v4470 = vmax.f32 %v4415, 0.0
      %v4471 = vmax.f32 %v4418, 0.0
      %v4472 = vmax.f32 %v4421, 0.0
      %v4473 = vmax.f32 %v4424, 0.0
      %v4474 = vmax.f32 %v4427, 0.0
      %v4475 = vmax.f32 %v4430, 0.0
      %v4476 = vmax.f32 %v4433, 0.0
      %v4477 = vmax.f32 %v4436, 0.0
      %v4478 = vmax.f32 %v4439, 0.0
      %v4479 = vmax.f32 %v4442, 0.0
      %v4480 = vmax.f32 %v4445, 0.0
      %v4481 = vmax.f32 %v4448, 0.0
      %v4482 = vld [vmem:[%s11] sm:$0xff]
      %v4483 = vld [vmem:[%s11 + $0x8] sm:$0xff]
      %v4484 = vld [vmem:[%s11 + $0x10] sm:$0xff]
      %v4485 = vld [vmem:[%s11 + $0x18] sm:$0xff]
      %v4486 = vld [vmem:[#allocation2] sm:$0x1]
      %v4488 = vperm.slane %v4486, 0
      %v4491 = vsel %vm587, %v4450, 0
      %v4494 = vsel %vm587, %v4451, 0
      %v4497 = vsel %vm587, %v4452, 0
      %v4500 = vsel %vm587, %v4453, 0
      %v4503 = vsel %vm587, %v4454, 0
      %v4506 = vsel %vm587, %v4455, 0
      %v4509 = vsel %vm587, %v4456, 0
      %v4512 = vsel %vm587, %v4457, 0
      %v4515 = vsel %vm587, %v4458, 0
      %v4518 = vsel %vm587, %v4459, 0
      %v4521 = vsel %vm587, %v4460, 0
      %v4524 = vsel %vm587, %v4461, 0
      %v4527 = vsel %vm587, %v4462, 0
      %v4530 = vsel %vm587, %v4463, 0
      %v4533 = vsel %vm587, %v4464, 0
      %v4536 = vsel %vm587, %v4465, 0
      %v4539 = vsel %vm587, %v4466, 0
      %v4542 = vsel %vm587, %v4467, 0
      %v4545 = vsel %vm587, %v4468, 0
      %v4548 = vsel %vm587, %v4469, 0
      %v4551 = vsel %vm587, %v4470, 0
      %v4554 = vsel %vm587, %v4471, 0
      %v4557 = vsel %vm587, %v4472, 0
      %v4560 = vsel %vm587, %v4473, 0
      %v4563 = vsel %vm587, %v4474, 0
      %v4566 = vsel %vm587, %v4475, 0
      %v4569 = vsel %vm587, %v4476, 0
      %v4572 = vsel %vm587, %v4477, 0
      %v4575 = vsel %vm587, %v4478, 0
      %v4578 = vsel %vm587, %v4479, 0
      %v4581 = vsel %vm587, %v4480, 0
      %v4584 = vsel %vm587, %v4481, 0
      %4586 = vmatpush.msra.mxu0 0.0
      %4587 = vmatpush.msra.mxu0 0.0
      %4588 = vmatpush.msra.mxu0 0.0
      %4589 = vmatpush.msra.mxu0 0.0
      %4590 = vmatpush.msra.mxu0 0.0
      %4591 = vmatpush.msra.mxu0 0.0
      %4592 = vmatpush.msra.mxu0 0.0
      %4593 = vmatpush.msra.mxu0 0.0
      %4594 = vmatpush.msra.mxu0 0.0
      %4595 = vmatpush.msra.mxu0 0.0
      %4596 = vmatpush.msra.mxu0 0.0
      %4597 = vmatpush.msra.mxu0 0.0
      %4598 = vmatpush.msra.mxu0 %v4485
      %4599 = vmatpush.msra.mxu0 %v4484
      %4600 = vmatpush.msra.mxu0 %v4483
      %4601 = vmatpush.msra.mxu0 %v4482
      %4602 = vmatmul.f32.gmra.mxu0 %v4491
      %v4603 = vpop.f32.mrf.mxu0
      %v4604 = vadd.f32 %v4488, %v4603
      %4605 = vmatmul.f32.gmra.mxu0 %v4494
      %v4606 = vpop.f32.mrf.mxu0
      %v4607 = vadd.f32 %v4488, %v4606
      %4608 = vmatmul.f32.gmra.mxu0 %v4497
      %v4609 = vpop.f32.mrf.mxu0
      %v4610 = vadd.f32 %v4488, %v4609
      %4611 = vmatmul.f32.gmra.mxu0 %v4500
      %v4612 = vpop.f32.mrf.mxu0
      %v4613 = vadd.f32 %v4488, %v4612
      %4614 = vmatmul.f32.gmra.mxu0 %v4503
      %v4615 = vpop.f32.mrf.mxu0
      %v4616 = vadd.f32 %v4488, %v4615
      %4617 = vmatmul.f32.gmra.mxu0 %v4506
      %v4618 = vpop.f32.mrf.mxu0
      %v4619 = vadd.f32 %v4488, %v4618
      %4620 = vmatmul.f32.gmra.mxu0 %v4509
      %v4621 = vpop.f32.mrf.mxu0
      %v4622 = vadd.f32 %v4488, %v4621
      %4623 = vmatmul.f32.gmra.mxu0 %v4512
      %v4624 = vpop.f32.mrf.mxu0
      %v4625 = vadd.f32 %v4488, %v4624
      %4626 = vmatmul.f32.gmra.mxu0 %v4515
      %v4627 = vpop.f32.mrf.mxu0
      %v4628 = vadd.f32 %v4488, %v4627
      %4629 = vmatmul.f32.gmra.mxu0 %v4518
      %v4630 = vpop.f32.mrf.mxu0
      %v4631 = vadd.f32 %v4488, %v4630
      %4632 = vmatmul.f32.gmra.mxu0 %v4521
      %v4633 = vpop.f32.mrf.mxu0
      %v4634 = vadd.f32 %v4488, %v4633
      %4635 = vmatmul.f32.gmra.mxu0 %v4524
      %v4636 = vpop.f32.mrf.mxu0
      %v4637 = vadd.f32 %v4488, %v4636
      %4638 = vmatmul.f32.gmra.mxu0 %v4527
      %v4639 = vpop.f32.mrf.mxu0
      %v4640 = vadd.f32 %v4488, %v4639
      %4641 = vmatmul.f32.gmra.mxu0 %v4530
      %v4642 = vpop.f32.mrf.mxu0
      %v4643 = vadd.f32 %v4488, %v4642
      %4644 = vmatmul.f32.gmra.mxu0 %v4533
      %v4645 = vpop.f32.mrf.mxu0
      %v4646 = vadd.f32 %v4488, %v4645
      %4647 = vmatmul.f32.gmra.mxu0 %v4536
      %v4648 = vpop.f32.mrf.mxu0
      %v4649 = vadd.f32 %v4488, %v4648
      %4650 = vmatmul.f32.gmra.mxu0 %v4539
      %v4651 = vpop.f32.mrf.mxu0
      %v4652 = vadd.f32 %v4488, %v4651
      %4653 = vmatmul.f32.gmra.mxu0 %v4542
      %v4654 = vpop.f32.mrf.mxu0
      %v4655 = vadd.f32 %v4488, %v4654
      %4656 = vmatmul.f32.gmra.mxu0 %v4545
      %v4657 = vpop.f32.mrf.mxu0
      %v4658 = vadd.f32 %v4488, %v4657
      %4659 = vmatmul.f32.gmra.mxu0 %v4548
      %v4660 = vpop.f32.mrf.mxu0
      %v4661 = vadd.f32 %v4488, %v4660
      %4662 = vmatmul.f32.gmra.mxu0 %v4551
      %v4663 = vpop.f32.mrf.mxu0
      %v4664 = vadd.f32 %v4488, %v4663
      %4665 = vmatmul.f32.gmra.mxu0 %v4554
      %v4666 = vpop.f32.mrf.mxu0
      %v4667 = vadd.f32 %v4488, %v4666
      %4668 = vmatmul.f32.gmra.mxu0 %v4557
      %v4669 = vpop.f32.mrf.mxu0
      %v4670 = vadd.f32 %v4488, %v4669
      %4671 = vmatmul.f32.gmra.mxu0 %v4560
      %v4672 = vpop.f32.mrf.mxu0
      %v4673 = vadd.f32 %v4488, %v4672
      %4674 = vmatmul.f32.gmra.mxu0 %v4563
      %v4675 = vpop.f32.mrf.mxu0
      %v4676 = vadd.f32 %v4488, %v4675
      %4677 = vmatmul.f32.gmra.mxu0 %v4566
      %v4678 = vpop.f32.mrf.mxu0
      %v4679 = vadd.f32 %v4488, %v4678
      %4680 = vmatmul.f32.gmra.mxu0 %v4569
      %v4681 = vpop.f32.mrf.mxu0
      %v4682 = vadd.f32 %v4488, %v4681
      %4683 = vmatmul.f32.gmra.mxu0 %v4572
      %v4684 = vpop.f32.mrf.mxu0
      %v4685 = vadd.f32 %v4488, %v4684
      %4686 = vmatmul.f32.gmra.mxu0 %v4575
      %v4687 = vpop.f32.mrf.mxu0
      %v4688 = vadd.f32 %v4488, %v4687
      %4689 = vmatmul.f32.gmra.mxu0 %v4578
      %v4690 = vpop.f32.mrf.mxu0
      %v4691 = vadd.f32 %v4488, %v4690
      %4692 = vmatmul.f32.gmra.mxu0 %v4581
      %v4693 = vpop.f32.mrf.mxu0
      %v4694 = vadd.f32 %v4488, %v4693
      %4695 = vmatmul.f32.gmra.mxu0 %v4584
      %v4696 = vpop.f32.mrf.mxu0
      %v4697 = vadd.f32 %v4488, %v4696
      %4698 = vdwg.mxu0
      %4731 = vrot.lane.b32.xlu0 %v4604, 12
      %v4732 = vpop.permute.xlu0 %4731
      %4733 = vrot.lane.b32.xlu0 %v4607, 12
      %v4734 = vpop.permute.xlu0 %4733
      %4735 = vrot.lane.b32.xlu0 %v4610, 12
      %v4736 = vpop.permute.xlu0 %4735
      %4737 = vrot.lane.b32.xlu0 %v4613, 12
      %v4738 = vpop.permute.xlu0 %4737
      %4739 = vrot.lane.b32.xlu0 %v4616, 12
      %v4740 = vpop.permute.xlu0 %4739
      %4741 = vrot.lane.b32.xlu0 %v4619, 12
      %v4742 = vpop.permute.xlu0 %4741
      %4743 = vrot.lane.b32.xlu0 %v4622, 12
      %v4744 = vpop.permute.xlu0 %4743
      %4745 = vrot.lane.b32.xlu0 %v4625, 12
      %v4746 = vpop.permute.xlu0 %4745
      %4747 = vrot.lane.b32.xlu0 %v4628, 12
      %v4748 = vpop.permute.xlu0 %4747
      %4749 = vrot.lane.b32.xlu0 %v4631, 12
      %v4750 = vpop.permute.xlu0 %4749
      %4751 = vrot.lane.b32.xlu0 %v4634, 12
      %v4752 = vpop.permute.xlu0 %4751
      %4753 = vrot.lane.b32.xlu0 %v4637, 12
      %v4754 = vpop.permute.xlu0 %4753
      %4755 = vrot.lane.b32.xlu0 %v4640, 12
      %v4756 = vpop.permute.xlu0 %4755
      %4757 = vrot.lane.b32.xlu0 %v4643, 12
      %v4758 = vpop.permute.xlu0 %4757
      %4759 = vrot.lane.b32.xlu0 %v4646, 12
      %v4760 = vpop.permute.xlu0 %4759
      %4761 = vrot.lane.b32.xlu0 %v4649, 12
      %v4762 = vpop.permute.xlu0 %4761
      %4763 = vrot.lane.b32.xlu0 %v4652, 12
      %v4764 = vpop.permute.xlu0 %4763
      %4765 = vrot.lane.b32.xlu0 %v4655, 12
      %v4766 = vpop.permute.xlu0 %4765
      %4767 = vrot.lane.b32.xlu0 %v4658, 12
      %v4768 = vpop.permute.xlu0 %4767
      %4769 = vrot.lane.b32.xlu0 %v4661, 12
      %v4770 = vpop.permute.xlu0 %4769
      %4771 = vrot.lane.b32.xlu0 %v4664, 12
      %v4772 = vpop.permute.xlu0 %4771
      %4773 = vrot.lane.b32.xlu0 %v4667, 12
      %v4774 = vpop.permute.xlu0 %4773
      %4775 = vrot.lane.b32.xlu0 %v4670, 12
      %v4776 = vpop.permute.xlu0 %4775
      %4777 = vrot.lane.b32.xlu0 %v4673, 12
      %v4778 = vpop.permute.xlu0 %4777
      %4779 = vrot.lane.b32.xlu0 %v4676, 12
      %v4780 = vpop.permute.xlu0 %4779
      %4781 = vrot.lane.b32.xlu0 %v4679, 12
      %v4782 = vpop.permute.xlu0 %4781
      %4783 = vrot.lane.b32.xlu0 %v4682, 12
      %v4784 = vpop.permute.xlu0 %4783
      %4785 = vrot.lane.b32.xlu0 %v4685, 12
      %v4786 = vpop.permute.xlu0 %4785
      %4787 = vrot.lane.b32.xlu0 %v4688, 12
      %v4788 = vpop.permute.xlu0 %4787
      %4789 = vrot.lane.b32.xlu0 %v4691, 12
      %v4790 = vpop.permute.xlu0 %4789
      %4791 = vrot.lane.b32.xlu0 %v4694, 12
      %v4792 = vpop.permute.xlu0 %4791
      %4793 = vrot.lane.b32.xlu0 %v4697, 12
      %v4794 = vpop.permute.xlu0 %4793
      %v4827 = vsel %vm4168, %v3945, %v4732
      %v4828 = vsel %vm4168, %v3948, %v4734
      %v4829 = vsel %vm4168, %v3951, %v4736
      %v4830 = vsel %vm4168, %v3954, %v4738
      %v4831 = vsel %vm4168, %v3957, %v4740
      %v4832 = vsel %vm4168, %v3960, %v4742
      %v4833 = vsel %vm4168, %v3963, %v4744
      %v4834 = vsel %vm4168, %v3966, %v4746
      %v4835 = vsel %vm4168, %v3969, %v4748
      %v4836 = vsel %vm4168, %v3972, %v4750
      %v4837 = vsel %vm4168, %v3975, %v4752
      %v4838 = vsel %vm4168, %v3978, %v4754
      %v4839 = vsel %vm4168, %v3981, %v4756
      %v4840 = vsel %vm4168, %v3984, %v4758
      %v4841 = vsel %vm4168, %v3987, %v4760
      %v4842 = vsel %vm4168, %v3990, %v4762
      %v4843 = vsel %vm4168, %v3993, %v4764
      %v4844 = vsel %vm4168, %v3996, %v4766
      %v4845 = vsel %vm4168, %v3999, %v4768
      %v4846 = vsel %vm4168, %v4002, %v4770
      %v4847 = vsel %vm4168, %v4005, %v4772
      %v4848 = vsel %vm4168, %v4008, %v4774
      %v4849 = vsel %vm4168, %v4011, %v4776
      %v4850 = vsel %vm4168, %v4014, %v4778
      %v4851 = vsel %vm4168, %v4017, %v4780
      %v4852 = vsel %vm4168, %v4020, %v4782
      %v4853 = vsel %vm4168, %v4023, %v4784
      %v4854 = vsel %vm4168, %v4026, %v4786
      %v4855 = vsel %vm4168, %v4029, %v4788
      %v4856 = vsel %vm4168, %v4032, %v4790
      %v4857 = vsel %vm4168, %v4035, %v4792
      %v4858 = vsel %vm4168, %v4038, %v4794
      %vm4859 = vcmask 105472
      %v4860 = vsel %vm4859, %v4827, 0.0
      %v4861 = vsel %vm4859, %v4828, 0.0
      %v4862 = vsel %vm4859, %v4829, 0.0
      %v4863 = vsel %vm4859, %v4830, 0.0
      %v4864 = vsel %vm4859, %v4831, 0.0
      %v4865 = vsel %vm4859, %v4832, 0.0
      %v4866 = vsel %vm4859, %v4833, 0.0
      %v4867 = vsel %vm4859, %v4834, 0.0
      %v4868 = vsel %vm4859, %v4835, 0.0
      %v4869 = vsel %vm4859, %v4836, 0.0
      %v4870 = vsel %vm4859, %v4837, 0.0
      %v4871 = vsel %vm4859, %v4838, 0.0
      %v4872 = vsel %vm4859, %v4839, 0.0
      %v4873 = vsel %vm4859, %v4840, 0.0
      %v4874 = vsel %vm4859, %v4841, 0.0
      %v4875 = vsel %vm4859, %v4842, 0.0
      %v4876 = vsel %vm4859, %v4843, 0.0
      %v4877 = vsel %vm4859, %v4844, 0.0
      %v4878 = vsel %vm4859, %v4845, 0.0
      %v4879 = vsel %vm4859, %v4846, 0.0
      %v4880 = vsel %vm4859, %v4847, 0.0
      %v4881 = vsel %vm4859, %v4848, 0.0
      %v4882 = vsel %vm4859, %v4849, 0.0
      %v4883 = vsel %vm4859, %v4850, 0.0
      %v4884 = vsel %vm4859, %v4851, 0.0
      %v4885 = vsel %vm4859, %v4852, 0.0
      %v4886 = vsel %vm4859, %v4853, 0.0
      %v4887 = vsel %vm4859, %v4854, 0.0
      %v4888 = vsel %vm4859, %v4855, 0.0
      %v4889 = vsel %vm4859, %v4856, 0.0
      %v4890 = vsel %vm4859, %v4857, 0.0
      %v4891 = vsel %vm4859, %v4858, 0.0
      %vm4892 = vcmask 130048
      %4893 = vst.msk [vmem:[%s501] sm:$0xff] %vm4892, %v4860
      %4894 = vst.msk [vmem:[%s501 + $0x8] sm:$0xff] %vm4892, %v4861
      %4895 = vst.msk [vmem:[%s501 + $0x10] sm:$0xff] %vm4892, %v4862
      %4896 = vst.msk [vmem:[%s501 + $0x18] sm:$0xff] %vm4892, %v4863
      %4897 = vst.msk [vmem:[%s501 + $0x20] sm:$0xff] %vm4892, %v4864
      %4898 = vst.msk [vmem:[%s501 + $0x28] sm:$0xff] %vm4892, %v4865
      %4899 = vst.msk [vmem:[%s501 + $0x30] sm:$0xff] %vm4892, %v4866
      %4900 = vst.msk [vmem:[%s501 + $0x38] sm:$0xff] %vm4892, %v4867
      %4901 = vst.msk [vmem:[%s501 + $0x40] sm:$0xff] %vm4892, %v4868
      %4902 = vst.msk [vmem:[%s501 + $0x48] sm:$0xff] %vm4892, %v4869
      %4903 = vst.msk [vmem:[%s501 + $0x50] sm:$0xff] %vm4892, %v4870
      %4904 = vst.msk [vmem:[%s501 + $0x58] sm:$0xff] %vm4892, %v4871
      %4905 = vst.msk [vmem:[%s501 + $0x60] sm:$0xff] %vm4892, %v4872
      %4906 = vst.msk [vmem:[%s501 + $0x68] sm:$0xff] %vm4892, %v4873
      %4907 = vst.msk [vmem:[%s501 + $0x70] sm:$0xff] %vm4892, %v4874
      %4908 = vst.msk [vmem:[%s501 + $0x78] sm:$0xff] %vm4892, %v4875
      %4909 = vst.msk [vmem:[%s501 + $0x80] sm:$0xff] %vm4892, %v4876
      %4910 = vst.msk [vmem:[%s501 + $0x88] sm:$0xff] %vm4892, %v4877
      %4911 = vst.msk [vmem:[%s501 + $0x90] sm:$0xff] %vm4892, %v4878
      %4912 = vst.msk [vmem:[%s501 + $0x98] sm:$0xff] %vm4892, %v4879
      %4913 = vst.msk [vmem:[%s501 + $0xa0] sm:$0xff] %vm4892, %v4880
      %4914 = vst.msk [vmem:[%s501 + $0xa8] sm:$0xff] %vm4892, %v4881
      %4915 = vst.msk [vmem:[%s501 + $0xb0] sm:$0xff] %vm4892, %v4882
      %4916 = vst.msk [vmem:[%s501 + $0xb8] sm:$0xff] %vm4892, %v4883
      %4917 = vst.msk [vmem:[%s501 + $0xc0] sm:$0xff] %vm4892, %v4884
      %4918 = vst.msk [vmem:[%s501 + $0xc8] sm:$0xff] %vm4892, %v4885
      %4919 = vst.msk [vmem:[%s501 + $0xd0] sm:$0xff] %vm4892, %v4886
      %4920 = vst.msk [vmem:[%s501 + $0xd8] sm:$0xff] %vm4892, %v4887
      %4921 = vst.msk [vmem:[%s501 + $0xe0] sm:$0xff] %vm4892, %v4888
      %4922 = vst.msk [vmem:[%s501 + $0xe8] sm:$0xff] %vm4892, %v4889
      %4923 = vst.msk [vmem:[%s501 + $0xf0] sm:$0xff] %vm4892, %v4890
      %4924 = vst.msk [vmem:[%s501 + $0xf8] sm:$0xff] %vm4892, %v4891
      %s4925 = smul.u32 32, %s28
      %p4926 = scmp.lt.s32.totalorder %s4925, 63
      %s4927 = scalar_select %p4926, %s4925, 63
      %s4928 = smul.addr %s4927, 8
      %s4929 = scalar_lea.vmem %s13, %s4928
      %s4930 = smul.u32 32, %s28
      %p4931 = scmp.lt.s32.totalorder %s4930, 63
      %s4932 = scalar_select %p4931, %s4930, 63
      %s4933 = smul.addr %s4932, 8
      %s4934 = scalar_lea.vmem %s14, %s4933
      // Predicated region
      $region73: #{triple_branch_tail_forward.5} parent=71 // pred_check
        %p4935 = pneg %p329
      $region74: #{triple_branch_tail_forward.5} parent=71 // pred_check_branch
        %4937 = sbr.rel (%p4935) target = $region76
      $region75: #{triple_branch_tail_forward.5} parent=71 // pred_region
        %s4938 = smul.u32 32, %s28
      $region76: #{triple_branch_tail_forward.5} parent=71 // pred_fallthru
        _
      // Predicated region
      $region77: #{triple_branch_tail_forward.5} parent=71 // pred_check
        %p4939 = pneg %p355
      $region78: #{triple_branch_tail_forward.5} parent=71 // pred_check_branch
        %4941 = sbr.rel (%p4939) target = $region80
      $region79: #{triple_branch_tail_forward.5} parent=71 // pred_region
        %s4942 = smul.u32 32, %s28
      $region80: #{triple_branch_tail_forward.5} parent=71 // pred_fallthru
        _
    $region72: #{triple_branch_tail_forward.5} parent=5 // pred_fallthru
      _
    %p4943 = scmp.le.s32.totalorder 2, %s23
    // Predicated region
    $region81: #{triple_branch_tail_forward.5} parent=5 // pred_check
      %p4944 = pneg %p4943
    $region82: #{triple_branch_tail_forward.5} parent=5 // pred_check_branch
      %4946 = sbr.rel (%p4944) target = $region84
    $region83: #{triple_branch_tail_forward.5} parent=5 // pred_region
      %s4947 = ssub.s32 %s23, 2
      // Predicated region
      $region85: #{triple_branch_tail_forward.5} parent=83 // pred_check
        %p4948 = pneg %p335
      $region86: #{triple_branch_tail_forward.5} parent=83 // pred_check_branch
        %4950 = sbr.rel (%p4948) target = $region88
      $region87: #{triple_branch_tail_forward.5} parent=83 // pred_region
        %s4951 = smul.u32 32, %s29
        %p4952 = scmp.lt.s32.totalorder %s4951, 63
        %s4953 = scalar_select %p4952, %s4951, 63
        %s4954 = smul.addr %s4953, 8
        %s4955 = scalar_lea.vmem %s13, %s4954
      $region88: #{triple_branch_tail_forward.5} parent=83 // pred_fallthru
        _
      // Predicated region
      $region89: #{triple_branch_tail_forward.5} parent=83 // pred_check
        %p4956 = pneg %p361
      $region90: #{triple_branch_tail_forward.5} parent=83 // pred_check_branch
        %4958 = sbr.rel (%p4956) target = $region92
      $region91: #{triple_branch_tail_forward.5} parent=83 // pred_region
        %s4959 = smul.u32 32, %s29
        %p4960 = scmp.lt.s32.totalorder %s4959, 63
        %s4961 = scalar_select %p4960, %s4959, 63
        %s4962 = smul.addr %s4961, 8
        %s4963 = scalar_lea.vmem %s14, %s4962
      $region92: #{triple_branch_tail_forward.5} parent=83 // pred_fallthru
        _
    $region84: #{triple_branch_tail_forward.5} parent=5 // pred_fallthru
      _
  $region6: #{triple_branch_tail_forward.5} parent=0 // loop_footer
    %s27 = sadd.s32 1, %s23
  $region7: #{triple_branch_tail_forward.5} parent=0 // loop_footer_branch
    %22 = sbr.rel target = $region3
  $region8: #{triple_branch_tail_forward.5} parent=0 // loop_exit
    _

</llo_original>
